<compile_context>
chip_gen: v5e
topology: v5e:2x2
jax: 0.10.0
libtpu: 0.0.40
codegen_flags: <defaults>
</compile_context>

<pallas_src>
import jax
import jax.numpy as jnp
from jax import lax
from jax.experimental import pallas as pl
from jax.experimental.pallas import tpu as pltpu

# ----------------------------- hyper-parameters ------------------------------
N_FEATURES = 1
SEQ_LEN = 8
LATENT_DIM = 20
UNITS = max(32, LATENT_DIM + 2)          # AutoNCP units -> LTC state size (=32)
WIDE = 2 * UNITS                         # packed [num | den] lane width (=64)
HIDDEN_DIM = 2 * LATENT_DIM              # decoder LSTM hidden size (=40)
ODE_UNFOLDS = 6                          # ncps LTC default
EPSILON = 1e-8                           # ncps LTC default

GATE_PAD = 128                           # each LSTM gate padded to a 128-lane group
VEC_ROWS = 10                            # packed row-vector parameter block
DEC_ROWS = UNITS + HIDDEN_DIM + 8        # 80 rows: w_ih | w_hh | [bias ; w_lin/b_lin ; pad]


def _sigmoid(x):
    """sigmoid(x) == 0.5*tanh(0.5*x) + 0.5 : single EUP push per vreg."""
    return 0.5 * jnp.tanh(0.5 * x) + 0.5


# --------------------------------- kernel ------------------------------------
def lnn_autoencoder_kernel(
    x_ref,            # (SEQ_LEN, N_FEATURES)
    mats_ref,         # (3, UNITS, WIDE): [mu|mu], [0.5*sigma|0.5*sigma], [0.5*w*erev|0.5*w]
    vecs_ref,         # (VEC_ROWS, UNITS): s_mu, s_sigma, s_w, s_erev, cm_t,
                      #    num_base, den_base, enc_ow(pad), enc_ob(pad), [inp_w, inp_b, 0...]
    dec_ref,          # (DEC_ROWS, 4*GATE_PAD): fused decoder weights
    out_ref,          # (SEQ_LEN, N_FEATURES)
    wnum_scr,         # VMEM (SEQ_LEN, UNITS)  per-step numerator bias
    wden_scr,         # VMEM (SEQ_LEN, UNITS)  per-step denominator bias
):
    f32 = jnp.float32

    # ------------------------------- prologue --------------------------------
    mu_w = mats_ref[0]                                  # (U, 2U)
    hsig_w = mats_ref[1]                                # 0.5 * sigma, duplicated
    wh_w = mats_ref[2]                                  # 0.5 * [w*erev | w]

    vecs = vecs_ref[...]                                # (VEC_ROWS, UNITS)
    s_mu, s_sigma = vecs[0:1, :], vecs[1:2, :]
    s_w, s_erev = vecs[2:3, :], vecs[3:4, :]
    cm_t = vecs[4:5, :]
    num_base, den_base = vecs[5:6, :], vecs[6:7, :]     # loop-invariant ODE bias terms
    enc_ow, enc_ob = vecs[7:8, :], vecs[8:9, :]         # zero beyond LATENT_DIM
    inp_w, inp_b = vecs[9:10, 0:1], vecs[9:10, 1:2]     # (1,1) scalars

    # Identity mask: flip the (1,U) state row into a (U,1) column with an
    # elementwise mul + lane reduce (no transpose relayout).
    rows = lax.broadcasted_iota(jnp.int32, (UNITS, UNITS), 0)
    cols = lax.broadcasted_iota(jnp.int32, (UNITS, UNITS), 1)
    eye = (rows == cols).astype(f32)

    # ---- sensory pathway, vectorized over ALL timesteps (out of the loop) ----
    inp_all = x_ref[...] * inp_w + inp_b                               # (T, 1)
    sens_all = s_w * _sigmoid(s_sigma * (inp_all - s_mu))              # (T, U)
    wnum_scr[...] = num_base + sens_all * s_erev                       # full per-step num bias
    wden_scr[...] = den_base + sens_all                                # full per-step den bias

    # --------------------- Encoder: LTC recurrence over time -----------------
    def enc_step(t, v):
        num_c = wnum_scr[pl.ds(t, 1), :]                               # (1, U)
        den_c = wden_scr[pl.ds(t, 1), :]                               # (1, U)

        def ode(_, v_pre):                                             # v_pre: (1, U)
            v_col = jnp.sum(eye * v_pre, axis=1, keepdims=True)        # (U, 1)
            # Fused [num|den] reduction: one tanh + one mul + ONE sublane reduce.
            tnh = jnp.tanh(hsig_w * (v_col - mu_w))                    # (U, 2U)
            red = jnp.sum(wh_w * tnh, axis=0, keepdims=True)           # (1, 2U)
            num = cm_t * v_pre + num_c + red[:, 0:UNITS]
            den = den_c + red[:, UNITS:WIDE]
            # EUP approx reciprocal + one Newton step -> rel err ~1e-7, safe
            # within the 1e-3 tolerance even compounded over 48 serial steps.
            inv = pl.reciprocal(den, approx=True)
            inv = inv * (2.0 - den * inv)
            return num * inv

        return lax.fori_loop(0, ODE_UNFOLDS, ode, v, unroll=True)

    v0 = jnp.zeros((1, UNITS), dtype=f32)
    v_last = lax.fori_loop(0, SEQ_LEN, enc_step, v0, unroll=True)

    # Output mapping (motor neurons * w + b); enc_ow/enc_ob are zero-padded to
    # UNITS lanes, so lanes >= LATENT_DIM come out exactly 0.
    encoded = v_last * enc_ow + enc_ob                                 # (1, U)

    # ---------------- Decoder: LSTM over the repeated latent vector ----------
    w_ih = dec_ref[0:UNITS, :]                                         # (U, 512)
    w_hh = dec_ref[UNITS:UNITS + HIDDEN_DIM, :]                        # (H, 512)
    tail = dec_ref[UNITS + HIDDEN_DIM:UNITS + HIDDEN_DIM + 8, :]       # (8, 512)
    b_g = tail[0:1, :]                                                 # (1, 512)
    w_lin = tail[1:2, 0:HIDDEN_DIM]                                    # (1, H)
    b_lin = tail[1:2, HIDDEN_DIM:HIDDEN_DIM + 1]                       # (1, 1)

    # The LSTM sees the same `encoded` row every timestep -> the input->gate
    # contribution is loop invariant. All four gates fused into one 512-lane
    # matmul; each gate occupies its own vreg-aligned 128-lane group (i,f,g,o).
    gx = jnp.dot(encoded, w_ih, preferred_element_type=f32) + b_g      # (1, 512)

    def lstm_step(t, carry):
        h, c = carry
        gates = gx + jnp.dot(h, w_hh, preferred_element_type=f32)      # (1, 512)
        gi = gates[:, 0 * GATE_PAD:0 * GATE_PAD + HIDDEN_DIM]
        gf = gates[:, 1 * GATE_PAD:1 * GATE_PAD + HIDDEN_DIM]
        gg = gates[:, 2 * GATE_PAD:2 * GATE_PAD + HIDDEN_DIM]
        go = gates[:, 3 * GATE_PAD:3 * GATE_PAD + HIDDEN_DIM]
        i = _sigmoid(gi)
        f = _sigmoid(gf)
        g = jnp.tanh(gg)
        o = _sigmoid(go)
        c_new = f * c + i * g
        h_new = o * jnp.tanh(c_new)
        # Final Linear(HIDDEN_DIM -> 1) fused into the step; the lane reduce and
        # the 1-element store are off the h->h dependency so they hide under the
        # next step's matmul.
        out_ref[pl.ds(t, 1), :] = (
            jnp.sum(h_new * w_lin, axis=1, keepdims=True) + b_lin)
        return (h_new, c_new)

    h0 = jnp.zeros((1, HIDDEN_DIM), dtype=f32)
    c0 = jnp.zeros((1, HIDDEN_DIM), dtype=f32)
    lax.fori_loop(0, SEQ_LEN, lstm_step, (h0, c0), unroll=True)


# ------------------------------ wrapper / glue --------------------------------
@jax.jit
def lnn_autoencoder(x, ltc_mats, ltc_vecs, dec_pack):
    return pl.pallas_call(
        lnn_autoencoder_kernel,
        out_shape=jax.ShapeDtypeStruct((SEQ_LEN, N_FEATURES), jnp.float32),
        in_specs=[pl.BlockSpec(memory_space=pltpu.MemorySpace.VMEM)] * 4,
        out_specs=pl.BlockSpec(memory_space=pltpu.MemorySpace.VMEM),
        scratch_shapes=[
            pltpu.VMEM((SEQ_LEN, UNITS), jnp.float32),        # per-step num bias
            pltpu.VMEM((SEQ_LEN, UNITS), jnp.float32),        # per-step den bias
        ],
        cost_estimate=pl.CostEstimate(
            flops=1_000_000, transcendentals=40_000, bytes_accessed=200_000),
    )(x, ltc_mats, ltc_vecs, dec_pack)


def pack_params(p):
    """Pack the 20 logical parameters into 3 fused kernel inputs (fewer DMAs).

    Host-side algebra folded into the packing (exact reformulations):
      sigmoid(x) = 0.5*tanh(0.5*x) + 0.5
      => sum(w*erev*sigmoid) = 0.5*sum(w*erev) + sum(0.5*w*erev * tanh(0.5*sigma*(v-mu)))
      The constant 0.5*sum(...) terms move into num_base/den_base; the 0.5 scales
      move into the packed sigma / w matrices.
    """
    f32 = jnp.float32
    w_eff = p["w"]                                 # softplus(w) * adjacency (already applied)
    erev = p["erev"]

    # (3, U, 2U): [mu|mu], [0.5*sigma|0.5*sigma], [0.5*w*erev | 0.5*w]
    mu_wide = jnp.concatenate([p["mu"], p["mu"]], axis=1)
    hs_wide = 0.5 * jnp.concatenate([p["sigma"], p["sigma"]], axis=1)
    wh_wide = 0.5 * jnp.concatenate([w_eff * erev, w_eff], axis=1)
    mats = jnp.stack([mu_wide, hs_wide, wh_wide], axis=0).astype(f32)

    # Loop-invariant ODE bias terms (include the tanh-decomposition constants).
    num_base = p["gleak"] * p["vleak"] + 0.5 * jnp.sum(w_eff * erev, axis=0, keepdims=True)
    den_base = p["cm_t"] + p["gleak"] + EPSILON + 0.5 * jnp.sum(w_eff, axis=0, keepdims=True)

    # (VEC_ROWS, U): all row-vector parameters.
    vecs = jnp.zeros((VEC_ROWS, UNITS), f32)
    vecs = vecs.at[0].set(p["s_mu"][0])
    vecs = vecs.at[1].set(p["s_sigma"][0])
    vecs = vecs.at[2].set(p["s_w"][0])
    vecs = vecs.at[3].set(p["s_erev"][0])
    vecs = vecs.at[4].set(p["cm_t"][0])
    vecs = vecs.at[5].set(num_base[0])
    vecs = vecs.at[6].set(den_base[0])
    vecs = vecs.at[7, :LATENT_DIM].set(p["enc_ow"][0])
    vecs = vecs.at[8, :LATENT_DIM].set(p["enc_ob"][0])
    vecs = vecs.at[9, 0].set(p["inp_w"][0, 0])
    vecs = vecs.at[9, 1].set(p["inp_b"][0, 0])

    # (DEC_ROWS, 512): fused decoder weights, gates i,f,g,o each padded to 128 lanes.
    dec = jnp.zeros((DEC_ROWS, 4 * GATE_PAD), f32)
    for g in range(4):
        c0 = g * GATE_PAD
        dec = dec.at[0:LATENT_DIM, c0:c0 + HIDDEN_DIM].set(p["w_ih"][g])              # (L, H)
        dec = dec.at[UNITS:UNITS + HIDDEN_DIM, c0:c0 + HIDDEN_DIM].set(p["w_hh"][g])  # (H, H)
        dec = dec.at[UNITS + HIDDEN_DIM, c0:c0 + HIDDEN_DIM].set(p["b_lstm"][g, 0])   # (H,)
    dec = dec.at[UNITS + HIDDEN_DIM + 1, 0:HIDDEN_DIM].set(p["w_lin"][:, 0])
    dec = dec.at[UNITS + HIDDEN_DIM + 1, HIDDEN_DIM].set(p["b_lin"][0, 0])
    return mats, vecs, dec


def init_params(key):
    """Deterministic synthetic parameters with the shapes of the PyTorch module."""
    U, F, L, H = UNITS, N_FEATURES, LATENT_DIM, HIDDEN_DIM
    ks = jax.random.split(key, 20)
    u = lambda k, shape, lo, hi: jax.random.uniform(k, shape, jnp.float32, lo, hi)

    # --- LTC cell parameters (ncps-style init ranges) ---
    gleak = u(ks[0], (U,), 0.001, 1.0)
    vleak = u(ks[1], (U,), -0.2, 0.2)
    cm = u(ks[2], (U,), 0.4, 0.6)
    sigma = u(ks[3], (U, U), 3.0, 8.0)
    mu = u(ks[4], (U, U), 0.3, 0.8)
    w = u(ks[5], (U, U), 0.001, 1.0)
    s_sigma = u(ks[6], (F, U), 3.0, 8.0)
    s_mu = u(ks[7], (F, U), 0.3, 0.8)
    s_w = u(ks[8], (F, U), 0.001, 1.0)

    # TODO(synk): AutoNCP structured wiring not reproduced exactly; use a
    # deterministic synthetic adjacency (Bernoulli mask, +/-1 polarity) instead.
    adj_mask = jax.random.bernoulli(ks[9], 0.6, (U, U)).astype(jnp.float32)
    adj_sign = jnp.where(jax.random.bernoulli(ks[10], 0.5, (U, U)), 1.0, -1.0).astype(jnp.float32)
    erev = adj_sign * adj_mask
    s_mask = jnp.ones((F, U), jnp.float32)
    s_sign = jnp.where(jax.random.bernoulli(ks[11], 0.5, (F, U)), 1.0, -1.0).astype(jnp.float32)
    s_erev = s_sign * s_mask

    softplus = jax.nn.softplus  # ncps LTC default implicit_param_constraints=True
    params = dict(
        inp_w=jnp.ones((1, F), jnp.float32),              # ncps init: input_w=1
        inp_b=jnp.zeros((1, F), jnp.float32),             # ncps init: input_b=0
        s_mu=s_mu, s_sigma=s_sigma,
        s_w=softplus(s_w) * s_mask,
        s_erev=s_erev,
        mu=mu, sigma=sigma,
        w=softplus(w) * adj_mask,
        erev=erev,
        gleak=softplus(gleak).reshape(1, U),
        vleak=vleak.reshape(1, U),
        cm_t=(softplus(cm) * ODE_UNFOLDS).reshape(1, U),  # elapsed_time = 1.0
        enc_ow=jnp.ones((1, L), jnp.float32),             # ncps init: output_w=1
        enc_ob=jnp.zeros((1, L), jnp.float32),            # ncps init: output_b=0
    )

    # --- decoder LSTM(L -> H), PyTorch default init U(-1/sqrt(H), 1/sqrt(H)) ---
    stdv = 1.0 / float(H) ** 0.5
    w_ih = u(ks[12], (4 * H, L), -stdv, stdv)
    w_hh = u(ks[13], (4 * H, H), -stdv, stdv)
    b_ih = u(ks[14], (4 * H,), -stdv, stdv)
    b_hh = u(ks[15], (4 * H,), -stdv, stdv)
    params["w_ih"] = jnp.transpose(w_ih.reshape(4, H, L), (0, 2, 1))   # (4, L, H)
    params["w_hh"] = jnp.transpose(w_hh.reshape(4, H, H), (0, 2, 1))   # (4, H, H)
    params["b_lstm"] = (b_ih + b_hh).reshape(4, 1, H)

    # --- output Linear(H -> F) ---
    w_lin = u(ks[16], (F, H), -stdv, stdv)
    b_lin = u(ks[17], (F,), -stdv, stdv)
    params["w_lin"] = jnp.transpose(w_lin)                             # (H, F)
    params["b_lin"] = b_lin.reshape(1, F)
    return params


def reference_forward(x, p):
    """Pure-JAX mirror of the PyTorch forward (for correctness check)."""
    v = jnp.zeros((1, UNITS), jnp.float32)
    for t in range(SEQ_LEN):
        inp = x[t:t + 1, :] * p["inp_w"] + p["inp_b"]
        sens_act = p["s_w"] * jax.nn.sigmoid(p["s_sigma"] * (inp - p["s_mu"]))
        w_num_s = jnp.sum(sens_act * p["s_erev"], axis=0, keepdims=True)
        w_den_s = jnp.sum(sens_act, axis=0, keepdims=True)
        for _ in range(ODE_UNFOLDS):
            w_act = p["w"] * jax.nn.sigmoid(p["sigma"] * (v.T - p["mu"]))
            w_num = jnp.sum(w_act * p["erev"], axis=0, keepdims=True) + w_num_s
            w_den = jnp.sum(w_act, axis=0, keepdims=True) + w_den_s
            num = p["cm_t"] * v + p["gleak"] * p["vleak"] + w_num
            den = p["cm_t"] + p["gleak"] + w_den
            v = num / (den + EPSILON)
    encoded = v[:, :LATENT_DIM] * p["enc_ow"] + p["enc_ob"]

    h = jnp.zeros((1, HIDDEN_DIM), jnp.float32)
    c = jnp.zeros((1, HIDDEN_DIM), jnp.float32)
    hs = []
    for _ in range(SEQ_LEN):
        gates = [encoded @ p["w_ih"][k] + p["b_lstm"][k] + h @ p["w_hh"][k] for k in range(4)]
        i = jax.nn.sigmoid(gates[0]); f = jax.nn.sigmoid(gates[1])
        g = jnp.tanh(gates[2]); o = jax.nn.sigmoid(gates[3])
        c = f * c + i * g
        h = o * jnp.tanh(c)
        hs.append(h)
    H_all = jnp.concatenate(hs, axis=0)
    return H_all @ p["w_lin"] + p["b_lin"]


if __name__ == "__main__":
    assert N_FEATURES == 1, "kernel (like the PyTorch module) assumes n_features == 1"
    key = jax.random.PRNGKey(0)
    pkey, xkey = jax.random.split(key)
    params = init_params(pkey)
    x = jax.random.normal(xkey, (SEQ_LEN, N_FEATURES), jnp.float32)

    ltc_mats, ltc_vecs, dec_pack = pack_params(params)   # pack once, reuse every call

    out = lnn_autoencoder(x, ltc_mats, ltc_vecs, dec_pack)
    out = jax.block_until_ready(out)
    assert out.shape == (SEQ_LEN, N_FEATURES)

    ref = reference_forward(x, params)
    err = float(jnp.max(jnp.abs(out - ref)))
    if not bool(jnp.allclose(out, ref, atol=1e-3, rtol=1e-3)):
        raise SystemExit(f"mismatch vs reference: max abs err = {err:e}")
    print("KERNEL_OK")
</pallas_src>

<mosaic_0001>
module attributes {stable_mosaic.version = 11 : i64} {
  func.func @lnn_autoencoder_kernel(%arg0: memref<8x1xf32, #tpu.memory_space<vmem>>, %arg1: memref<3x32x64xf32, #tpu.memory_space<vmem>>, %arg2: memref<10x32xf32, #tpu.memory_space<vmem>>, %arg3: memref<80x512xf32, #tpu.memory_space<vmem>>, %arg4: memref<8x1xf32, #tpu.memory_space<vmem>>, %arg5: memref<8x32xf32, #tpu.memory_space<vmem>>, %arg6: memref<8x32xf32, #tpu.memory_space<vmem>>) attributes {dimension_semantics = [], scalar_prefetch = 0 : i64, scratch_operands = 2 : i64, tpu.core_type = #tpu.core_type<tc>} {
    %c0 = arith.constant 0 : index
    %c0_0 = arith.constant 0 : index
    %c0_1 = arith.constant 0 : index
    %0 = vector.load %arg1[%c0, %c0_0, %c0_1] : memref<3x32x64xf32, #tpu.memory_space<vmem>>, vector<1x32x64xf32>
    %1 = vector.shape_cast %0 : vector<1x32x64xf32> to vector<32x64xf32>
    %c1 = arith.constant 1 : index
    %c0_2 = arith.constant 0 : index
    %c0_3 = arith.constant 0 : index
    %2 = vector.load %arg1[%c1, %c0_2, %c0_3] : memref<3x32x64xf32, #tpu.memory_space<vmem>>, vector<1x32x64xf32>
    %3 = vector.shape_cast %2 : vector<1x32x64xf32> to vector<32x64xf32>
    %c2 = arith.constant 2 : index
    %c0_4 = arith.constant 0 : index
    %c0_5 = arith.constant 0 : index
    %4 = vector.load %arg1[%c2, %c0_4, %c0_5] : memref<3x32x64xf32, #tpu.memory_space<vmem>>, vector<1x32x64xf32>
    %5 = vector.shape_cast %4 : vector<1x32x64xf32> to vector<32x64xf32>
    %c0_6 = arith.constant 0 : index
    %c0_7 = arith.constant 0 : index
    %6 = vector.load %arg2[%c0_6, %c0_7] : memref<10x32xf32, #tpu.memory_space<vmem>>, vector<10x32xf32>
    %7 = vector.extract_strided_slice %6 {offsets = [0, 0], sizes = [1, 32], strides = [1, 1]} : vector<10x32xf32> to vector<1x32xf32>
    %8 = vector.extract_strided_slice %6 {offsets = [1, 0], sizes = [1, 32], strides = [1, 1]} : vector<10x32xf32> to vector<1x32xf32>
    %9 = vector.extract_strided_slice %6 {offsets = [2, 0], sizes = [1, 32], strides = [1, 1]} : vector<10x32xf32> to vector<1x32xf32>
    %10 = vector.extract_strided_slice %6 {offsets = [3, 0], sizes = [1, 32], strides = [1, 1]} : vector<10x32xf32> to vector<1x32xf32>
    %11 = vector.extract_strided_slice %6 {offsets = [4, 0], sizes = [1, 32], strides = [1, 1]} : vector<10x32xf32> to vector<1x32xf32>
    %12 = vector.extract_strided_slice %6 {offsets = [5, 0], sizes = [1, 32], strides = [1, 1]} : vector<10x32xf32> to vector<1x32xf32>
    %13 = vector.extract_strided_slice %6 {offsets = [6, 0], sizes = [1, 32], strides = [1, 1]} : vector<10x32xf32> to vector<1x32xf32>
    %14 = vector.extract_strided_slice %6 {offsets = [7, 0], sizes = [1, 32], strides = [1, 1]} : vector<10x32xf32> to vector<1x32xf32>
    %15 = vector.extract_strided_slice %6 {offsets = [8, 0], sizes = [1, 32], strides = [1, 1]} : vector<10x32xf32> to vector<1x32xf32>
    %16 = vector.extract_strided_slice %6 {offsets = [9, 0], sizes = [1, 1], strides = [1, 1]} : vector<10x32xf32> to vector<1x1xf32>
    %17 = vector.extract_strided_slice %6 {offsets = [9, 1], sizes = [1, 1], strides = [1, 1]} : vector<10x32xf32> to vector<1x1xf32>
    %18 = tpu.iota {dimensions = array<i32: 0>} : vector<32x32xi32>
    %19 = tpu.iota {dimensions = array<i32: 1>} : vector<32x32xi32>
    %20 = arith.cmpi eq, %18, %19 : vector<32x32xi32>
    %21 = arith.extui %20 : vector<32x32xi1> to vector<32x32xi32>
    %22 = arith.sitofp %21 : vector<32x32xi32> to vector<32x32xf32>
    %c0_8 = arith.constant 0 : index
    %c0_9 = arith.constant 0 : index
    %23 = vector.load %arg0[%c0_8, %c0_9] : memref<8x1xf32, #tpu.memory_space<vmem>>, vector<8x1xf32>
    %24 = vector.broadcast %16 : vector<1x1xf32> to vector<8x1xf32>
    %25 = arith.mulf %23, %24 : vector<8x1xf32>
    %26 = vector.broadcast %17 : vector<1x1xf32> to vector<8x1xf32>
    %27 = arith.addf %25, %26 : vector<8x1xf32>
    %28 = vector.broadcast %27 : vector<8x1xf32> to vector<8x32xf32>
    %29 = vector.broadcast %7 : vector<1x32xf32> to vector<8x32xf32>
    %30 = arith.subf %28, %29 : vector<8x32xf32>
    %31 = vector.broadcast %8 : vector<1x32xf32> to vector<8x32xf32>
    %32 = arith.mulf %31, %30 : vector<8x32xf32>
    %cst = arith.constant 5.000000e-01 : f32
    %33 = vector.broadcast %cst : f32 to vector<8x32xf32>
    %34 = arith.mulf %33, %32 : vector<8x32xf32>
    %35 = math.tanh %34 : vector<8x32xf32>
    %cst_10 = arith.constant 5.000000e-01 : f32
    %36 = vector.broadcast %cst_10 : f32 to vector<8x32xf32>
    %37 = arith.mulf %36, %35 : vector<8x32xf32>
    %cst_11 = arith.constant 5.000000e-01 : f32
    %38 = vector.broadcast %cst_11 : f32 to vector<8x32xf32>
    %39 = arith.addf %37, %38 : vector<8x32xf32>
    %40 = vector.broadcast %9 : vector<1x32xf32> to vector<8x32xf32>
    %41 = arith.mulf %40, %39 : vector<8x32xf32>
    %42 = vector.broadcast %10 : vector<1x32xf32> to vector<8x32xf32>
    %43 = arith.mulf %41, %42 : vector<8x32xf32>
    %44 = vector.broadcast %12 : vector<1x32xf32> to vector<8x32xf32>
    %45 = arith.addf %44, %43 : vector<8x32xf32>
    %c0_12 = arith.constant 0 : index
    %c0_13 = arith.constant 0 : index
    %46 = vector.load %arg5[%c0_12, %c0_13] : memref<8x32xf32, #tpu.memory_space<vmem>>, vector<8x32xf32>
    tpu.vector_store %arg5[%c0_12, %c0_13], %45 {strides = array<i32>} : memref<8x32xf32, #tpu.memory_space<vmem>>, vector<8x32xf32>,
    %47 = vector.broadcast %13 : vector<1x32xf32> to vector<8x32xf32>
    %48 = arith.addf %47, %41 : vector<8x32xf32>
    %c0_14 = arith.constant 0 : index
    %c0_15 = arith.constant 0 : index
    %49 = vector.load %arg6[%c0_14, %c0_15] : memref<8x32xf32, #tpu.memory_space<vmem>>, vector<8x32xf32>
    tpu.vector_store %arg6[%c0_14, %c0_15], %48 {strides = array<i32>} : memref<8x32xf32, #tpu.memory_space<vmem>>, vector<8x32xf32>,
    %cst_16 = arith.constant 0.000000e+00 : f32
    %50 = vector.broadcast %cst_16 : f32 to vector<1x32xf32>
    %c0_i32 = arith.constant 0 : i32
    %51 = arith.index_cast %c0_i32 : i32 to index
    %c0_17 = arith.constant 0 : index
    %52 = vector.load %arg5[%51, %c0_17] : memref<8x32xf32, #tpu.memory_space<vmem>>, vector<1x32xf32>
    %53 = arith.index_cast %c0_i32 : i32 to index
    %c0_18 = arith.constant 0 : index
    %54 = vector.load %arg6[%53, %c0_18] : memref<8x32xf32, #tpu.memory_space<vmem>>, vector<1x32xf32>
    %c0_i32_19 = arith.constant 0 : i32
    %55 = vector.broadcast %50 : vector<1x32xf32> to vector<32x32xf32>
    %56 = arith.mulf %22, %55 : vector<32x32xf32>
    %cst_20 = arith.constant dense<0.000000e+00> : vector<32xf32>
    %57 = vector.multi_reduction <add>, %56, %cst_20 [1] : vector<32x32xf32> to vector<32xf32>
    %58 = vector.shape_cast %57 : vector<32xf32> to vector<32x1xf32>
    %59 = vector.broadcast %58 : vector<32x1xf32> to vector<32x64xf32>
    %60 = arith.subf %59, %1 : vector<32x64xf32>
    %61 = arith.mulf %3, %60 : vector<32x64xf32>
    %62 = math.tanh %61 : vector<32x64xf32>
    %63 = arith.mulf %5, %62 : vector<32x64xf32>
    %cst_21 = arith.constant dense<0.000000e+00> : vector<64xf32>
    %64 = vector.multi_reduction <add>, %63, %cst_21 [0] : vector<32x64xf32> to vector<64xf32>
    %65 = vector.shape_cast %64 : vector<64xf32> to vector<1x64xf32>
    %66 = arith.mulf %11, %50 : vector<1x32xf32>
    %67 = arith.addf %66, %52 : vector<1x32xf32>
    %68 = vector.extract_strided_slice %65 {offsets = [0, 0], sizes = [1, 32], strides = [1, 1]} : vector<1x64xf32> to vector<1x32xf32>
    %69 = arith.addf %67, %68 : vector<1x32xf32>
    %70 = vector.extract_strided_slice %65 {offsets = [0, 32], sizes = [1, 32], strides = [1, 1]} : vector<1x64xf32> to vector<1x32xf32>
    %71 = arith.addf %54, %70 : vector<1x32xf32>
    %72 = tpu.reciprocal %71 {approx = true} : vector<1x32xf32> -> vector<1x32xf32>
    %73 = arith.mulf %71, %72 : vector<1x32xf32>
    %cst_22 = arith.constant 2.000000e+00 : f32
    %74 = vector.broadcast %cst_22 : f32 to vector<1x32xf32>
    %75 = arith.subf %74, %73 : vector<1x32xf32>
    %76 = arith.mulf %72, %75 : vector<1x32xf32>
    %77 = arith.mulf %69, %76 : vector<1x32xf32>
    %c1_i32 = arith.constant 1 : i32
    %78 = vector.broadcast %77 : vector<1x32xf32> to vector<32x32xf32>
    %79 = arith.mulf %22, %78 : vector<32x32xf32>
    %cst_23 = arith.constant dense<0.000000e+00> : vector<32xf32>
    %80 = vector.multi_reduction <add>, %79, %cst_23 [1] : vector<32x32xf32> to vector<32xf32>
    %81 = vector.shape_cast %80 : vector<32xf32> to vector<32x1xf32>
    %82 = vector.broadcast %81 : vector<32x1xf32> to vector<32x64xf32>
    %83 = arith.subf %82, %1 : vector<32x64xf32>
    %84 = arith.mulf %3, %83 : vector<32x64xf32>
    %85 = math.tanh %84 : vector<32x64xf32>
    %86 = arith.mulf %5, %85 : vector<32x64xf32>
    %cst_24 = arith.constant dense<0.000000e+00> : vector<64xf32>
    %87 = vector.multi_reduction <add>, %86, %cst_24 [0] : vector<32x64xf32> to vector<64xf32>
    %88 = vector.shape_cast %87 : vector<64xf32> to vector<1x64xf32>
    %89 = arith.mulf %11, %77 : vector<1x32xf32>
    %90 = arith.addf %89, %52 : vector<1x32xf32>
    %91 = vector.extract_strided_slice %88 {offsets = [0, 0], sizes = [1, 32], strides = [1, 1]} : vector<1x64xf32> to vector<1x32xf32>
    %92 = arith.addf %90, %91 : vector<1x32xf32>
    %93 = vector.extract_strided_slice %88 {offsets = [0, 32], sizes = [1, 32], strides = [1, 1]} : vector<1x64xf32> to vector<1x32xf32>
    %94 = arith.addf %54, %93 : vector<1x32xf32>
    %95 = tpu.reciprocal %94 {approx = true} : vector<1x32xf32> -> vector<1x32xf32>
    %96 = arith.mulf %94, %95 : vector<1x32xf32>
    %cst_25 = arith.constant 2.000000e+00 : f32
    %97 = vector.broadcast %cst_25 : f32 to vector<1x32xf32>
    %98 = arith.subf %97, %96 : vector<1x32xf32>
    %99 = arith.mulf %95, %98 : vector<1x32xf32>
    %100 = arith.mulf %92, %99 : vector<1x32xf32>
    %c2_i32 = arith.constant 2 : i32
    %101 = vector.broadcast %100 : vector<1x32xf32> to vector<32x32xf32>
    %102 = arith.mulf %22, %101 : vector<32x32xf32>
    %cst_26 = arith.constant dense<0.000000e+00> : vector<32xf32>
    %103 = vector.multi_reduction <add>, %102, %cst_26 [1] : vector<32x32xf32> to vector<32xf32>
    %104 = vector.shape_cast %103 : vector<32xf32> to vector<32x1xf32>
    %105 = vector.broadcast %104 : vector<32x1xf32> to vector<32x64xf32>
    %106 = arith.subf %105, %1 : vector<32x64xf32>
    %107 = arith.mulf %3, %106 : vector<32x64xf32>
    %108 = math.tanh %107 : vector<32x64xf32>
    %109 = arith.mulf %5, %108 : vector<32x64xf32>
    %cst_27 = arith.constant dense<0.000000e+00> : vector<64xf32>
    %110 = vector.multi_reduction <add>, %109, %cst_27 [0] : vector<32x64xf32> to vector<64xf32>
    %111 = vector.shape_cast %110 : vector<64xf32> to vector<1x64xf32>
    %112 = arith.mulf %11, %100 : vector<1x32xf32>
    %113 = arith.addf %112, %52 : vector<1x32xf32>
    %114 = vector.extract_strided_slice %111 {offsets = [0, 0], sizes = [1, 32], strides = [1, 1]} : vector<1x64xf32> to vector<1x32xf32>
    %115 = arith.addf %113, %114 : vector<1x32xf32>
    %116 = vector.extract_strided_slice %111 {offsets = [0, 32], sizes = [1, 32], strides = [1, 1]} : vector<1x64xf32> to vector<1x32xf32>
    %117 = arith.addf %54, %116 : vector<1x32xf32>
    %118 = tpu.reciprocal %117 {approx = true} : vector<1x32xf32> -> vector<1x32xf32>
    %119 = arith.mulf %117, %118 : vector<1x32xf32>
    %cst_28 = arith.constant 2.000000e+00 : f32
    %120 = vector.broadcast %cst_28 : f32 to vector<1x32xf32>
    %121 = arith.subf %120, %119 : vector<1x32xf32>
    %122 = arith.mulf %118, %121 : vector<1x32xf32>
    %123 = arith.mulf %115, %122 : vector<1x32xf32>
    %c3_i32 = arith.constant 3 : i32
    %124 = vector.broadcast %123 : vector<1x32xf32> to vector<32x32xf32>
    %125 = arith.mulf %22, %124 : vector<32x32xf32>
    %cst_29 = arith.constant dense<0.000000e+00> : vector<32xf32>
    %126 = vector.multi_reduction <add>, %125, %cst_29 [1] : vector<32x32xf32> to vector<32xf32>
    %127 = vector.shape_cast %126 : vector<32xf32> to vector<32x1xf32>
    %128 = vector.broadcast %127 : vector<32x1xf32> to vector<32x64xf32>
    %129 = arith.subf %128, %1 : vector<32x64xf32>
    %130 = arith.mulf %3, %129 : vector<32x64xf32>
    %131 = math.tanh %130 : vector<32x64xf32>
    %132 = arith.mulf %5, %131 : vector<32x64xf32>
    %cst_30 = arith.constant dense<0.000000e+00> : vector<64xf32>
    %133 = vector.multi_reduction <add>, %132, %cst_30 [0] : vector<32x64xf32> to vector<64xf32>
    %134 = vector.shape_cast %133 : vector<64xf32> to vector<1x64xf32>
    %135 = arith.mulf %11, %123 : vector<1x32xf32>
    %136 = arith.addf %135, %52 : vector<1x32xf32>
    %137 = vector.extract_strided_slice %134 {offsets = [0, 0], sizes = [1, 32], strides = [1, 1]} : vector<1x64xf32> to vector<1x32xf32>
    %138 = arith.addf %136, %137 : vector<1x32xf32>
    %139 = vector.extract_strided_slice %134 {offsets = [0, 32], sizes = [1, 32], strides = [1, 1]} : vector<1x64xf32> to vector<1x32xf32>
    %140 = arith.addf %54, %139 : vector<1x32xf32>
    %141 = tpu.reciprocal %140 {approx = true} : vector<1x32xf32> -> vector<1x32xf32>
    %142 = arith.mulf %140, %141 : vector<1x32xf32>
    %cst_31 = arith.constant 2.000000e+00 : f32
    %143 = vector.broadcast %cst_31 : f32 to vector<1x32xf32>
    %144 = arith.subf %143, %142 : vector<1x32xf32>
    %145 = arith.mulf %141, %144 : vector<1x32xf32>
    %146 = arith.mulf %138, %145 : vector<1x32xf32>
    %c4_i32 = arith.constant 4 : i32
    %147 = vector.broadcast %146 : vector<1x32xf32> to vector<32x32xf32>
    %148 = arith.mulf %22, %147 : vector<32x32xf32>
    %cst_32 = arith.constant dense<0.000000e+00> : vector<32xf32>
    %149 = vector.multi_reduction <add>, %148, %cst_32 [1] : vector<32x32xf32> to vector<32xf32>
    %150 = vector.shape_cast %149 : vector<32xf32> to vector<32x1xf32>
    %151 = vector.broadcast %150 : vector<32x1xf32> to vector<32x64xf32>
    %152 = arith.subf %151, %1 : vector<32x64xf32>
    %153 = arith.mulf %3, %152 : vector<32x64xf32>
    %154 = math.tanh %153 : vector<32x64xf32>
    %155 = arith.mulf %5, %154 : vector<32x64xf32>
    %cst_33 = arith.constant dense<0.000000e+00> : vector<64xf32>
    %156 = vector.multi_reduction <add>, %155, %cst_33 [0] : vector<32x64xf32> to vector<64xf32>
    %157 = vector.shape_cast %156 : vector<64xf32> to vector<1x64xf32>
    %158 = arith.mulf %11, %146 : vector<1x32xf32>
    %159 = arith.addf %158, %52 : vector<1x32xf32>
    %160 = vector.extract_strided_slice %157 {offsets = [0, 0], sizes = [1, 32], strides = [1, 1]} : vector<1x64xf32> to vector<1x32xf32>
    %161 = arith.addf %159, %160 : vector<1x32xf32>
    %162 = vector.extract_strided_slice %157 {offsets = [0, 32], sizes = [1, 32], strides = [1, 1]} : vector<1x64xf32> to vector<1x32xf32>
    %163 = arith.addf %54, %162 : vector<1x32xf32>
    %164 = tpu.reciprocal %163 {approx = true} : vector<1x32xf32> -> vector<1x32xf32>
    %165 = arith.mulf %163, %164 : vector<1x32xf32>
    %cst_34 = arith.constant 2.000000e+00 : f32
    %166 = vector.broadcast %cst_34 : f32 to vector<1x32xf32>
    %167 = arith.subf %166, %165 : vector<1x32xf32>
    %168 = arith.mulf %164, %167 : vector<1x32xf32>
    %169 = arith.mulf %161, %168 : vector<1x32xf32>
    %c5_i32 = arith.constant 5 : i32
    %170 = vector.broadcast %169 : vector<1x32xf32> to vector<32x32xf32>
    %171 = arith.mulf %22, %170 : vector<32x32xf32>
    %cst_35 = arith.constant dense<0.000000e+00> : vector<32xf32>
    %172 = vector.multi_reduction <add>, %171, %cst_35 [1] : vector<32x32xf32> to vector<32xf32>
    %173 = vector.shape_cast %172 : vector<32xf32> to vector<32x1xf32>
    %174 = vector.broadcast %173 : vector<32x1xf32> to vector<32x64xf32>
    %175 = arith.subf %174, %1 : vector<32x64xf32>
    %176 = arith.mulf %3, %175 : vector<32x64xf32>
    %177 = math.tanh %176 : vector<32x64xf32>
    %178 = arith.mulf %5, %177 : vector<32x64xf32>
    %cst_36 = arith.constant dense<0.000000e+00> : vector<64xf32>
    %179 = vector.multi_reduction <add>, %178, %cst_36 [0] : vector<32x64xf32> to vector<64xf32>
    %180 = vector.shape_cast %179 : vector<64xf32> to vector<1x64xf32>
    %181 = arith.mulf %11, %169 : vector<1x32xf32>
    %182 = arith.addf %181, %52 : vector<1x32xf32>
    %183 = vector.extract_strided_slice %180 {offsets = [0, 0], sizes = [1, 32], strides = [1, 1]} : vector<1x64xf32> to vector<1x32xf32>
    %184 = arith.addf %182, %183 : vector<1x32xf32>
    %185 = vector.extract_strided_slice %180 {offsets = [0, 32], sizes = [1, 32], strides = [1, 1]} : vector<1x64xf32> to vector<1x32xf32>
    %186 = arith.addf %54, %185 : vector<1x32xf32>
    %187 = tpu.reciprocal %186 {approx = true} : vector<1x32xf32> -> vector<1x32xf32>
    %188 = arith.mulf %186, %187 : vector<1x32xf32>
    %cst_37 = arith.constant 2.000000e+00 : f32
    %189 = vector.broadcast %cst_37 : f32 to vector<1x32xf32>
    %190 = arith.subf %189, %188 : vector<1x32xf32>
    %191 = arith.mulf %187, %190 : vector<1x32xf32>
    %192 = arith.mulf %184, %191 : vector<1x32xf32>
    %c1_i32_38 = arith.constant 1 : i32
    %193 = arith.index_cast %c1_i32_38 : i32 to index
    %c0_39 = arith.constant 0 : index
    %194 = vector.load %arg5[%193, %c0_39] : memref<8x32xf32, #tpu.memory_space<vmem>>, vector<1x32xf32>
    %195 = arith.index_cast %c1_i32_38 : i32 to index
    %c0_40 = arith.constant 0 : index
    %196 = vector.load %arg6[%195, %c0_40] : memref<8x32xf32, #tpu.memory_space<vmem>>, vector<1x32xf32>
    %c0_i32_41 = arith.constant 0 : i32
    %197 = vector.broadcast %192 : vector<1x32xf32> to vector<32x32xf32>
    %198 = arith.mulf %22, %197 : vector<32x32xf32>
    %cst_42 = arith.constant dense<0.000000e+00> : vector<32xf32>
    %199 = vector.multi_reduction <add>, %198, %cst_42 [1] : vector<32x32xf32> to vector<32xf32>
    %200 = vector.shape_cast %199 : vector<32xf32> to vector<32x1xf32>
    %201 = vector.broadcast %200 : vector<32x1xf32> to vector<32x64xf32>
    %202 = arith.subf %201, %1 : vector<32x64xf32>
    %203 = arith.mulf %3, %202 : vector<32x64xf32>
    %204 = math.tanh %203 : vector<32x64xf32>
    %205 = arith.mulf %5, %204 : vector<32x64xf32>
    %cst_43 = arith.constant dense<0.000000e+00> : vector<64xf32>
    %206 = vector.multi_reduction <add>, %205, %cst_43 [0] : vector<32x64xf32> to vector<64xf32>
    %207 = vector.shape_cast %206 : vector<64xf32> to vector<1x64xf32>
    %208 = arith.mulf %11, %192 : vector<1x32xf32>
    %209 = arith.addf %208, %194 : vector<1x32xf32>
    %210 = vector.extract_strided_slice %207 {offsets = [0, 0], sizes = [1, 32], strides = [1, 1]} : vector<1x64xf32> to vector<1x32xf32>
    %211 = arith.addf %209, %210 : vector<1x32xf32>
    %212 = vector.extract_strided_slice %207 {offsets = [0, 32], sizes = [1, 32], strides = [1, 1]} : vector<1x64xf32> to vector<1x32xf32>
    %213 = arith.addf %196, %212 : vector<1x32xf32>
    %214 = tpu.reciprocal %213 {approx = true} : vector<1x32xf32> -> vector<1x32xf32>
    %215 = arith.mulf %213, %214 : vector<1x32xf32>
    %cst_44 = arith.constant 2.000000e+00 : f32
    %216 = vector.broadcast %cst_44 : f32 to vector<1x32xf32>
    %217 = arith.subf %216, %215 : vector<1x32xf32>
    %218 = arith.mulf %214, %217 : vector<1x32xf32>
    %219 = arith.mulf %211, %218 : vector<1x32xf32>
    %c1_i32_45 = arith.constant 1 : i32
    %220 = vector.broadcast %219 : vector<1x32xf32> to vector<32x32xf32>
    %221 = arith.mulf %22, %220 : vector<32x32xf32>
    %cst_46 = arith.constant dense<0.000000e+00> : vector<32xf32>
    %222 = vector.multi_reduction <add>, %221, %cst_46 [1] : vector<32x32xf32> to vector<32xf32>
    %223 = vector.shape_cast %222 : vector<32xf32> to vector<32x1xf32>
    %224 = vector.broadcast %223 : vector<32x1xf32> to vector<32x64xf32>
    %225 = arith.subf %224, %1 : vector<32x64xf32>
    %226 = arith.mulf %3, %225 : vector<32x64xf32>
    %227 = math.tanh %226 : vector<32x64xf32>
    %228 = arith.mulf %5, %227 : vector<32x64xf32>
    %cst_47 = arith.constant dense<0.000000e+00> : vector<64xf32>
    %229 = vector.multi_reduction <add>, %228, %cst_47 [0] : vector<32x64xf32> to vector<64xf32>
    %230 = vector.shape_cast %229 : vector<64xf32> to vector<1x64xf32>
    %231 = arith.mulf %11, %219 : vector<1x32xf32>
    %232 = arith.addf %231, %194 : vector<1x32xf32>
    %233 = vector.extract_strided_slice %230 {offsets = [0, 0], sizes = [1, 32], strides = [1, 1]} : vector<1x64xf32> to vector<1x32xf32>
    %234 = arith.addf %232, %233 : vector<1x32xf32>
    %235 = vector.extract_strided_slice %230 {offsets = [0, 32], sizes = [1, 32], strides = [1, 1]} : vector<1x64xf32> to vector<1x32xf32>
    %236 = arith.addf %196, %235 : vector<1x32xf32>
    %237 = tpu.reciprocal %236 {approx = true} : vector<1x32xf32> -> vector<1x32xf32>
    %238 = arith.mulf %236, %237 : vector<1x32xf32>
    %cst_48 = arith.constant 2.000000e+00 : f32
    %239 = vector.broadcast %cst_48 : f32 to vector<1x32xf32>
    %240 = arith.subf %239, %238 : vector<1x32xf32>
    %241 = arith.mulf %237, %240 : vector<1x32xf32>
    %242 = arith.mulf %234, %241 : vector<1x32xf32>
    %c2_i32_49 = arith.constant 2 : i32
    %243 = vector.broadcast %242 : vector<1x32xf32> to vector<32x32xf32>
    %244 = arith.mulf %22, %243 : vector<32x32xf32>
    %cst_50 = arith.constant dense<0.000000e+00> : vector<32xf32>
    %245 = vector.multi_reduction <add>, %244, %cst_50 [1] : vector<32x32xf32> to vector<32xf32>
    %246 = vector.shape_cast %245 : vector<32xf32> to vector<32x1xf32>
    %247 = vector.broadcast %246 : vector<32x1xf32> to vector<32x64xf32>
    %248 = arith.subf %247, %1 : vector<32x64xf32>
    %249 = arith.mulf %3, %248 : vector<32x64xf32>
    %250 = math.tanh %249 : vector<32x64xf32>
    %251 = arith.mulf %5, %250 : vector<32x64xf32>
    %cst_51 = arith.constant dense<0.000000e+00> : vector<64xf32>
    %252 = vector.multi_reduction <add>, %251, %cst_51 [0] : vector<32x64xf32> to vector<64xf32>
    %253 = vector.shape_cast %252 : vector<64xf32> to vector<1x64xf32>
    %254 = arith.mulf %11, %242 : vector<1x32xf32>
    %255 = arith.addf %254, %194 : vector<1x32xf32>
    %256 = vector.extract_strided_slice %253 {offsets = [0, 0], sizes = [1, 32], strides = [1, 1]} : vector<1x64xf32> to vector<1x32xf32>
    %257 = arith.addf %255, %256 : vector<1x32xf32>
    %258 = vector.extract_strided_slice %253 {offsets = [0, 32], sizes = [1, 32], strides = [1, 1]} : vector<1x64xf32> to vector<1x32xf32>
    %259 = arith.addf %196, %258 : vector<1x32xf32>
    %260 = tpu.reciprocal %259 {approx = true} : vector<1x32xf32> -> vector<1x32xf32>
    %261 = arith.mulf %259, %260 : vector<1x32xf32>
    %cst_52 = arith.constant 2.000000e+00 : f32
    %262 = vector.broadcast %cst_52 : f32 to vector<1x32xf32>
    %263 = arith.subf %262, %261 : vector<1x32xf32>
    %264 = arith.mulf %260, %263 : vector<1x32xf32>
    %265 = arith.mulf %257, %264 : vector<1x32xf32>
    %c3_i32_53 = arith.constant 3 : i32
    %266 = vector.broadcast %265 : vector<1x32xf32> to vector<32x32xf32>
    %267 = arith.mulf %22, %266 : vector<32x32xf32>
    %cst_54 = arith.constant dense<0.000000e+00> : vector<32xf32>
    %268 = vector.multi_reduction <add>, %267, %cst_54 [1] : vector<32x32xf32> to vector<32xf32>
    %269 = vector.shape_cast %268 : vector<32xf32> to vector<32x1xf32>
    %270 = vector.broadcast %269 : vector<32x1xf32> to vector<32x64xf32>
    %271 = arith.subf %270, %1 : vector<32x64xf32>
    %272 = arith.mulf %3, %271 : vector<32x64xf32>
    %273 = math.tanh %272 : vector<32x64xf32>
    %274 = arith.mulf %5, %273 : vector<32x64xf32>
    %cst_55 = arith.constant dense<0.000000e+00> : vector<64xf32>
    %275 = vector.multi_reduction <add>, %274, %cst_55 [0] : vector<32x64xf32> to vector<64xf32>
    %276 = vector.shape_cast %275 : vector<64xf32> to vector<1x64xf32>
    %277 = arith.mulf %11, %265 : vector<1x32xf32>
    %278 = arith.addf %277, %194 : vector<1x32xf32>
    %279 = vector.extract_strided_slice %276 {offsets = [0, 0], sizes = [1, 32], strides = [1, 1]} : vector<1x64xf32> to vector<1x32xf32>
    %280 = arith.addf %278, %279 : vector<1x32xf32>
    %281 = vector.extract_strided_slice %276 {offsets = [0, 32], sizes = [1, 32], strides = [1, 1]} : vector<1x64xf32> to vector<1x32xf32>
    %282 = arith.addf %196, %281 : vector<1x32xf32>
    %283 = tpu.reciprocal %282 {approx = true} : vector<1x32xf32> -> vector<1x32xf32>
    %284 = arith.mulf %282, %283 : vector<1x32xf32>
    %cst_56 = arith.constant 2.000000e+00 : f32
    %285 = vector.broadcast %cst_56 : f32 to vector<1x32xf32>
    %286 = arith.subf %285, %284 : vector<1x32xf32>
    %287 = arith.mulf %283, %286 : vector<1x32xf32>
    %288 = arith.mulf %280, %287 : vector<1x32xf32>
    %c4_i32_57 = arith.constant 4 : i32
    %289 = vector.broadcast %288 : vector<1x32xf32> to vector<32x32xf32>
    %290 = arith.mulf %22, %289 : vector<32x32xf32>
    %cst_58 = arith.constant dense<0.000000e+00> : vector<32xf32>
    %291 = vector.multi_reduction <add>, %290, %cst_58 [1] : vector<32x32xf32> to vector<32xf32>
    %292 = vector.shape_cast %291 : vector<32xf32> to vector<32x1xf32>
    %293 = vector.broadcast %292 : vector<32x1xf32> to vector<32x64xf32>
    %294 = arith.subf %293, %1 : vector<32x64xf32>
    %295 = arith.mulf %3, %294 : vector<32x64xf32>
    %296 = math.tanh %295 : vector<32x64xf32>
    %297 = arith.mulf %5, %296 : vector<32x64xf32>
    %cst_59 = arith.constant dense<0.000000e+00> : vector<64xf32>
    %298 = vector.multi_reduction <add>, %297, %cst_59 [0] : vector<32x64xf32> to vector<64xf32>
    %299 = vector.shape_cast %298 : vector<64xf32> to vector<1x64xf32>
    %300 = arith.mulf %11, %288 : vector<1x32xf32>
    %301 = arith.addf %300, %194 : vector<1x32xf32>
    %302 = vector.extract_strided_slice %299 {offsets = [0, 0], sizes = [1, 32], strides = [1, 1]} : vector<1x64xf32> to vector<1x32xf32>
    %303 = arith.addf %301, %302 : vector<1x32xf32>
    %304 = vector.extract_strided_slice %299 {offsets = [0, 32], sizes = [1, 32], strides = [1, 1]} : vector<1x64xf32> to vector<1x32xf32>
    %305 = arith.addf %196, %304 : vector<1x32xf32>
    %306 = tpu.reciprocal %305 {approx = true} : vector<1x32xf32> -> vector<1x32xf32>
    %307 = arith.mulf %305, %306 : vector<1x32xf32>
    %cst_60 = arith.constant 2.000000e+00 : f32
    %308 = vector.broadcast %cst_60 : f32 to vector<1x32xf32>
    %309 = arith.subf %308, %307 : vector<1x32xf32>
    %310 = arith.mulf %306, %309 : vector<1x32xf32>
    %311 = arith.mulf %303, %310 : vector<1x32xf32>
    %c5_i32_61 = arith.constant 5 : i32
    %312 = vector.broadcast %311 : vector<1x32xf32> to vector<32x32xf32>
    %313 = arith.mulf %22, %312 : vector<32x32xf32>
    %cst_62 = arith.constant dense<0.000000e+00> : vector<32xf32>
    %314 = vector.multi_reduction <add>, %313, %cst_62 [1] : vector<32x32xf32> to vector<32xf32>
    %315 = vector.shape_cast %314 : vector<32xf32> to vector<32x1xf32>
    %316 = vector.broadcast %315 : vector<32x1xf32> to vector<32x64xf32>
    %317 = arith.subf %316, %1 : vector<32x64xf32>
    %318 = arith.mulf %3, %317 : vector<32x64xf32>
    %319 = math.tanh %318 : vector<32x64xf32>
    %320 = arith.mulf %5, %319 : vector<32x64xf32>
    %cst_63 = arith.constant dense<0.000000e+00> : vector<64xf32>
    %321 = vector.multi_reduction <add>, %320, %cst_63 [0] : vector<32x64xf32> to vector<64xf32>
    %322 = vector.shape_cast %321 : vector<64xf32> to vector<1x64xf32>
    %323 = arith.mulf %11, %311 : vector<1x32xf32>
    %324 = arith.addf %323, %194 : vector<1x32xf32>
    %325 = vector.extract_strided_slice %322 {offsets = [0, 0], sizes = [1, 32], strides = [1, 1]} : vector<1x64xf32> to vector<1x32xf32>
    %326 = arith.addf %324, %325 : vector<1x32xf32>
    %327 = vector.extract_strided_slice %322 {offsets = [0, 32], sizes = [1, 32], strides = [1, 1]} : vector<1x64xf32> to vector<1x32xf32>
    %328 = arith.addf %196, %327 : vector<1x32xf32>
    %329 = tpu.reciprocal %328 {approx = true} : vector<1x32xf32> -> vector<1x32xf32>
    %330 = arith.mulf %328, %329 : vector<1x32xf32>
    %cst_64 = arith.constant 2.000000e+00 : f32
    %331 = vector.broadcast %cst_64 : f32 to vector<1x32xf32>
    %332 = arith.subf %331, %330 : vector<1x32xf32>
    %333 = arith.mulf %329, %332 : vector<1x32xf32>
    %334 = arith.mulf %326, %333 : vector<1x32xf32>
    %c2_i32_65 = arith.constant 2 : i32
    %335 = arith.index_cast %c2_i32_65 : i32 to index
    %c0_66 = arith.constant 0 : index
    %336 = vector.load %arg5[%335, %c0_66] : memref<8x32xf32, #tpu.memory_space<vmem>>, vector<1x32xf32>
    %337 = arith.index_cast %c2_i32_65 : i32 to index
    %c0_67 = arith.constant 0 : index
    %338 = vector.load %arg6[%337, %c0_67] : memref<8x32xf32, #tpu.memory_space<vmem>>, vector<1x32xf32>
    %c0_i32_68 = arith.constant 0 : i32
    %339 = vector.broadcast %334 : vector<1x32xf32> to vector<32x32xf32>
    %340 = arith.mulf %22, %339 : vector<32x32xf32>
    %cst_69 = arith.constant dense<0.000000e+00> : vector<32xf32>
    %341 = vector.multi_reduction <add>, %340, %cst_69 [1] : vector<32x32xf32> to vector<32xf32>
    %342 = vector.shape_cast %341 : vector<32xf32> to vector<32x1xf32>
    %343 = vector.broadcast %342 : vector<32x1xf32> to vector<32x64xf32>
    %344 = arith.subf %343, %1 : vector<32x64xf32>
    %345 = arith.mulf %3, %344 : vector<32x64xf32>
    %346 = math.tanh %345 : vector<32x64xf32>
    %347 = arith.mulf %5, %346 : vector<32x64xf32>
    %cst_70 = arith.constant dense<0.000000e+00> : vector<64xf32>
    %348 = vector.multi_reduction <add>, %347, %cst_70 [0] : vector<32x64xf32> to vector<64xf32>
    %349 = vector.shape_cast %348 : vector<64xf32> to vector<1x64xf32>
    %350 = arith.mulf %11, %334 : vector<1x32xf32>
    %351 = arith.addf %350, %336 : vector<1x32xf32>
    %352 = vector.extract_strided_slice %349 {offsets = [0, 0], sizes = [1, 32], strides = [1, 1]} : vector<1x64xf32> to vector<1x32xf32>
    %353 = arith.addf %351, %352 : vector<1x32xf32>
    %354 = vector.extract_strided_slice %349 {offsets = [0, 32], sizes = [1, 32], strides = [1, 1]} : vector<1x64xf32> to vector<1x32xf32>
    %355 = arith.addf %338, %354 : vector<1x32xf32>
    %356 = tpu.reciprocal %355 {approx = true} : vector<1x32xf32> -> vector<1x32xf32>
    %357 = arith.mulf %355, %356 : vector<1x32xf32>
    %cst_71 = arith.constant 2.000000e+00 : f32
    %358 = vector.broadcast %cst_71 : f32 to vector<1x32xf32>
    %359 = arith.subf %358, %357 : vector<1x32xf32>
    %360 = arith.mulf %356, %359 : vector<1x32xf32>
    %361 = arith.mulf %353, %360 : vector<1x32xf32>
    %c1_i32_72 = arith.constant 1 : i32
    %362 = vector.broadcast %361 : vector<1x32xf32> to vector<32x32xf32>
    %363 = arith.mulf %22, %362 : vector<32x32xf32>
    %cst_73 = arith.constant dense<0.000000e+00> : vector<32xf32>
    %364 = vector.multi_reduction <add>, %363, %cst_73 [1] : vector<32x32xf32> to vector<32xf32>
    %365 = vector.shape_cast %364 : vector<32xf32> to vector<32x1xf32>
    %366 = vector.broadcast %365 : vector<32x1xf32> to vector<32x64xf32>
    %367 = arith.subf %366, %1 : vector<32x64xf32>
    %368 = arith.mulf %3, %367 : vector<32x64xf32>
    %369 = math.tanh %368 : vector<32x64xf32>
    %370 = arith.mulf %5, %369 : vector<32x64xf32>
    %cst_74 = arith.constant dense<0.000000e+00> : vector<64xf32>
    %371 = vector.multi_reduction <add>, %370, %cst_74 [0] : vector<32x64xf32> to vector<64xf32>
    %372 = vector.shape_cast %371 : vector<64xf32> to vector<1x64xf32>
    %373 = arith.mulf %11, %361 : vector<1x32xf32>
    %374 = arith.addf %373, %336 : vector<1x32xf32>
    %375 = vector.extract_strided_slice %372 {offsets = [0, 0], sizes = [1, 32], strides = [1, 1]} : vector<1x64xf32> to vector<1x32xf32>
    %376 = arith.addf %374, %375 : vector<1x32xf32>
    %377 = vector.extract_strided_slice %372 {offsets = [0, 32], sizes = [1, 32], strides = [1, 1]} : vector<1x64xf32> to vector<1x32xf32>
    %378 = arith.addf %338, %377 : vector<1x32xf32>
    %379 = tpu.reciprocal %378 {approx = true} : vector<1x32xf32> -> vector<1x32xf32>
    %380 = arith.mulf %378, %379 : vector<1x32xf32>
    %cst_75 = arith.constant 2.000000e+00 : f32
    %381 = vector.broadcast %cst_75 : f32 to vector<1x32xf32>
    %382 = arith.subf %381, %380 : vector<1x32xf32>
    %383 = arith.mulf %379, %382 : vector<1x32xf32>
    %384 = arith.mulf %376, %383 : vector<1x32xf32>
    %c2_i32_76 = arith.constant 2 : i32
    %385 = vector.broadcast %384 : vector<1x32xf32> to vector<32x32xf32>
    %386 = arith.mulf %22, %385 : vector<32x32xf32>
    %cst_77 = arith.constant dense<0.000000e+00> : vector<32xf32>
    %387 = vector.multi_reduction <add>, %386, %cst_77 [1] : vector<32x32xf32> to vector<32xf32>
    %388 = vector.shape_cast %387 : vector<32xf32> to vector<32x1xf32>
    %389 = vector.broadcast %388 : vector<32x1xf32> to vector<32x64xf32>
    %390 = arith.subf %389, %1 : vector<32x64xf32>
    %391 = arith.mulf %3, %390 : vector<32x64xf32>
    %392 = math.tanh %391 : vector<32x64xf32>
    %393 = arith.mulf %5, %392 : vector<32x64xf32>
    %cst_78 = arith.constant dense<0.000000e+00> : vector<64xf32>
    %394 = vector.multi_reduction <add>, %393, %cst_78 [0] : vector<32x64xf32> to vector<64xf32>
    %395 = vector.shape_cast %394 : vector<64xf32> to vector<1x64xf32>
    %396 = arith.mulf %11, %384 : vector<1x32xf32>
    %397 = arith.addf %396, %336 : vector<1x32xf32>
    %398 = vector.extract_strided_slice %395 {offsets = [0, 0], sizes = [1, 32], strides = [1, 1]} : vector<1x64xf32> to vector<1x32xf32>
    %399 = arith.addf %397, %398 : vector<1x32xf32>
    %400 = vector.extract_strided_slice %395 {offsets = [0, 32], sizes = [1, 32], strides = [1, 1]} : vector<1x64xf32> to vector<1x32xf32>
    %401 = arith.addf %338, %400 : vector<1x32xf32>
    %402 = tpu.reciprocal %401 {approx = true} : vector<1x32xf32> -> vector<1x32xf32>
    %403 = arith.mulf %401, %402 : vector<1x32xf32>
    %cst_79 = arith.constant 2.000000e+00 : f32
    %404 = vector.broadcast %cst_79 : f32 to vector<1x32xf32>
    %405 = arith.subf %404, %403 : vector<1x32xf32>
    %406 = arith.mulf %402, %405 : vector<1x32xf32>
    %407 = arith.mulf %399, %406 : vector<1x32xf32>
    %c3_i32_80 = arith.constant 3 : i32
    %408 = vector.broadcast %407 : vector<1x32xf32> to vector<32x32xf32>
    %409 = arith.mulf %22, %408 : vector<32x32xf32>
    %cst_81 = arith.constant dense<0.000000e+00> : vector<32xf32>
    %410 = vector.multi_reduction <add>, %409, %cst_81 [1] : vector<32x32xf32> to vector<32xf32>
    %411 = vector.shape_cast %410 : vector<32xf32> to vector<32x1xf32>
    %412 = vector.broadcast %411 : vector<32x1xf32> to vector<32x64xf32>
    %413 = arith.subf %412, %1 : vector<32x64xf32>
    %414 = arith.mulf %3, %413 : vector<32x64xf32>
    %415 = math.tanh %414 : vector<32x64xf32>
    %416 = arith.mulf %5, %415 : vector<32x64xf32>
    %cst_82 = arith.constant dense<0.000000e+00> : vector<64xf32>
    %417 = vector.multi_reduction <add>, %416, %cst_82 [0] : vector<32x64xf32> to vector<64xf32>
    %418 = vector.shape_cast %417 : vector<64xf32> to vector<1x64xf32>
    %419 = arith.mulf %11, %407 : vector<1x32xf32>
    %420 = arith.addf %419, %336 : vector<1x32xf32>
    %421 = vector.extract_strided_slice %418 {offsets = [0, 0], sizes = [1, 32], strides = [1, 1]} : vector<1x64xf32> to vector<1x32xf32>
    %422 = arith.addf %420, %421 : vector<1x32xf32>
    %423 = vector.extract_strided_slice %418 {offsets = [0, 32], sizes = [1, 32], strides = [1, 1]} : vector<1x64xf32> to vector<1x32xf32>
    %424 = arith.addf %338, %423 : vector<1x32xf32>
    %425 = tpu.reciprocal %424 {approx = true} : vector<1x32xf32> -> vector<1x32xf32>
    %426 = arith.mulf %424, %425 : vector<1x32xf32>
    %cst_83 = arith.constant 2.000000e+00 : f32
    %427 = vector.broadcast %cst_83 : f32 to vector<1x32xf32>
    %428 = arith.subf %427, %426 : vector<1x32xf32>
    %429 = arith.mulf %425, %428 : vector<1x32xf32>
    %430 = arith.mulf %422, %429 : vector<1x32xf32>
    %c4_i32_84 = arith.constant 4 : i32
    %431 = vector.broadcast %430 : vector<1x32xf32> to vector<32x32xf32>
    %432 = arith.mulf %22, %431 : vector<32x32xf32>
    %cst_85 = arith.constant dense<0.000000e+00> : vector<32xf32>
    %433 = vector.multi_reduction <add>, %432, %cst_85 [1] : vector<32x32xf32> to vector<32xf32>
    %434 = vector.shape_cast %433 : vector<32xf32> to vector<32x1xf32>
    %435 = vector.broadcast %434 : vector<32x1xf32> to vector<32x64xf32>
    %436 = arith.subf %435, %1 : vector<32x64xf32>
    %437 = arith.mulf %3, %436 : vector<32x64xf32>
    %438 = math.tanh %437 : vector<32x64xf32>
    %439 = arith.mulf %5, %438 : vector<32x64xf32>
    %cst_86 = arith.constant dense<0.000000e+00> : vector<64xf32>
    %440 = vector.multi_reduction <add>, %439, %cst_86 [0] : vector<32x64xf32> to vector<64xf32>
    %441 = vector.shape_cast %440 : vector<64xf32> to vector<1x64xf32>
    %442 = arith.mulf %11, %430 : vector<1x32xf32>
    %443 = arith.addf %442, %336 : vector<1x32xf32>
    %444 = vector.extract_strided_slice %441 {offsets = [0, 0], sizes = [1, 32], strides = [1, 1]} : vector<1x64xf32> to vector<1x32xf32>
    %445 = arith.addf %443, %444 : vector<1x32xf32>
    %446 = vector.extract_strided_slice %441 {offsets = [0, 32], sizes = [1, 32], strides = [1, 1]} : vector<1x64xf32> to vector<1x32xf32>
    %447 = arith.addf %338, %446 : vector<1x32xf32>
    %448 = tpu.reciprocal %447 {approx = true} : vector<1x32xf32> -> vector<1x32xf32>
    %449 = arith.mulf %447, %448 : vector<1x32xf32>
    %cst_87 = arith.constant 2.000000e+00 : f32
    %450 = vector.broadcast %cst_87 : f32 to vector<1x32xf32>
    %451 = arith.subf %450, %449 : vector<1x32xf32>
    %452 = arith.mulf %448, %451 : vector<1x32xf32>
    %453 = arith.mulf %445, %452 : vector<1x32xf32>
    %c5_i32_88 = arith.constant 5 : i32
    %454 = vector.broadcast %453 : vector<1x32xf32> to vector<32x32xf32>
    %455 = arith.mulf %22, %454 : vector<32x32xf32>
    %cst_89 = arith.constant dense<0.000000e+00> : vector<32xf32>
    %456 = vector.multi_reduction <add>, %455, %cst_89 [1] : vector<32x32xf32> to vector<32xf32>
    %457 = vector.shape_cast %456 : vector<32xf32> to vector<32x1xf32>
    %458 = vector.broadcast %457 : vector<32x1xf32> to vector<32x64xf32>
    %459 = arith.subf %458, %1 : vector<32x64xf32>
    %460 = arith.mulf %3, %459 : vector<32x64xf32>
    %461 = math.tanh %460 : vector<32x64xf32>
    %462 = arith.mulf %5, %461 : vector<32x64xf32>
    %cst_90 = arith.constant dense<0.000000e+00> : vector<64xf32>
    %463 = vector.multi_reduction <add>, %462, %cst_90 [0] : vector<32x64xf32> to vector<64xf32>
    %464 = vector.shape_cast %463 : vector<64xf32> to vector<1x64xf32>
    %465 = arith.mulf %11, %453 : vector<1x32xf32>
    %466 = arith.addf %465, %336 : vector<1x32xf32>
    %467 = vector.extract_strided_slice %464 {offsets = [0, 0], sizes = [1, 32], strides = [1, 1]} : vector<1x64xf32> to vector<1x32xf32>
    %468 = arith.addf %466, %467 : vector<1x32xf32>
    %469 = vector.extract_strided_slice %464 {offsets = [0, 32], sizes = [1, 32], strides = [1, 1]} : vector<1x64xf32> to vector<1x32xf32>
    %470 = arith.addf %338, %469 : vector<1x32xf32>
    %471 = tpu.reciprocal %470 {approx = true} : vector<1x32xf32> -> vector<1x32xf32>
    %472 = arith.mulf %470, %471 : vector<1x32xf32>
    %cst_91 = arith.constant 2.000000e+00 : f32
    %473 = vector.broadcast %cst_91 : f32 to vector<1x32xf32>
    %474 = arith.subf %473, %472 : vector<1x32xf32>
    %475 = arith.mulf %471, %474 : vector<1x32xf32>
    %476 = arith.mulf %468, %475 : vector<1x32xf32>
    %c3_i32_92 = arith.constant 3 : i32
    %477 = arith.index_cast %c3_i32_92 : i32 to index
    %c0_93 = arith.constant 0 : index
    %478 = vector.load %arg5[%477, %c0_93] : memref<8x32xf32, #tpu.memory_space<vmem>>, vector<1x32xf32>
    %479 = arith.index_cast %c3_i32_92 : i32 to index
    %c0_94 = arith.constant 0 : index
    %480 = vector.load %arg6[%479, %c0_94] : memref<8x32xf32, #tpu.memory_space<vmem>>, vector<1x32xf32>
    %c0_i32_95 = arith.constant 0 : i32
    %481 = vector.broadcast %476 : vector<1x32xf32> to vector<32x32xf32>
    %482 = arith.mulf %22, %481 : vector<32x32xf32>
    %cst_96 = arith.constant dense<0.000000e+00> : vector<32xf32>
    %483 = vector.multi_reduction <add>, %482, %cst_96 [1] : vector<32x32xf32> to vector<32xf32>
    %484 = vector.shape_cast %483 : vector<32xf32> to vector<32x1xf32>
    %485 = vector.broadcast %484 : vector<32x1xf32> to vector<32x64xf32>
    %486 = arith.subf %485, %1 : vector<32x64xf32>
    %487 = arith.mulf %3, %486 : vector<32x64xf32>
    %488 = math.tanh %487 : vector<32x64xf32>
    %489 = arith.mulf %5, %488 : vector<32x64xf32>
    %cst_97 = arith.constant dense<0.000000e+00> : vector<64xf32>
    %490 = vector.multi_reduction <add>, %489, %cst_97 [0] : vector<32x64xf32> to vector<64xf32>
    %491 = vector.shape_cast %490 : vector<64xf32> to vector<1x64xf32>
    %492 = arith.mulf %11, %476 : vector<1x32xf32>
    %493 = arith.addf %492, %478 : vector<1x32xf32>
    %494 = vector.extract_strided_slice %491 {offsets = [0, 0], sizes = [1, 32], strides = [1, 1]} : vector<1x64xf32> to vector<1x32xf32>
    %495 = arith.addf %493, %494 : vector<1x32xf32>
    %496 = vector.extract_strided_slice %491 {offsets = [0, 32], sizes = [1, 32], strides = [1, 1]} : vector<1x64xf32> to vector<1x32xf32>
    %497 = arith.addf %480, %496 : vector<1x32xf32>
    %498 = tpu.reciprocal %497 {approx = true} : vector<1x32xf32> -> vector<1x32xf32>
    %499 = arith.mulf %497, %498 : vector<1x32xf32>
    %cst_98 = arith.constant 2.000000e+00 : f32
    %500 = vector.broadcast %cst_98 : f32 to vector<1x32xf32>
    %501 = arith.subf %500, %499 : vector<1x32xf32>
    %502 = arith.mulf %498, %501 : vector<1x32xf32>
    %503 = arith.mulf %495, %502 : vector<1x32xf32>
    %c1_i32_99 = arith.constant 1 : i32
    %504 = vector.broadcast %503 : vector<1x32xf32> to vector<32x32xf32>
    %505 = arith.mulf %22, %504 : vector<32x32xf32>
    %cst_100 = arith.constant dense<0.000000e+00> : vector<32xf32>
    %506 = vector.multi_reduction <add>, %505, %cst_100 [1] : vector<32x32xf32> to vector<32xf32>
    %507 = vector.shape_cast %506 : vector<32xf32> to vector<32x1xf32>
    %508 = vector.broadcast %507 : vector<32x1xf32> to vector<32x64xf32>
    %509 = arith.subf %508, %1 : vector<32x64xf32>
    %510 = arith.mulf %3, %509 : vector<32x64xf32>
    %511 = math.tanh %510 : vector<32x64xf32>
    %512 = arith.mulf %5, %511 : vector<32x64xf32>
    %cst_101 = arith.constant dense<0.000000e+00> : vector<64xf32>
    %513 = vector.multi_reduction <add>, %512, %cst_101 [0] : vector<32x64xf32> to vector<64xf32>
    %514 = vector.shape_cast %513 : vector<64xf32> to vector<1x64xf32>
    %515 = arith.mulf %11, %503 : vector<1x32xf32>
    %516 = arith.addf %515, %478 : vector<1x32xf32>
    %517 = vector.extract_strided_slice %514 {offsets = [0, 0], sizes = [1, 32], strides = [1, 1]} : vector<1x64xf32> to vector<1x32xf32>
    %518 = arith.addf %516, %517 : vector<1x32xf32>
    %519 = vector.extract_strided_slice %514 {offsets = [0, 32], sizes = [1, 32], strides = [1, 1]} : vector<1x64xf32> to vector<1x32xf32>
    %520 = arith.addf %480, %519 : vector<1x32xf32>
    %521 = tpu.reciprocal %520 {approx = true} : vector<1x32xf32> -> vector<1x32xf32>
    %522 = arith.mulf %520, %521 : vector<1x32xf32>
    %cst_102 = arith.constant 2.000000e+00 : f32
    %523 = vector.broadcast %cst_102 : f32 to vector<1x32xf32>
    %524 = arith.subf %523, %522 : vector<1x32xf32>
    %525 = arith.mulf %521, %524 : vector<1x32xf32>
    %526 = arith.mulf %518, %525 : vector<1x32xf32>
    %c2_i32_103 = arith.constant 2 : i32
    %527 = vector.broadcast %526 : vector<1x32xf32> to vector<32x32xf32>
    %528 = arith.mulf %22, %527 : vector<32x32xf32>
    %cst_104 = arith.constant dense<0.000000e+00> : vector<32xf32>
    %529 = vector.multi_reduction <add>, %528, %cst_104 [1] : vector<32x32xf32> to vector<32xf32>
    %530 = vector.shape_cast %529 : vector<32xf32> to vector<32x1xf32>
    %531 = vector.broadcast %530 : vector<32x1xf32> to vector<32x64xf32>
    %532 = arith.subf %531, %1 : vector<32x64xf32>
    %533 = arith.mulf %3, %532 : vector<32x64xf32>
    %534 = math.tanh %533 : vector<32x64xf32>
    %535 = arith.mulf %5, %534 : vector<32x64xf32>
    %cst_105 = arith.constant dense<0.000000e+00> : vector<64xf32>
    %536 = vector.multi_reduction <add>, %535, %cst_105 [0] : vector<32x64xf32> to vector<64xf32>
    %537 = vector.shape_cast %536 : vector<64xf32> to vector<1x64xf32>
    %538 = arith.mulf %11, %526 : vector<1x32xf32>
    %539 = arith.addf %538, %478 : vector<1x32xf32>
    %540 = vector.extract_strided_slice %537 {offsets = [0, 0], sizes = [1, 32], strides = [1, 1]} : vector<1x64xf32> to vector<1x32xf32>
    %541 = arith.addf %539, %540 : vector<1x32xf32>
    %542 = vector.extract_strided_slice %537 {offsets = [0, 32], sizes = [1, 32], strides = [1, 1]} : vector<1x64xf32> to vector<1x32xf32>
    %543 = arith.addf %480, %542 : vector<1x32xf32>
    %544 = tpu.reciprocal %543 {approx = true} : vector<1x32xf32> -> vector<1x32xf32>
    %545 = arith.mulf %543, %544 : vector<1x32xf32>
    %cst_106 = arith.constant 2.000000e+00 : f32
    %546 = vector.broadcast %cst_106 : f32 to vector<1x32xf32>
    %547 = arith.subf %546, %545 : vector<1x32xf32>
    %548 = arith.mulf %544, %547 : vector<1x32xf32>
    %549 = arith.mulf %541, %548 : vector<1x32xf32>
    %c3_i32_107 = arith.constant 3 : i32
    %550 = vector.broadcast %549 : vector<1x32xf32> to vector<32x32xf32>
    %551 = arith.mulf %22, %550 : vector<32x32xf32>
    %cst_108 = arith.constant dense<0.000000e+00> : vector<32xf32>
    %552 = vector.multi_reduction <add>, %551, %cst_108 [1] : vector<32x32xf32> to vector<32xf32>
    %553 = vector.shape_cast %552 : vector<32xf32> to vector<32x1xf32>
    %554 = vector.broadcast %553 : vector<32x1xf32> to vector<32x64xf32>
    %555 = arith.subf %554, %1 : vector<32x64xf32>
    %556 = arith.mulf %3, %555 : vector<32x64xf32>
    %557 = math.tanh %556 : vector<32x64xf32>
    %558 = arith.mulf %5, %557 : vector<32x64xf32>
    %cst_109 = arith.constant dense<0.000000e+00> : vector<64xf32>
    %559 = vector.multi_reduction <add>, %558, %cst_109 [0] : vector<32x64xf32> to vector<64xf32>
    %560 = vector.shape_cast %559 : vector<64xf32> to vector<1x64xf32>
    %561 = arith.mulf %11, %549 : vector<1x32xf32>
    %562 = arith.addf %561, %478 : vector<1x32xf32>
    %563 = vector.extract_strided_slice %560 {offsets = [0, 0], sizes = [1, 32], strides = [1, 1]} : vector<1x64xf32> to vector<1x32xf32>
    %564 = arith.addf %562, %563 : vector<1x32xf32>
    %565 = vector.extract_strided_slice %560 {offsets = [0, 32], sizes = [1, 32], strides = [1, 1]} : vector<1x64xf32> to vector<1x32xf32>
    %566 = arith.addf %480, %565 : vector<1x32xf32>
    %567 = tpu.reciprocal %566 {approx = true} : vector<1x32xf32> -> vector<1x32xf32>
    %568 = arith.mulf %566, %567 : vector<1x32xf32>
    %cst_110 = arith.constant 2.000000e+00 : f32
    %569 = vector.broadcast %cst_110 : f32 to vector<1x32xf32>
    %570 = arith.subf %569, %568 : vector<1x32xf32>
    %571 = arith.mulf %567, %570 : vector<1x32xf32>
    %572 = arith.mulf %564, %571 : vector<1x32xf32>
    %c4_i32_111 = arith.constant 4 : i32
    %573 = vector.broadcast %572 : vector<1x32xf32> to vector<32x32xf32>
    %574 = arith.mulf %22, %573 : vector<32x32xf32>
    %cst_112 = arith.constant dense<0.000000e+00> : vector<32xf32>
    %575 = vector.multi_reduction <add>, %574, %cst_112 [1] : vector<32x32xf32> to vector<32xf32>
    %576 = vector.shape_cast %575 : vector<32xf32> to vector<32x1xf32>
    %577 = vector.broadcast %576 : vector<32x1xf32> to vector<32x64xf32>
    %578 = arith.subf %577, %1 : vector<32x64xf32>
    %579 = arith.mulf %3, %578 : vector<32x64xf32>
    %580 = math.tanh %579 : vector<32x64xf32>
    %581 = arith.mulf %5, %580 : vector<32x64xf32>
    %cst_113 = arith.constant dense<0.000000e+00> : vector<64xf32>
    %582 = vector.multi_reduction <add>, %581, %cst_113 [0] : vector<32x64xf32> to vector<64xf32>
    %583 = vector.shape_cast %582 : vector<64xf32> to vector<1x64xf32>
    %584 = arith.mulf %11, %572 : vector<1x32xf32>
    %585 = arith.addf %584, %478 : vector<1x32xf32>
    %586 = vector.extract_strided_slice %583 {offsets = [0, 0], sizes = [1, 32], strides = [1, 1]} : vector<1x64xf32> to vector<1x32xf32>
    %587 = arith.addf %585, %586 : vector<1x32xf32>
    %588 = vector.extract_strided_slice %583 {offsets = [0, 32], sizes = [1, 32], strides = [1, 1]} : vector<1x64xf32> to vector<1x32xf32>
    %589 = arith.addf %480, %588 : vector<1x32xf32>
    %590 = tpu.reciprocal %589 {approx = true} : vector<1x32xf32> -> vector<1x32xf32>
    %591 = arith.mulf %589, %590 : vector<1x32xf32>
    %cst_114 = arith.constant 2.000000e+00 : f32
    %592 = vector.broadcast %cst_114 : f32 to vector<1x32xf32>
    %593 = arith.subf %592, %591 : vector<1x32xf32>
    %594 = arith.mulf %590, %593 : vector<1x32xf32>
    %595 = arith.mulf %587, %594 : vector<1x32xf32>
    %c5_i32_115 = arith.constant 5 : i32
    %596 = vector.broadcast %595 : vector<1x32xf32> to vector<32x32xf32>
    %597 = arith.mulf %22, %596 : vector<32x32xf32>
    %cst_116 = arith.constant dense<0.000000e+00> : vector<32xf32>
    %598 = vector.multi_reduction <add>, %597, %cst_116 [1] : vector<32x32xf32> to vector<32xf32>
    %599 = vector.shape_cast %598 : vector<32xf32> to vector<32x1xf32>
    %600 = vector.broadcast %599 : vector<32x1xf32> to vector<32x64xf32>
    %601 = arith.subf %600, %1 : vector<32x64xf32>
    %602 = arith.mulf %3, %601 : vector<32x64xf32>
    %603 = math.tanh %602 : vector<32x64xf32>
    %604 = arith.mulf %5, %603 : vector<32x64xf32>
    %cst_117 = arith.constant dense<0.000000e+00> : vector<64xf32>
    %605 = vector.multi_reduction <add>, %604, %cst_117 [0] : vector<32x64xf32> to vector<64xf32>
    %606 = vector.shape_cast %605 : vector<64xf32> to vector<1x64xf32>
    %607 = arith.mulf %11, %595 : vector<1x32xf32>
    %608 = arith.addf %607, %478 : vector<1x32xf32>
    %609 = vector.extract_strided_slice %606 {offsets = [0, 0], sizes = [1, 32], strides = [1, 1]} : vector<1x64xf32> to vector<1x32xf32>
    %610 = arith.addf %608, %609 : vector<1x32xf32>
    %611 = vector.extract_strided_slice %606 {offsets = [0, 32], sizes = [1, 32], strides = [1, 1]} : vector<1x64xf32> to vector<1x32xf32>
    %612 = arith.addf %480, %611 : vector<1x32xf32>
    %613 = tpu.reciprocal %612 {approx = true} : vector<1x32xf32> -> vector<1x32xf32>
    %614 = arith.mulf %612, %613 : vector<1x32xf32>
    %cst_118 = arith.constant 2.000000e+00 : f32
    %615 = vector.broadcast %cst_118 : f32 to vector<1x32xf32>
    %616 = arith.subf %615, %614 : vector<1x32xf32>
    %617 = arith.mulf %613, %616 : vector<1x32xf32>
    %618 = arith.mulf %610, %617 : vector<1x32xf32>
    %c4_i32_119 = arith.constant 4 : i32
    %619 = arith.index_cast %c4_i32_119 : i32 to index
    %c0_120 = arith.constant 0 : index
    %620 = vector.load %arg5[%619, %c0_120] : memref<8x32xf32, #tpu.memory_space<vmem>>, vector<1x32xf32>
    %621 = arith.index_cast %c4_i32_119 : i32 to index
    %c0_121 = arith.constant 0 : index
    %622 = vector.load %arg6[%621, %c0_121] : memref<8x32xf32, #tpu.memory_space<vmem>>, vector<1x32xf32>
    %c0_i32_122 = arith.constant 0 : i32
    %623 = vector.broadcast %618 : vector<1x32xf32> to vector<32x32xf32>
    %624 = arith.mulf %22, %623 : vector<32x32xf32>
    %cst_123 = arith.constant dense<0.000000e+00> : vector<32xf32>
    %625 = vector.multi_reduction <add>, %624, %cst_123 [1] : vector<32x32xf32> to vector<32xf32>
    %626 = vector.shape_cast %625 : vector<32xf32> to vector<32x1xf32>
    %627 = vector.broadcast %626 : vector<32x1xf32> to vector<32x64xf32>
    %628 = arith.subf %627, %1 : vector<32x64xf32>
    %629 = arith.mulf %3, %628 : vector<32x64xf32>
    %630 = math.tanh %629 : vector<32x64xf32>
    %631 = arith.mulf %5, %630 : vector<32x64xf32>
    %cst_124 = arith.constant dense<0.000000e+00> : vector<64xf32>
    %632 = vector.multi_reduction <add>, %631, %cst_124 [0] : vector<32x64xf32> to vector<64xf32>
    %633 = vector.shape_cast %632 : vector<64xf32> to vector<1x64xf32>
    %634 = arith.mulf %11, %618 : vector<1x32xf32>
    %635 = arith.addf %634, %620 : vector<1x32xf32>
    %636 = vector.extract_strided_slice %633 {offsets = [0, 0], sizes = [1, 32], strides = [1, 1]} : vector<1x64xf32> to vector<1x32xf32>
    %637 = arith.addf %635, %636 : vector<1x32xf32>
    %638 = vector.extract_strided_slice %633 {offsets = [0, 32], sizes = [1, 32], strides = [1, 1]} : vector<1x64xf32> to vector<1x32xf32>
    %639 = arith.addf %622, %638 : vector<1x32xf32>
    %640 = tpu.reciprocal %639 {approx = true} : vector<1x32xf32> -> vector<1x32xf32>
    %641 = arith.mulf %639, %640 : vector<1x32xf32>
    %cst_125 = arith.constant 2.000000e+00 : f32
    %642 = vector.broadcast %cst_125 : f32 to vector<1x32xf32>
    %643 = arith.subf %642, %641 : vector<1x32xf32>
    %644 = arith.mulf %640, %643 : vector<1x32xf32>
    %645 = arith.mulf %637, %644 : vector<1x32xf32>
    %c1_i32_126 = arith.constant 1 : i32
    %646 = vector.broadcast %645 : vector<1x32xf32> to vector<32x32xf32>
    %647 = arith.mulf %22, %646 : vector<32x32xf32>
    %cst_127 = arith.constant dense<0.000000e+00> : vector<32xf32>
    %648 = vector.multi_reduction <add>, %647, %cst_127 [1] : vector<32x32xf32> to vector<32xf32>
    %649 = vector.shape_cast %648 : vector<32xf32> to vector<32x1xf32>
    %650 = vector.broadcast %649 : vector<32x1xf32> to vector<32x64xf32>
    %651 = arith.subf %650, %1 : vector<32x64xf32>
    %652 = arith.mulf %3, %651 : vector<32x64xf32>
    %653 = math.tanh %652 : vector<32x64xf32>
    %654 = arith.mulf %5, %653 : vector<32x64xf32>
    %cst_128 = arith.constant dense<0.000000e+00> : vector<64xf32>
    %655 = vector.multi_reduction <add>, %654, %cst_128 [0] : vector<32x64xf32> to vector<64xf32>
    %656 = vector.shape_cast %655 : vector<64xf32> to vector<1x64xf32>
    %657 = arith.mulf %11, %645 : vector<1x32xf32>
    %658 = arith.addf %657, %620 : vector<1x32xf32>
    %659 = vector.extract_strided_slice %656 {offsets = [0, 0], sizes = [1, 32], strides = [1, 1]} : vector<1x64xf32> to vector<1x32xf32>
    %660 = arith.addf %658, %659 : vector<1x32xf32>
    %661 = vector.extract_strided_slice %656 {offsets = [0, 32], sizes = [1, 32], strides = [1, 1]} : vector<1x64xf32> to vector<1x32xf32>
    %662 = arith.addf %622, %661 : vector<1x32xf32>
    %663 = tpu.reciprocal %662 {approx = true} : vector<1x32xf32> -> vector<1x32xf32>
    %664 = arith.mulf %662, %663 : vector<1x32xf32>
    %cst_129 = arith.constant 2.000000e+00 : f32
    %665 = vector.broadcast %cst_129 : f32 to vector<1x32xf32>
    %666 = arith.subf %665, %664 : vector<1x32xf32>
    %667 = arith.mulf %663, %666 : vector<1x32xf32>
    %668 = arith.mulf %660, %667 : vector<1x32xf32>
    %c2_i32_130 = arith.constant 2 : i32
    %669 = vector.broadcast %668 : vector<1x32xf32> to vector<32x32xf32>
    %670 = arith.mulf %22, %669 : vector<32x32xf32>
    %cst_131 = arith.constant dense<0.000000e+00> : vector<32xf32>
    %671 = vector.multi_reduction <add>, %670, %cst_131 [1] : vector<32x32xf32> to vector<32xf32>
    %672 = vector.shape_cast %671 : vector<32xf32> to vector<32x1xf32>
    %673 = vector.broadcast %672 : vector<32x1xf32> to vector<32x64xf32>
    %674 = arith.subf %673, %1 : vector<32x64xf32>
    %675 = arith.mulf %3, %674 : vector<32x64xf32>
    %676 = math.tanh %675 : vector<32x64xf32>
    %677 = arith.mulf %5, %676 : vector<32x64xf32>
    %cst_132 = arith.constant dense<0.000000e+00> : vector<64xf32>
    %678 = vector.multi_reduction <add>, %677, %cst_132 [0] : vector<32x64xf32> to vector<64xf32>
    %679 = vector.shape_cast %678 : vector<64xf32> to vector<1x64xf32>
    %680 = arith.mulf %11, %668 : vector<1x32xf32>
    %681 = arith.addf %680, %620 : vector<1x32xf32>
    %682 = vector.extract_strided_slice %679 {offsets = [0, 0], sizes = [1, 32], strides = [1, 1]} : vector<1x64xf32> to vector<1x32xf32>
    %683 = arith.addf %681, %682 : vector<1x32xf32>
    %684 = vector.extract_strided_slice %679 {offsets = [0, 32], sizes = [1, 32], strides = [1, 1]} : vector<1x64xf32> to vector<1x32xf32>
    %685 = arith.addf %622, %684 : vector<1x32xf32>
    %686 = tpu.reciprocal %685 {approx = true} : vector<1x32xf32> -> vector<1x32xf32>
    %687 = arith.mulf %685, %686 : vector<1x32xf32>
    %cst_133 = arith.constant 2.000000e+00 : f32
    %688 = vector.broadcast %cst_133 : f32 to vector<1x32xf32>
    %689 = arith.subf %688, %687 : vector<1x32xf32>
    %690 = arith.mulf %686, %689 : vector<1x32xf32>
    %691 = arith.mulf %683, %690 : vector<1x32xf32>
    %c3_i32_134 = arith.constant 3 : i32
    %692 = vector.broadcast %691 : vector<1x32xf32> to vector<32x32xf32>
    %693 = arith.mulf %22, %692 : vector<32x32xf32>
    %cst_135 = arith.constant dense<0.000000e+00> : vector<32xf32>
    %694 = vector.multi_reduction <add>, %693, %cst_135 [1] : vector<32x32xf32> to vector<32xf32>
    %695 = vector.shape_cast %694 : vector<32xf32> to vector<32x1xf32>
    %696 = vector.broadcast %695 : vector<32x1xf32> to vector<32x64xf32>
    %697 = arith.subf %696, %1 : vector<32x64xf32>
    %698 = arith.mulf %3, %697 : vector<32x64xf32>
    %699 = math.tanh %698 : vector<32x64xf32>
    %700 = arith.mulf %5, %699 : vector<32x64xf32>
    %cst_136 = arith.constant dense<0.000000e+00> : vector<64xf32>
    %701 = vector.multi_reduction <add>, %700, %cst_136 [0] : vector<32x64xf32> to vector<64xf32>
    %702 = vector.shape_cast %701 : vector<64xf32> to vector<1x64xf32>
    %703 = arith.mulf %11, %691 : vector<1x32xf32>
    %704 = arith.addf %703, %620 : vector<1x32xf32>
    %705 = vector.extract_strided_slice %702 {offsets = [0, 0], sizes = [1, 32], strides = [1, 1]} : vector<1x64xf32> to vector<1x32xf32>
    %706 = arith.addf %704, %705 : vector<1x32xf32>
    %707 = vector.extract_strided_slice %702 {offsets = [0, 32], sizes = [1, 32], strides = [1, 1]} : vector<1x64xf32> to vector<1x32xf32>
    %708 = arith.addf %622, %707 : vector<1x32xf32>
    %709 = tpu.reciprocal %708 {approx = true} : vector<1x32xf32> -> vector<1x32xf32>
    %710 = arith.mulf %708, %709 : vector<1x32xf32>
    %cst_137 = arith.constant 2.000000e+00 : f32
    %711 = vector.broadcast %cst_137 : f32 to vector<1x32xf32>
    %712 = arith.subf %711, %710 : vector<1x32xf32>
    %713 = arith.mulf %709, %712 : vector<1x32xf32>
    %714 = arith.mulf %706, %713 : vector<1x32xf32>
    %c4_i32_138 = arith.constant 4 : i32
    %715 = vector.broadcast %714 : vector<1x32xf32> to vector<32x32xf32>
    %716 = arith.mulf %22, %715 : vector<32x32xf32>
    %cst_139 = arith.constant dense<0.000000e+00> : vector<32xf32>
    %717 = vector.multi_reduction <add>, %716, %cst_139 [1] : vector<32x32xf32> to vector<32xf32>
    %718 = vector.shape_cast %717 : vector<32xf32> to vector<32x1xf32>
    %719 = vector.broadcast %718 : vector<32x1xf32> to vector<32x64xf32>
    %720 = arith.subf %719, %1 : vector<32x64xf32>
    %721 = arith.mulf %3, %720 : vector<32x64xf32>
    %722 = math.tanh %721 : vector<32x64xf32>
    %723 = arith.mulf %5, %722 : vector<32x64xf32>
    %cst_140 = arith.constant dense<0.000000e+00> : vector<64xf32>
    %724 = vector.multi_reduction <add>, %723, %cst_140 [0] : vector<32x64xf32> to vector<64xf32>
    %725 = vector.shape_cast %724 : vector<64xf32> to vector<1x64xf32>
    %726 = arith.mulf %11, %714 : vector<1x32xf32>
    %727 = arith.addf %726, %620 : vector<1x32xf32>
    %728 = vector.extract_strided_slice %725 {offsets = [0, 0], sizes = [1, 32], strides = [1, 1]} : vector<1x64xf32> to vector<1x32xf32>
    %729 = arith.addf %727, %728 : vector<1x32xf32>
    %730 = vector.extract_strided_slice %725 {offsets = [0, 32], sizes = [1, 32], strides = [1, 1]} : vector<1x64xf32> to vector<1x32xf32>
    %731 = arith.addf %622, %730 : vector<1x32xf32>
    %732 = tpu.reciprocal %731 {approx = true} : vector<1x32xf32> -> vector<1x32xf32>
    %733 = arith.mulf %731, %732 : vector<1x32xf32>
    %cst_141 = arith.constant 2.000000e+00 : f32
    %734 = vector.broadcast %cst_141 : f32 to vector<1x32xf32>
    %735 = arith.subf %734, %733 : vector<1x32xf32>
    %736 = arith.mulf %732, %735 : vector<1x32xf32>
    %737 = arith.mulf %729, %736 : vector<1x32xf32>
    %c5_i32_142 = arith.constant 5 : i32
    %738 = vector.broadcast %737 : vector<1x32xf32> to vector<32x32xf32>
    %739 = arith.mulf %22, %738 : vector<32x32xf32>
    %cst_143 = arith.constant dense<0.000000e+00> : vector<32xf32>
    %740 = vector.multi_reduction <add>, %739, %cst_143 [1] : vector<32x32xf32> to vector<32xf32>
    %741 = vector.shape_cast %740 : vector<32xf32> to vector<32x1xf32>
    %742 = vector.broadcast %741 : vector<32x1xf32> to vector<32x64xf32>
    %743 = arith.subf %742, %1 : vector<32x64xf32>
    %744 = arith.mulf %3, %743 : vector<32x64xf32>
    %745 = math.tanh %744 : vector<32x64xf32>
    %746 = arith.mulf %5, %745 : vector<32x64xf32>
    %cst_144 = arith.constant dense<0.000000e+00> : vector<64xf32>
    %747 = vector.multi_reduction <add>, %746, %cst_144 [0] : vector<32x64xf32> to vector<64xf32>
    %748 = vector.shape_cast %747 : vector<64xf32> to vector<1x64xf32>
    %749 = arith.mulf %11, %737 : vector<1x32xf32>
    %750 = arith.addf %749, %620 : vector<1x32xf32>
    %751 = vector.extract_strided_slice %748 {offsets = [0, 0], sizes = [1, 32], strides = [1, 1]} : vector<1x64xf32> to vector<1x32xf32>
    %752 = arith.addf %750, %751 : vector<1x32xf32>
    %753 = vector.extract_strided_slice %748 {offsets = [0, 32], sizes = [1, 32], strides = [1, 1]} : vector<1x64xf32> to vector<1x32xf32>
    %754 = arith.addf %622, %753 : vector<1x32xf32>
    %755 = tpu.reciprocal %754 {approx = true} : vector<1x32xf32> -> vector<1x32xf32>
    %756 = arith.mulf %754, %755 : vector<1x32xf32>
    %cst_145 = arith.constant 2.000000e+00 : f32
    %757 = vector.broadcast %cst_145 : f32 to vector<1x32xf32>
    %758 = arith.subf %757, %756 : vector<1x32xf32>
    %759 = arith.mulf %755, %758 : vector<1x32xf32>
    %760 = arith.mulf %752, %759 : vector<1x32xf32>
    %c5_i32_146 = arith.constant 5 : i32
    %761 = arith.index_cast %c5_i32_146 : i32 to index
    %c0_147 = arith.constant 0 : index
    %762 = vector.load %arg5[%761, %c0_147] : memref<8x32xf32, #tpu.memory_space<vmem>>, vector<1x32xf32>
    %763 = arith.index_cast %c5_i32_146 : i32 to index
    %c0_148 = arith.constant 0 : index
    %764 = vector.load %arg6[%763, %c0_148] : memref<8x32xf32, #tpu.memory_space<vmem>>, vector<1x32xf32>
    %c0_i32_149 = arith.constant 0 : i32
    %765 = vector.broadcast %760 : vector<1x32xf32> to vector<32x32xf32>
    %766 = arith.mulf %22, %765 : vector<32x32xf32>
    %cst_150 = arith.constant dense<0.000000e+00> : vector<32xf32>
    %767 = vector.multi_reduction <add>, %766, %cst_150 [1] : vector<32x32xf32> to vector<32xf32>
    %768 = vector.shape_cast %767 : vector<32xf32> to vector<32x1xf32>
    %769 = vector.broadcast %768 : vector<32x1xf32> to vector<32x64xf32>
    %770 = arith.subf %769, %1 : vector<32x64xf32>
    %771 = arith.mulf %3, %770 : vector<32x64xf32>
    %772 = math.tanh %771 : vector<32x64xf32>
    %773 = arith.mulf %5, %772 : vector<32x64xf32>
    %cst_151 = arith.constant dense<0.000000e+00> : vector<64xf32>
    %774 = vector.multi_reduction <add>, %773, %cst_151 [0] : vector<32x64xf32> to vector<64xf32>
    %775 = vector.shape_cast %774 : vector<64xf32> to vector<1x64xf32>
    %776 = arith.mulf %11, %760 : vector<1x32xf32>
    %777 = arith.addf %776, %762 : vector<1x32xf32>
    %778 = vector.extract_strided_slice %775 {offsets = [0, 0], sizes = [1, 32], strides = [1, 1]} : vector<1x64xf32> to vector<1x32xf32>
    %779 = arith.addf %777, %778 : vector<1x32xf32>
    %780 = vector.extract_strided_slice %775 {offsets = [0, 32], sizes = [1, 32], strides = [1, 1]} : vector<1x64xf32> to vector<1x32xf32>
    %781 = arith.addf %764, %780 : vector<1x32xf32>
    %782 = tpu.reciprocal %781 {approx = true} : vector<1x32xf32> -> vector<1x32xf32>
    %783 = arith.mulf %781, %782 : vector<1x32xf32>
    %cst_152 = arith.constant 2.000000e+00 : f32
    %784 = vector.broadcast %cst_152 : f32 to vector<1x32xf32>
    %785 = arith.subf %784, %783 : vector<1x32xf32>
    %786 = arith.mulf %782, %785 : vector<1x32xf32>
    %787 = arith.mulf %779, %786 : vector<1x32xf32>
    %c1_i32_153 = arith.constant 1 : i32
    %788 = vector.broadcast %787 : vector<1x32xf32> to vector<32x32xf32>
    %789 = arith.mulf %22, %788 : vector<32x32xf32>
    %cst_154 = arith.constant dense<0.000000e+00> : vector<32xf32>
    %790 = vector.multi_reduction <add>, %789, %cst_154 [1] : vector<32x32xf32> to vector<32xf32>
    %791 = vector.shape_cast %790 : vector<32xf32> to vector<32x1xf32>
    %792 = vector.broadcast %791 : vector<32x1xf32> to vector<32x64xf32>
    %793 = arith.subf %792, %1 : vector<32x64xf32>
    %794 = arith.mulf %3, %793 : vector<32x64xf32>
    %795 = math.tanh %794 : vector<32x64xf32>
    %796 = arith.mulf %5, %795 : vector<32x64xf32>
    %cst_155 = arith.constant dense<0.000000e+00> : vector<64xf32>
    %797 = vector.multi_reduction <add>, %796, %cst_155 [0] : vector<32x64xf32> to vector<64xf32>
    %798 = vector.shape_cast %797 : vector<64xf32> to vector<1x64xf32>
    %799 = arith.mulf %11, %787 : vector<1x32xf32>
    %800 = arith.addf %799, %762 : vector<1x32xf32>
    %801 = vector.extract_strided_slice %798 {offsets = [0, 0], sizes = [1, 32], strides = [1, 1]} : vector<1x64xf32> to vector<1x32xf32>
    %802 = arith.addf %800, %801 : vector<1x32xf32>
    %803 = vector.extract_strided_slice %798 {offsets = [0, 32], sizes = [1, 32], strides = [1, 1]} : vector<1x64xf32> to vector<1x32xf32>
    %804 = arith.addf %764, %803 : vector<1x32xf32>
    %805 = tpu.reciprocal %804 {approx = true} : vector<1x32xf32> -> vector<1x32xf32>
    %806 = arith.mulf %804, %805 : vector<1x32xf32>
    %cst_156 = arith.constant 2.000000e+00 : f32
    %807 = vector.broadcast %cst_156 : f32 to vector<1x32xf32>
    %808 = arith.subf %807, %806 : vector<1x32xf32>
    %809 = arith.mulf %805, %808 : vector<1x32xf32>
    %810 = arith.mulf %802, %809 : vector<1x32xf32>
    %c2_i32_157 = arith.constant 2 : i32
    %811 = vector.broadcast %810 : vector<1x32xf32> to vector<32x32xf32>
    %812 = arith.mulf %22, %811 : vector<32x32xf32>
    %cst_158 = arith.constant dense<0.000000e+00> : vector<32xf32>
    %813 = vector.multi_reduction <add>, %812, %cst_158 [1] : vector<32x32xf32> to vector<32xf32>
    %814 = vector.shape_cast %813 : vector<32xf32> to vector<32x1xf32>
    %815 = vector.broadcast %814 : vector<32x1xf32> to vector<32x64xf32>
    %816 = arith.subf %815, %1 : vector<32x64xf32>
    %817 = arith.mulf %3, %816 : vector<32x64xf32>
    %818 = math.tanh %817 : vector<32x64xf32>
    %819 = arith.mulf %5, %818 : vector<32x64xf32>
    %cst_159 = arith.constant dense<0.000000e+00> : vector<64xf32>
    %820 = vector.multi_reduction <add>, %819, %cst_159 [0] : vector<32x64xf32> to vector<64xf32>
    %821 = vector.shape_cast %820 : vector<64xf32> to vector<1x64xf32>
    %822 = arith.mulf %11, %810 : vector<1x32xf32>
    %823 = arith.addf %822, %762 : vector<1x32xf32>
    %824 = vector.extract_strided_slice %821 {offsets = [0, 0], sizes = [1, 32], strides = [1, 1]} : vector<1x64xf32> to vector<1x32xf32>
    %825 = arith.addf %823, %824 : vector<1x32xf32>
    %826 = vector.extract_strided_slice %821 {offsets = [0, 32], sizes = [1, 32], strides = [1, 1]} : vector<1x64xf32> to vector<1x32xf32>
    %827 = arith.addf %764, %826 : vector<1x32xf32>
    %828 = tpu.reciprocal %827 {approx = true} : vector<1x32xf32> -> vector<1x32xf32>
    %829 = arith.mulf %827, %828 : vector<1x32xf32>
    %cst_160 = arith.constant 2.000000e+00 : f32
    %830 = vector.broadcast %cst_160 : f32 to vector<1x32xf32>
    %831 = arith.subf %830, %829 : vector<1x32xf32>
    %832 = arith.mulf %828, %831 : vector<1x32xf32>
    %833 = arith.mulf %825, %832 : vector<1x32xf32>
    %c3_i32_161 = arith.constant 3 : i32
    %834 = vector.broadcast %833 : vector<1x32xf32> to vector<32x32xf32>
    %835 = arith.mulf %22, %834 : vector<32x32xf32>
    %cst_162 = arith.constant dense<0.000000e+00> : vector<32xf32>
    %836 = vector.multi_reduction <add>, %835, %cst_162 [1] : vector<32x32xf32> to vector<32xf32>
    %837 = vector.shape_cast %836 : vector<32xf32> to vector<32x1xf32>
    %838 = vector.broadcast %837 : vector<32x1xf32> to vector<32x64xf32>
    %839 = arith.subf %838, %1 : vector<32x64xf32>
    %840 = arith.mulf %3, %839 : vector<32x64xf32>
    %841 = math.tanh %840 : vector<32x64xf32>
    %842 = arith.mulf %5, %841 : vector<32x64xf32>
    %cst_163 = arith.constant dense<0.000000e+00> : vector<64xf32>
    %843 = vector.multi_reduction <add>, %842, %cst_163 [0] : vector<32x64xf32> to vector<64xf32>
    %844 = vector.shape_cast %843 : vector<64xf32> to vector<1x64xf32>
    %845 = arith.mulf %11, %833 : vector<1x32xf32>
    %846 = arith.addf %845, %762 : vector<1x32xf32>
    %847 = vector.extract_strided_slice %844 {offsets = [0, 0], sizes = [1, 32], strides = [1, 1]} : vector<1x64xf32> to vector<1x32xf32>
    %848 = arith.addf %846, %847 : vector<1x32xf32>
    %849 = vector.extract_strided_slice %844 {offsets = [0, 32], sizes = [1, 32], strides = [1, 1]} : vector<1x64xf32> to vector<1x32xf32>
    %850 = arith.addf %764, %849 : vector<1x32xf32>
    %851 = tpu.reciprocal %850 {approx = true} : vector<1x32xf32> -> vector<1x32xf32>
    %852 = arith.mulf %850, %851 : vector<1x32xf32>
    %cst_164 = arith.constant 2.000000e+00 : f32
    %853 = vector.broadcast %cst_164 : f32 to vector<1x32xf32>
    %854 = arith.subf %853, %852 : vector<1x32xf32>
    %855 = arith.mulf %851, %854 : vector<1x32xf32>
    %856 = arith.mulf %848, %855 : vector<1x32xf32>
    %c4_i32_165 = arith.constant 4 : i32
    %857 = vector.broadcast %856 : vector<1x32xf32> to vector<32x32xf32>
    %858 = arith.mulf %22, %857 : vector<32x32xf32>
    %cst_166 = arith.constant dense<0.000000e+00> : vector<32xf32>
    %859 = vector.multi_reduction <add>, %858, %cst_166 [1] : vector<32x32xf32> to vector<32xf32>
    %860 = vector.shape_cast %859 : vector<32xf32> to vector<32x1xf32>
    %861 = vector.broadcast %860 : vector<32x1xf32> to vector<32x64xf32>
    %862 = arith.subf %861, %1 : vector<32x64xf32>
    %863 = arith.mulf %3, %862 : vector<32x64xf32>
    %864 = math.tanh %863 : vector<32x64xf32>
    %865 = arith.mulf %5, %864 : vector<32x64xf32>
    %cst_167 = arith.constant dense<0.000000e+00> : vector<64xf32>
    %866 = vector.multi_reduction <add>, %865, %cst_167 [0] : vector<32x64xf32> to vector<64xf32>
    %867 = vector.shape_cast %866 : vector<64xf32> to vector<1x64xf32>
    %868 = arith.mulf %11, %856 : vector<1x32xf32>
    %869 = arith.addf %868, %762 : vector<1x32xf32>
    %870 = vector.extract_strided_slice %867 {offsets = [0, 0], sizes = [1, 32], strides = [1, 1]} : vector<1x64xf32> to vector<1x32xf32>
    %871 = arith.addf %869, %870 : vector<1x32xf32>
    %872 = vector.extract_strided_slice %867 {offsets = [0, 32], sizes = [1, 32], strides = [1, 1]} : vector<1x64xf32> to vector<1x32xf32>
    %873 = arith.addf %764, %872 : vector<1x32xf32>
    %874 = tpu.reciprocal %873 {approx = true} : vector<1x32xf32> -> vector<1x32xf32>
    %875 = arith.mulf %873, %874 : vector<1x32xf32>
    %cst_168 = arith.constant 2.000000e+00 : f32
    %876 = vector.broadcast %cst_168 : f32 to vector<1x32xf32>
    %877 = arith.subf %876, %875 : vector<1x32xf32>
    %878 = arith.mulf %874, %877 : vector<1x32xf32>
    %879 = arith.mulf %871, %878 : vector<1x32xf32>
    %c5_i32_169 = arith.constant 5 : i32
    %880 = vector.broadcast %879 : vector<1x32xf32> to vector<32x32xf32>
    %881 = arith.mulf %22, %880 : vector<32x32xf32>
    %cst_170 = arith.constant dense<0.000000e+00> : vector<32xf32>
    %882 = vector.multi_reduction <add>, %881, %cst_170 [1] : vector<32x32xf32> to vector<32xf32>
    %883 = vector.shape_cast %882 : vector<32xf32> to vector<32x1xf32>
    %884 = vector.broadcast %883 : vector<32x1xf32> to vector<32x64xf32>
    %885 = arith.subf %884, %1 : vector<32x64xf32>
    %886 = arith.mulf %3, %885 : vector<32x64xf32>
    %887 = math.tanh %886 : vector<32x64xf32>
    %888 = arith.mulf %5, %887 : vector<32x64xf32>
    %cst_171 = arith.constant dense<0.000000e+00> : vector<64xf32>
    %889 = vector.multi_reduction <add>, %888, %cst_171 [0] : vector<32x64xf32> to vector<64xf32>
    %890 = vector.shape_cast %889 : vector<64xf32> to vector<1x64xf32>
    %891 = arith.mulf %11, %879 : vector<1x32xf32>
    %892 = arith.addf %891, %762 : vector<1x32xf32>
    %893 = vector.extract_strided_slice %890 {offsets = [0, 0], sizes = [1, 32], strides = [1, 1]} : vector<1x64xf32> to vector<1x32xf32>
    %894 = arith.addf %892, %893 : vector<1x32xf32>
    %895 = vector.extract_strided_slice %890 {offsets = [0, 32], sizes = [1, 32], strides = [1, 1]} : vector<1x64xf32> to vector<1x32xf32>
    %896 = arith.addf %764, %895 : vector<1x32xf32>
    %897 = tpu.reciprocal %896 {approx = true} : vector<1x32xf32> -> vector<1x32xf32>
    %898 = arith.mulf %896, %897 : vector<1x32xf32>
    %cst_172 = arith.constant 2.000000e+00 : f32
    %899 = vector.broadcast %cst_172 : f32 to vector<1x32xf32>
    %900 = arith.subf %899, %898 : vector<1x32xf32>
    %901 = arith.mulf %897, %900 : vector<1x32xf32>
    %902 = arith.mulf %894, %901 : vector<1x32xf32>
    %c6_i32 = arith.constant 6 : i32
    %903 = arith.index_cast %c6_i32 : i32 to index
    %c0_173 = arith.constant 0 : index
    %904 = vector.load %arg5[%903, %c0_173] : memref<8x32xf32, #tpu.memory_space<vmem>>, vector<1x32xf32>
    %905 = arith.index_cast %c6_i32 : i32 to index
    %c0_174 = arith.constant 0 : index
    %906 = vector.load %arg6[%905, %c0_174] : memref<8x32xf32, #tpu.memory_space<vmem>>, vector<1x32xf32>
    %c0_i32_175 = arith.constant 0 : i32
    %907 = vector.broadcast %902 : vector<1x32xf32> to vector<32x32xf32>
    %908 = arith.mulf %22, %907 : vector<32x32xf32>
    %cst_176 = arith.constant dense<0.000000e+00> : vector<32xf32>
    %909 = vector.multi_reduction <add>, %908, %cst_176 [1] : vector<32x32xf32> to vector<32xf32>
    %910 = vector.shape_cast %909 : vector<32xf32> to vector<32x1xf32>
    %911 = vector.broadcast %910 : vector<32x1xf32> to vector<32x64xf32>
    %912 = arith.subf %911, %1 : vector<32x64xf32>
    %913 = arith.mulf %3, %912 : vector<32x64xf32>
    %914 = math.tanh %913 : vector<32x64xf32>
    %915 = arith.mulf %5, %914 : vector<32x64xf32>
    %cst_177 = arith.constant dense<0.000000e+00> : vector<64xf32>
    %916 = vector.multi_reduction <add>, %915, %cst_177 [0] : vector<32x64xf32> to vector<64xf32>
    %917 = vector.shape_cast %916 : vector<64xf32> to vector<1x64xf32>
    %918 = arith.mulf %11, %902 : vector<1x32xf32>
    %919 = arith.addf %918, %904 : vector<1x32xf32>
    %920 = vector.extract_strided_slice %917 {offsets = [0, 0], sizes = [1, 32], strides = [1, 1]} : vector<1x64xf32> to vector<1x32xf32>
    %921 = arith.addf %919, %920 : vector<1x32xf32>
    %922 = vector.extract_strided_slice %917 {offsets = [0, 32], sizes = [1, 32], strides = [1, 1]} : vector<1x64xf32> to vector<1x32xf32>
    %923 = arith.addf %906, %922 : vector<1x32xf32>
    %924 = tpu.reciprocal %923 {approx = true} : vector<1x32xf32> -> vector<1x32xf32>
    %925 = arith.mulf %923, %924 : vector<1x32xf32>
    %cst_178 = arith.constant 2.000000e+00 : f32
    %926 = vector.broadcast %cst_178 : f32 to vector<1x32xf32>
    %927 = arith.subf %926, %925 : vector<1x32xf32>
    %928 = arith.mulf %924, %927 : vector<1x32xf32>
    %929 = arith.mulf %921, %928 : vector<1x32xf32>
    %c1_i32_179 = arith.constant 1 : i32
    %930 = vector.broadcast %929 : vector<1x32xf32> to vector<32x32xf32>
    %931 = arith.mulf %22, %930 : vector<32x32xf32>
    %cst_180 = arith.constant dense<0.000000e+00> : vector<32xf32>
    %932 = vector.multi_reduction <add>, %931, %cst_180 [1] : vector<32x32xf32> to vector<32xf32>
    %933 = vector.shape_cast %932 : vector<32xf32> to vector<32x1xf32>
    %934 = vector.broadcast %933 : vector<32x1xf32> to vector<32x64xf32>
    %935 = arith.subf %934, %1 : vector<32x64xf32>
    %936 = arith.mulf %3, %935 : vector<32x64xf32>
    %937 = math.tanh %936 : vector<32x64xf32>
    %938 = arith.mulf %5, %937 : vector<32x64xf32>
    %cst_181 = arith.constant dense<0.000000e+00> : vector<64xf32>
    %939 = vector.multi_reduction <add>, %938, %cst_181 [0] : vector<32x64xf32> to vector<64xf32>
    %940 = vector.shape_cast %939 : vector<64xf32> to vector<1x64xf32>
    %941 = arith.mulf %11, %929 : vector<1x32xf32>
    %942 = arith.addf %941, %904 : vector<1x32xf32>
    %943 = vector.extract_strided_slice %940 {offsets = [0, 0], sizes = [1, 32], strides = [1, 1]} : vector<1x64xf32> to vector<1x32xf32>
    %944 = arith.addf %942, %943 : vector<1x32xf32>
    %945 = vector.extract_strided_slice %940 {offsets = [0, 32], sizes = [1, 32], strides = [1, 1]} : vector<1x64xf32> to vector<1x32xf32>
    %946 = arith.addf %906, %945 : vector<1x32xf32>
    %947 = tpu.reciprocal %946 {approx = true} : vector<1x32xf32> -> vector<1x32xf32>
    %948 = arith.mulf %946, %947 : vector<1x32xf32>
    %cst_182 = arith.constant 2.000000e+00 : f32
    %949 = vector.broadcast %cst_182 : f32 to vector<1x32xf32>
    %950 = arith.subf %949, %948 : vector<1x32xf32>
    %951 = arith.mulf %947, %950 : vector<1x32xf32>
    %952 = arith.mulf %944, %951 : vector<1x32xf32>
    %c2_i32_183 = arith.constant 2 : i32
    %953 = vector.broadcast %952 : vector<1x32xf32> to vector<32x32xf32>
    %954 = arith.mulf %22, %953 : vector<32x32xf32>
    %cst_184 = arith.constant dense<0.000000e+00> : vector<32xf32>
    %955 = vector.multi_reduction <add>, %954, %cst_184 [1] : vector<32x32xf32> to vector<32xf32>
    %956 = vector.shape_cast %955 : vector<32xf32> to vector<32x1xf32>
    %957 = vector.broadcast %956 : vector<32x1xf32> to vector<32x64xf32>
    %958 = arith.subf %957, %1 : vector<32x64xf32>
    %959 = arith.mulf %3, %958 : vector<32x64xf32>
    %960 = math.tanh %959 : vector<32x64xf32>
    %961 = arith.mulf %5, %960 : vector<32x64xf32>
    %cst_185 = arith.constant dense<0.000000e+00> : vector<64xf32>
    %962 = vector.multi_reduction <add>, %961, %cst_185 [0] : vector<32x64xf32> to vector<64xf32>
    %963 = vector.shape_cast %962 : vector<64xf32> to vector<1x64xf32>
    %964 = arith.mulf %11, %952 : vector<1x32xf32>
    %965 = arith.addf %964, %904 : vector<1x32xf32>
    %966 = vector.extract_strided_slice %963 {offsets = [0, 0], sizes = [1, 32], strides = [1, 1]} : vector<1x64xf32> to vector<1x32xf32>
    %967 = arith.addf %965, %966 : vector<1x32xf32>
    %968 = vector.extract_strided_slice %963 {offsets = [0, 32], sizes = [1, 32], strides = [1, 1]} : vector<1x64xf32> to vector<1x32xf32>
    %969 = arith.addf %906, %968 : vector<1x32xf32>
    %970 = tpu.reciprocal %969 {approx = true} : vector<1x32xf32> -> vector<1x32xf32>
    %971 = arith.mulf %969, %970 : vector<1x32xf32>
    %cst_186 = arith.constant 2.000000e+00 : f32
    %972 = vector.broadcast %cst_186 : f32 to vector<1x32xf32>
    %973 = arith.subf %972, %971 : vector<1x32xf32>
    %974 = arith.mulf %970, %973 : vector<1x32xf32>
    %975 = arith.mulf %967, %974 : vector<1x32xf32>
    %c3_i32_187 = arith.constant 3 : i32
    %976 = vector.broadcast %975 : vector<1x32xf32> to vector<32x32xf32>
    %977 = arith.mulf %22, %976 : vector<32x32xf32>
    %cst_188 = arith.constant dense<0.000000e+00> : vector<32xf32>
    %978 = vector.multi_reduction <add>, %977, %cst_188 [1] : vector<32x32xf32> to vector<32xf32>
    %979 = vector.shape_cast %978 : vector<32xf32> to vector<32x1xf32>
    %980 = vector.broadcast %979 : vector<32x1xf32> to vector<32x64xf32>
    %981 = arith.subf %980, %1 : vector<32x64xf32>
    %982 = arith.mulf %3, %981 : vector<32x64xf32>
    %983 = math.tanh %982 : vector<32x64xf32>
    %984 = arith.mulf %5, %983 : vector<32x64xf32>
    %cst_189 = arith.constant dense<0.000000e+00> : vector<64xf32>
    %985 = vector.multi_reduction <add>, %984, %cst_189 [0] : vector<32x64xf32> to vector<64xf32>
    %986 = vector.shape_cast %985 : vector<64xf32> to vector<1x64xf32>
    %987 = arith.mulf %11, %975 : vector<1x32xf32>
    %988 = arith.addf %987, %904 : vector<1x32xf32>
    %989 = vector.extract_strided_slice %986 {offsets = [0, 0], sizes = [1, 32], strides = [1, 1]} : vector<1x64xf32> to vector<1x32xf32>
    %990 = arith.addf %988, %989 : vector<1x32xf32>
    %991 = vector.extract_strided_slice %986 {offsets = [0, 32], sizes = [1, 32], strides = [1, 1]} : vector<1x64xf32> to vector<1x32xf32>
    %992 = arith.addf %906, %991 : vector<1x32xf32>
    %993 = tpu.reciprocal %992 {approx = true} : vector<1x32xf32> -> vector<1x32xf32>
    %994 = arith.mulf %992, %993 : vector<1x32xf32>
    %cst_190 = arith.constant 2.000000e+00 : f32
    %995 = vector.broadcast %cst_190 : f32 to vector<1x32xf32>
    %996 = arith.subf %995, %994 : vector<1x32xf32>
    %997 = arith.mulf %993, %996 : vector<1x32xf32>
    %998 = arith.mulf %990, %997 : vector<1x32xf32>
    %c4_i32_191 = arith.constant 4 : i32
    %999 = vector.broadcast %998 : vector<1x32xf32> to vector<32x32xf32>
    %1000 = arith.mulf %22, %999 : vector<32x32xf32>
    %cst_192 = arith.constant dense<0.000000e+00> : vector<32xf32>
    %1001 = vector.multi_reduction <add>, %1000, %cst_192 [1] : vector<32x32xf32> to vector<32xf32>
    %1002 = vector.shape_cast %1001 : vector<32xf32> to vector<32x1xf32>
    %1003 = vector.broadcast %1002 : vector<32x1xf32> to vector<32x64xf32>
    %1004 = arith.subf %1003, %1 : vector<32x64xf32>
    %1005 = arith.mulf %3, %1004 : vector<32x64xf32>
    %1006 = math.tanh %1005 : vector<32x64xf32>
    %1007 = arith.mulf %5, %1006 : vector<32x64xf32>
    %cst_193 = arith.constant dense<0.000000e+00> : vector<64xf32>
    %1008 = vector.multi_reduction <add>, %1007, %cst_193 [0] : vector<32x64xf32> to vector<64xf32>
    %1009 = vector.shape_cast %1008 : vector<64xf32> to vector<1x64xf32>
    %1010 = arith.mulf %11, %998 : vector<1x32xf32>
    %1011 = arith.addf %1010, %904 : vector<1x32xf32>
    %1012 = vector.extract_strided_slice %1009 {offsets = [0, 0], sizes = [1, 32], strides = [1, 1]} : vector<1x64xf32> to vector<1x32xf32>
    %1013 = arith.addf %1011, %1012 : vector<1x32xf32>
    %1014 = vector.extract_strided_slice %1009 {offsets = [0, 32], sizes = [1, 32], strides = [1, 1]} : vector<1x64xf32> to vector<1x32xf32>
    %1015 = arith.addf %906, %1014 : vector<1x32xf32>
    %1016 = tpu.reciprocal %1015 {approx = true} : vector<1x32xf32> -> vector<1x32xf32>
    %1017 = arith.mulf %1015, %1016 : vector<1x32xf32>
    %cst_194 = arith.constant 2.000000e+00 : f32
    %1018 = vector.broadcast %cst_194 : f32 to vector<1x32xf32>
    %1019 = arith.subf %1018, %1017 : vector<1x32xf32>
    %1020 = arith.mulf %1016, %1019 : vector<1x32xf32>
    %1021 = arith.mulf %1013, %1020 : vector<1x32xf32>
    %c5_i32_195 = arith.constant 5 : i32
    %1022 = vector.broadcast %1021 : vector<1x32xf32> to vector<32x32xf32>
    %1023 = arith.mulf %22, %1022 : vector<32x32xf32>
    %cst_196 = arith.constant dense<0.000000e+00> : vector<32xf32>
    %1024 = vector.multi_reduction <add>, %1023, %cst_196 [1] : vector<32x32xf32> to vector<32xf32>
    %1025 = vector.shape_cast %1024 : vector<32xf32> to vector<32x1xf32>
    %1026 = vector.broadcast %1025 : vector<32x1xf32> to vector<32x64xf32>
    %1027 = arith.subf %1026, %1 : vector<32x64xf32>
    %1028 = arith.mulf %3, %1027 : vector<32x64xf32>
    %1029 = math.tanh %1028 : vector<32x64xf32>
    %1030 = arith.mulf %5, %1029 : vector<32x64xf32>
    %cst_197 = arith.constant dense<0.000000e+00> : vector<64xf32>
    %1031 = vector.multi_reduction <add>, %1030, %cst_197 [0] : vector<32x64xf32> to vector<64xf32>
    %1032 = vector.shape_cast %1031 : vector<64xf32> to vector<1x64xf32>
    %1033 = arith.mulf %11, %1021 : vector<1x32xf32>
    %1034 = arith.addf %1033, %904 : vector<1x32xf32>
    %1035 = vector.extract_strided_slice %1032 {offsets = [0, 0], sizes = [1, 32], strides = [1, 1]} : vector<1x64xf32> to vector<1x32xf32>
    %1036 = arith.addf %1034, %1035 : vector<1x32xf32>
    %1037 = vector.extract_strided_slice %1032 {offsets = [0, 32], sizes = [1, 32], strides = [1, 1]} : vector<1x64xf32> to vector<1x32xf32>
    %1038 = arith.addf %906, %1037 : vector<1x32xf32>
    %1039 = tpu.reciprocal %1038 {approx = true} : vector<1x32xf32> -> vector<1x32xf32>
    %1040 = arith.mulf %1038, %1039 : vector<1x32xf32>
    %cst_198 = arith.constant 2.000000e+00 : f32
    %1041 = vector.broadcast %cst_198 : f32 to vector<1x32xf32>
    %1042 = arith.subf %1041, %1040 : vector<1x32xf32>
    %1043 = arith.mulf %1039, %1042 : vector<1x32xf32>
    %1044 = arith.mulf %1036, %1043 : vector<1x32xf32>
    %c7_i32 = arith.constant 7 : i32
    %1045 = arith.index_cast %c7_i32 : i32 to index
    %c0_199 = arith.constant 0 : index
    %1046 = vector.load %arg5[%1045, %c0_199] : memref<8x32xf32, #tpu.memory_space<vmem>>, vector<1x32xf32>
    %1047 = arith.index_cast %c7_i32 : i32 to index
    %c0_200 = arith.constant 0 : index
    %1048 = vector.load %arg6[%1047, %c0_200] : memref<8x32xf32, #tpu.memory_space<vmem>>, vector<1x32xf32>
    %c0_i32_201 = arith.constant 0 : i32
    %1049 = vector.broadcast %1044 : vector<1x32xf32> to vector<32x32xf32>
    %1050 = arith.mulf %22, %1049 : vector<32x32xf32>
    %cst_202 = arith.constant dense<0.000000e+00> : vector<32xf32>
    %1051 = vector.multi_reduction <add>, %1050, %cst_202 [1] : vector<32x32xf32> to vector<32xf32>
    %1052 = vector.shape_cast %1051 : vector<32xf32> to vector<32x1xf32>
    %1053 = vector.broadcast %1052 : vector<32x1xf32> to vector<32x64xf32>
    %1054 = arith.subf %1053, %1 : vector<32x64xf32>
    %1055 = arith.mulf %3, %1054 : vector<32x64xf32>
    %1056 = math.tanh %1055 : vector<32x64xf32>
    %1057 = arith.mulf %5, %1056 : vector<32x64xf32>
    %cst_203 = arith.constant dense<0.000000e+00> : vector<64xf32>
    %1058 = vector.multi_reduction <add>, %1057, %cst_203 [0] : vector<32x64xf32> to vector<64xf32>
    %1059 = vector.shape_cast %1058 : vector<64xf32> to vector<1x64xf32>
    %1060 = arith.mulf %11, %1044 : vector<1x32xf32>
    %1061 = arith.addf %1060, %1046 : vector<1x32xf32>
    %1062 = vector.extract_strided_slice %1059 {offsets = [0, 0], sizes = [1, 32], strides = [1, 1]} : vector<1x64xf32> to vector<1x32xf32>
    %1063 = arith.addf %1061, %1062 : vector<1x32xf32>
    %1064 = vector.extract_strided_slice %1059 {offsets = [0, 32], sizes = [1, 32], strides = [1, 1]} : vector<1x64xf32> to vector<1x32xf32>
    %1065 = arith.addf %1048, %1064 : vector<1x32xf32>
    %1066 = tpu.reciprocal %1065 {approx = true} : vector<1x32xf32> -> vector<1x32xf32>
    %1067 = arith.mulf %1065, %1066 : vector<1x32xf32>
    %cst_204 = arith.constant 2.000000e+00 : f32
    %1068 = vector.broadcast %cst_204 : f32 to vector<1x32xf32>
    %1069 = arith.subf %1068, %1067 : vector<1x32xf32>
    %1070 = arith.mulf %1066, %1069 : vector<1x32xf32>
    %1071 = arith.mulf %1063, %1070 : vector<1x32xf32>
    %c1_i32_205 = arith.constant 1 : i32
    %1072 = vector.broadcast %1071 : vector<1x32xf32> to vector<32x32xf32>
    %1073 = arith.mulf %22, %1072 : vector<32x32xf32>
    %cst_206 = arith.constant dense<0.000000e+00> : vector<32xf32>
    %1074 = vector.multi_reduction <add>, %1073, %cst_206 [1] : vector<32x32xf32> to vector<32xf32>
    %1075 = vector.shape_cast %1074 : vector<32xf32> to vector<32x1xf32>
    %1076 = vector.broadcast %1075 : vector<32x1xf32> to vector<32x64xf32>
    %1077 = arith.subf %1076, %1 : vector<32x64xf32>
    %1078 = arith.mulf %3, %1077 : vector<32x64xf32>
    %1079 = math.tanh %1078 : vector<32x64xf32>
    %1080 = arith.mulf %5, %1079 : vector<32x64xf32>
    %cst_207 = arith.constant dense<0.000000e+00> : vector<64xf32>
    %1081 = vector.multi_reduction <add>, %1080, %cst_207 [0] : vector<32x64xf32> to vector<64xf32>
    %1082 = vector.shape_cast %1081 : vector<64xf32> to vector<1x64xf32>
    %1083 = arith.mulf %11, %1071 : vector<1x32xf32>
    %1084 = arith.addf %1083, %1046 : vector<1x32xf32>
    %1085 = vector.extract_strided_slice %1082 {offsets = [0, 0], sizes = [1, 32], strides = [1, 1]} : vector<1x64xf32> to vector<1x32xf32>
    %1086 = arith.addf %1084, %1085 : vector<1x32xf32>
    %1087 = vector.extract_strided_slice %1082 {offsets = [0, 32], sizes = [1, 32], strides = [1, 1]} : vector<1x64xf32> to vector<1x32xf32>
    %1088 = arith.addf %1048, %1087 : vector<1x32xf32>
    %1089 = tpu.reciprocal %1088 {approx = true} : vector<1x32xf32> -> vector<1x32xf32>
    %1090 = arith.mulf %1088, %1089 : vector<1x32xf32>
    %cst_208 = arith.constant 2.000000e+00 : f32
    %1091 = vector.broadcast %cst_208 : f32 to vector<1x32xf32>
    %1092 = arith.subf %1091, %1090 : vector<1x32xf32>
    %1093 = arith.mulf %1089, %1092 : vector<1x32xf32>
    %1094 = arith.mulf %1086, %1093 : vector<1x32xf32>
    %c2_i32_209 = arith.constant 2 : i32
    %1095 = vector.broadcast %1094 : vector<1x32xf32> to vector<32x32xf32>
    %1096 = arith.mulf %22, %1095 : vector<32x32xf32>
    %cst_210 = arith.constant dense<0.000000e+00> : vector<32xf32>
    %1097 = vector.multi_reduction <add>, %1096, %cst_210 [1] : vector<32x32xf32> to vector<32xf32>
    %1098 = vector.shape_cast %1097 : vector<32xf32> to vector<32x1xf32>
    %1099 = vector.broadcast %1098 : vector<32x1xf32> to vector<32x64xf32>
    %1100 = arith.subf %1099, %1 : vector<32x64xf32>
    %1101 = arith.mulf %3, %1100 : vector<32x64xf32>
    %1102 = math.tanh %1101 : vector<32x64xf32>
    %1103 = arith.mulf %5, %1102 : vector<32x64xf32>
    %cst_211 = arith.constant dense<0.000000e+00> : vector<64xf32>
    %1104 = vector.multi_reduction <add>, %1103, %cst_211 [0] : vector<32x64xf32> to vector<64xf32>
    %1105 = vector.shape_cast %1104 : vector<64xf32> to vector<1x64xf32>
    %1106 = arith.mulf %11, %1094 : vector<1x32xf32>
    %1107 = arith.addf %1106, %1046 : vector<1x32xf32>
    %1108 = vector.extract_strided_slice %1105 {offsets = [0, 0], sizes = [1, 32], strides = [1, 1]} : vector<1x64xf32> to vector<1x32xf32>
    %1109 = arith.addf %1107, %1108 : vector<1x32xf32>
    %1110 = vector.extract_strided_slice %1105 {offsets = [0, 32], sizes = [1, 32], strides = [1, 1]} : vector<1x64xf32> to vector<1x32xf32>
    %1111 = arith.addf %1048, %1110 : vector<1x32xf32>
    %1112 = tpu.reciprocal %1111 {approx = true} : vector<1x32xf32> -> vector<1x32xf32>
    %1113 = arith.mulf %1111, %1112 : vector<1x32xf32>
    %cst_212 = arith.constant 2.000000e+00 : f32
    %1114 = vector.broadcast %cst_212 : f32 to vector<1x32xf32>
    %1115 = arith.subf %1114, %1113 : vector<1x32xf32>
    %1116 = arith.mulf %1112, %1115 : vector<1x32xf32>
    %1117 = arith.mulf %1109, %1116 : vector<1x32xf32>
    %c3_i32_213 = arith.constant 3 : i32
    %1118 = vector.broadcast %1117 : vector<1x32xf32> to vector<32x32xf32>
    %1119 = arith.mulf %22, %1118 : vector<32x32xf32>
    %cst_214 = arith.constant dense<0.000000e+00> : vector<32xf32>
    %1120 = vector.multi_reduction <add>, %1119, %cst_214 [1] : vector<32x32xf32> to vector<32xf32>
    %1121 = vector.shape_cast %1120 : vector<32xf32> to vector<32x1xf32>
    %1122 = vector.broadcast %1121 : vector<32x1xf32> to vector<32x64xf32>
    %1123 = arith.subf %1122, %1 : vector<32x64xf32>
    %1124 = arith.mulf %3, %1123 : vector<32x64xf32>
    %1125 = math.tanh %1124 : vector<32x64xf32>
    %1126 = arith.mulf %5, %1125 : vector<32x64xf32>
    %cst_215 = arith.constant dense<0.000000e+00> : vector<64xf32>
    %1127 = vector.multi_reduction <add>, %1126, %cst_215 [0] : vector<32x64xf32> to vector<64xf32>
    %1128 = vector.shape_cast %1127 : vector<64xf32> to vector<1x64xf32>
    %1129 = arith.mulf %11, %1117 : vector<1x32xf32>
    %1130 = arith.addf %1129, %1046 : vector<1x32xf32>
    %1131 = vector.extract_strided_slice %1128 {offsets = [0, 0], sizes = [1, 32], strides = [1, 1]} : vector<1x64xf32> to vector<1x32xf32>
    %1132 = arith.addf %1130, %1131 : vector<1x32xf32>
    %1133 = vector.extract_strided_slice %1128 {offsets = [0, 32], sizes = [1, 32], strides = [1, 1]} : vector<1x64xf32> to vector<1x32xf32>
    %1134 = arith.addf %1048, %1133 : vector<1x32xf32>
    %1135 = tpu.reciprocal %1134 {approx = true} : vector<1x32xf32> -> vector<1x32xf32>
    %1136 = arith.mulf %1134, %1135 : vector<1x32xf32>
    %cst_216 = arith.constant 2.000000e+00 : f32
    %1137 = vector.broadcast %cst_216 : f32 to vector<1x32xf32>
    %1138 = arith.subf %1137, %1136 : vector<1x32xf32>
    %1139 = arith.mulf %1135, %1138 : vector<1x32xf32>
    %1140 = arith.mulf %1132, %1139 : vector<1x32xf32>
    %c4_i32_217 = arith.constant 4 : i32
    %1141 = vector.broadcast %1140 : vector<1x32xf32> to vector<32x32xf32>
    %1142 = arith.mulf %22, %1141 : vector<32x32xf32>
    %cst_218 = arith.constant dense<0.000000e+00> : vector<32xf32>
    %1143 = vector.multi_reduction <add>, %1142, %cst_218 [1] : vector<32x32xf32> to vector<32xf32>
    %1144 = vector.shape_cast %1143 : vector<32xf32> to vector<32x1xf32>
    %1145 = vector.broadcast %1144 : vector<32x1xf32> to vector<32x64xf32>
    %1146 = arith.subf %1145, %1 : vector<32x64xf32>
    %1147 = arith.mulf %3, %1146 : vector<32x64xf32>
    %1148 = math.tanh %1147 : vector<32x64xf32>
    %1149 = arith.mulf %5, %1148 : vector<32x64xf32>
    %cst_219 = arith.constant dense<0.000000e+00> : vector<64xf32>
    %1150 = vector.multi_reduction <add>, %1149, %cst_219 [0] : vector<32x64xf32> to vector<64xf32>
    %1151 = vector.shape_cast %1150 : vector<64xf32> to vector<1x64xf32>
    %1152 = arith.mulf %11, %1140 : vector<1x32xf32>
    %1153 = arith.addf %1152, %1046 : vector<1x32xf32>
    %1154 = vector.extract_strided_slice %1151 {offsets = [0, 0], sizes = [1, 32], strides = [1, 1]} : vector<1x64xf32> to vector<1x32xf32>
    %1155 = arith.addf %1153, %1154 : vector<1x32xf32>
    %1156 = vector.extract_strided_slice %1151 {offsets = [0, 32], sizes = [1, 32], strides = [1, 1]} : vector<1x64xf32> to vector<1x32xf32>
    %1157 = arith.addf %1048, %1156 : vector<1x32xf32>
    %1158 = tpu.reciprocal %1157 {approx = true} : vector<1x32xf32> -> vector<1x32xf32>
    %1159 = arith.mulf %1157, %1158 : vector<1x32xf32>
    %cst_220 = arith.constant 2.000000e+00 : f32
    %1160 = vector.broadcast %cst_220 : f32 to vector<1x32xf32>
    %1161 = arith.subf %1160, %1159 : vector<1x32xf32>
    %1162 = arith.mulf %1158, %1161 : vector<1x32xf32>
    %1163 = arith.mulf %1155, %1162 : vector<1x32xf32>
    %c5_i32_221 = arith.constant 5 : i32
    %1164 = vector.broadcast %1163 : vector<1x32xf32> to vector<32x32xf32>
    %1165 = arith.mulf %22, %1164 : vector<32x32xf32>
    %cst_222 = arith.constant dense<0.000000e+00> : vector<32xf32>
    %1166 = vector.multi_reduction <add>, %1165, %cst_222 [1] : vector<32x32xf32> to vector<32xf32>
    %1167 = vector.shape_cast %1166 : vector<32xf32> to vector<32x1xf32>
    %1168 = vector.broadcast %1167 : vector<32x1xf32> to vector<32x64xf32>
    %1169 = arith.subf %1168, %1 : vector<32x64xf32>
    %1170 = arith.mulf %3, %1169 : vector<32x64xf32>
    %1171 = math.tanh %1170 : vector<32x64xf32>
    %1172 = arith.mulf %5, %1171 : vector<32x64xf32>
    %cst_223 = arith.constant dense<0.000000e+00> : vector<64xf32>
    %1173 = vector.multi_reduction <add>, %1172, %cst_223 [0] : vector<32x64xf32> to vector<64xf32>
    %1174 = vector.shape_cast %1173 : vector<64xf32> to vector<1x64xf32>
    %1175 = arith.mulf %11, %1163 : vector<1x32xf32>
    %1176 = arith.addf %1175, %1046 : vector<1x32xf32>
    %1177 = vector.extract_strided_slice %1174 {offsets = [0, 0], sizes = [1, 32], strides = [1, 1]} : vector<1x64xf32> to vector<1x32xf32>
    %1178 = arith.addf %1176, %1177 : vector<1x32xf32>
    %1179 = vector.extract_strided_slice %1174 {offsets = [0, 32], sizes = [1, 32], strides = [1, 1]} : vector<1x64xf32> to vector<1x32xf32>
    %1180 = arith.addf %1048, %1179 : vector<1x32xf32>
    %1181 = tpu.reciprocal %1180 {approx = true} : vector<1x32xf32> -> vector<1x32xf32>
    %1182 = arith.mulf %1180, %1181 : vector<1x32xf32>
    %cst_224 = arith.constant 2.000000e+00 : f32
    %1183 = vector.broadcast %cst_224 : f32 to vector<1x32xf32>
    %1184 = arith.subf %1183, %1182 : vector<1x32xf32>
    %1185 = arith.mulf %1181, %1184 : vector<1x32xf32>
    %1186 = arith.mulf %1178, %1185 : vector<1x32xf32>
    %c8_i32 = arith.constant 8 : i32
    %1187 = arith.mulf %1186, %14 : vector<1x32xf32>
    %1188 = arith.addf %1187, %15 : vector<1x32xf32>
    %c0_225 = arith.constant 0 : index
    %c0_226 = arith.constant 0 : index
    %1189 = vector.load %arg3[%c0_225, %c0_226] : memref<80x512xf32, #tpu.memory_space<vmem>>, vector<32x512xf32>
    %c32 = arith.constant 32 : index
    %c0_227 = arith.constant 0 : index
    %1190 = vector.load %arg3[%c32, %c0_227] : memref<80x512xf32, #tpu.memory_space<vmem>>, vector<40x512xf32>
    %c72 = arith.constant 72 : index
    %c0_228 = arith.constant 0 : index
    %1191 = vector.load %arg3[%c72, %c0_228] : memref<80x512xf32, #tpu.memory_space<vmem>>, vector<8x512xf32>
    %1192 = vector.extract_strided_slice %1191 {offsets = [0, 0], sizes = [1, 512], strides = [1, 1]} : vector<8x512xf32> to vector<1x512xf32>
    %1193 = vector.extract_strided_slice %1191 {offsets = [1, 0], sizes = [1, 40], strides = [1, 1]} : vector<8x512xf32> to vector<1x40xf32>
    %1194 = vector.extract_strided_slice %1191 {offsets = [1, 40], sizes = [1, 1], strides = [1, 1]} : vector<8x512xf32> to vector<1x1xf32>
    %cst_229 = arith.constant dense<0.000000e+00> : vector<1x512xf32>
    %1195 = tpu.matmul %1188, %1189, %cst_229 {dimension_numbers = #tpu.dot_dimension_numbers<[1], [0], [0], [1], [0, 0, 1, 1], [], []>} : vector<1x32xf32>, vector<32x512xf32>, vector<1x512xf32> -> vector<1x512xf32>
    %1196 = arith.addf %1195, %1192 : vector<1x512xf32>
    %cst_230 = arith.constant 0.000000e+00 : f32
    %1197 = vector.broadcast %cst_230 : f32 to vector<1x40xf32>
    %cst_231 = arith.constant 0.000000e+00 : f32
    %1198 = vector.broadcast %cst_231 : f32 to vector<1x40xf32>
    %c0_i32_232 = arith.constant 0 : i32
    %cst_233 = arith.constant dense<0.000000e+00> : vector<1x512xf32>
    %1199 = tpu.matmul %1197, %1190, %cst_233 {dimension_numbers = #tpu.dot_dimension_numbers<[1], [0], [0], [1], [0, 0, 1, 1], [], []>} : vector<1x40xf32>, vector<40x512xf32>, vector<1x512xf32> -> vector<1x512xf32>
    %1200 = arith.addf %1196, %1199 : vector<1x512xf32>
    %1201 = vector.extract_strided_slice %1200 {offsets = [0, 0], sizes = [1, 40], strides = [1, 1]} : vector<1x512xf32> to vector<1x40xf32>
    %1202 = vector.extract_strided_slice %1200 {offsets = [0, 128], sizes = [1, 40], strides = [1, 1]} : vector<1x512xf32> to vector<1x40xf32>
    %1203 = vector.extract_strided_slice %1200 {offsets = [0, 256], sizes = [1, 40], strides = [1, 1]} : vector<1x512xf32> to vector<1x40xf32>
    %1204 = vector.extract_strided_slice %1200 {offsets = [0, 384], sizes = [1, 40], strides = [1, 1]} : vector<1x512xf32> to vector<1x40xf32>
    %cst_234 = arith.constant 5.000000e-01 : f32
    %1205 = vector.broadcast %cst_234 : f32 to vector<1x40xf32>
    %1206 = arith.mulf %1205, %1201 : vector<1x40xf32>
    %1207 = math.tanh %1206 : vector<1x40xf32>
    %cst_235 = arith.constant 5.000000e-01 : f32
    %1208 = vector.broadcast %cst_235 : f32 to vector<1x40xf32>
    %1209 = arith.mulf %1208, %1207 : vector<1x40xf32>
    %cst_236 = arith.constant 5.000000e-01 : f32
    %1210 = vector.broadcast %cst_236 : f32 to vector<1x40xf32>
    %1211 = arith.addf %1209, %1210 : vector<1x40xf32>
    %cst_237 = arith.constant 5.000000e-01 : f32
    %1212 = vector.broadcast %cst_237 : f32 to vector<1x40xf32>
    %1213 = arith.mulf %1212, %1202 : vector<1x40xf32>
    %1214 = math.tanh %1213 : vector<1x40xf32>
    %cst_238 = arith.constant 5.000000e-01 : f32
    %1215 = vector.broadcast %cst_238 : f32 to vector<1x40xf32>
    %1216 = arith.mulf %1215, %1214 : vector<1x40xf32>
    %cst_239 = arith.constant 5.000000e-01 : f32
    %1217 = vector.broadcast %cst_239 : f32 to vector<1x40xf32>
    %1218 = arith.addf %1216, %1217 : vector<1x40xf32>
    %1219 = math.tanh %1203 : vector<1x40xf32>
    %cst_240 = arith.constant 5.000000e-01 : f32
    %1220 = vector.broadcast %cst_240 : f32 to vector<1x40xf32>
    %1221 = arith.mulf %1220, %1204 : vector<1x40xf32>
    %1222 = math.tanh %1221 : vector<1x40xf32>
    %cst_241 = arith.constant 5.000000e-01 : f32
    %1223 = vector.broadcast %cst_241 : f32 to vector<1x40xf32>
    %1224 = arith.mulf %1223, %1222 : vector<1x40xf32>
    %cst_242 = arith.constant 5.000000e-01 : f32
    %1225 = vector.broadcast %cst_242 : f32 to vector<1x40xf32>
    %1226 = arith.addf %1224, %1225 : vector<1x40xf32>
    %1227 = arith.mulf %1218, %1198 : vector<1x40xf32>
    %1228 = arith.mulf %1211, %1219 : vector<1x40xf32>
    %1229 = arith.addf %1227, %1228 : vector<1x40xf32>
    %1230 = math.tanh %1229 : vector<1x40xf32>
    %1231 = arith.mulf %1226, %1230 : vector<1x40xf32>
    %1232 = arith.mulf %1231, %1193 : vector<1x40xf32>
    %cst_243 = arith.constant dense<0.000000e+00> : vector<1xf32>
    %1233 = vector.multi_reduction <add>, %1232, %cst_243 [1] : vector<1x40xf32> to vector<1xf32>
    %1234 = vector.shape_cast %1233 : vector<1xf32> to vector<1x1xf32>
    %1235 = arith.addf %1234, %1194 : vector<1x1xf32>
    %1236 = arith.index_cast %c0_i32_232 : i32 to index
    %c0_244 = arith.constant 0 : index
    %1237 = vector.load %arg4[%1236, %c0_244] : memref<8x1xf32, #tpu.memory_space<vmem>>, vector<1x1xf32>
    tpu.vector_store %arg4[%1236, %c0_244], %1235 {strides = array<i32>} : memref<8x1xf32, #tpu.memory_space<vmem>>, vector<1x1xf32>,
    %c1_i32_245 = arith.constant 1 : i32
    %cst_246 = arith.constant dense<0.000000e+00> : vector<1x512xf32>
    %1238 = tpu.matmul %1231, %1190, %cst_246 {dimension_numbers = #tpu.dot_dimension_numbers<[1], [0], [0], [1], [0, 0, 1, 1], [], []>} : vector<1x40xf32>, vector<40x512xf32>, vector<1x512xf32> -> vector<1x512xf32>
    %1239 = arith.addf %1196, %1238 : vector<1x512xf32>
    %1240 = vector.extract_strided_slice %1239 {offsets = [0, 0], sizes = [1, 40], strides = [1, 1]} : vector<1x512xf32> to vector<1x40xf32>
    %1241 = vector.extract_strided_slice %1239 {offsets = [0, 128], sizes = [1, 40], strides = [1, 1]} : vector<1x512xf32> to vector<1x40xf32>
    %1242 = vector.extract_strided_slice %1239 {offsets = [0, 256], sizes = [1, 40], strides = [1, 1]} : vector<1x512xf32> to vector<1x40xf32>
    %1243 = vector.extract_strided_slice %1239 {offsets = [0, 384], sizes = [1, 40], strides = [1, 1]} : vector<1x512xf32> to vector<1x40xf32>
    %cst_247 = arith.constant 5.000000e-01 : f32
    %1244 = vector.broadcast %cst_247 : f32 to vector<1x40xf32>
    %1245 = arith.mulf %1244, %1240 : vector<1x40xf32>
    %1246 = math.tanh %1245 : vector<1x40xf32>
    %cst_248 = arith.constant 5.000000e-01 : f32
    %1247 = vector.broadcast %cst_248 : f32 to vector<1x40xf32>
    %1248 = arith.mulf %1247, %1246 : vector<1x40xf32>
    %cst_249 = arith.constant 5.000000e-01 : f32
    %1249 = vector.broadcast %cst_249 : f32 to vector<1x40xf32>
    %1250 = arith.addf %1248, %1249 : vector<1x40xf32>
    %cst_250 = arith.constant 5.000000e-01 : f32
    %1251 = vector.broadcast %cst_250 : f32 to vector<1x40xf32>
    %1252 = arith.mulf %1251, %1241 : vector<1x40xf32>
    %1253 = math.tanh %1252 : vector<1x40xf32>
    %cst_251 = arith.constant 5.000000e-01 : f32
    %1254 = vector.broadcast %cst_251 : f32 to vector<1x40xf32>
    %1255 = arith.mulf %1254, %1253 : vector<1x40xf32>
    %cst_252 = arith.constant 5.000000e-01 : f32
    %1256 = vector.broadcast %cst_252 : f32 to vector<1x40xf32>
    %1257 = arith.addf %1255, %1256 : vector<1x40xf32>
    %1258 = math.tanh %1242 : vector<1x40xf32>
    %cst_253 = arith.constant 5.000000e-01 : f32
    %1259 = vector.broadcast %cst_253 : f32 to vector<1x40xf32>
    %1260 = arith.mulf %1259, %1243 : vector<1x40xf32>
    %1261 = math.tanh %1260 : vector<1x40xf32>
    %cst_254 = arith.constant 5.000000e-01 : f32
    %1262 = vector.broadcast %cst_254 : f32 to vector<1x40xf32>
    %1263 = arith.mulf %1262, %1261 : vector<1x40xf32>
    %cst_255 = arith.constant 5.000000e-01 : f32
    %1264 = vector.broadcast %cst_255 : f32 to vector<1x40xf32>
    %1265 = arith.addf %1263, %1264 : vector<1x40xf32>
    %1266 = arith.mulf %1257, %1229 : vector<1x40xf32>
    %1267 = arith.mulf %1250, %1258 : vector<1x40xf32>
    %1268 = arith.addf %1266, %1267 : vector<1x40xf32>
    %1269 = math.tanh %1268 : vector<1x40xf32>
    %1270 = arith.mulf %1265, %1269 : vector<1x40xf32>
    %1271 = arith.mulf %1270, %1193 : vector<1x40xf32>
    %cst_256 = arith.constant dense<0.000000e+00> : vector<1xf32>
    %1272 = vector.multi_reduction <add>, %1271, %cst_256 [1] : vector<1x40xf32> to vector<1xf32>
    %1273 = vector.shape_cast %1272 : vector<1xf32> to vector<1x1xf32>
    %1274 = arith.addf %1273, %1194 : vector<1x1xf32>
    %1275 = arith.index_cast %c1_i32_245 : i32 to index
    %c0_257 = arith.constant 0 : index
    %1276 = vector.load %arg4[%1275, %c0_257] : memref<8x1xf32, #tpu.memory_space<vmem>>, vector<1x1xf32>
    tpu.vector_store %arg4[%1275, %c0_257], %1274 {strides = array<i32>} : memref<8x1xf32, #tpu.memory_space<vmem>>, vector<1x1xf32>,
    %c2_i32_258 = arith.constant 2 : i32
    %cst_259 = arith.constant dense<0.000000e+00> : vector<1x512xf32>
    %1277 = tpu.matmul %1270, %1190, %cst_259 {dimension_numbers = #tpu.dot_dimension_numbers<[1], [0], [0], [1], [0, 0, 1, 1], [], []>} : vector<1x40xf32>, vector<40x512xf32>, vector<1x512xf32> -> vector<1x512xf32>
    %1278 = arith.addf %1196, %1277 : vector<1x512xf32>
    %1279 = vector.extract_strided_slice %1278 {offsets = [0, 0], sizes = [1, 40], strides = [1, 1]} : vector<1x512xf32> to vector<1x40xf32>
    %1280 = vector.extract_strided_slice %1278 {offsets = [0, 128], sizes = [1, 40], strides = [1, 1]} : vector<1x512xf32> to vector<1x40xf32>
    %1281 = vector.extract_strided_slice %1278 {offsets = [0, 256], sizes = [1, 40], strides = [1, 1]} : vector<1x512xf32> to vector<1x40xf32>
    %1282 = vector.extract_strided_slice %1278 {offsets = [0, 384], sizes = [1, 40], strides = [1, 1]} : vector<1x512xf32> to vector<1x40xf32>
    %cst_260 = arith.constant 5.000000e-01 : f32
    %1283 = vector.broadcast %cst_260 : f32 to vector<1x40xf32>
    %1284 = arith.mulf %1283, %1279 : vector<1x40xf32>
    %1285 = math.tanh %1284 : vector<1x40xf32>
    %cst_261 = arith.constant 5.000000e-01 : f32
    %1286 = vector.broadcast %cst_261 : f32 to vector<1x40xf32>
    %1287 = arith.mulf %1286, %1285 : vector<1x40xf32>
    %cst_262 = arith.constant 5.000000e-01 : f32
    %1288 = vector.broadcast %cst_262 : f32 to vector<1x40xf32>
    %1289 = arith.addf %1287, %1288 : vector<1x40xf32>
    %cst_263 = arith.constant 5.000000e-01 : f32
    %1290 = vector.broadcast %cst_263 : f32 to vector<1x40xf32>
    %1291 = arith.mulf %1290, %1280 : vector<1x40xf32>
    %1292 = math.tanh %1291 : vector<1x40xf32>
    %cst_264 = arith.constant 5.000000e-01 : f32
    %1293 = vector.broadcast %cst_264 : f32 to vector<1x40xf32>
    %1294 = arith.mulf %1293, %1292 : vector<1x40xf32>
    %cst_265 = arith.constant 5.000000e-01 : f32
    %1295 = vector.broadcast %cst_265 : f32 to vector<1x40xf32>
    %1296 = arith.addf %1294, %1295 : vector<1x40xf32>
    %1297 = math.tanh %1281 : vector<1x40xf32>
    %cst_266 = arith.constant 5.000000e-01 : f32
    %1298 = vector.broadcast %cst_266 : f32 to vector<1x40xf32>
    %1299 = arith.mulf %1298, %1282 : vector<1x40xf32>
    %1300 = math.tanh %1299 : vector<1x40xf32>
    %cst_267 = arith.constant 5.000000e-01 : f32
    %1301 = vector.broadcast %cst_267 : f32 to vector<1x40xf32>
    %1302 = arith.mulf %1301, %1300 : vector<1x40xf32>
    %cst_268 = arith.constant 5.000000e-01 : f32
    %1303 = vector.broadcast %cst_268 : f32 to vector<1x40xf32>
    %1304 = arith.addf %1302, %1303 : vector<1x40xf32>
    %1305 = arith.mulf %1296, %1268 : vector<1x40xf32>
    %1306 = arith.mulf %1289, %1297 : vector<1x40xf32>
    %1307 = arith.addf %1305, %1306 : vector<1x40xf32>
    %1308 = math.tanh %1307 : vector<1x40xf32>
    %1309 = arith.mulf %1304, %1308 : vector<1x40xf32>
    %1310 = arith.mulf %1309, %1193 : vector<1x40xf32>
    %cst_269 = arith.constant dense<0.000000e+00> : vector<1xf32>
    %1311 = vector.multi_reduction <add>, %1310, %cst_269 [1] : vector<1x40xf32> to vector<1xf32>
    %1312 = vector.shape_cast %1311 : vector<1xf32> to vector<1x1xf32>
    %1313 = arith.addf %1312, %1194 : vector<1x1xf32>
    %1314 = arith.index_cast %c2_i32_258 : i32 to index
    %c0_270 = arith.constant 0 : index
    %1315 = vector.load %arg4[%1314, %c0_270] : memref<8x1xf32, #tpu.memory_space<vmem>>, vector<1x1xf32>
    tpu.vector_store %arg4[%1314, %c0_270], %1313 {strides = array<i32>} : memref<8x1xf32, #tpu.memory_space<vmem>>, vector<1x1xf32>,
    %c3_i32_271 = arith.constant 3 : i32
    %cst_272 = arith.constant dense<0.000000e+00> : vector<1x512xf32>
    %1316 = tpu.matmul %1309, %1190, %cst_272 {dimension_numbers = #tpu.dot_dimension_numbers<[1], [0], [0], [1], [0, 0, 1, 1], [], []>} : vector<1x40xf32>, vector<40x512xf32>, vector<1x512xf32> -> vector<1x512xf32>
    %1317 = arith.addf %1196, %1316 : vector<1x512xf32>
    %1318 = vector.extract_strided_slice %1317 {offsets = [0, 0], sizes = [1, 40], strides = [1, 1]} : vector<1x512xf32> to vector<1x40xf32>
    %1319 = vector.extract_strided_slice %1317 {offsets = [0, 128], sizes = [1, 40], strides = [1, 1]} : vector<1x512xf32> to vector<1x40xf32>
    %1320 = vector.extract_strided_slice %1317 {offsets = [0, 256], sizes = [1, 40], strides = [1, 1]} : vector<1x512xf32> to vector<1x40xf32>
    %1321 = vector.extract_strided_slice %1317 {offsets = [0, 384], sizes = [1, 40], strides = [1, 1]} : vector<1x512xf32> to vector<1x40xf32>
    %cst_273 = arith.constant 5.000000e-01 : f32
    %1322 = vector.broadcast %cst_273 : f32 to vector<1x40xf32>
    %1323 = arith.mulf %1322, %1318 : vector<1x40xf32>
    %1324 = math.tanh %1323 : vector<1x40xf32>
    %cst_274 = arith.constant 5.000000e-01 : f32
    %1325 = vector.broadcast %cst_274 : f32 to vector<1x40xf32>
    %1326 = arith.mulf %1325, %1324 : vector<1x40xf32>
    %cst_275 = arith.constant 5.000000e-01 : f32
    %1327 = vector.broadcast %cst_275 : f32 to vector<1x40xf32>
    %1328 = arith.addf %1326, %1327 : vector<1x40xf32>
    %cst_276 = arith.constant 5.000000e-01 : f32
    %1329 = vector.broadcast %cst_276 : f32 to vector<1x40xf32>
    %1330 = arith.mulf %1329, %1319 : vector<1x40xf32>
    %1331 = math.tanh %1330 : vector<1x40xf32>
    %cst_277 = arith.constant 5.000000e-01 : f32
    %1332 = vector.broadcast %cst_277 : f32 to vector<1x40xf32>
    %1333 = arith.mulf %1332, %1331 : vector<1x40xf32>
    %cst_278 = arith.constant 5.000000e-01 : f32
    %1334 = vector.broadcast %cst_278 : f32 to vector<1x40xf32>
    %1335 = arith.addf %1333, %1334 : vector<1x40xf32>
    %1336 = math.tanh %1320 : vector<1x40xf32>
    %cst_279 = arith.constant 5.000000e-01 : f32
    %1337 = vector.broadcast %cst_279 : f32 to vector<1x40xf32>
    %1338 = arith.mulf %1337, %1321 : vector<1x40xf32>
    %1339 = math.tanh %1338 : vector<1x40xf32>
    %cst_280 = arith.constant 5.000000e-01 : f32
    %1340 = vector.broadcast %cst_280 : f32 to vector<1x40xf32>
    %1341 = arith.mulf %1340, %1339 : vector<1x40xf32>
    %cst_281 = arith.constant 5.000000e-01 : f32
    %1342 = vector.broadcast %cst_281 : f32 to vector<1x40xf32>
    %1343 = arith.addf %1341, %1342 : vector<1x40xf32>
    %1344 = arith.mulf %1335, %1307 : vector<1x40xf32>
    %1345 = arith.mulf %1328, %1336 : vector<1x40xf32>
    %1346 = arith.addf %1344, %1345 : vector<1x40xf32>
    %1347 = math.tanh %1346 : vector<1x40xf32>
    %1348 = arith.mulf %1343, %1347 : vector<1x40xf32>
    %1349 = arith.mulf %1348, %1193 : vector<1x40xf32>
    %cst_282 = arith.constant dense<0.000000e+00> : vector<1xf32>
    %1350 = vector.multi_reduction <add>, %1349, %cst_282 [1] : vector<1x40xf32> to vector<1xf32>
    %1351 = vector.shape_cast %1350 : vector<1xf32> to vector<1x1xf32>
    %1352 = arith.addf %1351, %1194 : vector<1x1xf32>
    %1353 = arith.index_cast %c3_i32_271 : i32 to index
    %c0_283 = arith.constant 0 : index
    %1354 = vector.load %arg4[%1353, %c0_283] : memref<8x1xf32, #tpu.memory_space<vmem>>, vector<1x1xf32>
    tpu.vector_store %arg4[%1353, %c0_283], %1352 {strides = array<i32>} : memref<8x1xf32, #tpu.memory_space<vmem>>, vector<1x1xf32>,
    %c4_i32_284 = arith.constant 4 : i32
    %cst_285 = arith.constant dense<0.000000e+00> : vector<1x512xf32>
    %1355 = tpu.matmul %1348, %1190, %cst_285 {dimension_numbers = #tpu.dot_dimension_numbers<[1], [0], [0], [1], [0, 0, 1, 1], [], []>} : vector<1x40xf32>, vector<40x512xf32>, vector<1x512xf32> -> vector<1x512xf32>
    %1356 = arith.addf %1196, %1355 : vector<1x512xf32>
    %1357 = vector.extract_strided_slice %1356 {offsets = [0, 0], sizes = [1, 40], strides = [1, 1]} : vector<1x512xf32> to vector<1x40xf32>
    %1358 = vector.extract_strided_slice %1356 {offsets = [0, 128], sizes = [1, 40], strides = [1, 1]} : vector<1x512xf32> to vector<1x40xf32>
    %1359 = vector.extract_strided_slice %1356 {offsets = [0, 256], sizes = [1, 40], strides = [1, 1]} : vector<1x512xf32> to vector<1x40xf32>
    %1360 = vector.extract_strided_slice %1356 {offsets = [0, 384], sizes = [1, 40], strides = [1, 1]} : vector<1x512xf32> to vector<1x40xf32>
    %cst_286 = arith.constant 5.000000e-01 : f32
    %1361 = vector.broadcast %cst_286 : f32 to vector<1x40xf32>
    %1362 = arith.mulf %1361, %1357 : vector<1x40xf32>
    %1363 = math.tanh %1362 : vector<1x40xf32>
    %cst_287 = arith.constant 5.000000e-01 : f32
    %1364 = vector.broadcast %cst_287 : f32 to vector<1x40xf32>
    %1365 = arith.mulf %1364, %1363 : vector<1x40xf32>
    %cst_288 = arith.constant 5.000000e-01 : f32
    %1366 = vector.broadcast %cst_288 : f32 to vector<1x40xf32>
    %1367 = arith.addf %1365, %1366 : vector<1x40xf32>
    %cst_289 = arith.constant 5.000000e-01 : f32
    %1368 = vector.broadcast %cst_289 : f32 to vector<1x40xf32>
    %1369 = arith.mulf %1368, %1358 : vector<1x40xf32>
    %1370 = math.tanh %1369 : vector<1x40xf32>
    %cst_290 = arith.constant 5.000000e-01 : f32
    %1371 = vector.broadcast %cst_290 : f32 to vector<1x40xf32>
    %1372 = arith.mulf %1371, %1370 : vector<1x40xf32>
    %cst_291 = arith.constant 5.000000e-01 : f32
    %1373 = vector.broadcast %cst_291 : f32 to vector<1x40xf32>
    %1374 = arith.addf %1372, %1373 : vector<1x40xf32>
    %1375 = math.tanh %1359 : vector<1x40xf32>
    %cst_292 = arith.constant 5.000000e-01 : f32
    %1376 = vector.broadcast %cst_292 : f32 to vector<1x40xf32>
    %1377 = arith.mulf %1376, %1360 : vector<1x40xf32>
    %1378 = math.tanh %1377 : vector<1x40xf32>
    %cst_293 = arith.constant 5.000000e-01 : f32
    %1379 = vector.broadcast %cst_293 : f32 to vector<1x40xf32>
    %1380 = arith.mulf %1379, %1378 : vector<1x40xf32>
    %cst_294 = arith.constant 5.000000e-01 : f32
    %1381 = vector.broadcast %cst_294 : f32 to vector<1x40xf32>
    %1382 = arith.addf %1380, %1381 : vector<1x40xf32>
    %1383 = arith.mulf %1374, %1346 : vector<1x40xf32>
    %1384 = arith.mulf %1367, %1375 : vector<1x40xf32>
    %1385 = arith.addf %1383, %1384 : vector<1x40xf32>
    %1386 = math.tanh %1385 : vector<1x40xf32>
    %1387 = arith.mulf %1382, %1386 : vector<1x40xf32>
    %1388 = arith.mulf %1387, %1193 : vector<1x40xf32>
    %cst_295 = arith.constant dense<0.000000e+00> : vector<1xf32>
    %1389 = vector.multi_reduction <add>, %1388, %cst_295 [1] : vector<1x40xf32> to vector<1xf32>
    %1390 = vector.shape_cast %1389 : vector<1xf32> to vector<1x1xf32>
    %1391 = arith.addf %1390, %1194 : vector<1x1xf32>
    %1392 = arith.index_cast %c4_i32_284 : i32 to index
    %c0_296 = arith.constant 0 : index
    %1393 = vector.load %arg4[%1392, %c0_296] : memref<8x1xf32, #tpu.memory_space<vmem>>, vector<1x1xf32>
    tpu.vector_store %arg4[%1392, %c0_296], %1391 {strides = array<i32>} : memref<8x1xf32, #tpu.memory_space<vmem>>, vector<1x1xf32>,
    %c5_i32_297 = arith.constant 5 : i32
    %cst_298 = arith.constant dense<0.000000e+00> : vector<1x512xf32>
    %1394 = tpu.matmul %1387, %1190, %cst_298 {dimension_numbers = #tpu.dot_dimension_numbers<[1], [0], [0], [1], [0, 0, 1, 1], [], []>} : vector<1x40xf32>, vector<40x512xf32>, vector<1x512xf32> -> vector<1x512xf32>
    %1395 = arith.addf %1196, %1394 : vector<1x512xf32>
    %1396 = vector.extract_strided_slice %1395 {offsets = [0, 0], sizes = [1, 40], strides = [1, 1]} : vector<1x512xf32> to vector<1x40xf32>
    %1397 = vector.extract_strided_slice %1395 {offsets = [0, 128], sizes = [1, 40], strides = [1, 1]} : vector<1x512xf32> to vector<1x40xf32>
    %1398 = vector.extract_strided_slice %1395 {offsets = [0, 256], sizes = [1, 40], strides = [1, 1]} : vector<1x512xf32> to vector<1x40xf32>
    %1399 = vector.extract_strided_slice %1395 {offsets = [0, 384], sizes = [1, 40], strides = [1, 1]} : vector<1x512xf32> to vector<1x40xf32>
    %cst_299 = arith.constant 5.000000e-01 : f32
    %1400 = vector.broadcast %cst_299 : f32 to vector<1x40xf32>
    %1401 = arith.mulf %1400, %1396 : vector<1x40xf32>
    %1402 = math.tanh %1401 : vector<1x40xf32>
    %cst_300 = arith.constant 5.000000e-01 : f32
    %1403 = vector.broadcast %cst_300 : f32 to vector<1x40xf32>
    %1404 = arith.mulf %1403, %1402 : vector<1x40xf32>
    %cst_301 = arith.constant 5.000000e-01 : f32
    %1405 = vector.broadcast %cst_301 : f32 to vector<1x40xf32>
    %1406 = arith.addf %1404, %1405 : vector<1x40xf32>
    %cst_302 = arith.constant 5.000000e-01 : f32
    %1407 = vector.broadcast %cst_302 : f32 to vector<1x40xf32>
    %1408 = arith.mulf %1407, %1397 : vector<1x40xf32>
    %1409 = math.tanh %1408 : vector<1x40xf32>
    %cst_303 = arith.constant 5.000000e-01 : f32
    %1410 = vector.broadcast %cst_303 : f32 to vector<1x40xf32>
    %1411 = arith.mulf %1410, %1409 : vector<1x40xf32>
    %cst_304 = arith.constant 5.000000e-01 : f32
    %1412 = vector.broadcast %cst_304 : f32 to vector<1x40xf32>
    %1413 = arith.addf %1411, %1412 : vector<1x40xf32>
    %1414 = math.tanh %1398 : vector<1x40xf32>
    %cst_305 = arith.constant 5.000000e-01 : f32
    %1415 = vector.broadcast %cst_305 : f32 to vector<1x40xf32>
    %1416 = arith.mulf %1415, %1399 : vector<1x40xf32>
    %1417 = math.tanh %1416 : vector<1x40xf32>
    %cst_306 = arith.constant 5.000000e-01 : f32
    %1418 = vector.broadcast %cst_306 : f32 to vector<1x40xf32>
    %1419 = arith.mulf %1418, %1417 : vector<1x40xf32>
    %cst_307 = arith.constant 5.000000e-01 : f32
    %1420 = vector.broadcast %cst_307 : f32 to vector<1x40xf32>
    %1421 = arith.addf %1419, %1420 : vector<1x40xf32>
    %1422 = arith.mulf %1413, %1385 : vector<1x40xf32>
    %1423 = arith.mulf %1406, %1414 : vector<1x40xf32>
    %1424 = arith.addf %1422, %1423 : vector<1x40xf32>
    %1425 = math.tanh %1424 : vector<1x40xf32>
    %1426 = arith.mulf %1421, %1425 : vector<1x40xf32>
    %1427 = arith.mulf %1426, %1193 : vector<1x40xf32>
    %cst_308 = arith.constant dense<0.000000e+00> : vector<1xf32>
    %1428 = vector.multi_reduction <add>, %1427, %cst_308 [1] : vector<1x40xf32> to vector<1xf32>
    %1429 = vector.shape_cast %1428 : vector<1xf32> to vector<1x1xf32>
    %1430 = arith.addf %1429, %1194 : vector<1x1xf32>
    %1431 = arith.index_cast %c5_i32_297 : i32 to index
    %c0_309 = arith.constant 0 : index
    %1432 = vector.load %arg4[%1431, %c0_309] : memref<8x1xf32, #tpu.memory_space<vmem>>, vector<1x1xf32>
    tpu.vector_store %arg4[%1431, %c0_309], %1430 {strides = array<i32>} : memref<8x1xf32, #tpu.memory_space<vmem>>, vector<1x1xf32>,
    %c6_i32_310 = arith.constant 6 : i32
    %cst_311 = arith.constant dense<0.000000e+00> : vector<1x512xf32>
    %1433 = tpu.matmul %1426, %1190, %cst_311 {dimension_numbers = #tpu.dot_dimension_numbers<[1], [0], [0], [1], [0, 0, 1, 1], [], []>} : vector<1x40xf32>, vector<40x512xf32>, vector<1x512xf32> -> vector<1x512xf32>
    %1434 = arith.addf %1196, %1433 : vector<1x512xf32>
    %1435 = vector.extract_strided_slice %1434 {offsets = [0, 0], sizes = [1, 40], strides = [1, 1]} : vector<1x512xf32> to vector<1x40xf32>
    %1436 = vector.extract_strided_slice %1434 {offsets = [0, 128], sizes = [1, 40], strides = [1, 1]} : vector<1x512xf32> to vector<1x40xf32>
    %1437 = vector.extract_strided_slice %1434 {offsets = [0, 256], sizes = [1, 40], strides = [1, 1]} : vector<1x512xf32> to vector<1x40xf32>
    %1438 = vector.extract_strided_slice %1434 {offsets = [0, 384], sizes = [1, 40], strides = [1, 1]} : vector<1x512xf32> to vector<1x40xf32>
    %cst_312 = arith.constant 5.000000e-01 : f32
    %1439 = vector.broadcast %cst_312 : f32 to vector<1x40xf32>
    %1440 = arith.mulf %1439, %1435 : vector<1x40xf32>
    %1441 = math.tanh %1440 : vector<1x40xf32>
    %cst_313 = arith.constant 5.000000e-01 : f32
    %1442 = vector.broadcast %cst_313 : f32 to vector<1x40xf32>
    %1443 = arith.mulf %1442, %1441 : vector<1x40xf32>
    %cst_314 = arith.constant 5.000000e-01 : f32
    %1444 = vector.broadcast %cst_314 : f32 to vector<1x40xf32>
    %1445 = arith.addf %1443, %1444 : vector<1x40xf32>
    %cst_315 = arith.constant 5.000000e-01 : f32
    %1446 = vector.broadcast %cst_315 : f32 to vector<1x40xf32>
    %1447 = arith.mulf %1446, %1436 : vector<1x40xf32>
    %1448 = math.tanh %1447 : vector<1x40xf32>
    %cst_316 = arith.constant 5.000000e-01 : f32
    %1449 = vector.broadcast %cst_316 : f32 to vector<1x40xf32>
    %1450 = arith.mulf %1449, %1448 : vector<1x40xf32>
    %cst_317 = arith.constant 5.000000e-01 : f32
    %1451 = vector.broadcast %cst_317 : f32 to vector<1x40xf32>
    %1452 = arith.addf %1450, %1451 : vector<1x40xf32>
    %1453 = math.tanh %1437 : vector<1x40xf32>
    %cst_318 = arith.constant 5.000000e-01 : f32
    %1454 = vector.broadcast %cst_318 : f32 to vector<1x40xf32>
    %1455 = arith.mulf %1454, %1438 : vector<1x40xf32>
    %1456 = math.tanh %1455 : vector<1x40xf32>
    %cst_319 = arith.constant 5.000000e-01 : f32
    %1457 = vector.broadcast %cst_319 : f32 to vector<1x40xf32>
    %1458 = arith.mulf %1457, %1456 : vector<1x40xf32>
    %cst_320 = arith.constant 5.000000e-01 : f32
    %1459 = vector.broadcast %cst_320 : f32 to vector<1x40xf32>
    %1460 = arith.addf %1458, %1459 : vector<1x40xf32>
    %1461 = arith.mulf %1452, %1424 : vector<1x40xf32>
    %1462 = arith.mulf %1445, %1453 : vector<1x40xf32>
    %1463 = arith.addf %1461, %1462 : vector<1x40xf32>
    %1464 = math.tanh %1463 : vector<1x40xf32>
    %1465 = arith.mulf %1460, %1464 : vector<1x40xf32>
    %1466 = arith.mulf %1465, %1193 : vector<1x40xf32>
    %cst_321 = arith.constant dense<0.000000e+00> : vector<1xf32>
    %1467 = vector.multi_reduction <add>, %1466, %cst_321 [1] : vector<1x40xf32> to vector<1xf32>
    %1468 = vector.shape_cast %1467 : vector<1xf32> to vector<1x1xf32>
    %1469 = arith.addf %1468, %1194 : vector<1x1xf32>
    %1470 = arith.index_cast %c6_i32_310 : i32 to index
    %c0_322 = arith.constant 0 : index
    %1471 = vector.load %arg4[%1470, %c0_322] : memref<8x1xf32, #tpu.memory_space<vmem>>, vector<1x1xf32>
    tpu.vector_store %arg4[%1470, %c0_322], %1469 {strides = array<i32>} : memref<8x1xf32, #tpu.memory_space<vmem>>, vector<1x1xf32>,
    %c7_i32_323 = arith.constant 7 : i32
    %cst_324 = arith.constant dense<0.000000e+00> : vector<1x512xf32>
    %1472 = tpu.matmul %1465, %1190, %cst_324 {dimension_numbers = #tpu.dot_dimension_numbers<[1], [0], [0], [1], [0, 0, 1, 1], [], []>} : vector<1x40xf32>, vector<40x512xf32>, vector<1x512xf32> -> vector<1x512xf32>
    %1473 = arith.addf %1196, %1472 : vector<1x512xf32>
    %1474 = vector.extract_strided_slice %1473 {offsets = [0, 0], sizes = [1, 40], strides = [1, 1]} : vector<1x512xf32> to vector<1x40xf32>
    %1475 = vector.extract_strided_slice %1473 {offsets = [0, 128], sizes = [1, 40], strides = [1, 1]} : vector<1x512xf32> to vector<1x40xf32>
    %1476 = vector.extract_strided_slice %1473 {offsets = [0, 256], sizes = [1, 40], strides = [1, 1]} : vector<1x512xf32> to vector<1x40xf32>
    %1477 = vector.extract_strided_slice %1473 {offsets = [0, 384], sizes = [1, 40], strides = [1, 1]} : vector<1x512xf32> to vector<1x40xf32>
    %cst_325 = arith.constant 5.000000e-01 : f32
    %1478 = vector.broadcast %cst_325 : f32 to vector<1x40xf32>
    %1479 = arith.mulf %1478, %1474 : vector<1x40xf32>
    %1480 = math.tanh %1479 : vector<1x40xf32>
    %cst_326 = arith.constant 5.000000e-01 : f32
    %1481 = vector.broadcast %cst_326 : f32 to vector<1x40xf32>
    %1482 = arith.mulf %1481, %1480 : vector<1x40xf32>
    %cst_327 = arith.constant 5.000000e-01 : f32
    %1483 = vector.broadcast %cst_327 : f32 to vector<1x40xf32>
    %1484 = arith.addf %1482, %1483 : vector<1x40xf32>
    %cst_328 = arith.constant 5.000000e-01 : f32
    %1485 = vector.broadcast %cst_328 : f32 to vector<1x40xf32>
    %1486 = arith.mulf %1485, %1475 : vector<1x40xf32>
    %1487 = math.tanh %1486 : vector<1x40xf32>
    %cst_329 = arith.constant 5.000000e-01 : f32
    %1488 = vector.broadcast %cst_329 : f32 to vector<1x40xf32>
    %1489 = arith.mulf %1488, %1487 : vector<1x40xf32>
    %cst_330 = arith.constant 5.000000e-01 : f32
    %1490 = vector.broadcast %cst_330 : f32 to vector<1x40xf32>
    %1491 = arith.addf %1489, %1490 : vector<1x40xf32>
    %1492 = math.tanh %1476 : vector<1x40xf32>
    %cst_331 = arith.constant 5.000000e-01 : f32
    %1493 = vector.broadcast %cst_331 : f32 to vector<1x40xf32>
    %1494 = arith.mulf %1493, %1477 : vector<1x40xf32>
    %1495 = math.tanh %1494 : vector<1x40xf32>
    %cst_332 = arith.constant 5.000000e-01 : f32
    %1496 = vector.broadcast %cst_332 : f32 to vector<1x40xf32>
    %1497 = arith.mulf %1496, %1495 : vector<1x40xf32>
    %cst_333 = arith.constant 5.000000e-01 : f32
    %1498 = vector.broadcast %cst_333 : f32 to vector<1x40xf32>
    %1499 = arith.addf %1497, %1498 : vector<1x40xf32>
    %1500 = arith.mulf %1491, %1463 : vector<1x40xf32>
    %1501 = arith.mulf %1484, %1492 : vector<1x40xf32>
    %1502 = arith.addf %1500, %1501 : vector<1x40xf32>
    %1503 = math.tanh %1502 : vector<1x40xf32>
    %1504 = arith.mulf %1499, %1503 : vector<1x40xf32>
    %1505 = arith.mulf %1504, %1193 : vector<1x40xf32>
    %cst_334 = arith.constant dense<0.000000e+00> : vector<1xf32>
    %1506 = vector.multi_reduction <add>, %1505, %cst_334 [1] : vector<1x40xf32> to vector<1xf32>
    %1507 = vector.shape_cast %1506 : vector<1xf32> to vector<1x1xf32>
    %1508 = arith.addf %1507, %1194 : vector<1x1xf32>
    %1509 = arith.index_cast %c7_i32_323 : i32 to index
    %c0_335 = arith.constant 0 : index
    %1510 = vector.load %arg4[%1509, %c0_335] : memref<8x1xf32, #tpu.memory_space<vmem>>, vector<1x1xf32>
    tpu.vector_store %arg4[%1509, %c0_335], %1508 {strides = array<i32>} : memref<8x1xf32, #tpu.memory_space<vmem>>, vector<1x1xf32>,
    %c8_i32_336 = arith.constant 8 : i32
    return
  }
}

</mosaic_0001>

<llo_original>
// kernel: lnn_autoencoder.1
$region0: #{lnn_autoencoder.1}
  #allocation0 [shape = 'u32[]', space=smem, size = 0x4, offset = 0x4, fixed_abs, tag = 'smem constant byte address 0x4 - core index']
  #allocation1 [shape = 'u32[72,128]{1,0:T(1,128)}', space=vmem, size = 0x9000, scoped, tag = 'internal scratch']
  #allocation2 [shape = 'f32[8,32]{1,0:T(8,128)}', space=vmem, size = 0x1000, scoped, tag = 'scratch operand']
  #allocation3 [shape = 'f32[8,32]{1,0:T(8,128)}', space=vmem, size = 0x1000, scoped, tag = 'scratch operand']
  %s0 = inlined_call_operand.vmem [shape: f32[8,1], index: 0, kind: input, shape index: {}]
  %s1 = inlined_call_operand.hbm [shape: f32[3,32,64], index: 1, kind: input, shape index: {}]
  %s2 = inlined_call_operand.hbm [shape: f32[10,32], index: 2, kind: input, shape index: {}]
  %s3 = inlined_call_operand.hbm [shape: f32[80,512], index: 3, kind: input, shape index: {}]
  %s4 = inlined_call_operand.vmem [shape: f32[8,1], index: 4, kind: output, shape index: {}]
  %s5 = sld [smem:[#allocation0]]
  $region38: #{lnn_autoencoder.1} parent=0
    _
  %s7 = ssub.s32 1, %s5
  %s8 = scalar_select 0, %s7, %s5
  $region1: #{lnn_autoencoder.1} parent=0
    #allocation4 [shape = 'u8[49152]{0}', space=vmem, size = 0xc000, scoped, tag = 'input window, operand 1, single buffered']
    #allocation5 [shape = 's32[1]{0}', space=sflag, size = 0x4, scoped, tag = 'scoped memory for lnn_autoencoder.1']
    #allocation6 [shape = 'u8[8192]{0}', space=vmem, size = 0x2000, scoped, tag = 'input window, operand 2, single buffered']
    #allocation7 [shape = 's32[1]{0}', space=sflag, size = 0x4, scoped, tag = 'scoped memory for lnn_autoencoder.1']
    #allocation8 [shape = 'u8[163840]{0}', space=vmem, size = 0x28000, scoped, tag = 'input window, operand 3, single buffered']
    %9 = vsyncpa [#allocation5], 0
    %10 = vsyncpa [#allocation7], 0
    // Predicated region
    $region2: #{lnn_autoencoder.1} parent=1 // pred_check
      _
    $region3: #{lnn_autoencoder.1} parent=1 // pred_check_branch
      %12 = sbr.rel (0) target = $region5
    $region4: #{lnn_autoencoder.1} parent=1 // pred_region
      _
    $region5: #{lnn_autoencoder.1} parent=1 // pred_fallthru
      _
    // Predicated region
    $region6: #{lnn_autoencoder.1} parent=1 // pred_check
      _
    $region7: #{lnn_autoencoder.1} parent=1 // pred_check_branch
      %14 = sbr.rel (0) target = $region9
    $region8: #{lnn_autoencoder.1} parent=1 // pred_region
      %16 = vsyncadd [#allocation5], 0
      %s17 = sshll.u32 %s1, 4
      %s18 = int_to_ptr.hbm [resolvable:$true] %s17
      %s19 = sshll.u32 [#allocation4], 4
      %s20 = int_to_ptr.vmem [resolvable:$true] %s19
      %25 = dma.hbm_to_vmem [thread:$0]  %s18, 1536, %s20, [#allocation5], 128, 128, 8
    $region9: #{lnn_autoencoder.1} parent=1 // pred_fallthru
      _
    // Predicated region
    $region10: #{lnn_autoencoder.1} parent=1 // pred_check
      _
    $region11: #{lnn_autoencoder.1} parent=1 // pred_check_branch
      %27 = sbr.rel (0) target = $region13
    $region12: #{lnn_autoencoder.1} parent=1 // pred_region
      %29 = vsyncadd [#allocation7], 0
      %s30 = sshll.u32 %s2, 4
      %s31 = int_to_ptr.hbm [resolvable:$true] %s30
      %s32 = sshll.u32 [#allocation6], 4
      %s33 = int_to_ptr.vmem [resolvable:$true] %s32
      %38 = dma.hbm_to_vmem [thread:$0]  %s31, 256, %s33, [#allocation7], 128, 128, 8
    $region13: #{lnn_autoencoder.1} parent=1 // pred_fallthru
      _
    // Predicated region
    $region14: #{lnn_autoencoder.1} parent=1 // pred_check
      _
    $region15: #{lnn_autoencoder.1} parent=1 // pred_check_branch
      %40 = sbr.rel (0) target = $region17
    $region16: #{lnn_autoencoder.1} parent=1 // pred_region
      %42 = vsyncadd [#allocation7], 0
      %s43 = sshll.u32 %s3, 4
      %s44 = int_to_ptr.hbm [resolvable:$true] %s43
      %s45 = sshll.u32 [#allocation8], 4
      %s46 = int_to_ptr.vmem [resolvable:$true] %s45
      %51 = dma.hbm_to_vmem [thread:$0]  %s44, 5120, %s46, [#allocation7], 512, 512, 32
    $region17: #{lnn_autoencoder.1} parent=1 // pred_fallthru
      _
    // Predicated region
    $region18: #{lnn_autoencoder.1} parent=1 // pred_check
      _
    $region19: #{lnn_autoencoder.1} parent=1 // pred_check_branch
      %53 = sbr.rel (0) target = $region21
    $region20: #{lnn_autoencoder.1} parent=1 // pred_region
      %55 = dma.done [#allocation5], 1536
    $region21: #{lnn_autoencoder.1} parent=1 // pred_fallthru
      _
    // Predicated region
    $region22: #{lnn_autoencoder.1} parent=1 // pred_check
      _
    $region23: #{lnn_autoencoder.1} parent=1 // pred_check_branch
      %57 = sbr.rel (0) target = $region25
    $region24: #{lnn_autoencoder.1} parent=1 // pred_region
      %59 = dma.done [#allocation7], 256
    $region25: #{lnn_autoencoder.1} parent=1 // pred_fallthru
      _
    // Predicated region
    $region26: #{lnn_autoencoder.1} parent=1 // pred_check
      _
    $region27: #{lnn_autoencoder.1} parent=1 // pred_check_branch
      %61 = sbr.rel (0) target = $region29
    $region28: #{lnn_autoencoder.1} parent=1 // pred_region
      %63 = dma.done [#allocation7], 5120
    $region29: #{lnn_autoencoder.1} parent=1 // pred_fallthru
      _
    %v64 = vld [vmem:[#allocation4] sm:$0xff]
    %v65 = vld [vmem:[#allocation4 + $0x8] sm:$0xff]
    %v66 = vld [vmem:[#allocation4 + $0x10] sm:$0xff]
    %v67 = vld [vmem:[#allocation4 + $0x18] sm:$0xff]
    %s68 = scalar_lea.vmem [#allocation4], 32
    %v69 = vld [vmem:[%s68] sm:$0xff]
    %v70 = vld [vmem:[%s68 + $0x8] sm:$0xff]
    %v71 = vld [vmem:[%s68 + $0x10] sm:$0xff]
    %v72 = vld [vmem:[%s68 + $0x18] sm:$0xff]
    %s73 = scalar_lea.vmem [#allocation4], 64
    %v74 = vld [vmem:[%s73] sm:$0xff]
    %v75 = vld [vmem:[%s73 + $0x8] sm:$0xff]
    %v76 = vld [vmem:[%s73 + $0x10] sm:$0xff]
    %v77 = vld [vmem:[%s73 + $0x18] sm:$0xff]
    %v78 = vld [vmem:[#allocation6] sm:$0xff]
    %v79 = vld [vmem:[#allocation6 + $0x8] sm:$0x3]
    %v80 = vlaneseq
    %v81 = vshrl.u32 %v80, 7
    %v82 = vadd.s32 %v81, 8
    %v83 = vadd.s32 %v81, 16
    %v84 = vadd.s32 %v81, 24
    %v85 = vlaneseq
    %v86 = vand.u32 %v85, 127
    %vm87 = vcmp.eq.s32.totalorder %v81, %v86
    %vm88 = vcmp.eq.s32.totalorder %v82, %v86
    %vm89 = vcmp.eq.s32.totalorder %v83, %v86
    %vm90 = vcmp.eq.s32.totalorder %v84, %v86
    %v91 = vsel %vm87, 1, 0
    %v92 = vsel %vm88, 1, 0
    %v93 = vsel %vm89, 1, 0
    %v94 = vsel %vm90, 1, 0
    %v95 = vcvt.s32.f32 %v91
    %v96 = vcvt.s32.f32 %v92
    %v97 = vcvt.s32.f32 %v93
    %v98 = vcvt.s32.f32 %v94
    %v99 = vld [vmem:[%s0] sm:$0xff]
    %v100 = vperm.slane %v79, 1
    %v101 = vmul.f32 %v99, %v100
    %103 = vrot.lane.b32.xlu0 %v100, 127
    %v104 = vpop.permute.xlu0 %103
    %v106 = vadd.f32 %v101, %v104
    %108 = vset.pattern.permute.xlu0 0
    %109 = vperm.xlu0 %108, %v106
    %v110 = vpop.permute.xlu0 %109
    %v112 = vperm.slane %v78, 0
    %v113 = vsub.f32 %v110, %v112
    %v114 = vperm.slane %v78, 1
    %v115 = vmul.f32 %v114, %v113
    %v116 = vmul.f32 %v115, 0.5
    %v117 = vtanh.pop %v116
    %v118 = vmul.f32 %v117, 0.5
    %v119 = vadd.f32 %v118, 0.5
    %v120 = vperm.slane %v78, 2
    %v121 = vmul.f32 %v120, %v119
    %v122 = vperm.slane %v78, 3
    %v123 = vmul.f32 %v121, %v122
    %v124 = vperm.slane %v78, 5
    %v125 = vadd.f32 %v124, %v123
    %vm126 = vcmask 261120
    %127 = vst.msk [vmem:[#allocation2] sm:$0xff] %vm126, %v125
    %v128 = vperm.slane %v78, 6
    %v129 = vadd.f32 %v128, %v121
    %130 = vst.msk [vmem:[#allocation3] sm:$0xff] %vm126, %v129
    %v131 = vld [vmem:[#allocation2] sm:$0x1]
    %v132 = vld [vmem:[#allocation3] sm:$0x1]
    %v133 = vmul.f32 %v95, 0.0
    %v134 = vmul.f32 %v96, 0.0
    %v135 = vmul.f32 %v97, 0.0
    %v136 = vmul.f32 %v98, 0.0
    %v137 = vsel %vm126, %v133, 0.0
    %138 = vadd.xlane.f32.xlu0 %v137
    %v139 = vpop.xlane.xlu0 %138
    %v140 = vsel %vm126, %v134, 0.0
    %141 = vadd.xlane.f32.xlu0 %v140
    %v142 = vpop.xlane.xlu0 %141
    %v143 = vsel %vm126, %v135, 0.0
    %144 = vadd.xlane.f32.xlu0 %v143
    %v145 = vpop.xlane.xlu0 %144
    %v146 = vsel %vm126, %v136, 0.0
    %147 = vadd.xlane.f32.xlu0 %v146
    %v148 = vpop.xlane.xlu0 %147
    %v149 = vsub.f32 %v139, %v64
    %v150 = vsub.f32 %v142, %v65
    %v151 = vsub.f32 %v145, %v66
    %v152 = vsub.f32 %v148, %v67
    %v153 = vmul.f32 %v69, %v149
    %v154 = vmul.f32 %v70, %v150
    %v155 = vmul.f32 %v71, %v151
    %v156 = vmul.f32 %v72, %v152
    %v157 = vtanh.pop %v153
    %v158 = vtanh.pop %v154
    %v159 = vtanh.pop %v155
    %v160 = vtanh.pop %v156
    %v161 = vmul.f32 %v74, %v157
    %v162 = vmul.f32 %v75, %v158
    %v163 = vmul.f32 %v76, %v159
    %v164 = vmul.f32 %v77, %v160
    %vm165 = vcmask 523264
    %v166 = vsel %vm165, %v161, 0.0
    %v167 = vsel %vm165, %v162, 0.0
    %v168 = vadd.f32 %v166, %v167
    %v169 = vsel %vm165, %v163, 0.0
    %v170 = vadd.f32 %v168, %v169
    %v171 = vsel %vm165, %v164, 0.0
    %v172 = vadd.f32 %v170, %v171
    %v173 = vrot.slane %v172, 4
    %v174 = vadd.f32 %v172, %v173
    %v175 = vrot.slane %v174, 2
    %v176 = vadd.f32 %v174, %v175
    %v177 = vrot.slane %v176, 1
    %v178 = vadd.f32 %v176, %v177
    %v179 = vmul.f32 %v78, 0.0
    %v181 = vrot.slane %v131, 4
    %v183 = vadd.f32 %v179, %v181
    %v184 = vadd.f32 %v183, %v178
    %186 = vrot.lane.b32.xlu0 %v178, 96
    %v187 = vpop.permute.xlu0 %186
    %v189 = vadd.f32 %v132, %v187
    %v190 = vrcp.pop %v189
    %v191 = vmul.f32 %v189, %v190
    %v192 = vsub.f32 2.0, %v191
    %v193 = vmul.f32 %v190, %v192
    %v195 = vrot.slane %v193, 4
    %v197 = vmul.f32 %v184, %v195
    %v198 = vperm.slane %v197, 4
    %v199 = vmul.f32 %v95, %v198
    %v200 = vmul.f32 %v96, %v198
    %v201 = vmul.f32 %v97, %v198
    %v202 = vmul.f32 %v98, %v198
    %v203 = vsel %vm126, %v199, 0.0
    %204 = vadd.xlane.f32.xlu0 %v203
    %v205 = vpop.xlane.xlu0 %204
    %v206 = vsel %vm126, %v200, 0.0
    %207 = vadd.xlane.f32.xlu0 %v206
    %v208 = vpop.xlane.xlu0 %207
    %v209 = vsel %vm126, %v201, 0.0
    %210 = vadd.xlane.f32.xlu0 %v209
    %v211 = vpop.xlane.xlu0 %210
    %v212 = vsel %vm126, %v202, 0.0
    %213 = vadd.xlane.f32.xlu0 %v212
    %v214 = vpop.xlane.xlu0 %213
    %v215 = vsub.f32 %v205, %v64
    %v216 = vsub.f32 %v208, %v65
    %v217 = vsub.f32 %v211, %v66
    %v218 = vsub.f32 %v214, %v67
    %v219 = vmul.f32 %v69, %v215
    %v220 = vmul.f32 %v70, %v216
    %v221 = vmul.f32 %v71, %v217
    %v222 = vmul.f32 %v72, %v218
    %v223 = vtanh.pop %v219
    %v224 = vtanh.pop %v220
    %v225 = vtanh.pop %v221
    %v226 = vtanh.pop %v222
    %v227 = vmul.f32 %v74, %v223
    %v228 = vmul.f32 %v75, %v224
    %v229 = vmul.f32 %v76, %v225
    %v230 = vmul.f32 %v77, %v226
    %v231 = vsel %vm165, %v227, 0.0
    %v232 = vsel %vm165, %v228, 0.0
    %v233 = vadd.f32 %v231, %v232
    %v234 = vsel %vm165, %v229, 0.0
    %v235 = vadd.f32 %v233, %v234
    %v236 = vsel %vm165, %v230, 0.0
    %v237 = vadd.f32 %v235, %v236
    %v238 = vrot.slane %v237, 4
    %v239 = vadd.f32 %v237, %v238
    %v240 = vrot.slane %v239, 2
    %v241 = vadd.f32 %v239, %v240
    %v242 = vrot.slane %v241, 1
    %v243 = vadd.f32 %v241, %v242
    %v244 = vmul.f32 %v78, %v197
    %v245 = vadd.f32 %v244, %v181
    %v246 = vadd.f32 %v245, %v243
    %248 = vrot.lane.b32.xlu0 %v243, 96
    %v249 = vpop.permute.xlu0 %248
    %v251 = vadd.f32 %v132, %v249
    %v252 = vrcp.pop %v251
    %v253 = vmul.f32 %v251, %v252
    %v254 = vsub.f32 2.0, %v253
    %v255 = vmul.f32 %v252, %v254
    %v257 = vrot.slane %v255, 4
    %v259 = vmul.f32 %v246, %v257
    %v260 = vperm.slane %v259, 4
    %v261 = vmul.f32 %v95, %v260
    %v262 = vmul.f32 %v96, %v260
    %v263 = vmul.f32 %v97, %v260
    %v264 = vmul.f32 %v98, %v260
    %v265 = vsel %vm126, %v261, 0.0
    %266 = vadd.xlane.f32.xlu0 %v265
    %v267 = vpop.xlane.xlu0 %266
    %v268 = vsel %vm126, %v262, 0.0
    %269 = vadd.xlane.f32.xlu0 %v268
    %v270 = vpop.xlane.xlu0 %269
    %v271 = vsel %vm126, %v263, 0.0
    %272 = vadd.xlane.f32.xlu0 %v271
    %v273 = vpop.xlane.xlu0 %272
    %v274 = vsel %vm126, %v264, 0.0
    %275 = vadd.xlane.f32.xlu0 %v274
    %v276 = vpop.xlane.xlu0 %275
    %v277 = vsub.f32 %v267, %v64
    %v278 = vsub.f32 %v270, %v65
    %v279 = vsub.f32 %v273, %v66
    %v280 = vsub.f32 %v276, %v67
    %v281 = vmul.f32 %v69, %v277
    %v282 = vmul.f32 %v70, %v278
    %v283 = vmul.f32 %v71, %v279
    %v284 = vmul.f32 %v72, %v280
    %v285 = vtanh.pop %v281
    %v286 = vtanh.pop %v282
    %v287 = vtanh.pop %v283
    %v288 = vtanh.pop %v284
    %v289 = vmul.f32 %v74, %v285
    %v290 = vmul.f32 %v75, %v286
    %v291 = vmul.f32 %v76, %v287
    %v292 = vmul.f32 %v77, %v288
    %v293 = vsel %vm165, %v289, 0.0
    %v294 = vsel %vm165, %v290, 0.0
    %v295 = vadd.f32 %v293, %v294
    %v296 = vsel %vm165, %v291, 0.0
    %v297 = vadd.f32 %v295, %v296
    %v298 = vsel %vm165, %v292, 0.0
    %v299 = vadd.f32 %v297, %v298
    %v300 = vrot.slane %v299, 4
    %v301 = vadd.f32 %v299, %v300
    %v302 = vrot.slane %v301, 2
    %v303 = vadd.f32 %v301, %v302
    %v304 = vrot.slane %v303, 1
    %v305 = vadd.f32 %v303, %v304
    %v306 = vmul.f32 %v78, %v259
    %v307 = vadd.f32 %v306, %v181
    %v308 = vadd.f32 %v307, %v305
    %310 = vrot.lane.b32.xlu0 %v305, 96
    %v311 = vpop.permute.xlu0 %310
    %v313 = vadd.f32 %v132, %v311
    %v314 = vrcp.pop %v313
    %v315 = vmul.f32 %v313, %v314
    %v316 = vsub.f32 2.0, %v315
    %v317 = vmul.f32 %v314, %v316
    %v319 = vrot.slane %v317, 4
    %v321 = vmul.f32 %v308, %v319
    %v322 = vperm.slane %v321, 4
    %v323 = vmul.f32 %v95, %v322
    %v324 = vmul.f32 %v96, %v322
    %v325 = vmul.f32 %v97, %v322
    %v326 = vmul.f32 %v98, %v322
    %v327 = vsel %vm126, %v323, 0.0
    %328 = vadd.xlane.f32.xlu0 %v327
    %v329 = vpop.xlane.xlu0 %328
    %v330 = vsel %vm126, %v324, 0.0
    %331 = vadd.xlane.f32.xlu0 %v330
    %v332 = vpop.xlane.xlu0 %331
    %v333 = vsel %vm126, %v325, 0.0
    %334 = vadd.xlane.f32.xlu0 %v333
    %v335 = vpop.xlane.xlu0 %334
    %v336 = vsel %vm126, %v326, 0.0
    %337 = vadd.xlane.f32.xlu0 %v336
    %v338 = vpop.xlane.xlu0 %337
    %v339 = vsub.f32 %v329, %v64
    %v340 = vsub.f32 %v332, %v65
    %v341 = vsub.f32 %v335, %v66
    %v342 = vsub.f32 %v338, %v67
    %v343 = vmul.f32 %v69, %v339
    %v344 = vmul.f32 %v70, %v340
    %v345 = vmul.f32 %v71, %v341
    %v346 = vmul.f32 %v72, %v342
    %v347 = vtanh.pop %v343
    %v348 = vtanh.pop %v344
    %v349 = vtanh.pop %v345
    %v350 = vtanh.pop %v346
    %v351 = vmul.f32 %v74, %v347
    %v352 = vmul.f32 %v75, %v348
    %v353 = vmul.f32 %v76, %v349
    %v354 = vmul.f32 %v77, %v350
    %v355 = vsel %vm165, %v351, 0.0
    %v356 = vsel %vm165, %v352, 0.0
    %v357 = vadd.f32 %v355, %v356
    %v358 = vsel %vm165, %v353, 0.0
    %v359 = vadd.f32 %v357, %v358
    %v360 = vsel %vm165, %v354, 0.0
    %v361 = vadd.f32 %v359, %v360
    %v362 = vrot.slane %v361, 4
    %v363 = vadd.f32 %v361, %v362
    %v364 = vrot.slane %v363, 2
    %v365 = vadd.f32 %v363, %v364
    %v366 = vrot.slane %v365, 1
    %v367 = vadd.f32 %v365, %v366
    %v368 = vmul.f32 %v78, %v321
    %v369 = vadd.f32 %v368, %v181
    %v370 = vadd.f32 %v369, %v367
    %372 = vrot.lane.b32.xlu0 %v367, 96
    %v373 = vpop.permute.xlu0 %372
    %v375 = vadd.f32 %v132, %v373
    %v376 = vrcp.pop %v375
    %v377 = vmul.f32 %v375, %v376
    %v378 = vsub.f32 2.0, %v377
    %v379 = vmul.f32 %v376, %v378
    %v381 = vrot.slane %v379, 4
    %v383 = vmul.f32 %v370, %v381
    %v384 = vperm.slane %v383, 4
    %v385 = vmul.f32 %v95, %v384
    %v386 = vmul.f32 %v96, %v384
    %v387 = vmul.f32 %v97, %v384
    %v388 = vmul.f32 %v98, %v384
    %v389 = vsel %vm126, %v385, 0.0
    %390 = vadd.xlane.f32.xlu0 %v389
    %v391 = vpop.xlane.xlu0 %390
    %v392 = vsel %vm126, %v386, 0.0
    %393 = vadd.xlane.f32.xlu0 %v392
    %v394 = vpop.xlane.xlu0 %393
    %v395 = vsel %vm126, %v387, 0.0
    %396 = vadd.xlane.f32.xlu0 %v395
    %v397 = vpop.xlane.xlu0 %396
    %v398 = vsel %vm126, %v388, 0.0
    %399 = vadd.xlane.f32.xlu0 %v398
    %v400 = vpop.xlane.xlu0 %399
    %v401 = vsub.f32 %v391, %v64
    %v402 = vsub.f32 %v394, %v65
    %v403 = vsub.f32 %v397, %v66
    %v404 = vsub.f32 %v400, %v67
    %v405 = vmul.f32 %v69, %v401
    %v406 = vmul.f32 %v70, %v402
    %v407 = vmul.f32 %v71, %v403
    %v408 = vmul.f32 %v72, %v404
    %v409 = vtanh.pop %v405
    %v410 = vtanh.pop %v406
    %v411 = vtanh.pop %v407
    %v412 = vtanh.pop %v408
    %v413 = vmul.f32 %v74, %v409
    %v414 = vmul.f32 %v75, %v410
    %v415 = vmul.f32 %v76, %v411
    %v416 = vmul.f32 %v77, %v412
    %v417 = vsel %vm165, %v413, 0.0
    %v418 = vsel %vm165, %v414, 0.0
    %v419 = vadd.f32 %v417, %v418
    %v420 = vsel %vm165, %v415, 0.0
    %v421 = vadd.f32 %v419, %v420
    %v422 = vsel %vm165, %v416, 0.0
    %v423 = vadd.f32 %v421, %v422
    %v424 = vrot.slane %v423, 4
    %v425 = vadd.f32 %v423, %v424
    %v426 = vrot.slane %v425, 2
    %v427 = vadd.f32 %v425, %v426
    %v428 = vrot.slane %v427, 1
    %v429 = vadd.f32 %v427, %v428
    %v430 = vmul.f32 %v78, %v383
    %v431 = vadd.f32 %v430, %v181
    %v432 = vadd.f32 %v431, %v429
    %434 = vrot.lane.b32.xlu0 %v429, 96
    %v435 = vpop.permute.xlu0 %434
    %v437 = vadd.f32 %v132, %v435
    %v438 = vrcp.pop %v437
    %v439 = vmul.f32 %v437, %v438
    %v440 = vsub.f32 2.0, %v439
    %v441 = vmul.f32 %v438, %v440
    %v443 = vrot.slane %v441, 4
    %v445 = vmul.f32 %v432, %v443
    %v446 = vperm.slane %v445, 4
    %v447 = vmul.f32 %v95, %v446
    %v448 = vmul.f32 %v96, %v446
    %v449 = vmul.f32 %v97, %v446
    %v450 = vmul.f32 %v98, %v446
    %v451 = vsel %vm126, %v447, 0.0
    %452 = vadd.xlane.f32.xlu0 %v451
    %v453 = vpop.xlane.xlu0 %452
    %v454 = vsel %vm126, %v448, 0.0
    %455 = vadd.xlane.f32.xlu0 %v454
    %v456 = vpop.xlane.xlu0 %455
    %v457 = vsel %vm126, %v449, 0.0
    %458 = vadd.xlane.f32.xlu0 %v457
    %v459 = vpop.xlane.xlu0 %458
    %v460 = vsel %vm126, %v450, 0.0
    %461 = vadd.xlane.f32.xlu0 %v460
    %v462 = vpop.xlane.xlu0 %461
    %v463 = vsub.f32 %v453, %v64
    %v464 = vsub.f32 %v456, %v65
    %v465 = vsub.f32 %v459, %v66
    %v466 = vsub.f32 %v462, %v67
    %v467 = vmul.f32 %v69, %v463
    %v468 = vmul.f32 %v70, %v464
    %v469 = vmul.f32 %v71, %v465
    %v470 = vmul.f32 %v72, %v466
    %v471 = vtanh.pop %v467
    %v472 = vtanh.pop %v468
    %v473 = vtanh.pop %v469
    %v474 = vtanh.pop %v470
    %v475 = vmul.f32 %v74, %v471
    %v476 = vmul.f32 %v75, %v472
    %v477 = vmul.f32 %v76, %v473
    %v478 = vmul.f32 %v77, %v474
    %v479 = vsel %vm165, %v475, 0.0
    %v480 = vsel %vm165, %v476, 0.0
    %v481 = vadd.f32 %v479, %v480
    %v482 = vsel %vm165, %v477, 0.0
    %v483 = vadd.f32 %v481, %v482
    %v484 = vsel %vm165, %v478, 0.0
    %v485 = vadd.f32 %v483, %v484
    %v486 = vrot.slane %v485, 4
    %v487 = vadd.f32 %v485, %v486
    %v488 = vrot.slane %v487, 2
    %v489 = vadd.f32 %v487, %v488
    %v490 = vrot.slane %v489, 1
    %v491 = vadd.f32 %v489, %v490
    %v492 = vmul.f32 %v78, %v445
    %v493 = vadd.f32 %v492, %v181
    %v494 = vadd.f32 %v493, %v491
    %496 = vrot.lane.b32.xlu0 %v491, 96
    %v497 = vpop.permute.xlu0 %496
    %v499 = vadd.f32 %v132, %v497
    %v500 = vrcp.pop %v499
    %v501 = vmul.f32 %v499, %v500
    %v502 = vsub.f32 2.0, %v501
    %v503 = vmul.f32 %v500, %v502
    %v505 = vrot.slane %v503, 4
    %v507 = vmul.f32 %v494, %v505
    %v508 = vld [vmem:[#allocation2 + $0x1] sm:$0x1]
    %v509 = vld [vmem:[#allocation3 + $0x1] sm:$0x1]
    %v510 = vperm.slane %v507, 4
    %v511 = vmul.f32 %v95, %v510
    %v512 = vmul.f32 %v96, %v510
    %v513 = vmul.f32 %v97, %v510
    %v514 = vmul.f32 %v98, %v510
    %v515 = vsel %vm126, %v511, 0.0
    %516 = vadd.xlane.f32.xlu0 %v515
    %v517 = vpop.xlane.xlu0 %516
    %v518 = vsel %vm126, %v512, 0.0
    %519 = vadd.xlane.f32.xlu0 %v518
    %v520 = vpop.xlane.xlu0 %519
    %v521 = vsel %vm126, %v513, 0.0
    %522 = vadd.xlane.f32.xlu0 %v521
    %v523 = vpop.xlane.xlu0 %522
    %v524 = vsel %vm126, %v514, 0.0
    %525 = vadd.xlane.f32.xlu0 %v524
    %v526 = vpop.xlane.xlu0 %525
    %v527 = vsub.f32 %v517, %v64
    %v528 = vsub.f32 %v520, %v65
    %v529 = vsub.f32 %v523, %v66
    %v530 = vsub.f32 %v526, %v67
    %v531 = vmul.f32 %v69, %v527
    %v532 = vmul.f32 %v70, %v528
    %v533 = vmul.f32 %v71, %v529
    %v534 = vmul.f32 %v72, %v530
    %v535 = vtanh.pop %v531
    %v536 = vtanh.pop %v532
    %v537 = vtanh.pop %v533
    %v538 = vtanh.pop %v534
    %v539 = vmul.f32 %v74, %v535
    %v540 = vmul.f32 %v75, %v536
    %v541 = vmul.f32 %v76, %v537
    %v542 = vmul.f32 %v77, %v538
    %v543 = vsel %vm165, %v539, 0.0
    %v544 = vsel %vm165, %v540, 0.0
    %v545 = vadd.f32 %v543, %v544
    %v546 = vsel %vm165, %v541, 0.0
    %v547 = vadd.f32 %v545, %v546
    %v548 = vsel %vm165, %v542, 0.0
    %v549 = vadd.f32 %v547, %v548
    %v550 = vrot.slane %v549, 4
    %v551 = vadd.f32 %v549, %v550
    %v552 = vrot.slane %v551, 2
    %v553 = vadd.f32 %v551, %v552
    %v554 = vrot.slane %v553, 1
    %v555 = vadd.f32 %v553, %v554
    %v556 = vmul.f32 %v78, %v507
    %v558 = vrot.slane %v508, 4
    %v560 = vadd.f32 %v556, %v558
    %v561 = vadd.f32 %v560, %v555
    %563 = vrot.lane.b32.xlu0 %v555, 96
    %v564 = vpop.permute.xlu0 %563
    %v566 = vadd.f32 %v509, %v564
    %v567 = vrcp.pop %v566
    %v568 = vmul.f32 %v566, %v567
    %v569 = vsub.f32 2.0, %v568
    %v570 = vmul.f32 %v567, %v569
    %v572 = vrot.slane %v570, 4
    %v574 = vmul.f32 %v561, %v572
    %v575 = vperm.slane %v574, 4
    %v576 = vmul.f32 %v95, %v575
    %v577 = vmul.f32 %v96, %v575
    %v578 = vmul.f32 %v97, %v575
    %v579 = vmul.f32 %v98, %v575
    %v580 = vsel %vm126, %v576, 0.0
    %581 = vadd.xlane.f32.xlu0 %v580
    %v582 = vpop.xlane.xlu0 %581
    %v583 = vsel %vm126, %v577, 0.0
    %584 = vadd.xlane.f32.xlu0 %v583
    %v585 = vpop.xlane.xlu0 %584
    %v586 = vsel %vm126, %v578, 0.0
    %587 = vadd.xlane.f32.xlu0 %v586
    %v588 = vpop.xlane.xlu0 %587
    %v589 = vsel %vm126, %v579, 0.0
    %590 = vadd.xlane.f32.xlu0 %v589
    %v591 = vpop.xlane.xlu0 %590
    %v592 = vsub.f32 %v582, %v64
    %v593 = vsub.f32 %v585, %v65
    %v594 = vsub.f32 %v588, %v66
    %v595 = vsub.f32 %v591, %v67
    %v596 = vmul.f32 %v69, %v592
    %v597 = vmul.f32 %v70, %v593
    %v598 = vmul.f32 %v71, %v594
    %v599 = vmul.f32 %v72, %v595
    %v600 = vtanh.pop %v596
    %v601 = vtanh.pop %v597
    %v602 = vtanh.pop %v598
    %v603 = vtanh.pop %v599
    %v604 = vmul.f32 %v74, %v600
    %v605 = vmul.f32 %v75, %v601
    %v606 = vmul.f32 %v76, %v602
    %v607 = vmul.f32 %v77, %v603
    %v608 = vsel %vm165, %v604, 0.0
    %v609 = vsel %vm165, %v605, 0.0
    %v610 = vadd.f32 %v608, %v609
    %v611 = vsel %vm165, %v606, 0.0
    %v612 = vadd.f32 %v610, %v611
    %v613 = vsel %vm165, %v607, 0.0
    %v614 = vadd.f32 %v612, %v613
    %v615 = vrot.slane %v614, 4
    %v616 = vadd.f32 %v614, %v615
    %v617 = vrot.slane %v616, 2
    %v618 = vadd.f32 %v616, %v617
    %v619 = vrot.slane %v618, 1
    %v620 = vadd.f32 %v618, %v619
    %v621 = vmul.f32 %v78, %v574
    %v622 = vadd.f32 %v621, %v558
    %v623 = vadd.f32 %v622, %v620
    %625 = vrot.lane.b32.xlu0 %v620, 96
    %v626 = vpop.permute.xlu0 %625
    %v628 = vadd.f32 %v509, %v626
    %v629 = vrcp.pop %v628
    %v630 = vmul.f32 %v628, %v629
    %v631 = vsub.f32 2.0, %v630
    %v632 = vmul.f32 %v629, %v631
    %v634 = vrot.slane %v632, 4
    %v636 = vmul.f32 %v623, %v634
    %v637 = vperm.slane %v636, 4
    %v638 = vmul.f32 %v95, %v637
    %v639 = vmul.f32 %v96, %v637
    %v640 = vmul.f32 %v97, %v637
    %v641 = vmul.f32 %v98, %v637
    %v642 = vsel %vm126, %v638, 0.0
    %643 = vadd.xlane.f32.xlu0 %v642
    %v644 = vpop.xlane.xlu0 %643
    %v645 = vsel %vm126, %v639, 0.0
    %646 = vadd.xlane.f32.xlu0 %v645
    %v647 = vpop.xlane.xlu0 %646
    %v648 = vsel %vm126, %v640, 0.0
    %649 = vadd.xlane.f32.xlu0 %v648
    %v650 = vpop.xlane.xlu0 %649
    %v651 = vsel %vm126, %v641, 0.0
    %652 = vadd.xlane.f32.xlu0 %v651
    %v653 = vpop.xlane.xlu0 %652
    %v654 = vsub.f32 %v644, %v64
    %v655 = vsub.f32 %v647, %v65
    %v656 = vsub.f32 %v650, %v66
    %v657 = vsub.f32 %v653, %v67
    %v658 = vmul.f32 %v69, %v654
    %v659 = vmul.f32 %v70, %v655
    %v660 = vmul.f32 %v71, %v656
    %v661 = vmul.f32 %v72, %v657
    %v662 = vtanh.pop %v658
    %v663 = vtanh.pop %v659
    %v664 = vtanh.pop %v660
    %v665 = vtanh.pop %v661
    %v666 = vmul.f32 %v74, %v662
    %v667 = vmul.f32 %v75, %v663
    %v668 = vmul.f32 %v76, %v664
    %v669 = vmul.f32 %v77, %v665
    %v670 = vsel %vm165, %v666, 0.0
    %v671 = vsel %vm165, %v667, 0.0
    %v672 = vadd.f32 %v670, %v671
    %v673 = vsel %vm165, %v668, 0.0
    %v674 = vadd.f32 %v672, %v673
    %v675 = vsel %vm165, %v669, 0.0
    %v676 = vadd.f32 %v674, %v675
    %v677 = vrot.slane %v676, 4
    %v678 = vadd.f32 %v676, %v677
    %v679 = vrot.slane %v678, 2
    %v680 = vadd.f32 %v678, %v679
    %v681 = vrot.slane %v680, 1
    %v682 = vadd.f32 %v680, %v681
    %v683 = vmul.f32 %v78, %v636
    %v684 = vadd.f32 %v683, %v558
    %v685 = vadd.f32 %v684, %v682
    %687 = vrot.lane.b32.xlu0 %v682, 96
    %v688 = vpop.permute.xlu0 %687
    %v690 = vadd.f32 %v509, %v688
    %v691 = vrcp.pop %v690
    %v692 = vmul.f32 %v690, %v691
    %v693 = vsub.f32 2.0, %v692
    %v694 = vmul.f32 %v691, %v693
    %v696 = vrot.slane %v694, 4
    %v698 = vmul.f32 %v685, %v696
    %v699 = vperm.slane %v698, 4
    %v700 = vmul.f32 %v95, %v699
    %v701 = vmul.f32 %v96, %v699
    %v702 = vmul.f32 %v97, %v699
    %v703 = vmul.f32 %v98, %v699
    %v704 = vsel %vm126, %v700, 0.0
    %705 = vadd.xlane.f32.xlu0 %v704
    %v706 = vpop.xlane.xlu0 %705
    %v707 = vsel %vm126, %v701, 0.0
    %708 = vadd.xlane.f32.xlu0 %v707
    %v709 = vpop.xlane.xlu0 %708
    %v710 = vsel %vm126, %v702, 0.0
    %711 = vadd.xlane.f32.xlu0 %v710
    %v712 = vpop.xlane.xlu0 %711
    %v713 = vsel %vm126, %v703, 0.0
    %714 = vadd.xlane.f32.xlu0 %v713
    %v715 = vpop.xlane.xlu0 %714
    %v716 = vsub.f32 %v706, %v64
    %v717 = vsub.f32 %v709, %v65
    %v718 = vsub.f32 %v712, %v66
    %v719 = vsub.f32 %v715, %v67
    %v720 = vmul.f32 %v69, %v716
    %v721 = vmul.f32 %v70, %v717
    %v722 = vmul.f32 %v71, %v718
    %v723 = vmul.f32 %v72, %v719
    %v724 = vtanh.pop %v720
    %v725 = vtanh.pop %v721
    %v726 = vtanh.pop %v722
    %v727 = vtanh.pop %v723
    %v728 = vmul.f32 %v74, %v724
    %v729 = vmul.f32 %v75, %v725
    %v730 = vmul.f32 %v76, %v726
    %v731 = vmul.f32 %v77, %v727
    %v732 = vsel %vm165, %v728, 0.0
    %v733 = vsel %vm165, %v729, 0.0
    %v734 = vadd.f32 %v732, %v733
    %v735 = vsel %vm165, %v730, 0.0
    %v736 = vadd.f32 %v734, %v735
    %v737 = vsel %vm165, %v731, 0.0
    %v738 = vadd.f32 %v736, %v737
    %v739 = vrot.slane %v738, 4
    %v740 = vadd.f32 %v738, %v739
    %v741 = vrot.slane %v740, 2
    %v742 = vadd.f32 %v740, %v741
    %v743 = vrot.slane %v742, 1
    %v744 = vadd.f32 %v742, %v743
    %v745 = vmul.f32 %v78, %v698
    %v746 = vadd.f32 %v745, %v558
    %v747 = vadd.f32 %v746, %v744
    %749 = vrot.lane.b32.xlu0 %v744, 96
    %v750 = vpop.permute.xlu0 %749
    %v752 = vadd.f32 %v509, %v750
    %v753 = vrcp.pop %v752
    %v754 = vmul.f32 %v752, %v753
    %v755 = vsub.f32 2.0, %v754
    %v756 = vmul.f32 %v753, %v755
    %v758 = vrot.slane %v756, 4
    %v760 = vmul.f32 %v747, %v758
    %v761 = vperm.slane %v760, 4
    %v762 = vmul.f32 %v95, %v761
    %v763 = vmul.f32 %v96, %v761
    %v764 = vmul.f32 %v97, %v761
    %v765 = vmul.f32 %v98, %v761
    %v766 = vsel %vm126, %v762, 0.0
    %767 = vadd.xlane.f32.xlu0 %v766
    %v768 = vpop.xlane.xlu0 %767
    %v769 = vsel %vm126, %v763, 0.0
    %770 = vadd.xlane.f32.xlu0 %v769
    %v771 = vpop.xlane.xlu0 %770
    %v772 = vsel %vm126, %v764, 0.0
    %773 = vadd.xlane.f32.xlu0 %v772
    %v774 = vpop.xlane.xlu0 %773
    %v775 = vsel %vm126, %v765, 0.0
    %776 = vadd.xlane.f32.xlu0 %v775
    %v777 = vpop.xlane.xlu0 %776
    %v778 = vsub.f32 %v768, %v64
    %v779 = vsub.f32 %v771, %v65
    %v780 = vsub.f32 %v774, %v66
    %v781 = vsub.f32 %v777, %v67
    %v782 = vmul.f32 %v69, %v778
    %v783 = vmul.f32 %v70, %v779
    %v784 = vmul.f32 %v71, %v780
    %v785 = vmul.f32 %v72, %v781
    %v786 = vtanh.pop %v782
    %v787 = vtanh.pop %v783
    %v788 = vtanh.pop %v784
    %v789 = vtanh.pop %v785
    %v790 = vmul.f32 %v74, %v786
    %v791 = vmul.f32 %v75, %v787
    %v792 = vmul.f32 %v76, %v788
    %v793 = vmul.f32 %v77, %v789
    %v794 = vsel %vm165, %v790, 0.0
    %v795 = vsel %vm165, %v791, 0.0
    %v796 = vadd.f32 %v794, %v795
    %v797 = vsel %vm165, %v792, 0.0
    %v798 = vadd.f32 %v796, %v797
    %v799 = vsel %vm165, %v793, 0.0
    %v800 = vadd.f32 %v798, %v799
    %v801 = vrot.slane %v800, 4
    %v802 = vadd.f32 %v800, %v801
    %v803 = vrot.slane %v802, 2
    %v804 = vadd.f32 %v802, %v803
    %v805 = vrot.slane %v804, 1
    %v806 = vadd.f32 %v804, %v805
    %v807 = vmul.f32 %v78, %v760
    %v808 = vadd.f32 %v807, %v558
    %v809 = vadd.f32 %v808, %v806
    %811 = vrot.lane.b32.xlu0 %v806, 96
    %v812 = vpop.permute.xlu0 %811
    %v814 = vadd.f32 %v509, %v812
    %v815 = vrcp.pop %v814
    %v816 = vmul.f32 %v814, %v815
    %v817 = vsub.f32 2.0, %v816
    %v818 = vmul.f32 %v815, %v817
    %v820 = vrot.slane %v818, 4
    %v822 = vmul.f32 %v809, %v820
    %v823 = vperm.slane %v822, 4
    %v824 = vmul.f32 %v95, %v823
    %v825 = vmul.f32 %v96, %v823
    %v826 = vmul.f32 %v97, %v823
    %v827 = vmul.f32 %v98, %v823
    %v828 = vsel %vm126, %v824, 0.0
    %829 = vadd.xlane.f32.xlu0 %v828
    %v830 = vpop.xlane.xlu0 %829
    %v831 = vsel %vm126, %v825, 0.0
    %832 = vadd.xlane.f32.xlu0 %v831
    %v833 = vpop.xlane.xlu0 %832
    %v834 = vsel %vm126, %v826, 0.0
    %835 = vadd.xlane.f32.xlu0 %v834
    %v836 = vpop.xlane.xlu0 %835
    %v837 = vsel %vm126, %v827, 0.0
    %838 = vadd.xlane.f32.xlu0 %v837
    %v839 = vpop.xlane.xlu0 %838
    %v840 = vsub.f32 %v830, %v64
    %v841 = vsub.f32 %v833, %v65
    %v842 = vsub.f32 %v836, %v66
    %v843 = vsub.f32 %v839, %v67
    %v844 = vmul.f32 %v69, %v840
    %v845 = vmul.f32 %v70, %v841
    %v846 = vmul.f32 %v71, %v842
    %v847 = vmul.f32 %v72, %v843
    %v848 = vtanh.pop %v844
    %v849 = vtanh.pop %v845
    %v850 = vtanh.pop %v846
    %v851 = vtanh.pop %v847
    %v852 = vmul.f32 %v74, %v848
    %v853 = vmul.f32 %v75, %v849
    %v854 = vmul.f32 %v76, %v850
    %v855 = vmul.f32 %v77, %v851
    %v856 = vsel %vm165, %v852, 0.0
    %v857 = vsel %vm165, %v853, 0.0
    %v858 = vadd.f32 %v856, %v857
    %v859 = vsel %vm165, %v854, 0.0
    %v860 = vadd.f32 %v858, %v859
    %v861 = vsel %vm165, %v855, 0.0
    %v862 = vadd.f32 %v860, %v861
    %v863 = vrot.slane %v862, 4
    %v864 = vadd.f32 %v862, %v863
    %v865 = vrot.slane %v864, 2
    %v866 = vadd.f32 %v864, %v865
    %v867 = vrot.slane %v866, 1
    %v868 = vadd.f32 %v866, %v867
    %v869 = vmul.f32 %v78, %v822
    %v870 = vadd.f32 %v869, %v558
    %v871 = vadd.f32 %v870, %v868
    %873 = vrot.lane.b32.xlu0 %v868, 96
    %v874 = vpop.permute.xlu0 %873
    %v876 = vadd.f32 %v509, %v874
    %v877 = vrcp.pop %v876
    %v878 = vmul.f32 %v876, %v877
    %v879 = vsub.f32 2.0, %v878
    %v880 = vmul.f32 %v877, %v879
    %v882 = vrot.slane %v880, 4
    %v884 = vmul.f32 %v871, %v882
    %v885 = vld [vmem:[#allocation2 + $0x2] sm:$0x1]
    %v886 = vld [vmem:[#allocation3 + $0x2] sm:$0x1]
    %v887 = vperm.slane %v884, 4
    %v888 = vmul.f32 %v95, %v887
    %v889 = vmul.f32 %v96, %v887
    %v890 = vmul.f32 %v97, %v887
    %v891 = vmul.f32 %v98, %v887
    %v892 = vsel %vm126, %v888, 0.0
    %893 = vadd.xlane.f32.xlu0 %v892
    %v894 = vpop.xlane.xlu0 %893
    %v895 = vsel %vm126, %v889, 0.0
    %896 = vadd.xlane.f32.xlu0 %v895
    %v897 = vpop.xlane.xlu0 %896
    %v898 = vsel %vm126, %v890, 0.0
    %899 = vadd.xlane.f32.xlu0 %v898
    %v900 = vpop.xlane.xlu0 %899
    %v901 = vsel %vm126, %v891, 0.0
    %902 = vadd.xlane.f32.xlu0 %v901
    %v903 = vpop.xlane.xlu0 %902
    %v904 = vsub.f32 %v894, %v64
    %v905 = vsub.f32 %v897, %v65
    %v906 = vsub.f32 %v900, %v66
    %v907 = vsub.f32 %v903, %v67
    %v908 = vmul.f32 %v69, %v904
    %v909 = vmul.f32 %v70, %v905
    %v910 = vmul.f32 %v71, %v906
    %v911 = vmul.f32 %v72, %v907
    %v912 = vtanh.pop %v908
    %v913 = vtanh.pop %v909
    %v914 = vtanh.pop %v910
    %v915 = vtanh.pop %v911
    %v916 = vmul.f32 %v74, %v912
    %v917 = vmul.f32 %v75, %v913
    %v918 = vmul.f32 %v76, %v914
    %v919 = vmul.f32 %v77, %v915
    %v920 = vsel %vm165, %v916, 0.0
    %v921 = vsel %vm165, %v917, 0.0
    %v922 = vadd.f32 %v920, %v921
    %v923 = vsel %vm165, %v918, 0.0
    %v924 = vadd.f32 %v922, %v923
    %v925 = vsel %vm165, %v919, 0.0
    %v926 = vadd.f32 %v924, %v925
    %v927 = vrot.slane %v926, 4
    %v928 = vadd.f32 %v926, %v927
    %v929 = vrot.slane %v928, 2
    %v930 = vadd.f32 %v928, %v929
    %v931 = vrot.slane %v930, 1
    %v932 = vadd.f32 %v930, %v931
    %v933 = vmul.f32 %v78, %v884
    %v935 = vrot.slane %v885, 4
    %v937 = vadd.f32 %v933, %v935
    %v938 = vadd.f32 %v937, %v932
    %940 = vrot.lane.b32.xlu0 %v932, 96
    %v941 = vpop.permute.xlu0 %940
    %v943 = vadd.f32 %v886, %v941
    %v944 = vrcp.pop %v943
    %v945 = vmul.f32 %v943, %v944
    %v946 = vsub.f32 2.0, %v945
    %v947 = vmul.f32 %v944, %v946
    %v949 = vrot.slane %v947, 4
    %v951 = vmul.f32 %v938, %v949
    %v952 = vperm.slane %v951, 4
    %v953 = vmul.f32 %v95, %v952
    %v954 = vmul.f32 %v96, %v952
    %v955 = vmul.f32 %v97, %v952
    %v956 = vmul.f32 %v98, %v952
    %v957 = vsel %vm126, %v953, 0.0
    %958 = vadd.xlane.f32.xlu0 %v957
    %v959 = vpop.xlane.xlu0 %958
    %v960 = vsel %vm126, %v954, 0.0
    %961 = vadd.xlane.f32.xlu0 %v960
    %v962 = vpop.xlane.xlu0 %961
    %v963 = vsel %vm126, %v955, 0.0
    %964 = vadd.xlane.f32.xlu0 %v963
    %v965 = vpop.xlane.xlu0 %964
    %v966 = vsel %vm126, %v956, 0.0
    %967 = vadd.xlane.f32.xlu0 %v966
    %v968 = vpop.xlane.xlu0 %967
    %v969 = vsub.f32 %v959, %v64
    %v970 = vsub.f32 %v962, %v65
    %v971 = vsub.f32 %v965, %v66
    %v972 = vsub.f32 %v968, %v67
    %v973 = vmul.f32 %v69, %v969
    %v974 = vmul.f32 %v70, %v970
    %v975 = vmul.f32 %v71, %v971
    %v976 = vmul.f32 %v72, %v972
    %v977 = vtanh.pop %v973
    %v978 = vtanh.pop %v974
    %v979 = vtanh.pop %v975
    %v980 = vtanh.pop %v976
    %v981 = vmul.f32 %v74, %v977
    %v982 = vmul.f32 %v75, %v978
    %v983 = vmul.f32 %v76, %v979
    %v984 = vmul.f32 %v77, %v980
    %v985 = vsel %vm165, %v981, 0.0
    %v986 = vsel %vm165, %v982, 0.0
    %v987 = vadd.f32 %v985, %v986
    %v988 = vsel %vm165, %v983, 0.0
    %v989 = vadd.f32 %v987, %v988
    %v990 = vsel %vm165, %v984, 0.0
    %v991 = vadd.f32 %v989, %v990
    %v992 = vrot.slane %v991, 4
    %v993 = vadd.f32 %v991, %v992
    %v994 = vrot.slane %v993, 2
    %v995 = vadd.f32 %v993, %v994
    %v996 = vrot.slane %v995, 1
    %v997 = vadd.f32 %v995, %v996
    %v998 = vmul.f32 %v78, %v951
    %v999 = vadd.f32 %v998, %v935
    %v1000 = vadd.f32 %v999, %v997
    %1002 = vrot.lane.b32.xlu0 %v997, 96
    %v1003 = vpop.permute.xlu0 %1002
    %v1005 = vadd.f32 %v886, %v1003
    %v1006 = vrcp.pop %v1005
    %v1007 = vmul.f32 %v1005, %v1006
    %v1008 = vsub.f32 2.0, %v1007
    %v1009 = vmul.f32 %v1006, %v1008
    %v1011 = vrot.slane %v1009, 4
    %v1013 = vmul.f32 %v1000, %v1011
    %v1014 = vperm.slane %v1013, 4
    %v1015 = vmul.f32 %v95, %v1014
    %v1016 = vmul.f32 %v96, %v1014
    %v1017 = vmul.f32 %v97, %v1014
    %v1018 = vmul.f32 %v98, %v1014
    %v1019 = vsel %vm126, %v1015, 0.0
    %1020 = vadd.xlane.f32.xlu0 %v1019
    %v1021 = vpop.xlane.xlu0 %1020
    %v1022 = vsel %vm126, %v1016, 0.0
    %1023 = vadd.xlane.f32.xlu0 %v1022
    %v1024 = vpop.xlane.xlu0 %1023
    %v1025 = vsel %vm126, %v1017, 0.0
    %1026 = vadd.xlane.f32.xlu0 %v1025
    %v1027 = vpop.xlane.xlu0 %1026
    %v1028 = vsel %vm126, %v1018, 0.0
    %1029 = vadd.xlane.f32.xlu0 %v1028
    %v1030 = vpop.xlane.xlu0 %1029
    %v1031 = vsub.f32 %v1021, %v64
    %v1032 = vsub.f32 %v1024, %v65
    %v1033 = vsub.f32 %v1027, %v66
    %v1034 = vsub.f32 %v1030, %v67
    %v1035 = vmul.f32 %v69, %v1031
    %v1036 = vmul.f32 %v70, %v1032
    %v1037 = vmul.f32 %v71, %v1033
    %v1038 = vmul.f32 %v72, %v1034
    %v1039 = vtanh.pop %v1035
    %v1040 = vtanh.pop %v1036
    %v1041 = vtanh.pop %v1037
    %v1042 = vtanh.pop %v1038
    %v1043 = vmul.f32 %v74, %v1039
    %v1044 = vmul.f32 %v75, %v1040
    %v1045 = vmul.f32 %v76, %v1041
    %v1046 = vmul.f32 %v77, %v1042
    %v1047 = vsel %vm165, %v1043, 0.0
    %v1048 = vsel %vm165, %v1044, 0.0
    %v1049 = vadd.f32 %v1047, %v1048
    %v1050 = vsel %vm165, %v1045, 0.0
    %v1051 = vadd.f32 %v1049, %v1050
    %v1052 = vsel %vm165, %v1046, 0.0
    %v1053 = vadd.f32 %v1051, %v1052
    %v1054 = vrot.slane %v1053, 4
    %v1055 = vadd.f32 %v1053, %v1054
    %v1056 = vrot.slane %v1055, 2
    %v1057 = vadd.f32 %v1055, %v1056
    %v1058 = vrot.slane %v1057, 1
    %v1059 = vadd.f32 %v1057, %v1058
    %v1060 = vmul.f32 %v78, %v1013
    %v1061 = vadd.f32 %v1060, %v935
    %v1062 = vadd.f32 %v1061, %v1059
    %1064 = vrot.lane.b32.xlu0 %v1059, 96
    %v1065 = vpop.permute.xlu0 %1064
    %v1067 = vadd.f32 %v886, %v1065
    %v1068 = vrcp.pop %v1067
    %v1069 = vmul.f32 %v1067, %v1068
    %v1070 = vsub.f32 2.0, %v1069
    %v1071 = vmul.f32 %v1068, %v1070
    %v1073 = vrot.slane %v1071, 4
    %v1075 = vmul.f32 %v1062, %v1073
    %v1076 = vperm.slane %v1075, 4
    %v1077 = vmul.f32 %v95, %v1076
    %v1078 = vmul.f32 %v96, %v1076
    %v1079 = vmul.f32 %v97, %v1076
    %v1080 = vmul.f32 %v98, %v1076
    %v1081 = vsel %vm126, %v1077, 0.0
    %1082 = vadd.xlane.f32.xlu0 %v1081
    %v1083 = vpop.xlane.xlu0 %1082
    %v1084 = vsel %vm126, %v1078, 0.0
    %1085 = vadd.xlane.f32.xlu0 %v1084
    %v1086 = vpop.xlane.xlu0 %1085
    %v1087 = vsel %vm126, %v1079, 0.0
    %1088 = vadd.xlane.f32.xlu0 %v1087
    %v1089 = vpop.xlane.xlu0 %1088
    %v1090 = vsel %vm126, %v1080, 0.0
    %1091 = vadd.xlane.f32.xlu0 %v1090
    %v1092 = vpop.xlane.xlu0 %1091
    %v1093 = vsub.f32 %v1083, %v64
    %v1094 = vsub.f32 %v1086, %v65
    %v1095 = vsub.f32 %v1089, %v66
    %v1096 = vsub.f32 %v1092, %v67
    %v1097 = vmul.f32 %v69, %v1093
    %v1098 = vmul.f32 %v70, %v1094
    %v1099 = vmul.f32 %v71, %v1095
    %v1100 = vmul.f32 %v72, %v1096
    %v1101 = vtanh.pop %v1097
    %v1102 = vtanh.pop %v1098
    %v1103 = vtanh.pop %v1099
    %v1104 = vtanh.pop %v1100
    %v1105 = vmul.f32 %v74, %v1101
    %v1106 = vmul.f32 %v75, %v1102
    %v1107 = vmul.f32 %v76, %v1103
    %v1108 = vmul.f32 %v77, %v1104
    %v1109 = vsel %vm165, %v1105, 0.0
    %v1110 = vsel %vm165, %v1106, 0.0
    %v1111 = vadd.f32 %v1109, %v1110
    %v1112 = vsel %vm165, %v1107, 0.0
    %v1113 = vadd.f32 %v1111, %v1112
    %v1114 = vsel %vm165, %v1108, 0.0
    %v1115 = vadd.f32 %v1113, %v1114
    %v1116 = vrot.slane %v1115, 4
    %v1117 = vadd.f32 %v1115, %v1116
    %v1118 = vrot.slane %v1117, 2
    %v1119 = vadd.f32 %v1117, %v1118
    %v1120 = vrot.slane %v1119, 1
    %v1121 = vadd.f32 %v1119, %v1120
    %v1122 = vmul.f32 %v78, %v1075
    %v1123 = vadd.f32 %v1122, %v935
    %v1124 = vadd.f32 %v1123, %v1121
    %1126 = vrot.lane.b32.xlu0 %v1121, 96
    %v1127 = vpop.permute.xlu0 %1126
    %v1129 = vadd.f32 %v886, %v1127
    %v1130 = vrcp.pop %v1129
    %v1131 = vmul.f32 %v1129, %v1130
    %v1132 = vsub.f32 2.0, %v1131
    %v1133 = vmul.f32 %v1130, %v1132
    %v1135 = vrot.slane %v1133, 4
    %v1137 = vmul.f32 %v1124, %v1135
    %v1138 = vperm.slane %v1137, 4
    %v1139 = vmul.f32 %v95, %v1138
    %v1140 = vmul.f32 %v96, %v1138
    %v1141 = vmul.f32 %v97, %v1138
    %v1142 = vmul.f32 %v98, %v1138
    %v1143 = vsel %vm126, %v1139, 0.0
    %1144 = vadd.xlane.f32.xlu0 %v1143
    %v1145 = vpop.xlane.xlu0 %1144
    %v1146 = vsel %vm126, %v1140, 0.0
    %1147 = vadd.xlane.f32.xlu0 %v1146
    %v1148 = vpop.xlane.xlu0 %1147
    %v1149 = vsel %vm126, %v1141, 0.0
    %1150 = vadd.xlane.f32.xlu0 %v1149
    %v1151 = vpop.xlane.xlu0 %1150
    %v1152 = vsel %vm126, %v1142, 0.0
    %1153 = vadd.xlane.f32.xlu0 %v1152
    %v1154 = vpop.xlane.xlu0 %1153
    %v1155 = vsub.f32 %v1145, %v64
    %v1156 = vsub.f32 %v1148, %v65
    %v1157 = vsub.f32 %v1151, %v66
    %v1158 = vsub.f32 %v1154, %v67
    %v1159 = vmul.f32 %v69, %v1155
    %v1160 = vmul.f32 %v70, %v1156
    %v1161 = vmul.f32 %v71, %v1157
    %v1162 = vmul.f32 %v72, %v1158
    %v1163 = vtanh.pop %v1159
    %v1164 = vtanh.pop %v1160
    %v1165 = vtanh.pop %v1161
    %v1166 = vtanh.pop %v1162
    %v1167 = vmul.f32 %v74, %v1163
    %v1168 = vmul.f32 %v75, %v1164
    %v1169 = vmul.f32 %v76, %v1165
    %v1170 = vmul.f32 %v77, %v1166
    %v1171 = vsel %vm165, %v1167, 0.0
    %v1172 = vsel %vm165, %v1168, 0.0
    %v1173 = vadd.f32 %v1171, %v1172
    %v1174 = vsel %vm165, %v1169, 0.0
    %v1175 = vadd.f32 %v1173, %v1174
    %v1176 = vsel %vm165, %v1170, 0.0
    %v1177 = vadd.f32 %v1175, %v1176
    %v1178 = vrot.slane %v1177, 4
    %v1179 = vadd.f32 %v1177, %v1178
    %v1180 = vrot.slane %v1179, 2
    %v1181 = vadd.f32 %v1179, %v1180
    %v1182 = vrot.slane %v1181, 1
    %v1183 = vadd.f32 %v1181, %v1182
    %v1184 = vmul.f32 %v78, %v1137
    %v1185 = vadd.f32 %v1184, %v935
    %v1186 = vadd.f32 %v1185, %v1183
    %1188 = vrot.lane.b32.xlu0 %v1183, 96
    %v1189 = vpop.permute.xlu0 %1188
    %v1191 = vadd.f32 %v886, %v1189
    %v1192 = vrcp.pop %v1191
    %v1193 = vmul.f32 %v1191, %v1192
    %v1194 = vsub.f32 2.0, %v1193
    %v1195 = vmul.f32 %v1192, %v1194
    %v1197 = vrot.slane %v1195, 4
    %v1199 = vmul.f32 %v1186, %v1197
    %v1200 = vperm.slane %v1199, 4
    %v1201 = vmul.f32 %v95, %v1200
    %v1202 = vmul.f32 %v96, %v1200
    %v1203 = vmul.f32 %v97, %v1200
    %v1204 = vmul.f32 %v98, %v1200
    %v1205 = vsel %vm126, %v1201, 0.0
    %1206 = vadd.xlane.f32.xlu0 %v1205
    %v1207 = vpop.xlane.xlu0 %1206
    %v1208 = vsel %vm126, %v1202, 0.0
    %1209 = vadd.xlane.f32.xlu0 %v1208
    %v1210 = vpop.xlane.xlu0 %1209
    %v1211 = vsel %vm126, %v1203, 0.0
    %1212 = vadd.xlane.f32.xlu0 %v1211
    %v1213 = vpop.xlane.xlu0 %1212
    %v1214 = vsel %vm126, %v1204, 0.0
    %1215 = vadd.xlane.f32.xlu0 %v1214
    %v1216 = vpop.xlane.xlu0 %1215
    %v1217 = vsub.f32 %v1207, %v64
    %v1218 = vsub.f32 %v1210, %v65
    %v1219 = vsub.f32 %v1213, %v66
    %v1220 = vsub.f32 %v1216, %v67
    %v1221 = vmul.f32 %v69, %v1217
    %v1222 = vmul.f32 %v70, %v1218
    %v1223 = vmul.f32 %v71, %v1219
    %v1224 = vmul.f32 %v72, %v1220
    %v1225 = vtanh.pop %v1221
    %v1226 = vtanh.pop %v1222
    %v1227 = vtanh.pop %v1223
    %v1228 = vtanh.pop %v1224
    %v1229 = vmul.f32 %v74, %v1225
    %v1230 = vmul.f32 %v75, %v1226
    %v1231 = vmul.f32 %v76, %v1227
    %v1232 = vmul.f32 %v77, %v1228
    %v1233 = vsel %vm165, %v1229, 0.0
    %v1234 = vsel %vm165, %v1230, 0.0
    %v1235 = vadd.f32 %v1233, %v1234
    %v1236 = vsel %vm165, %v1231, 0.0
    %v1237 = vadd.f32 %v1235, %v1236
    %v1238 = vsel %vm165, %v1232, 0.0
    %v1239 = vadd.f32 %v1237, %v1238
    %v1240 = vrot.slane %v1239, 4
    %v1241 = vadd.f32 %v1239, %v1240
    %v1242 = vrot.slane %v1241, 2
    %v1243 = vadd.f32 %v1241, %v1242
    %v1244 = vrot.slane %v1243, 1
    %v1245 = vadd.f32 %v1243, %v1244
    %v1246 = vmul.f32 %v78, %v1199
    %v1247 = vadd.f32 %v1246, %v935
    %v1248 = vadd.f32 %v1247, %v1245
    %1250 = vrot.lane.b32.xlu0 %v1245, 96
    %v1251 = vpop.permute.xlu0 %1250
    %v1253 = vadd.f32 %v886, %v1251
    %v1254 = vrcp.pop %v1253
    %v1255 = vmul.f32 %v1253, %v1254
    %v1256 = vsub.f32 2.0, %v1255
    %v1257 = vmul.f32 %v1254, %v1256
    %v1259 = vrot.slane %v1257, 4
    %v1261 = vmul.f32 %v1248, %v1259
    %v1262 = vld [vmem:[#allocation2 + $0x3] sm:$0x1]
    %v1263 = vld [vmem:[#allocation3 + $0x3] sm:$0x1]
    %v1264 = vperm.slane %v1261, 4
    %v1265 = vmul.f32 %v95, %v1264
    %v1266 = vmul.f32 %v96, %v1264
    %v1267 = vmul.f32 %v97, %v1264
    %v1268 = vmul.f32 %v98, %v1264
    %v1269 = vsel %vm126, %v1265, 0.0
    %1270 = vadd.xlane.f32.xlu0 %v1269
    %v1271 = vpop.xlane.xlu0 %1270
    %v1272 = vsel %vm126, %v1266, 0.0
    %1273 = vadd.xlane.f32.xlu0 %v1272
    %v1274 = vpop.xlane.xlu0 %1273
    %v1275 = vsel %vm126, %v1267, 0.0
    %1276 = vadd.xlane.f32.xlu0 %v1275
    %v1277 = vpop.xlane.xlu0 %1276
    %v1278 = vsel %vm126, %v1268, 0.0
    %1279 = vadd.xlane.f32.xlu0 %v1278
    %v1280 = vpop.xlane.xlu0 %1279
    %v1281 = vsub.f32 %v1271, %v64
    %v1282 = vsub.f32 %v1274, %v65
    %v1283 = vsub.f32 %v1277, %v66
    %v1284 = vsub.f32 %v1280, %v67
    %v1285 = vmul.f32 %v69, %v1281
    %v1286 = vmul.f32 %v70, %v1282
    %v1287 = vmul.f32 %v71, %v1283
    %v1288 = vmul.f32 %v72, %v1284
    %v1289 = vtanh.pop %v1285
    %v1290 = vtanh.pop %v1286
    %v1291 = vtanh.pop %v1287
    %v1292 = vtanh.pop %v1288
    %v1293 = vmul.f32 %v74, %v1289
    %v1294 = vmul.f32 %v75, %v1290
    %v1295 = vmul.f32 %v76, %v1291
    %v1296 = vmul.f32 %v77, %v1292
    %v1297 = vsel %vm165, %v1293, 0.0
    %v1298 = vsel %vm165, %v1294, 0.0
    %v1299 = vadd.f32 %v1297, %v1298
    %v1300 = vsel %vm165, %v1295, 0.0
    %v1301 = vadd.f32 %v1299, %v1300
    %v1302 = vsel %vm165, %v1296, 0.0
    %v1303 = vadd.f32 %v1301, %v1302
    %v1304 = vrot.slane %v1303, 4
    %v1305 = vadd.f32 %v1303, %v1304
    %v1306 = vrot.slane %v1305, 2
    %v1307 = vadd.f32 %v1305, %v1306
    %v1308 = vrot.slane %v1307, 1
    %v1309 = vadd.f32 %v1307, %v1308
    %v1310 = vmul.f32 %v78, %v1261
    %v1312 = vrot.slane %v1262, 4
    %v1314 = vadd.f32 %v1310, %v1312
    %v1315 = vadd.f32 %v1314, %v1309
    %1317 = vrot.lane.b32.xlu0 %v1309, 96
    %v1318 = vpop.permute.xlu0 %1317
    %v1320 = vadd.f32 %v1263, %v1318
    %v1321 = vrcp.pop %v1320
    %v1322 = vmul.f32 %v1320, %v1321
    %v1323 = vsub.f32 2.0, %v1322
    %v1324 = vmul.f32 %v1321, %v1323
    %v1326 = vrot.slane %v1324, 4
    %v1328 = vmul.f32 %v1315, %v1326
    %v1329 = vperm.slane %v1328, 4
    %v1330 = vmul.f32 %v95, %v1329
    %v1331 = vmul.f32 %v96, %v1329
    %v1332 = vmul.f32 %v97, %v1329
    %v1333 = vmul.f32 %v98, %v1329
    %v1334 = vsel %vm126, %v1330, 0.0
    %1335 = vadd.xlane.f32.xlu0 %v1334
    %v1336 = vpop.xlane.xlu0 %1335
    %v1337 = vsel %vm126, %v1331, 0.0
    %1338 = vadd.xlane.f32.xlu0 %v1337
    %v1339 = vpop.xlane.xlu0 %1338
    %v1340 = vsel %vm126, %v1332, 0.0
    %1341 = vadd.xlane.f32.xlu0 %v1340
    %v1342 = vpop.xlane.xlu0 %1341
    %v1343 = vsel %vm126, %v1333, 0.0
    %1344 = vadd.xlane.f32.xlu0 %v1343
    %v1345 = vpop.xlane.xlu0 %1344
    %v1346 = vsub.f32 %v1336, %v64
    %v1347 = vsub.f32 %v1339, %v65
    %v1348 = vsub.f32 %v1342, %v66
    %v1349 = vsub.f32 %v1345, %v67
    %v1350 = vmul.f32 %v69, %v1346
    %v1351 = vmul.f32 %v70, %v1347
    %v1352 = vmul.f32 %v71, %v1348
    %v1353 = vmul.f32 %v72, %v1349
    %v1354 = vtanh.pop %v1350
    %v1355 = vtanh.pop %v1351
    %v1356 = vtanh.pop %v1352
    %v1357 = vtanh.pop %v1353
    %v1358 = vmul.f32 %v74, %v1354
    %v1359 = vmul.f32 %v75, %v1355
    %v1360 = vmul.f32 %v76, %v1356
    %v1361 = vmul.f32 %v77, %v1357
    %v1362 = vsel %vm165, %v1358, 0.0
    %v1363 = vsel %vm165, %v1359, 0.0
    %v1364 = vadd.f32 %v1362, %v1363
    %v1365 = vsel %vm165, %v1360, 0.0
    %v1366 = vadd.f32 %v1364, %v1365
    %v1367 = vsel %vm165, %v1361, 0.0
    %v1368 = vadd.f32 %v1366, %v1367
    %v1369 = vrot.slane %v1368, 4
    %v1370 = vadd.f32 %v1368, %v1369
    %v1371 = vrot.slane %v1370, 2
    %v1372 = vadd.f32 %v1370, %v1371
    %v1373 = vrot.slane %v1372, 1
    %v1374 = vadd.f32 %v1372, %v1373
    %v1375 = vmul.f32 %v78, %v1328
    %v1376 = vadd.f32 %v1375, %v1312
    %v1377 = vadd.f32 %v1376, %v1374
    %1379 = vrot.lane.b32.xlu0 %v1374, 96
    %v1380 = vpop.permute.xlu0 %1379
    %v1382 = vadd.f32 %v1263, %v1380
    %v1383 = vrcp.pop %v1382
    %v1384 = vmul.f32 %v1382, %v1383
    %v1385 = vsub.f32 2.0, %v1384
    %v1386 = vmul.f32 %v1383, %v1385
    %v1388 = vrot.slane %v1386, 4
    %v1390 = vmul.f32 %v1377, %v1388
    %v1391 = vperm.slane %v1390, 4
    %v1392 = vmul.f32 %v95, %v1391
    %v1393 = vmul.f32 %v96, %v1391
    %v1394 = vmul.f32 %v97, %v1391
    %v1395 = vmul.f32 %v98, %v1391
    %v1396 = vsel %vm126, %v1392, 0.0
    %1397 = vadd.xlane.f32.xlu0 %v1396
    %v1398 = vpop.xlane.xlu0 %1397
    %v1399 = vsel %vm126, %v1393, 0.0
    %1400 = vadd.xlane.f32.xlu0 %v1399
    %v1401 = vpop.xlane.xlu0 %1400
    %v1402 = vsel %vm126, %v1394, 0.0
    %1403 = vadd.xlane.f32.xlu0 %v1402
    %v1404 = vpop.xlane.xlu0 %1403
    %v1405 = vsel %vm126, %v1395, 0.0
    %1406 = vadd.xlane.f32.xlu0 %v1405
    %v1407 = vpop.xlane.xlu0 %1406
    %v1408 = vsub.f32 %v1398, %v64
    %v1409 = vsub.f32 %v1401, %v65
    %v1410 = vsub.f32 %v1404, %v66
    %v1411 = vsub.f32 %v1407, %v67
    %v1412 = vmul.f32 %v69, %v1408
    %v1413 = vmul.f32 %v70, %v1409
    %v1414 = vmul.f32 %v71, %v1410
    %v1415 = vmul.f32 %v72, %v1411
    %v1416 = vtanh.pop %v1412
    %v1417 = vtanh.pop %v1413
    %v1418 = vtanh.pop %v1414
    %v1419 = vtanh.pop %v1415
    %v1420 = vmul.f32 %v74, %v1416
    %v1421 = vmul.f32 %v75, %v1417
    %v1422 = vmul.f32 %v76, %v1418
    %v1423 = vmul.f32 %v77, %v1419
    %v1424 = vsel %vm165, %v1420, 0.0
    %v1425 = vsel %vm165, %v1421, 0.0
    %v1426 = vadd.f32 %v1424, %v1425
    %v1427 = vsel %vm165, %v1422, 0.0
    %v1428 = vadd.f32 %v1426, %v1427
    %v1429 = vsel %vm165, %v1423, 0.0
    %v1430 = vadd.f32 %v1428, %v1429
    %v1431 = vrot.slane %v1430, 4
    %v1432 = vadd.f32 %v1430, %v1431
    %v1433 = vrot.slane %v1432, 2
    %v1434 = vadd.f32 %v1432, %v1433
    %v1435 = vrot.slane %v1434, 1
    %v1436 = vadd.f32 %v1434, %v1435
    %v1437 = vmul.f32 %v78, %v1390
    %v1438 = vadd.f32 %v1437, %v1312
    %v1439 = vadd.f32 %v1438, %v1436
    %1441 = vrot.lane.b32.xlu0 %v1436, 96
    %v1442 = vpop.permute.xlu0 %1441
    %v1444 = vadd.f32 %v1263, %v1442
    %v1445 = vrcp.pop %v1444
    %v1446 = vmul.f32 %v1444, %v1445
    %v1447 = vsub.f32 2.0, %v1446
    %v1448 = vmul.f32 %v1445, %v1447
    %v1450 = vrot.slane %v1448, 4
    %v1452 = vmul.f32 %v1439, %v1450
    %v1453 = vperm.slane %v1452, 4
    %v1454 = vmul.f32 %v95, %v1453
    %v1455 = vmul.f32 %v96, %v1453
    %v1456 = vmul.f32 %v97, %v1453
    %v1457 = vmul.f32 %v98, %v1453
    %v1458 = vsel %vm126, %v1454, 0.0
    %1459 = vadd.xlane.f32.xlu0 %v1458
    %v1460 = vpop.xlane.xlu0 %1459
    %v1461 = vsel %vm126, %v1455, 0.0
    %1462 = vadd.xlane.f32.xlu0 %v1461
    %v1463 = vpop.xlane.xlu0 %1462
    %v1464 = vsel %vm126, %v1456, 0.0
    %1465 = vadd.xlane.f32.xlu0 %v1464
    %v1466 = vpop.xlane.xlu0 %1465
    %v1467 = vsel %vm126, %v1457, 0.0
    %1468 = vadd.xlane.f32.xlu0 %v1467
    %v1469 = vpop.xlane.xlu0 %1468
    %v1470 = vsub.f32 %v1460, %v64
    %v1471 = vsub.f32 %v1463, %v65
    %v1472 = vsub.f32 %v1466, %v66
    %v1473 = vsub.f32 %v1469, %v67
    %v1474 = vmul.f32 %v69, %v1470
    %v1475 = vmul.f32 %v70, %v1471
    %v1476 = vmul.f32 %v71, %v1472
    %v1477 = vmul.f32 %v72, %v1473
    %v1478 = vtanh.pop %v1474
    %v1479 = vtanh.pop %v1475
    %v1480 = vtanh.pop %v1476
    %v1481 = vtanh.pop %v1477
    %v1482 = vmul.f32 %v74, %v1478
    %v1483 = vmul.f32 %v75, %v1479
    %v1484 = vmul.f32 %v76, %v1480
    %v1485 = vmul.f32 %v77, %v1481
    %v1486 = vsel %vm165, %v1482, 0.0
    %v1487 = vsel %vm165, %v1483, 0.0
    %v1488 = vadd.f32 %v1486, %v1487
    %v1489 = vsel %vm165, %v1484, 0.0
    %v1490 = vadd.f32 %v1488, %v1489
    %v1491 = vsel %vm165, %v1485, 0.0
    %v1492 = vadd.f32 %v1490, %v1491
    %v1493 = vrot.slane %v1492, 4
    %v1494 = vadd.f32 %v1492, %v1493
    %v1495 = vrot.slane %v1494, 2
    %v1496 = vadd.f32 %v1494, %v1495
    %v1497 = vrot.slane %v1496, 1
    %v1498 = vadd.f32 %v1496, %v1497
    %v1499 = vmul.f32 %v78, %v1452
    %v1500 = vadd.f32 %v1499, %v1312
    %v1501 = vadd.f32 %v1500, %v1498
    %1503 = vrot.lane.b32.xlu0 %v1498, 96
    %v1504 = vpop.permute.xlu0 %1503
    %v1506 = vadd.f32 %v1263, %v1504
    %v1507 = vrcp.pop %v1506
    %v1508 = vmul.f32 %v1506, %v1507
    %v1509 = vsub.f32 2.0, %v1508
    %v1510 = vmul.f32 %v1507, %v1509
    %v1512 = vrot.slane %v1510, 4
    %v1514 = vmul.f32 %v1501, %v1512
    %v1515 = vperm.slane %v1514, 4
    %v1516 = vmul.f32 %v95, %v1515
    %v1517 = vmul.f32 %v96, %v1515
    %v1518 = vmul.f32 %v97, %v1515
    %v1519 = vmul.f32 %v98, %v1515
    %v1520 = vsel %vm126, %v1516, 0.0
    %1521 = vadd.xlane.f32.xlu0 %v1520
    %v1522 = vpop.xlane.xlu0 %1521
    %v1523 = vsel %vm126, %v1517, 0.0
    %1524 = vadd.xlane.f32.xlu0 %v1523
    %v1525 = vpop.xlane.xlu0 %1524
    %v1526 = vsel %vm126, %v1518, 0.0
    %1527 = vadd.xlane.f32.xlu0 %v1526
    %v1528 = vpop.xlane.xlu0 %1527
    %v1529 = vsel %vm126, %v1519, 0.0
    %1530 = vadd.xlane.f32.xlu0 %v1529
    %v1531 = vpop.xlane.xlu0 %1530
    %v1532 = vsub.f32 %v1522, %v64
    %v1533 = vsub.f32 %v1525, %v65
    %v1534 = vsub.f32 %v1528, %v66
    %v1535 = vsub.f32 %v1531, %v67
    %v1536 = vmul.f32 %v69, %v1532
    %v1537 = vmul.f32 %v70, %v1533
    %v1538 = vmul.f32 %v71, %v1534
    %v1539 = vmul.f32 %v72, %v1535
    %v1540 = vtanh.pop %v1536
    %v1541 = vtanh.pop %v1537
    %v1542 = vtanh.pop %v1538
    %v1543 = vtanh.pop %v1539
    %v1544 = vmul.f32 %v74, %v1540
    %v1545 = vmul.f32 %v75, %v1541
    %v1546 = vmul.f32 %v76, %v1542
    %v1547 = vmul.f32 %v77, %v1543
    %v1548 = vsel %vm165, %v1544, 0.0
    %v1549 = vsel %vm165, %v1545, 0.0
    %v1550 = vadd.f32 %v1548, %v1549
    %v1551 = vsel %vm165, %v1546, 0.0
    %v1552 = vadd.f32 %v1550, %v1551
    %v1553 = vsel %vm165, %v1547, 0.0
    %v1554 = vadd.f32 %v1552, %v1553
    %v1555 = vrot.slane %v1554, 4
    %v1556 = vadd.f32 %v1554, %v1555
    %v1557 = vrot.slane %v1556, 2
    %v1558 = vadd.f32 %v1556, %v1557
    %v1559 = vrot.slane %v1558, 1
    %v1560 = vadd.f32 %v1558, %v1559
    %v1561 = vmul.f32 %v78, %v1514
    %v1562 = vadd.f32 %v1561, %v1312
    %v1563 = vadd.f32 %v1562, %v1560
    %1565 = vrot.lane.b32.xlu0 %v1560, 96
    %v1566 = vpop.permute.xlu0 %1565
    %v1568 = vadd.f32 %v1263, %v1566
    %v1569 = vrcp.pop %v1568
    %v1570 = vmul.f32 %v1568, %v1569
    %v1571 = vsub.f32 2.0, %v1570
    %v1572 = vmul.f32 %v1569, %v1571
    %v1574 = vrot.slane %v1572, 4
    %v1576 = vmul.f32 %v1563, %v1574
    %v1577 = vperm.slane %v1576, 4
    %v1578 = vmul.f32 %v95, %v1577
    %v1579 = vmul.f32 %v96, %v1577
    %v1580 = vmul.f32 %v97, %v1577
    %v1581 = vmul.f32 %v98, %v1577
    %v1582 = vsel %vm126, %v1578, 0.0
    %1583 = vadd.xlane.f32.xlu0 %v1582
    %v1584 = vpop.xlane.xlu0 %1583
    %v1585 = vsel %vm126, %v1579, 0.0
    %1586 = vadd.xlane.f32.xlu0 %v1585
    %v1587 = vpop.xlane.xlu0 %1586
    %v1588 = vsel %vm126, %v1580, 0.0
    %1589 = vadd.xlane.f32.xlu0 %v1588
    %v1590 = vpop.xlane.xlu0 %1589
    %v1591 = vsel %vm126, %v1581, 0.0
    %1592 = vadd.xlane.f32.xlu0 %v1591
    %v1593 = vpop.xlane.xlu0 %1592
    %v1594 = vsub.f32 %v1584, %v64
    %v1595 = vsub.f32 %v1587, %v65
    %v1596 = vsub.f32 %v1590, %v66
    %v1597 = vsub.f32 %v1593, %v67
    %v1598 = vmul.f32 %v69, %v1594
    %v1599 = vmul.f32 %v70, %v1595
    %v1600 = vmul.f32 %v71, %v1596
    %v1601 = vmul.f32 %v72, %v1597
    %v1602 = vtanh.pop %v1598
    %v1603 = vtanh.pop %v1599
    %v1604 = vtanh.pop %v1600
    %v1605 = vtanh.pop %v1601
    %v1606 = vmul.f32 %v74, %v1602
    %v1607 = vmul.f32 %v75, %v1603
    %v1608 = vmul.f32 %v76, %v1604
    %v1609 = vmul.f32 %v77, %v1605
    %v1610 = vsel %vm165, %v1606, 0.0
    %v1611 = vsel %vm165, %v1607, 0.0
    %v1612 = vadd.f32 %v1610, %v1611
    %v1613 = vsel %vm165, %v1608, 0.0
    %v1614 = vadd.f32 %v1612, %v1613
    %v1615 = vsel %vm165, %v1609, 0.0
    %v1616 = vadd.f32 %v1614, %v1615
    %v1617 = vrot.slane %v1616, 4
    %v1618 = vadd.f32 %v1616, %v1617
    %v1619 = vrot.slane %v1618, 2
    %v1620 = vadd.f32 %v1618, %v1619
    %v1621 = vrot.slane %v1620, 1
    %v1622 = vadd.f32 %v1620, %v1621
    %v1623 = vmul.f32 %v78, %v1576
    %v1624 = vadd.f32 %v1623, %v1312
    %v1625 = vadd.f32 %v1624, %v1622
    %1627 = vrot.lane.b32.xlu0 %v1622, 96
    %v1628 = vpop.permute.xlu0 %1627
    %v1630 = vadd.f32 %v1263, %v1628
    %v1631 = vrcp.pop %v1630
    %v1632 = vmul.f32 %v1630, %v1631
    %v1633 = vsub.f32 2.0, %v1632
    %v1634 = vmul.f32 %v1631, %v1633
    %v1636 = vrot.slane %v1634, 4
    %v1638 = vmul.f32 %v1625, %v1636
    %v1639 = vld [vmem:[#allocation2 + $0x4] sm:$0x1]
    %v1640 = vld [vmem:[#allocation3 + $0x4] sm:$0x1]
    %v1641 = vperm.slane %v1638, 4
    %v1642 = vmul.f32 %v95, %v1641
    %v1643 = vmul.f32 %v96, %v1641
    %v1644 = vmul.f32 %v97, %v1641
    %v1645 = vmul.f32 %v98, %v1641
    %v1646 = vsel %vm126, %v1642, 0.0
    %1647 = vadd.xlane.f32.xlu0 %v1646
    %v1648 = vpop.xlane.xlu0 %1647
    %v1649 = vsel %vm126, %v1643, 0.0
    %1650 = vadd.xlane.f32.xlu0 %v1649
    %v1651 = vpop.xlane.xlu0 %1650
    %v1652 = vsel %vm126, %v1644, 0.0
    %1653 = vadd.xlane.f32.xlu0 %v1652
    %v1654 = vpop.xlane.xlu0 %1653
    %v1655 = vsel %vm126, %v1645, 0.0
    %1656 = vadd.xlane.f32.xlu0 %v1655
    %v1657 = vpop.xlane.xlu0 %1656
    %v1658 = vsub.f32 %v1648, %v64
    %v1659 = vsub.f32 %v1651, %v65
    %v1660 = vsub.f32 %v1654, %v66
    %v1661 = vsub.f32 %v1657, %v67
    %v1662 = vmul.f32 %v69, %v1658
    %v1663 = vmul.f32 %v70, %v1659
    %v1664 = vmul.f32 %v71, %v1660
    %v1665 = vmul.f32 %v72, %v1661
    %v1666 = vtanh.pop %v1662
    %v1667 = vtanh.pop %v1663
    %v1668 = vtanh.pop %v1664
    %v1669 = vtanh.pop %v1665
    %v1670 = vmul.f32 %v74, %v1666
    %v1671 = vmul.f32 %v75, %v1667
    %v1672 = vmul.f32 %v76, %v1668
    %v1673 = vmul.f32 %v77, %v1669
    %v1674 = vsel %vm165, %v1670, 0.0
    %v1675 = vsel %vm165, %v1671, 0.0
    %v1676 = vadd.f32 %v1674, %v1675
    %v1677 = vsel %vm165, %v1672, 0.0
    %v1678 = vadd.f32 %v1676, %v1677
    %v1679 = vsel %vm165, %v1673, 0.0
    %v1680 = vadd.f32 %v1678, %v1679
    %v1681 = vrot.slane %v1680, 4
    %v1682 = vadd.f32 %v1680, %v1681
    %v1683 = vrot.slane %v1682, 2
    %v1684 = vadd.f32 %v1682, %v1683
    %v1685 = vrot.slane %v1684, 1
    %v1686 = vadd.f32 %v1684, %v1685
    %v1687 = vmul.f32 %v78, %v1638
    %v1689 = vrot.slane %v1639, 4
    %v1691 = vadd.f32 %v1687, %v1689
    %v1692 = vadd.f32 %v1691, %v1686
    %1694 = vrot.lane.b32.xlu0 %v1686, 96
    %v1695 = vpop.permute.xlu0 %1694
    %v1697 = vadd.f32 %v1640, %v1695
    %v1698 = vrcp.pop %v1697
    %v1699 = vmul.f32 %v1697, %v1698
    %v1700 = vsub.f32 2.0, %v1699
    %v1701 = vmul.f32 %v1698, %v1700
    %v1703 = vrot.slane %v1701, 4
    %v1705 = vmul.f32 %v1692, %v1703
    %v1706 = vperm.slane %v1705, 4
    %v1707 = vmul.f32 %v95, %v1706
    %v1708 = vmul.f32 %v96, %v1706
    %v1709 = vmul.f32 %v97, %v1706
    %v1710 = vmul.f32 %v98, %v1706
    %v1711 = vsel %vm126, %v1707, 0.0
    %1712 = vadd.xlane.f32.xlu0 %v1711
    %v1713 = vpop.xlane.xlu0 %1712
    %v1714 = vsel %vm126, %v1708, 0.0
    %1715 = vadd.xlane.f32.xlu0 %v1714
    %v1716 = vpop.xlane.xlu0 %1715
    %v1717 = vsel %vm126, %v1709, 0.0
    %1718 = vadd.xlane.f32.xlu0 %v1717
    %v1719 = vpop.xlane.xlu0 %1718
    %v1720 = vsel %vm126, %v1710, 0.0
    %1721 = vadd.xlane.f32.xlu0 %v1720
    %v1722 = vpop.xlane.xlu0 %1721
    %v1723 = vsub.f32 %v1713, %v64
    %v1724 = vsub.f32 %v1716, %v65
    %v1725 = vsub.f32 %v1719, %v66
    %v1726 = vsub.f32 %v1722, %v67
    %v1727 = vmul.f32 %v69, %v1723
    %v1728 = vmul.f32 %v70, %v1724
    %v1729 = vmul.f32 %v71, %v1725
    %v1730 = vmul.f32 %v72, %v1726
    %v1731 = vtanh.pop %v1727
    %v1732 = vtanh.pop %v1728
    %v1733 = vtanh.pop %v1729
    %v1734 = vtanh.pop %v1730
    %v1735 = vmul.f32 %v74, %v1731
    %v1736 = vmul.f32 %v75, %v1732
    %v1737 = vmul.f32 %v76, %v1733
    %v1738 = vmul.f32 %v77, %v1734
    %v1739 = vsel %vm165, %v1735, 0.0
    %v1740 = vsel %vm165, %v1736, 0.0
    %v1741 = vadd.f32 %v1739, %v1740
    %v1742 = vsel %vm165, %v1737, 0.0
    %v1743 = vadd.f32 %v1741, %v1742
    %v1744 = vsel %vm165, %v1738, 0.0
    %v1745 = vadd.f32 %v1743, %v1744
    %v1746 = vrot.slane %v1745, 4
    %v1747 = vadd.f32 %v1745, %v1746
    %v1748 = vrot.slane %v1747, 2
    %v1749 = vadd.f32 %v1747, %v1748
    %v1750 = vrot.slane %v1749, 1
    %v1751 = vadd.f32 %v1749, %v1750
    %v1752 = vmul.f32 %v78, %v1705
    %v1753 = vadd.f32 %v1752, %v1689
    %v1754 = vadd.f32 %v1753, %v1751
    %1756 = vrot.lane.b32.xlu0 %v1751, 96
    %v1757 = vpop.permute.xlu0 %1756
    %v1759 = vadd.f32 %v1640, %v1757
    %v1760 = vrcp.pop %v1759
    %v1761 = vmul.f32 %v1759, %v1760
    %v1762 = vsub.f32 2.0, %v1761
    %v1763 = vmul.f32 %v1760, %v1762
    %v1765 = vrot.slane %v1763, 4
    %v1767 = vmul.f32 %v1754, %v1765
    %v1768 = vperm.slane %v1767, 4
    %v1769 = vmul.f32 %v95, %v1768
    %v1770 = vmul.f32 %v96, %v1768
    %v1771 = vmul.f32 %v97, %v1768
    %v1772 = vmul.f32 %v98, %v1768
    %v1773 = vsel %vm126, %v1769, 0.0
    %1774 = vadd.xlane.f32.xlu0 %v1773
    %v1775 = vpop.xlane.xlu0 %1774
    %v1776 = vsel %vm126, %v1770, 0.0
    %1777 = vadd.xlane.f32.xlu0 %v1776
    %v1778 = vpop.xlane.xlu0 %1777
    %v1779 = vsel %vm126, %v1771, 0.0
    %1780 = vadd.xlane.f32.xlu0 %v1779
    %v1781 = vpop.xlane.xlu0 %1780
    %v1782 = vsel %vm126, %v1772, 0.0
    %1783 = vadd.xlane.f32.xlu0 %v1782
    %v1784 = vpop.xlane.xlu0 %1783
    %v1785 = vsub.f32 %v1775, %v64
    %v1786 = vsub.f32 %v1778, %v65
    %v1787 = vsub.f32 %v1781, %v66
    %v1788 = vsub.f32 %v1784, %v67
    %v1789 = vmul.f32 %v69, %v1785
    %v1790 = vmul.f32 %v70, %v1786
    %v1791 = vmul.f32 %v71, %v1787
    %v1792 = vmul.f32 %v72, %v1788
    %v1793 = vtanh.pop %v1789
    %v1794 = vtanh.pop %v1790
    %v1795 = vtanh.pop %v1791
    %v1796 = vtanh.pop %v1792
    %v1797 = vmul.f32 %v74, %v1793
    %v1798 = vmul.f32 %v75, %v1794
    %v1799 = vmul.f32 %v76, %v1795
    %v1800 = vmul.f32 %v77, %v1796
    %v1801 = vsel %vm165, %v1797, 0.0
    %v1802 = vsel %vm165, %v1798, 0.0
    %v1803 = vadd.f32 %v1801, %v1802
    %v1804 = vsel %vm165, %v1799, 0.0
    %v1805 = vadd.f32 %v1803, %v1804
    %v1806 = vsel %vm165, %v1800, 0.0
    %v1807 = vadd.f32 %v1805, %v1806
    %v1808 = vrot.slane %v1807, 4
    %v1809 = vadd.f32 %v1807, %v1808
    %v1810 = vrot.slane %v1809, 2
    %v1811 = vadd.f32 %v1809, %v1810
    %v1812 = vrot.slane %v1811, 1
    %v1813 = vadd.f32 %v1811, %v1812
    %v1814 = vmul.f32 %v78, %v1767
    %v1815 = vadd.f32 %v1814, %v1689
    %v1816 = vadd.f32 %v1815, %v1813
    %1818 = vrot.lane.b32.xlu0 %v1813, 96
    %v1819 = vpop.permute.xlu0 %1818
    %v1821 = vadd.f32 %v1640, %v1819
    %v1822 = vrcp.pop %v1821
    %v1823 = vmul.f32 %v1821, %v1822
    %v1824 = vsub.f32 2.0, %v1823
    %v1825 = vmul.f32 %v1822, %v1824
    %v1827 = vrot.slane %v1825, 4
    %v1829 = vmul.f32 %v1816, %v1827
    %v1830 = vperm.slane %v1829, 4
    %v1831 = vmul.f32 %v95, %v1830
    %v1832 = vmul.f32 %v96, %v1830
    %v1833 = vmul.f32 %v97, %v1830
    %v1834 = vmul.f32 %v98, %v1830
    %v1835 = vsel %vm126, %v1831, 0.0
    %1836 = vadd.xlane.f32.xlu0 %v1835
    %v1837 = vpop.xlane.xlu0 %1836
    %v1838 = vsel %vm126, %v1832, 0.0
    %1839 = vadd.xlane.f32.xlu0 %v1838
    %v1840 = vpop.xlane.xlu0 %1839
    %v1841 = vsel %vm126, %v1833, 0.0
    %1842 = vadd.xlane.f32.xlu0 %v1841
    %v1843 = vpop.xlane.xlu0 %1842
    %v1844 = vsel %vm126, %v1834, 0.0
    %1845 = vadd.xlane.f32.xlu0 %v1844
    %v1846 = vpop.xlane.xlu0 %1845
    %v1847 = vsub.f32 %v1837, %v64
    %v1848 = vsub.f32 %v1840, %v65
    %v1849 = vsub.f32 %v1843, %v66
    %v1850 = vsub.f32 %v1846, %v67
    %v1851 = vmul.f32 %v69, %v1847
    %v1852 = vmul.f32 %v70, %v1848
    %v1853 = vmul.f32 %v71, %v1849
    %v1854 = vmul.f32 %v72, %v1850
    %v1855 = vtanh.pop %v1851
    %v1856 = vtanh.pop %v1852
    %v1857 = vtanh.pop %v1853
    %v1858 = vtanh.pop %v1854
    %v1859 = vmul.f32 %v74, %v1855
    %v1860 = vmul.f32 %v75, %v1856
    %v1861 = vmul.f32 %v76, %v1857
    %v1862 = vmul.f32 %v77, %v1858
    %v1863 = vsel %vm165, %v1859, 0.0
    %v1864 = vsel %vm165, %v1860, 0.0
    %v1865 = vadd.f32 %v1863, %v1864
    %v1866 = vsel %vm165, %v1861, 0.0
    %v1867 = vadd.f32 %v1865, %v1866
    %v1868 = vsel %vm165, %v1862, 0.0
    %v1869 = vadd.f32 %v1867, %v1868
    %v1870 = vrot.slane %v1869, 4
    %v1871 = vadd.f32 %v1869, %v1870
    %v1872 = vrot.slane %v1871, 2
    %v1873 = vadd.f32 %v1871, %v1872
    %v1874 = vrot.slane %v1873, 1
    %v1875 = vadd.f32 %v1873, %v1874
    %v1876 = vmul.f32 %v78, %v1829
    %v1877 = vadd.f32 %v1876, %v1689
    %v1878 = vadd.f32 %v1877, %v1875
    %1880 = vrot.lane.b32.xlu0 %v1875, 96
    %v1881 = vpop.permute.xlu0 %1880
    %v1883 = vadd.f32 %v1640, %v1881
    %v1884 = vrcp.pop %v1883
    %v1885 = vmul.f32 %v1883, %v1884
    %v1886 = vsub.f32 2.0, %v1885
    %v1887 = vmul.f32 %v1884, %v1886
    %v1889 = vrot.slane %v1887, 4
    %v1891 = vmul.f32 %v1878, %v1889
    %v1892 = vperm.slane %v1891, 4
    %v1893 = vmul.f32 %v95, %v1892
    %v1894 = vmul.f32 %v96, %v1892
    %v1895 = vmul.f32 %v97, %v1892
    %v1896 = vmul.f32 %v98, %v1892
    %v1897 = vsel %vm126, %v1893, 0.0
    %1898 = vadd.xlane.f32.xlu0 %v1897
    %v1899 = vpop.xlane.xlu0 %1898
    %v1900 = vsel %vm126, %v1894, 0.0
    %1901 = vadd.xlane.f32.xlu0 %v1900
    %v1902 = vpop.xlane.xlu0 %1901
    %v1903 = vsel %vm126, %v1895, 0.0
    %1904 = vadd.xlane.f32.xlu0 %v1903
    %v1905 = vpop.xlane.xlu0 %1904
    %v1906 = vsel %vm126, %v1896, 0.0
    %1907 = vadd.xlane.f32.xlu0 %v1906
    %v1908 = vpop.xlane.xlu0 %1907
    %v1909 = vsub.f32 %v1899, %v64
    %v1910 = vsub.f32 %v1902, %v65
    %v1911 = vsub.f32 %v1905, %v66
    %v1912 = vsub.f32 %v1908, %v67
    %v1913 = vmul.f32 %v69, %v1909
    %v1914 = vmul.f32 %v70, %v1910
    %v1915 = vmul.f32 %v71, %v1911
    %v1916 = vmul.f32 %v72, %v1912
    %v1917 = vtanh.pop %v1913
    %v1918 = vtanh.pop %v1914
    %v1919 = vtanh.pop %v1915
    %v1920 = vtanh.pop %v1916
    %v1921 = vmul.f32 %v74, %v1917
    %v1922 = vmul.f32 %v75, %v1918
    %v1923 = vmul.f32 %v76, %v1919
    %v1924 = vmul.f32 %v77, %v1920
    %v1925 = vsel %vm165, %v1921, 0.0
    %v1926 = vsel %vm165, %v1922, 0.0
    %v1927 = vadd.f32 %v1925, %v1926
    %v1928 = vsel %vm165, %v1923, 0.0
    %v1929 = vadd.f32 %v1927, %v1928
    %v1930 = vsel %vm165, %v1924, 0.0
    %v1931 = vadd.f32 %v1929, %v1930
    %v1932 = vrot.slane %v1931, 4
    %v1933 = vadd.f32 %v1931, %v1932
    %v1934 = vrot.slane %v1933, 2
    %v1935 = vadd.f32 %v1933, %v1934
    %v1936 = vrot.slane %v1935, 1
    %v1937 = vadd.f32 %v1935, %v1936
    %v1938 = vmul.f32 %v78, %v1891
    %v1939 = vadd.f32 %v1938, %v1689
    %v1940 = vadd.f32 %v1939, %v1937
    %1942 = vrot.lane.b32.xlu0 %v1937, 96
    %v1943 = vpop.permute.xlu0 %1942
    %v1945 = vadd.f32 %v1640, %v1943
    %v1946 = vrcp.pop %v1945
    %v1947 = vmul.f32 %v1945, %v1946
    %v1948 = vsub.f32 2.0, %v1947
    %v1949 = vmul.f32 %v1946, %v1948
    %v1951 = vrot.slane %v1949, 4
    %v1953 = vmul.f32 %v1940, %v1951
    %v1954 = vperm.slane %v1953, 4
    %v1955 = vmul.f32 %v95, %v1954
    %v1956 = vmul.f32 %v96, %v1954
    %v1957 = vmul.f32 %v97, %v1954
    %v1958 = vmul.f32 %v98, %v1954
    %v1959 = vsel %vm126, %v1955, 0.0
    %1960 = vadd.xlane.f32.xlu0 %v1959
    %v1961 = vpop.xlane.xlu0 %1960
    %v1962 = vsel %vm126, %v1956, 0.0
    %1963 = vadd.xlane.f32.xlu0 %v1962
    %v1964 = vpop.xlane.xlu0 %1963
    %v1965 = vsel %vm126, %v1957, 0.0
    %1966 = vadd.xlane.f32.xlu0 %v1965
    %v1967 = vpop.xlane.xlu0 %1966
    %v1968 = vsel %vm126, %v1958, 0.0
    %1969 = vadd.xlane.f32.xlu0 %v1968
    %v1970 = vpop.xlane.xlu0 %1969
    %v1971 = vsub.f32 %v1961, %v64
    %v1972 = vsub.f32 %v1964, %v65
    %v1973 = vsub.f32 %v1967, %v66
    %v1974 = vsub.f32 %v1970, %v67
    %v1975 = vmul.f32 %v69, %v1971
    %v1976 = vmul.f32 %v70, %v1972
    %v1977 = vmul.f32 %v71, %v1973
    %v1978 = vmul.f32 %v72, %v1974
    %v1979 = vtanh.pop %v1975
    %v1980 = vtanh.pop %v1976
    %v1981 = vtanh.pop %v1977
    %v1982 = vtanh.pop %v1978
    %v1983 = vmul.f32 %v74, %v1979
    %v1984 = vmul.f32 %v75, %v1980
    %v1985 = vmul.f32 %v76, %v1981
    %v1986 = vmul.f32 %v77, %v1982
    %v1987 = vsel %vm165, %v1983, 0.0
    %v1988 = vsel %vm165, %v1984, 0.0
    %v1989 = vadd.f32 %v1987, %v1988
    %v1990 = vsel %vm165, %v1985, 0.0
    %v1991 = vadd.f32 %v1989, %v1990
    %v1992 = vsel %vm165, %v1986, 0.0
    %v1993 = vadd.f32 %v1991, %v1992
    %v1994 = vrot.slane %v1993, 4
    %v1995 = vadd.f32 %v1993, %v1994
    %v1996 = vrot.slane %v1995, 2
    %v1997 = vadd.f32 %v1995, %v1996
    %v1998 = vrot.slane %v1997, 1
    %v1999 = vadd.f32 %v1997, %v1998
    %v2000 = vmul.f32 %v78, %v1953
    %v2001 = vadd.f32 %v2000, %v1689
    %v2002 = vadd.f32 %v2001, %v1999
    %2004 = vrot.lane.b32.xlu0 %v1999, 96
    %v2005 = vpop.permute.xlu0 %2004
    %v2007 = vadd.f32 %v1640, %v2005
    %v2008 = vrcp.pop %v2007
    %v2009 = vmul.f32 %v2007, %v2008
    %v2010 = vsub.f32 2.0, %v2009
    %v2011 = vmul.f32 %v2008, %v2010
    %v2013 = vrot.slane %v2011, 4
    %v2015 = vmul.f32 %v2002, %v2013
    %v2016 = vld [vmem:[#allocation2 + $0x5] sm:$0x1]
    %v2017 = vld [vmem:[#allocation3 + $0x5] sm:$0x1]
    %v2018 = vperm.slane %v2015, 4
    %v2019 = vmul.f32 %v95, %v2018
    %v2020 = vmul.f32 %v96, %v2018
    %v2021 = vmul.f32 %v97, %v2018
    %v2022 = vmul.f32 %v98, %v2018
    %v2023 = vsel %vm126, %v2019, 0.0
    %2024 = vadd.xlane.f32.xlu0 %v2023
    %v2025 = vpop.xlane.xlu0 %2024
    %v2026 = vsel %vm126, %v2020, 0.0
    %2027 = vadd.xlane.f32.xlu0 %v2026
    %v2028 = vpop.xlane.xlu0 %2027
    %v2029 = vsel %vm126, %v2021, 0.0
    %2030 = vadd.xlane.f32.xlu0 %v2029
    %v2031 = vpop.xlane.xlu0 %2030
    %v2032 = vsel %vm126, %v2022, 0.0
    %2033 = vadd.xlane.f32.xlu0 %v2032
    %v2034 = vpop.xlane.xlu0 %2033
    %v2035 = vsub.f32 %v2025, %v64
    %v2036 = vsub.f32 %v2028, %v65
    %v2037 = vsub.f32 %v2031, %v66
    %v2038 = vsub.f32 %v2034, %v67
    %v2039 = vmul.f32 %v69, %v2035
    %v2040 = vmul.f32 %v70, %v2036
    %v2041 = vmul.f32 %v71, %v2037
    %v2042 = vmul.f32 %v72, %v2038
    %v2043 = vtanh.pop %v2039
    %v2044 = vtanh.pop %v2040
    %v2045 = vtanh.pop %v2041
    %v2046 = vtanh.pop %v2042
    %v2047 = vmul.f32 %v74, %v2043
    %v2048 = vmul.f32 %v75, %v2044
    %v2049 = vmul.f32 %v76, %v2045
    %v2050 = vmul.f32 %v77, %v2046
    %v2051 = vsel %vm165, %v2047, 0.0
    %v2052 = vsel %vm165, %v2048, 0.0
    %v2053 = vadd.f32 %v2051, %v2052
    %v2054 = vsel %vm165, %v2049, 0.0
    %v2055 = vadd.f32 %v2053, %v2054
    %v2056 = vsel %vm165, %v2050, 0.0
    %v2057 = vadd.f32 %v2055, %v2056
    %v2058 = vrot.slane %v2057, 4
    %v2059 = vadd.f32 %v2057, %v2058
    %v2060 = vrot.slane %v2059, 2
    %v2061 = vadd.f32 %v2059, %v2060
    %v2062 = vrot.slane %v2061, 1
    %v2063 = vadd.f32 %v2061, %v2062
    %v2064 = vmul.f32 %v78, %v2015
    %v2066 = vrot.slane %v2016, 4
    %v2068 = vadd.f32 %v2064, %v2066
    %v2069 = vadd.f32 %v2068, %v2063
    %2071 = vrot.lane.b32.xlu0 %v2063, 96
    %v2072 = vpop.permute.xlu0 %2071
    %v2074 = vadd.f32 %v2017, %v2072
    %v2075 = vrcp.pop %v2074
    %v2076 = vmul.f32 %v2074, %v2075
    %v2077 = vsub.f32 2.0, %v2076
    %v2078 = vmul.f32 %v2075, %v2077
    %v2080 = vrot.slane %v2078, 4
    %v2082 = vmul.f32 %v2069, %v2080
    %v2083 = vperm.slane %v2082, 4
    %v2084 = vmul.f32 %v95, %v2083
    %v2085 = vmul.f32 %v96, %v2083
    %v2086 = vmul.f32 %v97, %v2083
    %v2087 = vmul.f32 %v98, %v2083
    %v2088 = vsel %vm126, %v2084, 0.0
    %2089 = vadd.xlane.f32.xlu0 %v2088
    %v2090 = vpop.xlane.xlu0 %2089
    %v2091 = vsel %vm126, %v2085, 0.0
    %2092 = vadd.xlane.f32.xlu0 %v2091
    %v2093 = vpop.xlane.xlu0 %2092
    %v2094 = vsel %vm126, %v2086, 0.0
    %2095 = vadd.xlane.f32.xlu0 %v2094
    %v2096 = vpop.xlane.xlu0 %2095
    %v2097 = vsel %vm126, %v2087, 0.0
    %2098 = vadd.xlane.f32.xlu0 %v2097
    %v2099 = vpop.xlane.xlu0 %2098
    %v2100 = vsub.f32 %v2090, %v64
    %v2101 = vsub.f32 %v2093, %v65
    %v2102 = vsub.f32 %v2096, %v66
    %v2103 = vsub.f32 %v2099, %v67
    %v2104 = vmul.f32 %v69, %v2100
    %v2105 = vmul.f32 %v70, %v2101
    %v2106 = vmul.f32 %v71, %v2102
    %v2107 = vmul.f32 %v72, %v2103
    %v2108 = vtanh.pop %v2104
    %v2109 = vtanh.pop %v2105
    %v2110 = vtanh.pop %v2106
    %v2111 = vtanh.pop %v2107
    %v2112 = vmul.f32 %v74, %v2108
    %v2113 = vmul.f32 %v75, %v2109
    %v2114 = vmul.f32 %v76, %v2110
    %v2115 = vmul.f32 %v77, %v2111
    %v2116 = vsel %vm165, %v2112, 0.0
    %v2117 = vsel %vm165, %v2113, 0.0
    %v2118 = vadd.f32 %v2116, %v2117
    %v2119 = vsel %vm165, %v2114, 0.0
    %v2120 = vadd.f32 %v2118, %v2119
    %v2121 = vsel %vm165, %v2115, 0.0
    %v2122 = vadd.f32 %v2120, %v2121
    %v2123 = vrot.slane %v2122, 4
    %v2124 = vadd.f32 %v2122, %v2123
    %v2125 = vrot.slane %v2124, 2
    %v2126 = vadd.f32 %v2124, %v2125
    %v2127 = vrot.slane %v2126, 1
    %v2128 = vadd.f32 %v2126, %v2127
    %v2129 = vmul.f32 %v78, %v2082
    %v2130 = vadd.f32 %v2129, %v2066
    %v2131 = vadd.f32 %v2130, %v2128
    %2133 = vrot.lane.b32.xlu0 %v2128, 96
    %v2134 = vpop.permute.xlu0 %2133
    %v2136 = vadd.f32 %v2017, %v2134
    %v2137 = vrcp.pop %v2136
    %v2138 = vmul.f32 %v2136, %v2137
    %v2139 = vsub.f32 2.0, %v2138
    %v2140 = vmul.f32 %v2137, %v2139
    %v2142 = vrot.slane %v2140, 4
    %v2144 = vmul.f32 %v2131, %v2142
    %v2145 = vperm.slane %v2144, 4
    %v2146 = vmul.f32 %v95, %v2145
    %v2147 = vmul.f32 %v96, %v2145
    %v2148 = vmul.f32 %v97, %v2145
    %v2149 = vmul.f32 %v98, %v2145
    %v2150 = vsel %vm126, %v2146, 0.0
    %2151 = vadd.xlane.f32.xlu0 %v2150
    %v2152 = vpop.xlane.xlu0 %2151
    %v2153 = vsel %vm126, %v2147, 0.0
    %2154 = vadd.xlane.f32.xlu0 %v2153
    %v2155 = vpop.xlane.xlu0 %2154
    %v2156 = vsel %vm126, %v2148, 0.0
    %2157 = vadd.xlane.f32.xlu0 %v2156
    %v2158 = vpop.xlane.xlu0 %2157
    %v2159 = vsel %vm126, %v2149, 0.0
    %2160 = vadd.xlane.f32.xlu0 %v2159
    %v2161 = vpop.xlane.xlu0 %2160
    %v2162 = vsub.f32 %v2152, %v64
    %v2163 = vsub.f32 %v2155, %v65
    %v2164 = vsub.f32 %v2158, %v66
    %v2165 = vsub.f32 %v2161, %v67
    %v2166 = vmul.f32 %v69, %v2162
    %v2167 = vmul.f32 %v70, %v2163
    %v2168 = vmul.f32 %v71, %v2164
    %v2169 = vmul.f32 %v72, %v2165
    %v2170 = vtanh.pop %v2166
    %v2171 = vtanh.pop %v2167
    %v2172 = vtanh.pop %v2168
    %v2173 = vtanh.pop %v2169
    %v2174 = vmul.f32 %v74, %v2170
    %v2175 = vmul.f32 %v75, %v2171
    %v2176 = vmul.f32 %v76, %v2172
    %v2177 = vmul.f32 %v77, %v2173
    %v2178 = vsel %vm165, %v2174, 0.0
    %v2179 = vsel %vm165, %v2175, 0.0
    %v2180 = vadd.f32 %v2178, %v2179
    %v2181 = vsel %vm165, %v2176, 0.0
    %v2182 = vadd.f32 %v2180, %v2181
    %v2183 = vsel %vm165, %v2177, 0.0
    %v2184 = vadd.f32 %v2182, %v2183
    %v2185 = vrot.slane %v2184, 4
    %v2186 = vadd.f32 %v2184, %v2185
    %v2187 = vrot.slane %v2186, 2
    %v2188 = vadd.f32 %v2186, %v2187
    %v2189 = vrot.slane %v2188, 1
    %v2190 = vadd.f32 %v2188, %v2189
    %v2191 = vmul.f32 %v78, %v2144
    %v2192 = vadd.f32 %v2191, %v2066
    %v2193 = vadd.f32 %v2192, %v2190
    %2195 = vrot.lane.b32.xlu0 %v2190, 96
    %v2196 = vpop.permute.xlu0 %2195
    %v2198 = vadd.f32 %v2017, %v2196
    %v2199 = vrcp.pop %v2198
    %v2200 = vmul.f32 %v2198, %v2199
    %v2201 = vsub.f32 2.0, %v2200
    %v2202 = vmul.f32 %v2199, %v2201
    %v2204 = vrot.slane %v2202, 4
    %v2206 = vmul.f32 %v2193, %v2204
    %v2207 = vperm.slane %v2206, 4
    %v2208 = vmul.f32 %v95, %v2207
    %v2209 = vmul.f32 %v96, %v2207
    %v2210 = vmul.f32 %v97, %v2207
    %v2211 = vmul.f32 %v98, %v2207
    %v2212 = vsel %vm126, %v2208, 0.0
    %2213 = vadd.xlane.f32.xlu0 %v2212
    %v2214 = vpop.xlane.xlu0 %2213
    %v2215 = vsel %vm126, %v2209, 0.0
    %2216 = vadd.xlane.f32.xlu0 %v2215
    %v2217 = vpop.xlane.xlu0 %2216
    %v2218 = vsel %vm126, %v2210, 0.0
    %2219 = vadd.xlane.f32.xlu0 %v2218
    %v2220 = vpop.xlane.xlu0 %2219
    %v2221 = vsel %vm126, %v2211, 0.0
    %2222 = vadd.xlane.f32.xlu0 %v2221
    %v2223 = vpop.xlane.xlu0 %2222
    %v2224 = vsub.f32 %v2214, %v64
    %v2225 = vsub.f32 %v2217, %v65
    %v2226 = vsub.f32 %v2220, %v66
    %v2227 = vsub.f32 %v2223, %v67
    %v2228 = vmul.f32 %v69, %v2224
    %v2229 = vmul.f32 %v70, %v2225
    %v2230 = vmul.f32 %v71, %v2226
    %v2231 = vmul.f32 %v72, %v2227
    %v2232 = vtanh.pop %v2228
    %v2233 = vtanh.pop %v2229
    %v2234 = vtanh.pop %v2230
    %v2235 = vtanh.pop %v2231
    %v2236 = vmul.f32 %v74, %v2232
    %v2237 = vmul.f32 %v75, %v2233
    %v2238 = vmul.f32 %v76, %v2234
    %v2239 = vmul.f32 %v77, %v2235
    %v2240 = vsel %vm165, %v2236, 0.0
    %v2241 = vsel %vm165, %v2237, 0.0
    %v2242 = vadd.f32 %v2240, %v2241
    %v2243 = vsel %vm165, %v2238, 0.0
    %v2244 = vadd.f32 %v2242, %v2243
    %v2245 = vsel %vm165, %v2239, 0.0
    %v2246 = vadd.f32 %v2244, %v2245
    %v2247 = vrot.slane %v2246, 4
    %v2248 = vadd.f32 %v2246, %v2247
    %v2249 = vrot.slane %v2248, 2
    %v2250 = vadd.f32 %v2248, %v2249
    %v2251 = vrot.slane %v2250, 1
    %v2252 = vadd.f32 %v2250, %v2251
    %v2253 = vmul.f32 %v78, %v2206
    %v2254 = vadd.f32 %v2253, %v2066
    %v2255 = vadd.f32 %v2254, %v2252
    %2257 = vrot.lane.b32.xlu0 %v2252, 96
    %v2258 = vpop.permute.xlu0 %2257
    %v2260 = vadd.f32 %v2017, %v2258
    %v2261 = vrcp.pop %v2260
    %v2262 = vmul.f32 %v2260, %v2261
    %v2263 = vsub.f32 2.0, %v2262
    %v2264 = vmul.f32 %v2261, %v2263
    %v2266 = vrot.slane %v2264, 4
    %v2268 = vmul.f32 %v2255, %v2266
    %v2269 = vperm.slane %v2268, 4
    %v2270 = vmul.f32 %v95, %v2269
    %v2271 = vmul.f32 %v96, %v2269
    %v2272 = vmul.f32 %v97, %v2269
    %v2273 = vmul.f32 %v98, %v2269
    %v2274 = vsel %vm126, %v2270, 0.0
    %2275 = vadd.xlane.f32.xlu0 %v2274
    %v2276 = vpop.xlane.xlu0 %2275
    %v2277 = vsel %vm126, %v2271, 0.0
    %2278 = vadd.xlane.f32.xlu0 %v2277
    %v2279 = vpop.xlane.xlu0 %2278
    %v2280 = vsel %vm126, %v2272, 0.0
    %2281 = vadd.xlane.f32.xlu0 %v2280
    %v2282 = vpop.xlane.xlu0 %2281
    %v2283 = vsel %vm126, %v2273, 0.0
    %2284 = vadd.xlane.f32.xlu0 %v2283
    %v2285 = vpop.xlane.xlu0 %2284
    %v2286 = vsub.f32 %v2276, %v64
    %v2287 = vsub.f32 %v2279, %v65
    %v2288 = vsub.f32 %v2282, %v66
    %v2289 = vsub.f32 %v2285, %v67
    %v2290 = vmul.f32 %v69, %v2286
    %v2291 = vmul.f32 %v70, %v2287
    %v2292 = vmul.f32 %v71, %v2288
    %v2293 = vmul.f32 %v72, %v2289
    %v2294 = vtanh.pop %v2290
    %v2295 = vtanh.pop %v2291
    %v2296 = vtanh.pop %v2292
    %v2297 = vtanh.pop %v2293
    %v2298 = vmul.f32 %v74, %v2294
    %v2299 = vmul.f32 %v75, %v2295
    %v2300 = vmul.f32 %v76, %v2296
    %v2301 = vmul.f32 %v77, %v2297
    %v2302 = vsel %vm165, %v2298, 0.0
    %v2303 = vsel %vm165, %v2299, 0.0
    %v2304 = vadd.f32 %v2302, %v2303
    %v2305 = vsel %vm165, %v2300, 0.0
    %v2306 = vadd.f32 %v2304, %v2305
    %v2307 = vsel %vm165, %v2301, 0.0
    %v2308 = vadd.f32 %v2306, %v2307
    %v2309 = vrot.slane %v2308, 4
    %v2310 = vadd.f32 %v2308, %v2309
    %v2311 = vrot.slane %v2310, 2
    %v2312 = vadd.f32 %v2310, %v2311
    %v2313 = vrot.slane %v2312, 1
    %v2314 = vadd.f32 %v2312, %v2313
    %v2315 = vmul.f32 %v78, %v2268
    %v2316 = vadd.f32 %v2315, %v2066
    %v2317 = vadd.f32 %v2316, %v2314
    %2319 = vrot.lane.b32.xlu0 %v2314, 96
    %v2320 = vpop.permute.xlu0 %2319
    %v2322 = vadd.f32 %v2017, %v2320
    %v2323 = vrcp.pop %v2322
    %v2324 = vmul.f32 %v2322, %v2323
    %v2325 = vsub.f32 2.0, %v2324
    %v2326 = vmul.f32 %v2323, %v2325
    %v2328 = vrot.slane %v2326, 4
    %v2330 = vmul.f32 %v2317, %v2328
    %v2331 = vperm.slane %v2330, 4
    %v2332 = vmul.f32 %v95, %v2331
    %v2333 = vmul.f32 %v96, %v2331
    %v2334 = vmul.f32 %v97, %v2331
    %v2335 = vmul.f32 %v98, %v2331
    %v2336 = vsel %vm126, %v2332, 0.0
    %2337 = vadd.xlane.f32.xlu0 %v2336
    %v2338 = vpop.xlane.xlu0 %2337
    %v2339 = vsel %vm126, %v2333, 0.0
    %2340 = vadd.xlane.f32.xlu0 %v2339
    %v2341 = vpop.xlane.xlu0 %2340
    %v2342 = vsel %vm126, %v2334, 0.0
    %2343 = vadd.xlane.f32.xlu0 %v2342
    %v2344 = vpop.xlane.xlu0 %2343
    %v2345 = vsel %vm126, %v2335, 0.0
    %2346 = vadd.xlane.f32.xlu0 %v2345
    %v2347 = vpop.xlane.xlu0 %2346
    %v2348 = vsub.f32 %v2338, %v64
    %v2349 = vsub.f32 %v2341, %v65
    %v2350 = vsub.f32 %v2344, %v66
    %v2351 = vsub.f32 %v2347, %v67
    %v2352 = vmul.f32 %v69, %v2348
    %v2353 = vmul.f32 %v70, %v2349
    %v2354 = vmul.f32 %v71, %v2350
    %v2355 = vmul.f32 %v72, %v2351
    %v2356 = vtanh.pop %v2352
    %v2357 = vtanh.pop %v2353
    %v2358 = vtanh.pop %v2354
    %v2359 = vtanh.pop %v2355
    %v2360 = vmul.f32 %v74, %v2356
    %v2361 = vmul.f32 %v75, %v2357
    %v2362 = vmul.f32 %v76, %v2358
    %v2363 = vmul.f32 %v77, %v2359
    %v2364 = vsel %vm165, %v2360, 0.0
    %v2365 = vsel %vm165, %v2361, 0.0
    %v2366 = vadd.f32 %v2364, %v2365
    %v2367 = vsel %vm165, %v2362, 0.0
    %v2368 = vadd.f32 %v2366, %v2367
    %v2369 = vsel %vm165, %v2363, 0.0
    %v2370 = vadd.f32 %v2368, %v2369
    %v2371 = vrot.slane %v2370, 4
    %v2372 = vadd.f32 %v2370, %v2371
    %v2373 = vrot.slane %v2372, 2
    %v2374 = vadd.f32 %v2372, %v2373
    %v2375 = vrot.slane %v2374, 1
    %v2376 = vadd.f32 %v2374, %v2375
    %v2377 = vmul.f32 %v78, %v2330
    %v2378 = vadd.f32 %v2377, %v2066
    %v2379 = vadd.f32 %v2378, %v2376
    %2381 = vrot.lane.b32.xlu0 %v2376, 96
    %v2382 = vpop.permute.xlu0 %2381
    %v2384 = vadd.f32 %v2017, %v2382
    %v2385 = vrcp.pop %v2384
    %v2386 = vmul.f32 %v2384, %v2385
    %v2387 = vsub.f32 2.0, %v2386
    %v2388 = vmul.f32 %v2385, %v2387
    %v2390 = vrot.slane %v2388, 4
    %v2392 = vmul.f32 %v2379, %v2390
    %v2393 = vld [vmem:[#allocation2 + $0x6] sm:$0x1]
    %v2394 = vld [vmem:[#allocation3 + $0x6] sm:$0x1]
    %v2395 = vperm.slane %v2392, 4
    %v2396 = vmul.f32 %v95, %v2395
    %v2397 = vmul.f32 %v96, %v2395
    %v2398 = vmul.f32 %v97, %v2395
    %v2399 = vmul.f32 %v98, %v2395
    %v2400 = vsel %vm126, %v2396, 0.0
    %2401 = vadd.xlane.f32.xlu0 %v2400
    %v2402 = vpop.xlane.xlu0 %2401
    %v2403 = vsel %vm126, %v2397, 0.0
    %2404 = vadd.xlane.f32.xlu0 %v2403
    %v2405 = vpop.xlane.xlu0 %2404
    %v2406 = vsel %vm126, %v2398, 0.0
    %2407 = vadd.xlane.f32.xlu0 %v2406
    %v2408 = vpop.xlane.xlu0 %2407
    %v2409 = vsel %vm126, %v2399, 0.0
    %2410 = vadd.xlane.f32.xlu0 %v2409
    %v2411 = vpop.xlane.xlu0 %2410
    %v2412 = vsub.f32 %v2402, %v64
    %v2413 = vsub.f32 %v2405, %v65
    %v2414 = vsub.f32 %v2408, %v66
    %v2415 = vsub.f32 %v2411, %v67
    %v2416 = vmul.f32 %v69, %v2412
    %v2417 = vmul.f32 %v70, %v2413
    %v2418 = vmul.f32 %v71, %v2414
    %v2419 = vmul.f32 %v72, %v2415
    %v2420 = vtanh.pop %v2416
    %v2421 = vtanh.pop %v2417
    %v2422 = vtanh.pop %v2418
    %v2423 = vtanh.pop %v2419
    %v2424 = vmul.f32 %v74, %v2420
    %v2425 = vmul.f32 %v75, %v2421
    %v2426 = vmul.f32 %v76, %v2422
    %v2427 = vmul.f32 %v77, %v2423
    %v2428 = vsel %vm165, %v2424, 0.0
    %v2429 = vsel %vm165, %v2425, 0.0
    %v2430 = vadd.f32 %v2428, %v2429
    %v2431 = vsel %vm165, %v2426, 0.0
    %v2432 = vadd.f32 %v2430, %v2431
    %v2433 = vsel %vm165, %v2427, 0.0
    %v2434 = vadd.f32 %v2432, %v2433
    %v2435 = vrot.slane %v2434, 4
    %v2436 = vadd.f32 %v2434, %v2435
    %v2437 = vrot.slane %v2436, 2
    %v2438 = vadd.f32 %v2436, %v2437
    %v2439 = vrot.slane %v2438, 1
    %v2440 = vadd.f32 %v2438, %v2439
    %v2441 = vmul.f32 %v78, %v2392
    %v2443 = vrot.slane %v2393, 4
    %v2445 = vadd.f32 %v2441, %v2443
    %v2446 = vadd.f32 %v2445, %v2440
    %2448 = vrot.lane.b32.xlu0 %v2440, 96
    %v2449 = vpop.permute.xlu0 %2448
    %v2451 = vadd.f32 %v2394, %v2449
    %v2452 = vrcp.pop %v2451
    %v2453 = vmul.f32 %v2451, %v2452
    %v2454 = vsub.f32 2.0, %v2453
    %v2455 = vmul.f32 %v2452, %v2454
    %v2457 = vrot.slane %v2455, 4
    %v2459 = vmul.f32 %v2446, %v2457
    %v2460 = vperm.slane %v2459, 4
    %v2461 = vmul.f32 %v95, %v2460
    %v2462 = vmul.f32 %v96, %v2460
    %v2463 = vmul.f32 %v97, %v2460
    %v2464 = vmul.f32 %v98, %v2460
    %v2465 = vsel %vm126, %v2461, 0.0
    %2466 = vadd.xlane.f32.xlu0 %v2465
    %v2467 = vpop.xlane.xlu0 %2466
    %v2468 = vsel %vm126, %v2462, 0.0
    %2469 = vadd.xlane.f32.xlu0 %v2468
    %v2470 = vpop.xlane.xlu0 %2469
    %v2471 = vsel %vm126, %v2463, 0.0
    %2472 = vadd.xlane.f32.xlu0 %v2471
    %v2473 = vpop.xlane.xlu0 %2472
    %v2474 = vsel %vm126, %v2464, 0.0
    %2475 = vadd.xlane.f32.xlu0 %v2474
    %v2476 = vpop.xlane.xlu0 %2475
    %v2477 = vsub.f32 %v2467, %v64
    %v2478 = vsub.f32 %v2470, %v65
    %v2479 = vsub.f32 %v2473, %v66
    %v2480 = vsub.f32 %v2476, %v67
    %v2481 = vmul.f32 %v69, %v2477
    %v2482 = vmul.f32 %v70, %v2478
    %v2483 = vmul.f32 %v71, %v2479
    %v2484 = vmul.f32 %v72, %v2480
    %v2485 = vtanh.pop %v2481
    %v2486 = vtanh.pop %v2482
    %v2487 = vtanh.pop %v2483
    %v2488 = vtanh.pop %v2484
    %v2489 = vmul.f32 %v74, %v2485
    %v2490 = vmul.f32 %v75, %v2486
    %v2491 = vmul.f32 %v76, %v2487
    %v2492 = vmul.f32 %v77, %v2488
    %v2493 = vsel %vm165, %v2489, 0.0
    %v2494 = vsel %vm165, %v2490, 0.0
    %v2495 = vadd.f32 %v2493, %v2494
    %v2496 = vsel %vm165, %v2491, 0.0
    %v2497 = vadd.f32 %v2495, %v2496
    %v2498 = vsel %vm165, %v2492, 0.0
    %v2499 = vadd.f32 %v2497, %v2498
    %v2500 = vrot.slane %v2499, 4
    %v2501 = vadd.f32 %v2499, %v2500
    %v2502 = vrot.slane %v2501, 2
    %v2503 = vadd.f32 %v2501, %v2502
    %v2504 = vrot.slane %v2503, 1
    %v2505 = vadd.f32 %v2503, %v2504
    %v2506 = vmul.f32 %v78, %v2459
    %v2507 = vadd.f32 %v2506, %v2443
    %v2508 = vadd.f32 %v2507, %v2505
    %2510 = vrot.lane.b32.xlu0 %v2505, 96
    %v2511 = vpop.permute.xlu0 %2510
    %v2513 = vadd.f32 %v2394, %v2511
    %v2514 = vrcp.pop %v2513
    %v2515 = vmul.f32 %v2513, %v2514
    %v2516 = vsub.f32 2.0, %v2515
    %v2517 = vmul.f32 %v2514, %v2516
    %v2519 = vrot.slane %v2517, 4
    %v2521 = vmul.f32 %v2508, %v2519
    %v2522 = vperm.slane %v2521, 4
    %v2523 = vmul.f32 %v95, %v2522
    %v2524 = vmul.f32 %v96, %v2522
    %v2525 = vmul.f32 %v97, %v2522
    %v2526 = vmul.f32 %v98, %v2522
    %v2527 = vsel %vm126, %v2523, 0.0
    %2528 = vadd.xlane.f32.xlu0 %v2527
    %v2529 = vpop.xlane.xlu0 %2528
    %v2530 = vsel %vm126, %v2524, 0.0
    %2531 = vadd.xlane.f32.xlu0 %v2530
    %v2532 = vpop.xlane.xlu0 %2531
    %v2533 = vsel %vm126, %v2525, 0.0
    %2534 = vadd.xlane.f32.xlu0 %v2533
    %v2535 = vpop.xlane.xlu0 %2534
    %v2536 = vsel %vm126, %v2526, 0.0
    %2537 = vadd.xlane.f32.xlu0 %v2536
    %v2538 = vpop.xlane.xlu0 %2537
    %v2539 = vsub.f32 %v2529, %v64
    %v2540 = vsub.f32 %v2532, %v65
    %v2541 = vsub.f32 %v2535, %v66
    %v2542 = vsub.f32 %v2538, %v67
    %v2543 = vmul.f32 %v69, %v2539
    %v2544 = vmul.f32 %v70, %v2540
    %v2545 = vmul.f32 %v71, %v2541
    %v2546 = vmul.f32 %v72, %v2542
    %v2547 = vtanh.pop %v2543
    %v2548 = vtanh.pop %v2544
    %v2549 = vtanh.pop %v2545
    %v2550 = vtanh.pop %v2546
    %v2551 = vmul.f32 %v74, %v2547
    %v2552 = vmul.f32 %v75, %v2548
    %v2553 = vmul.f32 %v76, %v2549
    %v2554 = vmul.f32 %v77, %v2550
    %v2555 = vsel %vm165, %v2551, 0.0
    %v2556 = vsel %vm165, %v2552, 0.0
    %v2557 = vadd.f32 %v2555, %v2556
    %v2558 = vsel %vm165, %v2553, 0.0
    %v2559 = vadd.f32 %v2557, %v2558
    %v2560 = vsel %vm165, %v2554, 0.0
    %v2561 = vadd.f32 %v2559, %v2560
    %v2562 = vrot.slane %v2561, 4
    %v2563 = vadd.f32 %v2561, %v2562
    %v2564 = vrot.slane %v2563, 2
    %v2565 = vadd.f32 %v2563, %v2564
    %v2566 = vrot.slane %v2565, 1
    %v2567 = vadd.f32 %v2565, %v2566
    %v2568 = vmul.f32 %v78, %v2521
    %v2569 = vadd.f32 %v2568, %v2443
    %v2570 = vadd.f32 %v2569, %v2567
    %2572 = vrot.lane.b32.xlu0 %v2567, 96
    %v2573 = vpop.permute.xlu0 %2572
    %v2575 = vadd.f32 %v2394, %v2573
    %v2576 = vrcp.pop %v2575
    %v2577 = vmul.f32 %v2575, %v2576
    %v2578 = vsub.f32 2.0, %v2577
    %v2579 = vmul.f32 %v2576, %v2578
    %v2581 = vrot.slane %v2579, 4
    %v2583 = vmul.f32 %v2570, %v2581
    %v2584 = vperm.slane %v2583, 4
    %v2585 = vmul.f32 %v95, %v2584
    %v2586 = vmul.f32 %v96, %v2584
    %v2587 = vmul.f32 %v97, %v2584
    %v2588 = vmul.f32 %v98, %v2584
    %v2589 = vsel %vm126, %v2585, 0.0
    %2590 = vadd.xlane.f32.xlu0 %v2589
    %v2591 = vpop.xlane.xlu0 %2590
    %v2592 = vsel %vm126, %v2586, 0.0
    %2593 = vadd.xlane.f32.xlu0 %v2592
    %v2594 = vpop.xlane.xlu0 %2593
    %v2595 = vsel %vm126, %v2587, 0.0
    %2596 = vadd.xlane.f32.xlu0 %v2595
    %v2597 = vpop.xlane.xlu0 %2596
    %v2598 = vsel %vm126, %v2588, 0.0
    %2599 = vadd.xlane.f32.xlu0 %v2598
    %v2600 = vpop.xlane.xlu0 %2599
    %v2601 = vsub.f32 %v2591, %v64
    %v2602 = vsub.f32 %v2594, %v65
    %v2603 = vsub.f32 %v2597, %v66
    %v2604 = vsub.f32 %v2600, %v67
    %v2605 = vmul.f32 %v69, %v2601
    %v2606 = vmul.f32 %v70, %v2602
    %v2607 = vmul.f32 %v71, %v2603
    %v2608 = vmul.f32 %v72, %v2604
    %v2609 = vtanh.pop %v2605
    %v2610 = vtanh.pop %v2606
    %v2611 = vtanh.pop %v2607
    %v2612 = vtanh.pop %v2608
    %v2613 = vmul.f32 %v74, %v2609
    %v2614 = vmul.f32 %v75, %v2610
    %v2615 = vmul.f32 %v76, %v2611
    %v2616 = vmul.f32 %v77, %v2612
    %v2617 = vsel %vm165, %v2613, 0.0
    %v2618 = vsel %vm165, %v2614, 0.0
    %v2619 = vadd.f32 %v2617, %v2618
    %v2620 = vsel %vm165, %v2615, 0.0
    %v2621 = vadd.f32 %v2619, %v2620
    %v2622 = vsel %vm165, %v2616, 0.0
    %v2623 = vadd.f32 %v2621, %v2622
    %v2624 = vrot.slane %v2623, 4
    %v2625 = vadd.f32 %v2623, %v2624
    %v2626 = vrot.slane %v2625, 2
    %v2627 = vadd.f32 %v2625, %v2626
    %v2628 = vrot.slane %v2627, 1
    %v2629 = vadd.f32 %v2627, %v2628
    %v2630 = vmul.f32 %v78, %v2583
    %v2631 = vadd.f32 %v2630, %v2443
    %v2632 = vadd.f32 %v2631, %v2629
    %2634 = vrot.lane.b32.xlu0 %v2629, 96
    %v2635 = vpop.permute.xlu0 %2634
    %v2637 = vadd.f32 %v2394, %v2635
    %v2638 = vrcp.pop %v2637
    %v2639 = vmul.f32 %v2637, %v2638
    %v2640 = vsub.f32 2.0, %v2639
    %v2641 = vmul.f32 %v2638, %v2640
    %v2643 = vrot.slane %v2641, 4
    %v2645 = vmul.f32 %v2632, %v2643
    %v2646 = vperm.slane %v2645, 4
    %v2647 = vmul.f32 %v95, %v2646
    %v2648 = vmul.f32 %v96, %v2646
    %v2649 = vmul.f32 %v97, %v2646
    %v2650 = vmul.f32 %v98, %v2646
    %v2651 = vsel %vm126, %v2647, 0.0
    %2652 = vadd.xlane.f32.xlu0 %v2651
    %v2653 = vpop.xlane.xlu0 %2652
    %v2654 = vsel %vm126, %v2648, 0.0
    %2655 = vadd.xlane.f32.xlu0 %v2654
    %v2656 = vpop.xlane.xlu0 %2655
    %v2657 = vsel %vm126, %v2649, 0.0
    %2658 = vadd.xlane.f32.xlu0 %v2657
    %v2659 = vpop.xlane.xlu0 %2658
    %v2660 = vsel %vm126, %v2650, 0.0
    %2661 = vadd.xlane.f32.xlu0 %v2660
    %v2662 = vpop.xlane.xlu0 %2661
    %v2663 = vsub.f32 %v2653, %v64
    %v2664 = vsub.f32 %v2656, %v65
    %v2665 = vsub.f32 %v2659, %v66
    %v2666 = vsub.f32 %v2662, %v67
    %v2667 = vmul.f32 %v69, %v2663
    %v2668 = vmul.f32 %v70, %v2664
    %v2669 = vmul.f32 %v71, %v2665
    %v2670 = vmul.f32 %v72, %v2666
    %v2671 = vtanh.pop %v2667
    %v2672 = vtanh.pop %v2668
    %v2673 = vtanh.pop %v2669
    %v2674 = vtanh.pop %v2670
    %v2675 = vmul.f32 %v74, %v2671
    %v2676 = vmul.f32 %v75, %v2672
    %v2677 = vmul.f32 %v76, %v2673
    %v2678 = vmul.f32 %v77, %v2674
    %v2679 = vsel %vm165, %v2675, 0.0
    %v2680 = vsel %vm165, %v2676, 0.0
    %v2681 = vadd.f32 %v2679, %v2680
    %v2682 = vsel %vm165, %v2677, 0.0
    %v2683 = vadd.f32 %v2681, %v2682
    %v2684 = vsel %vm165, %v2678, 0.0
    %v2685 = vadd.f32 %v2683, %v2684
    %v2686 = vrot.slane %v2685, 4
    %v2687 = vadd.f32 %v2685, %v2686
    %v2688 = vrot.slane %v2687, 2
    %v2689 = vadd.f32 %v2687, %v2688
    %v2690 = vrot.slane %v2689, 1
    %v2691 = vadd.f32 %v2689, %v2690
    %v2692 = vmul.f32 %v78, %v2645
    %v2693 = vadd.f32 %v2692, %v2443
    %v2694 = vadd.f32 %v2693, %v2691
    %2696 = vrot.lane.b32.xlu0 %v2691, 96
    %v2697 = vpop.permute.xlu0 %2696
    %v2699 = vadd.f32 %v2394, %v2697
    %v2700 = vrcp.pop %v2699
    %v2701 = vmul.f32 %v2699, %v2700
    %v2702 = vsub.f32 2.0, %v2701
    %v2703 = vmul.f32 %v2700, %v2702
    %v2705 = vrot.slane %v2703, 4
    %v2707 = vmul.f32 %v2694, %v2705
    %v2708 = vperm.slane %v2707, 4
    %v2709 = vmul.f32 %v95, %v2708
    %v2710 = vmul.f32 %v96, %v2708
    %v2711 = vmul.f32 %v97, %v2708
    %v2712 = vmul.f32 %v98, %v2708
    %v2713 = vsel %vm126, %v2709, 0.0
    %2714 = vadd.xlane.f32.xlu0 %v2713
    %v2715 = vpop.xlane.xlu0 %2714
    %v2716 = vsel %vm126, %v2710, 0.0
    %2717 = vadd.xlane.f32.xlu0 %v2716
    %v2718 = vpop.xlane.xlu0 %2717
    %v2719 = vsel %vm126, %v2711, 0.0
    %2720 = vadd.xlane.f32.xlu0 %v2719
    %v2721 = vpop.xlane.xlu0 %2720
    %v2722 = vsel %vm126, %v2712, 0.0
    %2723 = vadd.xlane.f32.xlu0 %v2722
    %v2724 = vpop.xlane.xlu0 %2723
    %v2725 = vsub.f32 %v2715, %v64
    %v2726 = vsub.f32 %v2718, %v65
    %v2727 = vsub.f32 %v2721, %v66
    %v2728 = vsub.f32 %v2724, %v67
    %v2729 = vmul.f32 %v69, %v2725
    %v2730 = vmul.f32 %v70, %v2726
    %v2731 = vmul.f32 %v71, %v2727
    %v2732 = vmul.f32 %v72, %v2728
    %v2733 = vtanh.pop %v2729
    %v2734 = vtanh.pop %v2730
    %v2735 = vtanh.pop %v2731
    %v2736 = vtanh.pop %v2732
    %v2737 = vmul.f32 %v74, %v2733
    %v2738 = vmul.f32 %v75, %v2734
    %v2739 = vmul.f32 %v76, %v2735
    %v2740 = vmul.f32 %v77, %v2736
    %v2741 = vsel %vm165, %v2737, 0.0
    %v2742 = vsel %vm165, %v2738, 0.0
    %v2743 = vadd.f32 %v2741, %v2742
    %v2744 = vsel %vm165, %v2739, 0.0
    %v2745 = vadd.f32 %v2743, %v2744
    %v2746 = vsel %vm165, %v2740, 0.0
    %v2747 = vadd.f32 %v2745, %v2746
    %v2748 = vrot.slane %v2747, 4
    %v2749 = vadd.f32 %v2747, %v2748
    %v2750 = vrot.slane %v2749, 2
    %v2751 = vadd.f32 %v2749, %v2750
    %v2752 = vrot.slane %v2751, 1
    %v2753 = vadd.f32 %v2751, %v2752
    %v2754 = vmul.f32 %v78, %v2707
    %v2755 = vadd.f32 %v2754, %v2443
    %v2756 = vadd.f32 %v2755, %v2753
    %2758 = vrot.lane.b32.xlu0 %v2753, 96
    %v2759 = vpop.permute.xlu0 %2758
    %v2761 = vadd.f32 %v2394, %v2759
    %v2762 = vrcp.pop %v2761
    %v2763 = vmul.f32 %v2761, %v2762
    %v2764 = vsub.f32 2.0, %v2763
    %v2765 = vmul.f32 %v2762, %v2764
    %v2767 = vrot.slane %v2765, 4
    %v2769 = vmul.f32 %v2756, %v2767
    %v2770 = vld [vmem:[#allocation2 + $0x7] sm:$0x1]
    %v2771 = vld [vmem:[#allocation3 + $0x7] sm:$0x1]
    %v2772 = vperm.slane %v2769, 4
    %v2773 = vmul.f32 %v95, %v2772
    %v2774 = vmul.f32 %v96, %v2772
    %v2775 = vmul.f32 %v97, %v2772
    %v2776 = vmul.f32 %v98, %v2772
    %v2777 = vsel %vm126, %v2773, 0.0
    %2778 = vadd.xlane.f32.xlu0 %v2777
    %v2779 = vpop.xlane.xlu0 %2778
    %v2780 = vsel %vm126, %v2774, 0.0
    %2781 = vadd.xlane.f32.xlu0 %v2780
    %v2782 = vpop.xlane.xlu0 %2781
    %v2783 = vsel %vm126, %v2775, 0.0
    %2784 = vadd.xlane.f32.xlu0 %v2783
    %v2785 = vpop.xlane.xlu0 %2784
    %v2786 = vsel %vm126, %v2776, 0.0
    %2787 = vadd.xlane.f32.xlu0 %v2786
    %v2788 = vpop.xlane.xlu0 %2787
    %v2789 = vsub.f32 %v2779, %v64
    %v2790 = vsub.f32 %v2782, %v65
    %v2791 = vsub.f32 %v2785, %v66
    %v2792 = vsub.f32 %v2788, %v67
    %v2793 = vmul.f32 %v69, %v2789
    %v2794 = vmul.f32 %v70, %v2790
    %v2795 = vmul.f32 %v71, %v2791
    %v2796 = vmul.f32 %v72, %v2792
    %v2797 = vtanh.pop %v2793
    %v2798 = vtanh.pop %v2794
    %v2799 = vtanh.pop %v2795
    %v2800 = vtanh.pop %v2796
    %v2801 = vmul.f32 %v74, %v2797
    %v2802 = vmul.f32 %v75, %v2798
    %v2803 = vmul.f32 %v76, %v2799
    %v2804 = vmul.f32 %v77, %v2800
    %v2805 = vsel %vm165, %v2801, 0.0
    %v2806 = vsel %vm165, %v2802, 0.0
    %v2807 = vadd.f32 %v2805, %v2806
    %v2808 = vsel %vm165, %v2803, 0.0
    %v2809 = vadd.f32 %v2807, %v2808
    %v2810 = vsel %vm165, %v2804, 0.0
    %v2811 = vadd.f32 %v2809, %v2810
    %v2812 = vrot.slane %v2811, 4
    %v2813 = vadd.f32 %v2811, %v2812
    %v2814 = vrot.slane %v2813, 2
    %v2815 = vadd.f32 %v2813, %v2814
    %v2816 = vrot.slane %v2815, 1
    %v2817 = vadd.f32 %v2815, %v2816
    %v2818 = vmul.f32 %v78, %v2769
    %v2820 = vrot.slane %v2770, 4
    %v2822 = vadd.f32 %v2818, %v2820
    %v2823 = vadd.f32 %v2822, %v2817
    %2825 = vrot.lane.b32.xlu0 %v2817, 96
    %v2826 = vpop.permute.xlu0 %2825
    %v2828 = vadd.f32 %v2771, %v2826
    %v2829 = vrcp.pop %v2828
    %v2830 = vmul.f32 %v2828, %v2829
    %v2831 = vsub.f32 2.0, %v2830
    %v2832 = vmul.f32 %v2829, %v2831
    %v2834 = vrot.slane %v2832, 4
    %v2836 = vmul.f32 %v2823, %v2834
    %v2837 = vperm.slane %v2836, 4
    %v2838 = vmul.f32 %v95, %v2837
    %v2839 = vmul.f32 %v96, %v2837
    %v2840 = vmul.f32 %v97, %v2837
    %v2841 = vmul.f32 %v98, %v2837
    %v2842 = vsel %vm126, %v2838, 0.0
    %2843 = vadd.xlane.f32.xlu0 %v2842
    %v2844 = vpop.xlane.xlu0 %2843
    %v2845 = vsel %vm126, %v2839, 0.0
    %2846 = vadd.xlane.f32.xlu0 %v2845
    %v2847 = vpop.xlane.xlu0 %2846
    %v2848 = vsel %vm126, %v2840, 0.0
    %2849 = vadd.xlane.f32.xlu0 %v2848
    %v2850 = vpop.xlane.xlu0 %2849
    %v2851 = vsel %vm126, %v2841, 0.0
    %2852 = vadd.xlane.f32.xlu0 %v2851
    %v2853 = vpop.xlane.xlu0 %2852
    %v2854 = vsub.f32 %v2844, %v64
    %v2855 = vsub.f32 %v2847, %v65
    %v2856 = vsub.f32 %v2850, %v66
    %v2857 = vsub.f32 %v2853, %v67
    %v2858 = vmul.f32 %v69, %v2854
    %v2859 = vmul.f32 %v70, %v2855
    %v2860 = vmul.f32 %v71, %v2856
    %v2861 = vmul.f32 %v72, %v2857
    %v2862 = vtanh.pop %v2858
    %v2863 = vtanh.pop %v2859
    %v2864 = vtanh.pop %v2860
    %v2865 = vtanh.pop %v2861
    %v2866 = vmul.f32 %v74, %v2862
    %v2867 = vmul.f32 %v75, %v2863
    %v2868 = vmul.f32 %v76, %v2864
    %v2869 = vmul.f32 %v77, %v2865
    %v2870 = vsel %vm165, %v2866, 0.0
    %v2871 = vsel %vm165, %v2867, 0.0
    %v2872 = vadd.f32 %v2870, %v2871
    %v2873 = vsel %vm165, %v2868, 0.0
    %v2874 = vadd.f32 %v2872, %v2873
    %v2875 = vsel %vm165, %v2869, 0.0
    %v2876 = vadd.f32 %v2874, %v2875
    %v2877 = vrot.slane %v2876, 4
    %v2878 = vadd.f32 %v2876, %v2877
    %v2879 = vrot.slane %v2878, 2
    %v2880 = vadd.f32 %v2878, %v2879
    %v2881 = vrot.slane %v2880, 1
    %v2882 = vadd.f32 %v2880, %v2881
    %v2883 = vmul.f32 %v78, %v2836
    %v2884 = vadd.f32 %v2883, %v2820
    %v2885 = vadd.f32 %v2884, %v2882
    %2887 = vrot.lane.b32.xlu0 %v2882, 96
    %v2888 = vpop.permute.xlu0 %2887
    %v2890 = vadd.f32 %v2771, %v2888
    %v2891 = vrcp.pop %v2890
    %v2892 = vmul.f32 %v2890, %v2891
    %v2893 = vsub.f32 2.0, %v2892
    %v2894 = vmul.f32 %v2891, %v2893
    %v2896 = vrot.slane %v2894, 4
    %v2898 = vmul.f32 %v2885, %v2896
    %v2899 = vperm.slane %v2898, 4
    %v2900 = vmul.f32 %v95, %v2899
    %v2901 = vmul.f32 %v96, %v2899
    %v2902 = vmul.f32 %v97, %v2899
    %v2903 = vmul.f32 %v98, %v2899
    %v2904 = vsel %vm126, %v2900, 0.0
    %2905 = vadd.xlane.f32.xlu0 %v2904
    %v2906 = vpop.xlane.xlu0 %2905
    %v2907 = vsel %vm126, %v2901, 0.0
    %2908 = vadd.xlane.f32.xlu0 %v2907
    %v2909 = vpop.xlane.xlu0 %2908
    %v2910 = vsel %vm126, %v2902, 0.0
    %2911 = vadd.xlane.f32.xlu0 %v2910
    %v2912 = vpop.xlane.xlu0 %2911
    %v2913 = vsel %vm126, %v2903, 0.0
    %2914 = vadd.xlane.f32.xlu0 %v2913
    %v2915 = vpop.xlane.xlu0 %2914
    %v2916 = vsub.f32 %v2906, %v64
    %v2917 = vsub.f32 %v2909, %v65
    %v2918 = vsub.f32 %v2912, %v66
    %v2919 = vsub.f32 %v2915, %v67
    %v2920 = vmul.f32 %v69, %v2916
    %v2921 = vmul.f32 %v70, %v2917
    %v2922 = vmul.f32 %v71, %v2918
    %v2923 = vmul.f32 %v72, %v2919
    %v2924 = vtanh.pop %v2920
    %v2925 = vtanh.pop %v2921
    %v2926 = vtanh.pop %v2922
    %v2927 = vtanh.pop %v2923
    %v2928 = vmul.f32 %v74, %v2924
    %v2929 = vmul.f32 %v75, %v2925
    %v2930 = vmul.f32 %v76, %v2926
    %v2931 = vmul.f32 %v77, %v2927
    %v2932 = vsel %vm165, %v2928, 0.0
    %v2933 = vsel %vm165, %v2929, 0.0
    %v2934 = vadd.f32 %v2932, %v2933
    %v2935 = vsel %vm165, %v2930, 0.0
    %v2936 = vadd.f32 %v2934, %v2935
    %v2937 = vsel %vm165, %v2931, 0.0
    %v2938 = vadd.f32 %v2936, %v2937
    %v2939 = vrot.slane %v2938, 4
    %v2940 = vadd.f32 %v2938, %v2939
    %v2941 = vrot.slane %v2940, 2
    %v2942 = vadd.f32 %v2940, %v2941
    %v2943 = vrot.slane %v2942, 1
    %v2944 = vadd.f32 %v2942, %v2943
    %v2945 = vmul.f32 %v78, %v2898
    %v2946 = vadd.f32 %v2945, %v2820
    %v2947 = vadd.f32 %v2946, %v2944
    %2949 = vrot.lane.b32.xlu0 %v2944, 96
    %v2950 = vpop.permute.xlu0 %2949
    %v2952 = vadd.f32 %v2771, %v2950
    %v2953 = vrcp.pop %v2952
    %v2954 = vmul.f32 %v2952, %v2953
    %v2955 = vsub.f32 2.0, %v2954
    %v2956 = vmul.f32 %v2953, %v2955
    %v2958 = vrot.slane %v2956, 4
    %v2960 = vmul.f32 %v2947, %v2958
    %v2961 = vperm.slane %v2960, 4
    %v2962 = vmul.f32 %v95, %v2961
    %v2963 = vmul.f32 %v96, %v2961
    %v2964 = vmul.f32 %v97, %v2961
    %v2965 = vmul.f32 %v98, %v2961
    %v2966 = vsel %vm126, %v2962, 0.0
    %2967 = vadd.xlane.f32.xlu0 %v2966
    %v2968 = vpop.xlane.xlu0 %2967
    %v2969 = vsel %vm126, %v2963, 0.0
    %2970 = vadd.xlane.f32.xlu0 %v2969
    %v2971 = vpop.xlane.xlu0 %2970
    %v2972 = vsel %vm126, %v2964, 0.0
    %2973 = vadd.xlane.f32.xlu0 %v2972
    %v2974 = vpop.xlane.xlu0 %2973
    %v2975 = vsel %vm126, %v2965, 0.0
    %2976 = vadd.xlane.f32.xlu0 %v2975
    %v2977 = vpop.xlane.xlu0 %2976
    %v2978 = vsub.f32 %v2968, %v64
    %v2979 = vsub.f32 %v2971, %v65
    %v2980 = vsub.f32 %v2974, %v66
    %v2981 = vsub.f32 %v2977, %v67
    %v2982 = vmul.f32 %v69, %v2978
    %v2983 = vmul.f32 %v70, %v2979
    %v2984 = vmul.f32 %v71, %v2980
    %v2985 = vmul.f32 %v72, %v2981
    %v2986 = vtanh.pop %v2982
    %v2987 = vtanh.pop %v2983
    %v2988 = vtanh.pop %v2984
    %v2989 = vtanh.pop %v2985
    %v2990 = vmul.f32 %v74, %v2986
    %v2991 = vmul.f32 %v75, %v2987
    %v2992 = vmul.f32 %v76, %v2988
    %v2993 = vmul.f32 %v77, %v2989
    %v2994 = vsel %vm165, %v2990, 0.0
    %v2995 = vsel %vm165, %v2991, 0.0
    %v2996 = vadd.f32 %v2994, %v2995
    %v2997 = vsel %vm165, %v2992, 0.0
    %v2998 = vadd.f32 %v2996, %v2997
    %v2999 = vsel %vm165, %v2993, 0.0
    %v3000 = vadd.f32 %v2998, %v2999
    %v3001 = vrot.slane %v3000, 4
    %v3002 = vadd.f32 %v3000, %v3001
    %v3003 = vrot.slane %v3002, 2
    %v3004 = vadd.f32 %v3002, %v3003
    %v3005 = vrot.slane %v3004, 1
    %v3006 = vadd.f32 %v3004, %v3005
    %v3007 = vmul.f32 %v78, %v2960
    %v3008 = vadd.f32 %v3007, %v2820
    %v3009 = vadd.f32 %v3008, %v3006
    %3011 = vrot.lane.b32.xlu0 %v3006, 96
    %v3012 = vpop.permute.xlu0 %3011
    %v3014 = vadd.f32 %v2771, %v3012
    %v3015 = vrcp.pop %v3014
    %v3016 = vmul.f32 %v3014, %v3015
    %v3017 = vsub.f32 2.0, %v3016
    %v3018 = vmul.f32 %v3015, %v3017
    %v3020 = vrot.slane %v3018, 4
    %v3022 = vmul.f32 %v3009, %v3020
    %v3023 = vperm.slane %v3022, 4
    %v3024 = vmul.f32 %v95, %v3023
    %v3025 = vmul.f32 %v96, %v3023
    %v3026 = vmul.f32 %v97, %v3023
    %v3027 = vmul.f32 %v98, %v3023
    %v3028 = vsel %vm126, %v3024, 0.0
    %3029 = vadd.xlane.f32.xlu0 %v3028
    %v3030 = vpop.xlane.xlu0 %3029
    %v3031 = vsel %vm126, %v3025, 0.0
    %3032 = vadd.xlane.f32.xlu0 %v3031
    %v3033 = vpop.xlane.xlu0 %3032
    %v3034 = vsel %vm126, %v3026, 0.0
    %3035 = vadd.xlane.f32.xlu0 %v3034
    %v3036 = vpop.xlane.xlu0 %3035
    %v3037 = vsel %vm126, %v3027, 0.0
    %3038 = vadd.xlane.f32.xlu0 %v3037
    %v3039 = vpop.xlane.xlu0 %3038
    %v3040 = vsub.f32 %v3030, %v64
    %v3041 = vsub.f32 %v3033, %v65
    %v3042 = vsub.f32 %v3036, %v66
    %v3043 = vsub.f32 %v3039, %v67
    %v3044 = vmul.f32 %v69, %v3040
    %v3045 = vmul.f32 %v70, %v3041
    %v3046 = vmul.f32 %v71, %v3042
    %v3047 = vmul.f32 %v72, %v3043
    %v3048 = vtanh.pop %v3044
    %v3049 = vtanh.pop %v3045
    %v3050 = vtanh.pop %v3046
    %v3051 = vtanh.pop %v3047
    %v3052 = vmul.f32 %v74, %v3048
    %v3053 = vmul.f32 %v75, %v3049
    %v3054 = vmul.f32 %v76, %v3050
    %v3055 = vmul.f32 %v77, %v3051
    %v3056 = vsel %vm165, %v3052, 0.0
    %v3057 = vsel %vm165, %v3053, 0.0
    %v3058 = vadd.f32 %v3056, %v3057
    %v3059 = vsel %vm165, %v3054, 0.0
    %v3060 = vadd.f32 %v3058, %v3059
    %v3061 = vsel %vm165, %v3055, 0.0
    %v3062 = vadd.f32 %v3060, %v3061
    %v3063 = vrot.slane %v3062, 4
    %v3064 = vadd.f32 %v3062, %v3063
    %v3065 = vrot.slane %v3064, 2
    %v3066 = vadd.f32 %v3064, %v3065
    %v3067 = vrot.slane %v3066, 1
    %v3068 = vadd.f32 %v3066, %v3067
    %v3069 = vmul.f32 %v78, %v3022
    %v3070 = vadd.f32 %v3069, %v2820
    %v3071 = vadd.f32 %v3070, %v3068
    %3073 = vrot.lane.b32.xlu0 %v3068, 96
    %v3074 = vpop.permute.xlu0 %3073
    %v3076 = vadd.f32 %v2771, %v3074
    %v3077 = vrcp.pop %v3076
    %v3078 = vmul.f32 %v3076, %v3077
    %v3079 = vsub.f32 2.0, %v3078
    %v3080 = vmul.f32 %v3077, %v3079
    %v3082 = vrot.slane %v3080, 4
    %v3084 = vmul.f32 %v3071, %v3082
    %v3085 = vperm.slane %v3084, 4
    %v3086 = vmul.f32 %v95, %v3085
    %v3087 = vmul.f32 %v96, %v3085
    %v3088 = vmul.f32 %v97, %v3085
    %v3089 = vmul.f32 %v98, %v3085
    %v3090 = vsel %vm126, %v3086, 0.0
    %3091 = vadd.xlane.f32.xlu0 %v3090
    %v3092 = vpop.xlane.xlu0 %3091
    %v3093 = vsel %vm126, %v3087, 0.0
    %3094 = vadd.xlane.f32.xlu0 %v3093
    %v3095 = vpop.xlane.xlu0 %3094
    %v3096 = vsel %vm126, %v3088, 0.0
    %3097 = vadd.xlane.f32.xlu0 %v3096
    %v3098 = vpop.xlane.xlu0 %3097
    %v3099 = vsel %vm126, %v3089, 0.0
    %3100 = vadd.xlane.f32.xlu0 %v3099
    %v3101 = vpop.xlane.xlu0 %3100
    %v3102 = vsub.f32 %v3092, %v64
    %v3103 = vsub.f32 %v3095, %v65
    %v3104 = vsub.f32 %v3098, %v66
    %v3105 = vsub.f32 %v3101, %v67
    %v3106 = vmul.f32 %v69, %v3102
    %v3107 = vmul.f32 %v70, %v3103
    %v3108 = vmul.f32 %v71, %v3104
    %v3109 = vmul.f32 %v72, %v3105
    %v3110 = vtanh.pop %v3106
    %v3111 = vtanh.pop %v3107
    %v3112 = vtanh.pop %v3108
    %v3113 = vtanh.pop %v3109
    %v3114 = vmul.f32 %v74, %v3110
    %v3115 = vmul.f32 %v75, %v3111
    %v3116 = vmul.f32 %v76, %v3112
    %v3117 = vmul.f32 %v77, %v3113
    %v3118 = vsel %vm165, %v3114, 0.0
    %v3119 = vsel %vm165, %v3115, 0.0
    %v3120 = vadd.f32 %v3118, %v3119
    %v3121 = vsel %vm165, %v3116, 0.0
    %v3122 = vadd.f32 %v3120, %v3121
    %v3123 = vsel %vm165, %v3117, 0.0
    %v3124 = vadd.f32 %v3122, %v3123
    %v3125 = vrot.slane %v3124, 4
    %v3126 = vadd.f32 %v3124, %v3125
    %v3127 = vrot.slane %v3126, 2
    %v3128 = vadd.f32 %v3126, %v3127
    %v3129 = vrot.slane %v3128, 1
    %v3130 = vadd.f32 %v3128, %v3129
    %v3131 = vmul.f32 %v78, %v3084
    %v3132 = vadd.f32 %v3131, %v2820
    %v3133 = vadd.f32 %v3132, %v3130
    %3135 = vrot.lane.b32.xlu0 %v3130, 96
    %v3136 = vpop.permute.xlu0 %3135
    %v3138 = vadd.f32 %v2771, %v3136
    %v3139 = vrcp.pop %v3138
    %v3140 = vmul.f32 %v3138, %v3139
    %v3141 = vsub.f32 2.0, %v3140
    %v3142 = vmul.f32 %v3139, %v3141
    %v3144 = vrot.slane %v3142, 4
    %v3146 = vmul.f32 %v3133, %v3144
    %v3148 = vrot.slane %v78, 3
    %v3150 = vmul.f32 %v3146, %v3148
    %v3152 = vrot.slane %v79, 4
    %v3154 = vadd.f32 %v3150, %v3152
    %v3155 = vld [vmem:[#allocation8] sm:$0xff]
    %v3156 = vld [vmem:[#allocation8 + $0x8] sm:$0xff]
    %v3157 = vld [vmem:[#allocation8 + $0x10] sm:$0xff]
    %v3158 = vld [vmem:[#allocation8 + $0x18] sm:$0xff]
    %v3159 = vld [vmem:[#allocation8 + $0x20] sm:$0xff]
    %v3160 = vld [vmem:[#allocation8 + $0x28] sm:$0xff]
    %v3161 = vld [vmem:[#allocation8 + $0x30] sm:$0xff]
    %v3162 = vld [vmem:[#allocation8 + $0x38] sm:$0xff]
    %v3163 = vld [vmem:[#allocation8 + $0x40] sm:$0xff]
    %v3164 = vld [vmem:[#allocation8 + $0x48] sm:$0xff]
    %v3165 = vld [vmem:[#allocation8 + $0x50] sm:$0xff]
    %v3166 = vld [vmem:[#allocation8 + $0x58] sm:$0xff]
    %v3167 = vld [vmem:[#allocation8 + $0x60] sm:$0xff]
    %v3168 = vld [vmem:[#allocation8 + $0x68] sm:$0xff]
    %v3169 = vld [vmem:[#allocation8 + $0x70] sm:$0xff]
    %v3170 = vld [vmem:[#allocation8 + $0x78] sm:$0xff]
    %v3171 = vld [vmem:[#allocation8 + $0x80] sm:$0xff]
    %v3172 = vld [vmem:[#allocation8 + $0x88] sm:$0xff]
    %v3173 = vld [vmem:[#allocation8 + $0x90] sm:$0xff]
    %v3174 = vld [vmem:[#allocation8 + $0x98] sm:$0xff]
    %v3175 = vld [vmem:[#allocation8 + $0xa0] sm:$0xff]
    %v3176 = vld [vmem:[#allocation8 + $0xa8] sm:$0xff]
    %v3177 = vld [vmem:[#allocation8 + $0xb0] sm:$0xff]
    %v3178 = vld [vmem:[#allocation8 + $0xb8] sm:$0xff]
    %v3179 = vld [vmem:[#allocation8 + $0xc0] sm:$0xff]
    %v3180 = vld [vmem:[#allocation8 + $0xc8] sm:$0xff]
    %v3181 = vld [vmem:[#allocation8 + $0xd0] sm:$0xff]
    %v3182 = vld [vmem:[#allocation8 + $0xd8] sm:$0xff]
    %v3183 = vld [vmem:[#allocation8 + $0xe0] sm:$0xff]
    %v3184 = vld [vmem:[#allocation8 + $0xe8] sm:$0xff]
    %v3185 = vld [vmem:[#allocation8 + $0xf0] sm:$0xff]
    %v3186 = vld [vmem:[#allocation8 + $0xf8] sm:$0xff]
    %v3187 = vld [vmem:[#allocation8 + $0x100] sm:$0xff]
    %v3188 = vld [vmem:[#allocation8 + $0x108] sm:$0xff]
    %v3189 = vld [vmem:[#allocation8 + $0x110] sm:$0xff]
    %v3190 = vld [vmem:[#allocation8 + $0x118] sm:$0xff]
    %v3191 = vld [vmem:[#allocation8 + $0x120] sm:$0xff]
    %v3192 = vld [vmem:[#allocation8 + $0x128] sm:$0xff]
    %v3193 = vld [vmem:[#allocation8 + $0x130] sm:$0xff]
    %v3194 = vld [vmem:[#allocation8 + $0x138] sm:$0xff]
    %v3196 = vrot.slane %v3154, 4
    %v3197 = vsel %vm126, %v3196, 0
    %3199 = vmatpush.msra.mxu0 0.0
    %3200 = vmatpush.msra.mxu0 0.0
    %3201 = vmatpush.msra.mxu0 0.0
    %3202 = vmatpush.msra.mxu0 0.0
    %3203 = vmatpush.msra.mxu0 0.0
    %3204 = vmatpush.msra.mxu0 0.0
    %3205 = vmatpush.msra.mxu0 0.0
    %3206 = vmatpush.msra.mxu0 0.0
    %3207 = vmatpush.msra.mxu0 0.0
    %3208 = vmatpush.msra.mxu0 0.0
    %3209 = vmatpush.msra.mxu0 0.0
    %3210 = vmatpush.msra.mxu0 0.0
    %3211 = vmatpush.msra.mxu0 %v3167
    %3212 = vmatpush.msra.mxu0 %v3163
    %3213 = vmatpush.msra.mxu0 %v3159
    %3214 = vmatpush.msra.mxu0 %v3155
    %3215 = vmatmul.f32.gmra.mxu0 %v3197
    %v3216 = vpop.f32.mrf.mxu0
    %v3217 = vadd.f32 %v3191, %v3216
    %3218 = vdwg.mxu0
    %3219 = vmatpush.msra.mxu0 0.0
    %3220 = vmatpush.msra.mxu0 0.0
    %3221 = vmatpush.msra.mxu0 0.0
    %3222 = vmatpush.msra.mxu0 0.0
    %3223 = vmatpush.msra.mxu0 0.0
    %3224 = vmatpush.msra.mxu0 0.0
    %3225 = vmatpush.msra.mxu0 0.0
    %3226 = vmatpush.msra.mxu0 0.0
    %3227 = vmatpush.msra.mxu0 0.0
    %3228 = vmatpush.msra.mxu0 0.0
    %3229 = vmatpush.msra.mxu0 0.0
    %3230 = vmatpush.msra.mxu0 0.0
    %3231 = vmatpush.msra.mxu0 %v3168
    %3232 = vmatpush.msra.mxu0 %v3164
    %3233 = vmatpush.msra.mxu0 %v3160
    %3234 = vmatpush.msra.mxu0 %v3156
    %3235 = vmatmul.f32.gmra.mxu0 %v3197
    %v3236 = vpop.f32.mrf.mxu0
    %v3237 = vadd.f32 %v3192, %v3236
    %3238 = vdwg.mxu0
    %3239 = vmatpush.msra.mxu0 0.0
    %3240 = vmatpush.msra.mxu0 0.0
    %3241 = vmatpush.msra.mxu0 0.0
    %3242 = vmatpush.msra.mxu0 0.0
    %3243 = vmatpush.msra.mxu0 0.0
    %3244 = vmatpush.msra.mxu0 0.0
    %3245 = vmatpush.msra.mxu0 0.0
    %3246 = vmatpush.msra.mxu0 0.0
    %3247 = vmatpush.msra.mxu0 0.0
    %3248 = vmatpush.msra.mxu0 0.0
    %3249 = vmatpush.msra.mxu0 0.0
    %3250 = vmatpush.msra.mxu0 0.0
    %3251 = vmatpush.msra.mxu0 %v3169
    %3252 = vmatpush.msra.mxu0 %v3165
    %3253 = vmatpush.msra.mxu0 %v3161
    %3254 = vmatpush.msra.mxu0 %v3157
    %3255 = vmatmul.f32.gmra.mxu0 %v3197
    %v3256 = vpop.f32.mrf.mxu0
    %v3257 = vadd.f32 %v3193, %v3256
    %3258 = vdwg.mxu0
    %3259 = vmatpush.msra.mxu0 0.0
    %3260 = vmatpush.msra.mxu0 0.0
    %3261 = vmatpush.msra.mxu0 0.0
    %3262 = vmatpush.msra.mxu0 0.0
    %3263 = vmatpush.msra.mxu0 0.0
    %3264 = vmatpush.msra.mxu0 0.0
    %3265 = vmatpush.msra.mxu0 0.0
    %3266 = vmatpush.msra.mxu0 0.0
    %3267 = vmatpush.msra.mxu0 0.0
    %3268 = vmatpush.msra.mxu0 0.0
    %3269 = vmatpush.msra.mxu0 0.0
    %3270 = vmatpush.msra.mxu0 0.0
    %3271 = vmatpush.msra.mxu0 %v3170
    %3272 = vmatpush.msra.mxu0 %v3166
    %3273 = vmatpush.msra.mxu0 %v3162
    %3274 = vmatpush.msra.mxu0 %v3158
    %3275 = vmatmul.f32.gmra.mxu0 %v3197
    %v3276 = vpop.f32.mrf.mxu0
    %v3277 = vadd.f32 %v3194, %v3276
    %3278 = vdwg.mxu0
    %vm3279 = vcmask 326656
    %v3281 = vsel %vm3279, 0.0, 0
    %3283 = vmatpush.msra.mxu0 0.0
    %3284 = vmatpush.msra.mxu0 0.0
    %3285 = vmatpush.msra.mxu0 0.0
    %3286 = vmatpush.msra.mxu0 0.0
    %3287 = vmatpush.msra.mxu0 0.0
    %3288 = vmatpush.msra.mxu0 0.0
    %3289 = vmatpush.msra.mxu0 0.0
    %3290 = vmatpush.msra.mxu0 0.0
    %3291 = vmatpush.msra.mxu0 0.0
    %3292 = vmatpush.msra.mxu0 0.0
    %3293 = vmatpush.msra.mxu0 0.0
    %3294 = vmatpush.msra.mxu0 %v3187
    %3295 = vmatpush.msra.mxu0 %v3183
    %3296 = vmatpush.msra.mxu0 %v3179
    %3297 = vmatpush.msra.mxu0 %v3175
    %3298 = vmatpush.msra.mxu0 %v3171
    %3299 = vmatmul.f32.gmra.mxu0 %v3281
    %v3300 = vpop.f32.mrf.mxu0
    %v3301 = vadd.f32 0.0, %v3300
    %3302 = vdwg.mxu0
    %3303 = vmatpush.msra.mxu0 0.0
    %3304 = vmatpush.msra.mxu0 0.0
    %3305 = vmatpush.msra.mxu0 0.0
    %3306 = vmatpush.msra.mxu0 0.0
    %3307 = vmatpush.msra.mxu0 0.0
    %3308 = vmatpush.msra.mxu0 0.0
    %3309 = vmatpush.msra.mxu0 0.0
    %3310 = vmatpush.msra.mxu0 0.0
    %3311 = vmatpush.msra.mxu0 0.0
    %3312 = vmatpush.msra.mxu0 0.0
    %3313 = vmatpush.msra.mxu0 0.0
    %3314 = vmatpush.msra.mxu0 %v3188
    %3315 = vmatpush.msra.mxu0 %v3184
    %3316 = vmatpush.msra.mxu0 %v3180
    %3317 = vmatpush.msra.mxu0 %v3176
    %3318 = vmatpush.msra.mxu0 %v3172
    %3319 = vmatmul.f32.gmra.mxu0 %v3281
    %v3320 = vpop.f32.mrf.mxu0
    %v3321 = vadd.f32 0.0, %v3320
    %3322 = vdwg.mxu0
    %3323 = vmatpush.msra.mxu0 0.0
    %3324 = vmatpush.msra.mxu0 0.0
    %3325 = vmatpush.msra.mxu0 0.0
    %3326 = vmatpush.msra.mxu0 0.0
    %3327 = vmatpush.msra.mxu0 0.0
    %3328 = vmatpush.msra.mxu0 0.0
    %3329 = vmatpush.msra.mxu0 0.0
    %3330 = vmatpush.msra.mxu0 0.0
    %3331 = vmatpush.msra.mxu0 0.0
    %3332 = vmatpush.msra.mxu0 0.0
    %3333 = vmatpush.msra.mxu0 0.0
    %3334 = vmatpush.msra.mxu0 %v3189
    %3335 = vmatpush.msra.mxu0 %v3185
    %3336 = vmatpush.msra.mxu0 %v3181
    %3337 = vmatpush.msra.mxu0 %v3177
    %3338 = vmatpush.msra.mxu0 %v3173
    %3339 = vmatmul.f32.gmra.mxu0 %v3281
    %v3340 = vpop.f32.mrf.mxu0
    %v3341 = vadd.f32 0.0, %v3340
    %3342 = vdwg.mxu0
    %3343 = vmatpush.msra.mxu0 0.0
    %3344 = vmatpush.msra.mxu0 0.0
    %3345 = vmatpush.msra.mxu0 0.0
    %3346 = vmatpush.msra.mxu0 0.0
    %3347 = vmatpush.msra.mxu0 0.0
    %3348 = vmatpush.msra.mxu0 0.0
    %3349 = vmatpush.msra.mxu0 0.0
    %3350 = vmatpush.msra.mxu0 0.0
    %3351 = vmatpush.msra.mxu0 0.0
    %3352 = vmatpush.msra.mxu0 0.0
    %3353 = vmatpush.msra.mxu0 0.0
    %3354 = vmatpush.msra.mxu0 %v3190
    %3355 = vmatpush.msra.mxu0 %v3186
    %3356 = vmatpush.msra.mxu0 %v3182
    %3357 = vmatpush.msra.mxu0 %v3178
    %3358 = vmatpush.msra.mxu0 %v3174
    %3359 = vmatmul.f32.gmra.mxu0 %v3281
    %v3360 = vpop.f32.mrf.mxu0
    %v3361 = vadd.f32 0.0, %v3360
    %3362 = vdwg.mxu0
    %v3363 = vadd.f32 %v3217, %v3301
    %v3364 = vadd.f32 %v3237, %v3321
    %v3365 = vadd.f32 %v3257, %v3341
    %v3366 = vadd.f32 %v3277, %v3361
    %v3367 = vmul.f32 %v3363, 0.5
    %v3368 = vtanh.pop %v3367
    %v3369 = vmul.f32 %v3368, 0.5
    %v3370 = vadd.f32 %v3369, 0.5
    %v3371 = vmul.f32 %v3364, 0.5
    %v3372 = vtanh.pop %v3371
    %v3373 = vmul.f32 %v3372, 0.5
    %v3374 = vadd.f32 %v3373, 0.5
    %v3375 = vtanh.pop %v3365
    %v3376 = vmul.f32 %v3366, 0.5
    %v3377 = vtanh.pop %v3376
    %v3378 = vmul.f32 %v3377, 0.5
    %v3379 = vadd.f32 %v3378, 0.5
    %v3380 = vmul.f32 %v3374, 0.0
    %v3381 = vmul.f32 %v3370, %v3375
    %v3382 = vadd.f32 %v3380, %v3381
    %v3383 = vtanh.pop %v3382
    %v3384 = vmul.f32 %v3379, %v3383
    %v3386 = vrot.slane %v3191, 1
    %v3388 = vmul.f32 %v3384, %v3386
    %vm3389 = vcmask 319488
    %v3390 = vsel %vm3389, %v3388, 0.0
    %3391 = vadd.xlane.f32.xlu0 %v3390
    %v3392 = vpop.xlane.xlu0 %3391
    %3393 = vrot.lane.b32.xlu0 %v3386, 88
    %v3394 = vpop.permute.xlu0 %3393
    %v3396 = vadd.f32 %v3392, %v3394
    %vm3397 = vcmask 0
    %3398 = vst.msk [vmem:[%s4] sm:$0x1] %vm3397, %v3396
    %v3400 = vsel %vm3279, %v3384, 0
    %3402 = vmatpush.msra.mxu0 0.0
    %3403 = vmatpush.msra.mxu0 0.0
    %3404 = vmatpush.msra.mxu0 0.0
    %3405 = vmatpush.msra.mxu0 0.0
    %3406 = vmatpush.msra.mxu0 0.0
    %3407 = vmatpush.msra.mxu0 0.0
    %3408 = vmatpush.msra.mxu0 0.0
    %3409 = vmatpush.msra.mxu0 0.0
    %3410 = vmatpush.msra.mxu0 0.0
    %3411 = vmatpush.msra.mxu0 0.0
    %3412 = vmatpush.msra.mxu0 0.0
    %3413 = vmatpush.msra.mxu0 %v3187
    %3414 = vmatpush.msra.mxu0 %v3183
    %3415 = vmatpush.msra.mxu0 %v3179
    %3416 = vmatpush.msra.mxu0 %v3175
    %3417 = vmatpush.msra.mxu0 %v3171
    %3418 = vmatmul.f32.gmra.mxu0 %v3400
    %v3419 = vpop.f32.mrf.mxu0
    %v3420 = vadd.f32 0.0, %v3419
    %3421 = vdwg.mxu0
    %3422 = vmatpush.msra.mxu0 0.0
    %3423 = vmatpush.msra.mxu0 0.0
    %3424 = vmatpush.msra.mxu0 0.0
    %3425 = vmatpush.msra.mxu0 0.0
    %3426 = vmatpush.msra.mxu0 0.0
    %3427 = vmatpush.msra.mxu0 0.0
    %3428 = vmatpush.msra.mxu0 0.0
    %3429 = vmatpush.msra.mxu0 0.0
    %3430 = vmatpush.msra.mxu0 0.0
    %3431 = vmatpush.msra.mxu0 0.0
    %3432 = vmatpush.msra.mxu0 0.0
    %3433 = vmatpush.msra.mxu0 %v3188
    %3434 = vmatpush.msra.mxu0 %v3184
    %3435 = vmatpush.msra.mxu0 %v3180
    %3436 = vmatpush.msra.mxu0 %v3176
    %3437 = vmatpush.msra.mxu0 %v3172
    %3438 = vmatmul.f32.gmra.mxu0 %v3400
    %v3439 = vpop.f32.mrf.mxu0
    %v3440 = vadd.f32 0.0, %v3439
    %3441 = vdwg.mxu0
    %3442 = vmatpush.msra.mxu0 0.0
    %3443 = vmatpush.msra.mxu0 0.0
    %3444 = vmatpush.msra.mxu0 0.0
    %3445 = vmatpush.msra.mxu0 0.0
    %3446 = vmatpush.msra.mxu0 0.0
    %3447 = vmatpush.msra.mxu0 0.0
    %3448 = vmatpush.msra.mxu0 0.0
    %3449 = vmatpush.msra.mxu0 0.0
    %3450 = vmatpush.msra.mxu0 0.0
    %3451 = vmatpush.msra.mxu0 0.0
    %3452 = vmatpush.msra.mxu0 0.0
    %3453 = vmatpush.msra.mxu0 %v3189
    %3454 = vmatpush.msra.mxu0 %v3185
    %3455 = vmatpush.msra.mxu0 %v3181
    %3456 = vmatpush.msra.mxu0 %v3177
    %3457 = vmatpush.msra.mxu0 %v3173
    %3458 = vmatmul.f32.gmra.mxu0 %v3400
    %v3459 = vpop.f32.mrf.mxu0
    %v3460 = vadd.f32 0.0, %v3459
    %3461 = vdwg.mxu0
    %3462 = vmatpush.msra.mxu0 0.0
    %3463 = vmatpush.msra.mxu0 0.0
    %3464 = vmatpush.msra.mxu0 0.0
    %3465 = vmatpush.msra.mxu0 0.0
    %3466 = vmatpush.msra.mxu0 0.0
    %3467 = vmatpush.msra.mxu0 0.0
    %3468 = vmatpush.msra.mxu0 0.0
    %3469 = vmatpush.msra.mxu0 0.0
    %3470 = vmatpush.msra.mxu0 0.0
    %3471 = vmatpush.msra.mxu0 0.0
    %3472 = vmatpush.msra.mxu0 0.0
    %3473 = vmatpush.msra.mxu0 %v3190
    %3474 = vmatpush.msra.mxu0 %v3186
    %3475 = vmatpush.msra.mxu0 %v3182
    %3476 = vmatpush.msra.mxu0 %v3178
    %3477 = vmatpush.msra.mxu0 %v3174
    %3478 = vmatmul.f32.gmra.mxu0 %v3400
    %v3479 = vpop.f32.mrf.mxu0
    %v3480 = vadd.f32 0.0, %v3479
    %3481 = vdwg.mxu0
    %v3482 = vadd.f32 %v3217, %v3420
    %v3483 = vadd.f32 %v3237, %v3440
    %v3484 = vadd.f32 %v3257, %v3460
    %v3485 = vadd.f32 %v3277, %v3480
    %v3486 = vmul.f32 %v3482, 0.5
    %v3487 = vtanh.pop %v3486
    %v3488 = vmul.f32 %v3487, 0.5
    %v3489 = vadd.f32 %v3488, 0.5
    %v3490 = vmul.f32 %v3483, 0.5
    %v3491 = vtanh.pop %v3490
    %v3492 = vmul.f32 %v3491, 0.5
    %v3493 = vadd.f32 %v3492, 0.5
    %v3494 = vtanh.pop %v3484
    %v3495 = vmul.f32 %v3485, 0.5
    %v3496 = vtanh.pop %v3495
    %v3497 = vmul.f32 %v3496, 0.5
    %v3498 = vadd.f32 %v3497, 0.5
    %v3499 = vmul.f32 %v3493, %v3382
    %v3500 = vmul.f32 %v3489, %v3494
    %v3501 = vadd.f32 %v3499, %v3500
    %v3502 = vtanh.pop %v3501
    %v3503 = vmul.f32 %v3498, %v3502
    %v3504 = vmul.f32 %v3503, %v3386
    %v3505 = vsel %vm3389, %v3504, 0.0
    %3506 = vadd.xlane.f32.xlu0 %v3505
    %v3507 = vpop.xlane.xlu0 %3506
    %v3508 = vadd.f32 %v3507, %v3394
    %3509 = vst.msk [vmem:[%s4 + $0x1] sm:$0x1] %vm3397, %v3508
    %v3511 = vsel %vm3279, %v3503, 0
    %3513 = vmatpush.msra.mxu0 0.0
    %3514 = vmatpush.msra.mxu0 0.0
    %3515 = vmatpush.msra.mxu0 0.0
    %3516 = vmatpush.msra.mxu0 0.0
    %3517 = vmatpush.msra.mxu0 0.0
    %3518 = vmatpush.msra.mxu0 0.0
    %3519 = vmatpush.msra.mxu0 0.0
    %3520 = vmatpush.msra.mxu0 0.0
    %3521 = vmatpush.msra.mxu0 0.0
    %3522 = vmatpush.msra.mxu0 0.0
    %3523 = vmatpush.msra.mxu0 0.0
    %3524 = vmatpush.msra.mxu0 %v3187
    %3525 = vmatpush.msra.mxu0 %v3183
    %3526 = vmatpush.msra.mxu0 %v3179
    %3527 = vmatpush.msra.mxu0 %v3175
    %3528 = vmatpush.msra.mxu0 %v3171
    %3529 = vmatmul.f32.gmra.mxu0 %v3511
    %v3530 = vpop.f32.mrf.mxu0
    %v3531 = vadd.f32 0.0, %v3530
    %3532 = vdwg.mxu0
    %3533 = vmatpush.msra.mxu0 0.0
    %3534 = vmatpush.msra.mxu0 0.0
    %3535 = vmatpush.msra.mxu0 0.0
    %3536 = vmatpush.msra.mxu0 0.0
    %3537 = vmatpush.msra.mxu0 0.0
    %3538 = vmatpush.msra.mxu0 0.0
    %3539 = vmatpush.msra.mxu0 0.0
    %3540 = vmatpush.msra.mxu0 0.0
    %3541 = vmatpush.msra.mxu0 0.0
    %3542 = vmatpush.msra.mxu0 0.0
    %3543 = vmatpush.msra.mxu0 0.0
    %3544 = vmatpush.msra.mxu0 %v3188
    %3545 = vmatpush.msra.mxu0 %v3184
    %3546 = vmatpush.msra.mxu0 %v3180
    %3547 = vmatpush.msra.mxu0 %v3176
    %3548 = vmatpush.msra.mxu0 %v3172
    %3549 = vmatmul.f32.gmra.mxu0 %v3511
    %v3550 = vpop.f32.mrf.mxu0
    %v3551 = vadd.f32 0.0, %v3550
    %3552 = vdwg.mxu0
    %3553 = vmatpush.msra.mxu0 0.0
    %3554 = vmatpush.msra.mxu0 0.0
    %3555 = vmatpush.msra.mxu0 0.0
    %3556 = vmatpush.msra.mxu0 0.0
    %3557 = vmatpush.msra.mxu0 0.0
    %3558 = vmatpush.msra.mxu0 0.0
    %3559 = vmatpush.msra.mxu0 0.0
    %3560 = vmatpush.msra.mxu0 0.0
    %3561 = vmatpush.msra.mxu0 0.0
    %3562 = vmatpush.msra.mxu0 0.0
    %3563 = vmatpush.msra.mxu0 0.0
    %3564 = vmatpush.msra.mxu0 %v3189
    %3565 = vmatpush.msra.mxu0 %v3185
    %3566 = vmatpush.msra.mxu0 %v3181
    %3567 = vmatpush.msra.mxu0 %v3177
    %3568 = vmatpush.msra.mxu0 %v3173
    %3569 = vmatmul.f32.gmra.mxu0 %v3511
    %v3570 = vpop.f32.mrf.mxu0
    %v3571 = vadd.f32 0.0, %v3570
    %3572 = vdwg.mxu0
    %3573 = vmatpush.msra.mxu0 0.0
    %3574 = vmatpush.msra.mxu0 0.0
    %3575 = vmatpush.msra.mxu0 0.0
    %3576 = vmatpush.msra.mxu0 0.0
    %3577 = vmatpush.msra.mxu0 0.0
    %3578 = vmatpush.msra.mxu0 0.0
    %3579 = vmatpush.msra.mxu0 0.0
    %3580 = vmatpush.msra.mxu0 0.0
    %3581 = vmatpush.msra.mxu0 0.0
    %3582 = vmatpush.msra.mxu0 0.0
    %3583 = vmatpush.msra.mxu0 0.0
    %3584 = vmatpush.msra.mxu0 %v3190
    %3585 = vmatpush.msra.mxu0 %v3186
    %3586 = vmatpush.msra.mxu0 %v3182
    %3587 = vmatpush.msra.mxu0 %v3178
    %3588 = vmatpush.msra.mxu0 %v3174
    %3589 = vmatmul.f32.gmra.mxu0 %v3511
    %v3590 = vpop.f32.mrf.mxu0
    %v3591 = vadd.f32 0.0, %v3590
    %3592 = vdwg.mxu0
    %v3593 = vadd.f32 %v3217, %v3531
    %v3594 = vadd.f32 %v3237, %v3551
    %v3595 = vadd.f32 %v3257, %v3571
    %v3596 = vadd.f32 %v3277, %v3591
    %v3597 = vmul.f32 %v3593, 0.5
    %v3598 = vtanh.pop %v3597
    %v3599 = vmul.f32 %v3598, 0.5
    %v3600 = vadd.f32 %v3599, 0.5
    %v3601 = vmul.f32 %v3594, 0.5
    %v3602 = vtanh.pop %v3601
    %v3603 = vmul.f32 %v3602, 0.5
    %v3604 = vadd.f32 %v3603, 0.5
    %v3605 = vtanh.pop %v3595
    %v3606 = vmul.f32 %v3596, 0.5
    %v3607 = vtanh.pop %v3606
    %v3608 = vmul.f32 %v3607, 0.5
    %v3609 = vadd.f32 %v3608, 0.5
    %v3610 = vmul.f32 %v3604, %v3501
    %v3611 = vmul.f32 %v3600, %v3605
    %v3612 = vadd.f32 %v3610, %v3611
    %v3613 = vtanh.pop %v3612
    %v3614 = vmul.f32 %v3609, %v3613
    %v3615 = vmul.f32 %v3614, %v3386
    %v3616 = vsel %vm3389, %v3615, 0.0
    %3617 = vadd.xlane.f32.xlu0 %v3616
    %v3618 = vpop.xlane.xlu0 %3617
    %v3619 = vadd.f32 %v3618, %v3394
    %3620 = vst.msk [vmem:[%s4 + $0x2] sm:$0x1] %vm3397, %v3619
    %v3622 = vsel %vm3279, %v3614, 0
    %3624 = vmatpush.msra.mxu0 0.0
    %3625 = vmatpush.msra.mxu0 0.0
    %3626 = vmatpush.msra.mxu0 0.0
    %3627 = vmatpush.msra.mxu0 0.0
    %3628 = vmatpush.msra.mxu0 0.0
    %3629 = vmatpush.msra.mxu0 0.0
    %3630 = vmatpush.msra.mxu0 0.0
    %3631 = vmatpush.msra.mxu0 0.0
    %3632 = vmatpush.msra.mxu0 0.0
    %3633 = vmatpush.msra.mxu0 0.0
    %3634 = vmatpush.msra.mxu0 0.0
    %3635 = vmatpush.msra.mxu0 %v3187
    %3636 = vmatpush.msra.mxu0 %v3183
    %3637 = vmatpush.msra.mxu0 %v3179
    %3638 = vmatpush.msra.mxu0 %v3175
    %3639 = vmatpush.msra.mxu0 %v3171
    %3640 = vmatmul.f32.gmra.mxu0 %v3622
    %v3641 = vpop.f32.mrf.mxu0
    %v3642 = vadd.f32 0.0, %v3641
    %3643 = vdwg.mxu0
    %3644 = vmatpush.msra.mxu0 0.0
    %3645 = vmatpush.msra.mxu0 0.0
    %3646 = vmatpush.msra.mxu0 0.0
    %3647 = vmatpush.msra.mxu0 0.0
    %3648 = vmatpush.msra.mxu0 0.0
    %3649 = vmatpush.msra.mxu0 0.0
    %3650 = vmatpush.msra.mxu0 0.0
    %3651 = vmatpush.msra.mxu0 0.0
    %3652 = vmatpush.msra.mxu0 0.0
    %3653 = vmatpush.msra.mxu0 0.0
    %3654 = vmatpush.msra.mxu0 0.0
    %3655 = vmatpush.msra.mxu0 %v3188
    %3656 = vmatpush.msra.mxu0 %v3184
    %3657 = vmatpush.msra.mxu0 %v3180
    %3658 = vmatpush.msra.mxu0 %v3176
    %3659 = vmatpush.msra.mxu0 %v3172
    %3660 = vmatmul.f32.gmra.mxu0 %v3622
    %v3661 = vpop.f32.mrf.mxu0
    %v3662 = vadd.f32 0.0, %v3661
    %3663 = vdwg.mxu0
    %3664 = vmatpush.msra.mxu0 0.0
    %3665 = vmatpush.msra.mxu0 0.0
    %3666 = vmatpush.msra.mxu0 0.0
    %3667 = vmatpush.msra.mxu0 0.0
    %3668 = vmatpush.msra.mxu0 0.0
    %3669 = vmatpush.msra.mxu0 0.0
    %3670 = vmatpush.msra.mxu0 0.0
    %3671 = vmatpush.msra.mxu0 0.0
    %3672 = vmatpush.msra.mxu0 0.0
    %3673 = vmatpush.msra.mxu0 0.0
    %3674 = vmatpush.msra.mxu0 0.0
    %3675 = vmatpush.msra.mxu0 %v3189
    %3676 = vmatpush.msra.mxu0 %v3185
    %3677 = vmatpush.msra.mxu0 %v3181
    %3678 = vmatpush.msra.mxu0 %v3177
    %3679 = vmatpush.msra.mxu0 %v3173
    %3680 = vmatmul.f32.gmra.mxu0 %v3622
    %v3681 = vpop.f32.mrf.mxu0
    %v3682 = vadd.f32 0.0, %v3681
    %3683 = vdwg.mxu0
    %3684 = vmatpush.msra.mxu0 0.0
    %3685 = vmatpush.msra.mxu0 0.0
    %3686 = vmatpush.msra.mxu0 0.0
    %3687 = vmatpush.msra.mxu0 0.0
    %3688 = vmatpush.msra.mxu0 0.0
    %3689 = vmatpush.msra.mxu0 0.0
    %3690 = vmatpush.msra.mxu0 0.0
    %3691 = vmatpush.msra.mxu0 0.0
    %3692 = vmatpush.msra.mxu0 0.0
    %3693 = vmatpush.msra.mxu0 0.0
    %3694 = vmatpush.msra.mxu0 0.0
    %3695 = vmatpush.msra.mxu0 %v3190
    %3696 = vmatpush.msra.mxu0 %v3186
    %3697 = vmatpush.msra.mxu0 %v3182
    %3698 = vmatpush.msra.mxu0 %v3178
    %3699 = vmatpush.msra.mxu0 %v3174
    %3700 = vmatmul.f32.gmra.mxu0 %v3622
    %v3701 = vpop.f32.mrf.mxu0
    %v3702 = vadd.f32 0.0, %v3701
    %3703 = vdwg.mxu0
    %v3704 = vadd.f32 %v3217, %v3642
    %v3705 = vadd.f32 %v3237, %v3662
    %v3706 = vadd.f32 %v3257, %v3682
    %v3707 = vadd.f32 %v3277, %v3702
    %v3708 = vmul.f32 %v3704, 0.5
    %v3709 = vtanh.pop %v3708
    %v3710 = vmul.f32 %v3709, 0.5
    %v3711 = vadd.f32 %v3710, 0.5
    %v3712 = vmul.f32 %v3705, 0.5
    %v3713 = vtanh.pop %v3712
    %v3714 = vmul.f32 %v3713, 0.5
    %v3715 = vadd.f32 %v3714, 0.5
    %v3716 = vtanh.pop %v3706
    %v3717 = vmul.f32 %v3707, 0.5
    %v3718 = vtanh.pop %v3717
    %v3719 = vmul.f32 %v3718, 0.5
    %v3720 = vadd.f32 %v3719, 0.5
    %v3721 = vmul.f32 %v3715, %v3612
    %v3722 = vmul.f32 %v3711, %v3716
    %v3723 = vadd.f32 %v3721, %v3722
    %v3724 = vtanh.pop %v3723
    %v3725 = vmul.f32 %v3720, %v3724
    %v3726 = vmul.f32 %v3725, %v3386
    %v3727 = vsel %vm3389, %v3726, 0.0
    %3728 = vadd.xlane.f32.xlu0 %v3727
    %v3729 = vpop.xlane.xlu0 %3728
    %v3730 = vadd.f32 %v3729, %v3394
    %3731 = vst.msk [vmem:[%s4 + $0x3] sm:$0x1] %vm3397, %v3730
    %v3733 = vsel %vm3279, %v3725, 0
    %3735 = vmatpush.msra.mxu0 0.0
    %3736 = vmatpush.msra.mxu0 0.0
    %3737 = vmatpush.msra.mxu0 0.0
    %3738 = vmatpush.msra.mxu0 0.0
    %3739 = vmatpush.msra.mxu0 0.0
    %3740 = vmatpush.msra.mxu0 0.0
    %3741 = vmatpush.msra.mxu0 0.0
    %3742 = vmatpush.msra.mxu0 0.0
    %3743 = vmatpush.msra.mxu0 0.0
    %3744 = vmatpush.msra.mxu0 0.0
    %3745 = vmatpush.msra.mxu0 0.0
    %3746 = vmatpush.msra.mxu0 %v3187
    %3747 = vmatpush.msra.mxu0 %v3183
    %3748 = vmatpush.msra.mxu0 %v3179
    %3749 = vmatpush.msra.mxu0 %v3175
    %3750 = vmatpush.msra.mxu0 %v3171
    %3751 = vmatmul.f32.gmra.mxu0 %v3733
    %v3752 = vpop.f32.mrf.mxu0
    %v3753 = vadd.f32 0.0, %v3752
    %3754 = vdwg.mxu0
    %3755 = vmatpush.msra.mxu0 0.0
    %3756 = vmatpush.msra.mxu0 0.0
    %3757 = vmatpush.msra.mxu0 0.0
    %3758 = vmatpush.msra.mxu0 0.0
    %3759 = vmatpush.msra.mxu0 0.0
    %3760 = vmatpush.msra.mxu0 0.0
    %3761 = vmatpush.msra.mxu0 0.0
    %3762 = vmatpush.msra.mxu0 0.0
    %3763 = vmatpush.msra.mxu0 0.0
    %3764 = vmatpush.msra.mxu0 0.0
    %3765 = vmatpush.msra.mxu0 0.0
    %3766 = vmatpush.msra.mxu0 %v3188
    %3767 = vmatpush.msra.mxu0 %v3184
    %3768 = vmatpush.msra.mxu0 %v3180
    %3769 = vmatpush.msra.mxu0 %v3176
    %3770 = vmatpush.msra.mxu0 %v3172
    %3771 = vmatmul.f32.gmra.mxu0 %v3733
    %v3772 = vpop.f32.mrf.mxu0
    %v3773 = vadd.f32 0.0, %v3772
    %3774 = vdwg.mxu0
    %3775 = vmatpush.msra.mxu0 0.0
    %3776 = vmatpush.msra.mxu0 0.0
    %3777 = vmatpush.msra.mxu0 0.0
    %3778 = vmatpush.msra.mxu0 0.0
    %3779 = vmatpush.msra.mxu0 0.0
    %3780 = vmatpush.msra.mxu0 0.0
    %3781 = vmatpush.msra.mxu0 0.0
    %3782 = vmatpush.msra.mxu0 0.0
    %3783 = vmatpush.msra.mxu0 0.0
    %3784 = vmatpush.msra.mxu0 0.0
    %3785 = vmatpush.msra.mxu0 0.0
    %3786 = vmatpush.msra.mxu0 %v3189
    %3787 = vmatpush.msra.mxu0 %v3185
    %3788 = vmatpush.msra.mxu0 %v3181
    %3789 = vmatpush.msra.mxu0 %v3177
    %3790 = vmatpush.msra.mxu0 %v3173
    %3791 = vmatmul.f32.gmra.mxu0 %v3733
    %v3792 = vpop.f32.mrf.mxu0
    %v3793 = vadd.f32 0.0, %v3792
    %3794 = vdwg.mxu0
    %3795 = vmatpush.msra.mxu0 0.0
    %3796 = vmatpush.msra.mxu0 0.0
    %3797 = vmatpush.msra.mxu0 0.0
    %3798 = vmatpush.msra.mxu0 0.0
    %3799 = vmatpush.msra.mxu0 0.0
    %3800 = vmatpush.msra.mxu0 0.0
    %3801 = vmatpush.msra.mxu0 0.0
    %3802 = vmatpush.msra.mxu0 0.0
    %3803 = vmatpush.msra.mxu0 0.0
    %3804 = vmatpush.msra.mxu0 0.0
    %3805 = vmatpush.msra.mxu0 0.0
    %3806 = vmatpush.msra.mxu0 %v3190
    %3807 = vmatpush.msra.mxu0 %v3186
    %3808 = vmatpush.msra.mxu0 %v3182
    %3809 = vmatpush.msra.mxu0 %v3178
    %3810 = vmatpush.msra.mxu0 %v3174
    %3811 = vmatmul.f32.gmra.mxu0 %v3733
    %v3812 = vpop.f32.mrf.mxu0
    %v3813 = vadd.f32 0.0, %v3812
    %3814 = vdwg.mxu0
    %v3815 = vadd.f32 %v3217, %v3753
    %v3816 = vadd.f32 %v3237, %v3773
    %v3817 = vadd.f32 %v3257, %v3793
    %v3818 = vadd.f32 %v3277, %v3813
    %v3819 = vmul.f32 %v3815, 0.5
    %v3820 = vtanh.pop %v3819
    %v3821 = vmul.f32 %v3820, 0.5
    %v3822 = vadd.f32 %v3821, 0.5
    %v3823 = vmul.f32 %v3816, 0.5
    %v3824 = vtanh.pop %v3823
    %v3825 = vmul.f32 %v3824, 0.5
    %v3826 = vadd.f32 %v3825, 0.5
    %v3827 = vtanh.pop %v3817
    %v3828 = vmul.f32 %v3818, 0.5
    %v3829 = vtanh.pop %v3828
    %v3830 = vmul.f32 %v3829, 0.5
    %v3831 = vadd.f32 %v3830, 0.5
    %v3832 = vmul.f32 %v3826, %v3723
    %v3833 = vmul.f32 %v3822, %v3827
    %v3834 = vadd.f32 %v3832, %v3833
    %v3835 = vtanh.pop %v3834
    %v3836 = vmul.f32 %v3831, %v3835
    %v3837 = vmul.f32 %v3836, %v3386
    %v3838 = vsel %vm3389, %v3837, 0.0
    %3839 = vadd.xlane.f32.xlu0 %v3838
    %v3840 = vpop.xlane.xlu0 %3839
    %v3841 = vadd.f32 %v3840, %v3394
    %3842 = vst.msk [vmem:[%s4 + $0x4] sm:$0x1] %vm3397, %v3841
    %v3844 = vsel %vm3279, %v3836, 0
    %3846 = vmatpush.msra.mxu0 0.0
    %3847 = vmatpush.msra.mxu0 0.0
    %3848 = vmatpush.msra.mxu0 0.0
    %3849 = vmatpush.msra.mxu0 0.0
    %3850 = vmatpush.msra.mxu0 0.0
    %3851 = vmatpush.msra.mxu0 0.0
    %3852 = vmatpush.msra.mxu0 0.0
    %3853 = vmatpush.msra.mxu0 0.0
    %3854 = vmatpush.msra.mxu0 0.0
    %3855 = vmatpush.msra.mxu0 0.0
    %3856 = vmatpush.msra.mxu0 0.0
    %3857 = vmatpush.msra.mxu0 %v3187
    %3858 = vmatpush.msra.mxu0 %v3183
    %3859 = vmatpush.msra.mxu0 %v3179
    %3860 = vmatpush.msra.mxu0 %v3175
    %3861 = vmatpush.msra.mxu0 %v3171
    %3862 = vmatmul.f32.gmra.mxu0 %v3844
    %v3863 = vpop.f32.mrf.mxu0
    %v3864 = vadd.f32 0.0, %v3863
    %3865 = vdwg.mxu0
    %3866 = vmatpush.msra.mxu0 0.0
    %3867 = vmatpush.msra.mxu0 0.0
    %3868 = vmatpush.msra.mxu0 0.0
    %3869 = vmatpush.msra.mxu0 0.0
    %3870 = vmatpush.msra.mxu0 0.0
    %3871 = vmatpush.msra.mxu0 0.0
    %3872 = vmatpush.msra.mxu0 0.0
    %3873 = vmatpush.msra.mxu0 0.0
    %3874 = vmatpush.msra.mxu0 0.0
    %3875 = vmatpush.msra.mxu0 0.0
    %3876 = vmatpush.msra.mxu0 0.0
    %3877 = vmatpush.msra.mxu0 %v3188
    %3878 = vmatpush.msra.mxu0 %v3184
    %3879 = vmatpush.msra.mxu0 %v3180
    %3880 = vmatpush.msra.mxu0 %v3176
    %3881 = vmatpush.msra.mxu0 %v3172
    %3882 = vmatmul.f32.gmra.mxu0 %v3844
    %v3883 = vpop.f32.mrf.mxu0
    %v3884 = vadd.f32 0.0, %v3883
    %3885 = vdwg.mxu0
    %3886 = vmatpush.msra.mxu0 0.0
    %3887 = vmatpush.msra.mxu0 0.0
    %3888 = vmatpush.msra.mxu0 0.0
    %3889 = vmatpush.msra.mxu0 0.0
    %3890 = vmatpush.msra.mxu0 0.0
    %3891 = vmatpush.msra.mxu0 0.0
    %3892 = vmatpush.msra.mxu0 0.0
    %3893 = vmatpush.msra.mxu0 0.0
    %3894 = vmatpush.msra.mxu0 0.0
    %3895 = vmatpush.msra.mxu0 0.0
    %3896 = vmatpush.msra.mxu0 0.0
    %3897 = vmatpush.msra.mxu0 %v3189
    %3898 = vmatpush.msra.mxu0 %v3185
    %3899 = vmatpush.msra.mxu0 %v3181
    %3900 = vmatpush.msra.mxu0 %v3177
    %3901 = vmatpush.msra.mxu0 %v3173
    %3902 = vmatmul.f32.gmra.mxu0 %v3844
    %v3903 = vpop.f32.mrf.mxu0
    %v3904 = vadd.f32 0.0, %v3903
    %3905 = vdwg.mxu0
    %3906 = vmatpush.msra.mxu0 0.0
    %3907 = vmatpush.msra.mxu0 0.0
    %3908 = vmatpush.msra.mxu0 0.0
    %3909 = vmatpush.msra.mxu0 0.0
    %3910 = vmatpush.msra.mxu0 0.0
    %3911 = vmatpush.msra.mxu0 0.0
    %3912 = vmatpush.msra.mxu0 0.0
    %3913 = vmatpush.msra.mxu0 0.0
    %3914 = vmatpush.msra.mxu0 0.0
    %3915 = vmatpush.msra.mxu0 0.0
    %3916 = vmatpush.msra.mxu0 0.0
    %3917 = vmatpush.msra.mxu0 %v3190
    %3918 = vmatpush.msra.mxu0 %v3186
    %3919 = vmatpush.msra.mxu0 %v3182
    %3920 = vmatpush.msra.mxu0 %v3178
    %3921 = vmatpush.msra.mxu0 %v3174
    %3922 = vmatmul.f32.gmra.mxu0 %v3844
    %v3923 = vpop.f32.mrf.mxu0
    %v3924 = vadd.f32 0.0, %v3923
    %3925 = vdwg.mxu0
    %v3926 = vadd.f32 %v3217, %v3864
    %v3927 = vadd.f32 %v3237, %v3884
    %v3928 = vadd.f32 %v3257, %v3904
    %v3929 = vadd.f32 %v3277, %v3924
    %v3930 = vmul.f32 %v3926, 0.5
    %v3931 = vtanh.pop %v3930
    %v3932 = vmul.f32 %v3931, 0.5
    %v3933 = vadd.f32 %v3932, 0.5
    %v3934 = vmul.f32 %v3927, 0.5
    %v3935 = vtanh.pop %v3934
    %v3936 = vmul.f32 %v3935, 0.5
    %v3937 = vadd.f32 %v3936, 0.5
    %v3938 = vtanh.pop %v3928
    %v3939 = vmul.f32 %v3929, 0.5
    %v3940 = vtanh.pop %v3939
    %v3941 = vmul.f32 %v3940, 0.5
    %v3942 = vadd.f32 %v3941, 0.5
    %v3943 = vmul.f32 %v3937, %v3834
    %v3944 = vmul.f32 %v3933, %v3938
    %v3945 = vadd.f32 %v3943, %v3944
    %v3946 = vtanh.pop %v3945
    %v3947 = vmul.f32 %v3942, %v3946
    %v3948 = vmul.f32 %v3947, %v3386
    %v3949 = vsel %vm3389, %v3948, 0.0
    %3950 = vadd.xlane.f32.xlu0 %v3949
    %v3951 = vpop.xlane.xlu0 %3950
    %v3952 = vadd.f32 %v3951, %v3394
    %3953 = vst.msk [vmem:[%s4 + $0x5] sm:$0x1] %vm3397, %v3952
    %v3955 = vsel %vm3279, %v3947, 0
    %3957 = vmatpush.msra.mxu0 0.0
    %3958 = vmatpush.msra.mxu0 0.0
    %3959 = vmatpush.msra.mxu0 0.0
    %3960 = vmatpush.msra.mxu0 0.0
    %3961 = vmatpush.msra.mxu0 0.0
    %3962 = vmatpush.msra.mxu0 0.0
    %3963 = vmatpush.msra.mxu0 0.0
    %3964 = vmatpush.msra.mxu0 0.0
    %3965 = vmatpush.msra.mxu0 0.0
    %3966 = vmatpush.msra.mxu0 0.0
    %3967 = vmatpush.msra.mxu0 0.0
    %3968 = vmatpush.msra.mxu0 %v3187
    %3969 = vmatpush.msra.mxu0 %v3183
    %3970 = vmatpush.msra.mxu0 %v3179
    %3971 = vmatpush.msra.mxu0 %v3175
    %3972 = vmatpush.msra.mxu0 %v3171
    %3973 = vmatmul.f32.gmra.mxu0 %v3955
    %v3974 = vpop.f32.mrf.mxu0
    %v3975 = vadd.f32 0.0, %v3974
    %3976 = vdwg.mxu0
    %3977 = vmatpush.msra.mxu0 0.0
    %3978 = vmatpush.msra.mxu0 0.0
    %3979 = vmatpush.msra.mxu0 0.0
    %3980 = vmatpush.msra.mxu0 0.0
    %3981 = vmatpush.msra.mxu0 0.0
    %3982 = vmatpush.msra.mxu0 0.0
    %3983 = vmatpush.msra.mxu0 0.0
    %3984 = vmatpush.msra.mxu0 0.0
    %3985 = vmatpush.msra.mxu0 0.0
    %3986 = vmatpush.msra.mxu0 0.0
    %3987 = vmatpush.msra.mxu0 0.0
    %3988 = vmatpush.msra.mxu0 %v3188
    %3989 = vmatpush.msra.mxu0 %v3184
    %3990 = vmatpush.msra.mxu0 %v3180
    %3991 = vmatpush.msra.mxu0 %v3176
    %3992 = vmatpush.msra.mxu0 %v3172
    %3993 = vmatmul.f32.gmra.mxu0 %v3955
    %v3994 = vpop.f32.mrf.mxu0
    %v3995 = vadd.f32 0.0, %v3994
    %3996 = vdwg.mxu0
    %3997 = vmatpush.msra.mxu0 0.0
    %3998 = vmatpush.msra.mxu0 0.0
    %3999 = vmatpush.msra.mxu0 0.0
    %4000 = vmatpush.msra.mxu0 0.0
    %4001 = vmatpush.msra.mxu0 0.0
    %4002 = vmatpush.msra.mxu0 0.0
    %4003 = vmatpush.msra.mxu0 0.0
    %4004 = vmatpush.msra.mxu0 0.0
    %4005 = vmatpush.msra.mxu0 0.0
    %4006 = vmatpush.msra.mxu0 0.0
    %4007 = vmatpush.msra.mxu0 0.0
    %4008 = vmatpush.msra.mxu0 %v3189
    %4009 = vmatpush.msra.mxu0 %v3185
    %4010 = vmatpush.msra.mxu0 %v3181
    %4011 = vmatpush.msra.mxu0 %v3177
    %4012 = vmatpush.msra.mxu0 %v3173
    %4013 = vmatmul.f32.gmra.mxu0 %v3955
    %v4014 = vpop.f32.mrf.mxu0
    %v4015 = vadd.f32 0.0, %v4014
    %4016 = vdwg.mxu0
    %4017 = vmatpush.msra.mxu0 0.0
    %4018 = vmatpush.msra.mxu0 0.0
    %4019 = vmatpush.msra.mxu0 0.0
    %4020 = vmatpush.msra.mxu0 0.0
    %4021 = vmatpush.msra.mxu0 0.0
    %4022 = vmatpush.msra.mxu0 0.0
    %4023 = vmatpush.msra.mxu0 0.0
    %4024 = vmatpush.msra.mxu0 0.0
    %4025 = vmatpush.msra.mxu0 0.0
    %4026 = vmatpush.msra.mxu0 0.0
    %4027 = vmatpush.msra.mxu0 0.0
    %4028 = vmatpush.msra.mxu0 %v3190
    %4029 = vmatpush.msra.mxu0 %v3186
    %4030 = vmatpush.msra.mxu0 %v3182
    %4031 = vmatpush.msra.mxu0 %v3178
    %4032 = vmatpush.msra.mxu0 %v3174
    %4033 = vmatmul.f32.gmra.mxu0 %v3955
    %v4034 = vpop.f32.mrf.mxu0
    %v4035 = vadd.f32 0.0, %v4034
    %4036 = vdwg.mxu0
    %v4037 = vadd.f32 %v3217, %v3975
    %v4038 = vadd.f32 %v3237, %v3995
    %v4039 = vadd.f32 %v3257, %v4015
    %v4040 = vadd.f32 %v3277, %v4035
    %v4041 = vmul.f32 %v4037, 0.5
    %v4042 = vtanh.pop %v4041
    %v4043 = vmul.f32 %v4042, 0.5
    %v4044 = vadd.f32 %v4043, 0.5
    %v4045 = vmul.f32 %v4038, 0.5
    %v4046 = vtanh.pop %v4045
    %v4047 = vmul.f32 %v4046, 0.5
    %v4048 = vadd.f32 %v4047, 0.5
    %v4049 = vtanh.pop %v4039
    %v4050 = vmul.f32 %v4040, 0.5
    %v4051 = vtanh.pop %v4050
    %v4052 = vmul.f32 %v4051, 0.5
    %v4053 = vadd.f32 %v4052, 0.5
    %v4054 = vmul.f32 %v4048, %v3945
    %v4055 = vmul.f32 %v4044, %v4049
    %v4056 = vadd.f32 %v4054, %v4055
    %v4057 = vtanh.pop %v4056
    %v4058 = vmul.f32 %v4053, %v4057
    %v4059 = vmul.f32 %v4058, %v3386
    %v4060 = vsel %vm3389, %v4059, 0.0
    %4061 = vadd.xlane.f32.xlu0 %v4060
    %v4062 = vpop.xlane.xlu0 %4061
    %v4063 = vadd.f32 %v4062, %v3394
    %4064 = vst.msk [vmem:[%s4 + $0x6] sm:$0x1] %vm3397, %v4063
    %v4066 = vsel %vm3279, %v4058, 0
    %4068 = vmatpush.msra.mxu0 0.0
    %4069 = vmatpush.msra.mxu0 0.0
    %4070 = vmatpush.msra.mxu0 0.0
    %4071 = vmatpush.msra.mxu0 0.0
    %4072 = vmatpush.msra.mxu0 0.0
    %4073 = vmatpush.msra.mxu0 0.0
    %4074 = vmatpush.msra.mxu0 0.0
    %4075 = vmatpush.msra.mxu0 0.0
    %4076 = vmatpush.msra.mxu0 0.0
    %4077 = vmatpush.msra.mxu0 0.0
    %4078 = vmatpush.msra.mxu0 0.0
    %4079 = vmatpush.msra.mxu0 %v3187
    %4080 = vmatpush.msra.mxu0 %v3183
    %4081 = vmatpush.msra.mxu0 %v3179
    %4082 = vmatpush.msra.mxu0 %v3175
    %4083 = vmatpush.msra.mxu0 %v3171
    %4084 = vmatmul.f32.gmra.mxu0 %v4066
    %v4085 = vpop.f32.mrf.mxu0
    %v4086 = vadd.f32 0.0, %v4085
    %4087 = vdwg.mxu0
    %4088 = vmatpush.msra.mxu0 0.0
    %4089 = vmatpush.msra.mxu0 0.0
    %4090 = vmatpush.msra.mxu0 0.0
    %4091 = vmatpush.msra.mxu0 0.0
    %4092 = vmatpush.msra.mxu0 0.0
    %4093 = vmatpush.msra.mxu0 0.0
    %4094 = vmatpush.msra.mxu0 0.0
    %4095 = vmatpush.msra.mxu0 0.0
    %4096 = vmatpush.msra.mxu0 0.0
    %4097 = vmatpush.msra.mxu0 0.0
    %4098 = vmatpush.msra.mxu0 0.0
    %4099 = vmatpush.msra.mxu0 %v3188
    %4100 = vmatpush.msra.mxu0 %v3184
    %4101 = vmatpush.msra.mxu0 %v3180
    %4102 = vmatpush.msra.mxu0 %v3176
    %4103 = vmatpush.msra.mxu0 %v3172
    %4104 = vmatmul.f32.gmra.mxu0 %v4066
    %v4105 = vpop.f32.mrf.mxu0
    %v4106 = vadd.f32 0.0, %v4105
    %4107 = vdwg.mxu0
    %4108 = vmatpush.msra.mxu0 0.0
    %4109 = vmatpush.msra.mxu0 0.0
    %4110 = vmatpush.msra.mxu0 0.0
    %4111 = vmatpush.msra.mxu0 0.0
    %4112 = vmatpush.msra.mxu0 0.0
    %4113 = vmatpush.msra.mxu0 0.0
    %4114 = vmatpush.msra.mxu0 0.0
    %4115 = vmatpush.msra.mxu0 0.0
    %4116 = vmatpush.msra.mxu0 0.0
    %4117 = vmatpush.msra.mxu0 0.0
    %4118 = vmatpush.msra.mxu0 0.0
    %4119 = vmatpush.msra.mxu0 %v3189
    %4120 = vmatpush.msra.mxu0 %v3185
    %4121 = vmatpush.msra.mxu0 %v3181
    %4122 = vmatpush.msra.mxu0 %v3177
    %4123 = vmatpush.msra.mxu0 %v3173
    %4124 = vmatmul.f32.gmra.mxu0 %v4066
    %v4125 = vpop.f32.mrf.mxu0
    %v4126 = vadd.f32 0.0, %v4125
    %4127 = vdwg.mxu0
    %4128 = vmatpush.msra.mxu0 0.0
    %4129 = vmatpush.msra.mxu0 0.0
    %4130 = vmatpush.msra.mxu0 0.0
    %4131 = vmatpush.msra.mxu0 0.0
    %4132 = vmatpush.msra.mxu0 0.0
    %4133 = vmatpush.msra.mxu0 0.0
    %4134 = vmatpush.msra.mxu0 0.0
    %4135 = vmatpush.msra.mxu0 0.0
    %4136 = vmatpush.msra.mxu0 0.0
    %4137 = vmatpush.msra.mxu0 0.0
    %4138 = vmatpush.msra.mxu0 0.0
    %4139 = vmatpush.msra.mxu0 %v3190
    %4140 = vmatpush.msra.mxu0 %v3186
    %4141 = vmatpush.msra.mxu0 %v3182
    %4142 = vmatpush.msra.mxu0 %v3178
    %4143 = vmatpush.msra.mxu0 %v3174
    %4144 = vmatmul.f32.gmra.mxu0 %v4066
    %v4145 = vpop.f32.mrf.mxu0
    %v4146 = vadd.f32 0.0, %v4145
    %4147 = vdwg.mxu0
    %v4148 = vadd.f32 %v3217, %v4086
    %v4149 = vadd.f32 %v3237, %v4106
    %v4150 = vadd.f32 %v3257, %v4126
    %v4151 = vadd.f32 %v3277, %v4146
    %v4152 = vmul.f32 %v4148, 0.5
    %v4153 = vtanh.pop %v4152
    %v4154 = vmul.f32 %v4153, 0.5
    %v4155 = vadd.f32 %v4154, 0.5
    %v4156 = vmul.f32 %v4149, 0.5
    %v4157 = vtanh.pop %v4156
    %v4158 = vmul.f32 %v4157, 0.5
    %v4159 = vadd.f32 %v4158, 0.5
    %v4160 = vtanh.pop %v4150
    %v4161 = vmul.f32 %v4151, 0.5
    %v4162 = vtanh.pop %v4161
    %v4163 = vmul.f32 %v4162, 0.5
    %v4164 = vadd.f32 %v4163, 0.5
    %v4165 = vmul.f32 %v4159, %v4056
    %v4166 = vmul.f32 %v4155, %v4160
    %v4167 = vadd.f32 %v4165, %v4166
    %v4168 = vtanh.pop %v4167
    %v4169 = vmul.f32 %v4164, %v4168
    %v4170 = vmul.f32 %v4169, %v3386
    %v4171 = vsel %vm3389, %v4170, 0.0
    %4172 = vadd.xlane.f32.xlu0 %v4171
    %v4173 = vpop.xlane.xlu0 %4172
    %v4174 = vadd.f32 %v4173, %v3394
    %4175 = vst.msk [vmem:[%s4 + $0x7] sm:$0x1] %vm3397, %v4174
    // Predicated region
    $region30: #{lnn_autoencoder.1} parent=1 // pred_check
      _
    $region31: #{lnn_autoencoder.1} parent=1 // pred_check_branch
      %4177 = sbr.rel (0) target = $region33
    $region32: #{lnn_autoencoder.1} parent=1 // pred_region
      _
    $region33: #{lnn_autoencoder.1} parent=1 // pred_fallthru
      _
    // Predicated region
    $region34: #{lnn_autoencoder.1} parent=1 // pred_check
      _
    $region35: #{lnn_autoencoder.1} parent=1 // pred_check_branch
      %4179 = sbr.rel (0) target = $region37
    $region36: #{lnn_autoencoder.1} parent=1 // pred_region
      _
    $region37: #{lnn_autoencoder.1} parent=1 // pred_fallthru
      _
    %4180 = vsyncpa [#allocation5], 1
    %4181 = vsyncpa [#allocation7], 1

</llo_original>
